<compile_context>
chip_gen: v7x
topology: tpu7x:2x2x1
jax: 0.10.0
libtpu: 0.0.40
codegen_flags: <defaults>
</compile_context>

<pallas_src>
import jax
import jax.numpy as jnp
from jax import lax
from jax.experimental import pallas as pl
from jax.experimental.pallas import tpu as pltpu

EPS = 1e-5
LANE = 128
SUB = 8  # f32 sublane count


def _round_up(x, m):
    return (x + m - 1) // m * m


# --------------------------------------------------------------------------
# Fused ResBlock kernel (one grid step = one batch element x one spatial tile)
# --------------------------------------------------------------------------
def make_resblock_kernel(Hp, Wp, CP, QT, QE, HALO, S, K1, K1p):
    def kernel(xw_ref, w1_ref, w2_ref, wd_ref, m_ref, o_ref, xcol_ref, h1_ref):
        # ---- conv1 (BN folded, bias via ones-row) over the extended tile
        # range [q0-HALO, q0+QT+HALO): sublane-aligned im2col slab + 1 matmul.
        for kd in range(3):
            for kh in range(3):
                for kw in range(3):
                    tap = (kd * 3 + kh) * 3 + kw
                    off = kd * Hp * Wp + kh * Wp + kw
                    xcol_ref[pl.ds(tap * CP, CP), :] = xw_ref[:, pl.ds(off, QE)]
        if K1p > K1:
            # zero K-pad rows (w1 columns there are zero, but uninitialized
            # VMEM may contain NaN and 0*NaN = NaN in the MXU accumulation)
            xcol_ref[pl.ds(K1, K1p - K1), :] = jnp.zeros((K1p - K1, QE),
                                                         jnp.float32)

        y1 = jnp.dot(w1_ref[...], xcol_ref[...],
                     preferred_element_type=jnp.float32)          # (Cout_p, QE)
        # ReLU, then mask: invalid (halo / pad-column / >=Q) positions become
        # exactly the zero padding conv2 needs.  h1 is fully overwritten.
        h1_ref[...] = jnp.maximum(y1, 0.0) * m_ref[...]

        # ---- conv2 (BN folded) + folded 1x1x1 downsample + bias + ReLU:
        # 27 per-tap matmuls straight from h1 slices (no im2col slab).
        acc = jnp.dot(wd_ref[...], xw_ref[:, pl.ds(HALO + S, QT)],
                      preferred_element_type=jnp.float32)         # residual + b2+bd
        for kd in range(3):
            for kh in range(3):
                for kw in range(3):
                    tap = (kd * 3 + kh) * 3 + kw
                    off = kd * Hp * Wp + kh * Wp + kw
                    acc = acc + jnp.dot(w2_ref[tap],
                                        h1_ref[:, pl.ds(HALO - S + off, QT)],
                                        preferred_element_type=jnp.float32)
        o_ref[...] = jnp.maximum(acc, 0.0).astype(o_ref.dtype)

    return kernel


# --------------------------------------------------------------------------
# Wrapper
# --------------------------------------------------------------------------
def fold_bn(gamma, beta, mean, var):
    s = gamma / jnp.sqrt(var + EPS)
    return s.astype(jnp.float32), (beta - mean * s).astype(jnp.float32)


@jax.jit
def resblock_forward(x_ncdhw, params):
    N, Cin, D, H, W = x_ncdhw.shape
    Cout = params["w1"].shape[0]
    Dp, Hp, Wp = D + 2, H + 2, W + 2

    # Flat "padded-stride" coords: output q = d*Hp*Wp + h*Wp + w reads input
    # taps at x_flat[q + off], off = kd*Hp*Wp + kh*Wp + kw; center tap at q+S.
    S = Hp * Wp + Wp + 1
    MAXOFF = 2 * S
    Q = D * Hp * Wp

    QT = 512                              # output tile (lanes), multiple of 128
    nT = pl.cdiv(Q, QT)
    Qp = nT * QT
    HALO = _round_up(S, LANE)             # conv1 recompute halo for conv2
    QE = QT + 2 * HALO                    # extended conv1 range per tile
    LBX = _round_up(QE + MAXOFF, LANE)    # per-tile x window length (w/ halo)

    CP = _round_up(Cin + 1, SUB)          # packed channels (+1 ones/bias row)
    Cout_p = _round_up(Cout, SUB)
    K1 = 27 * CP
    K1p = _round_up(K1, LANE)

    # ---- fold BN into conv weights / per-channel biases ----
    s1, b1 = fold_bn(*params["bn1"])
    s2, b2 = fold_bn(*params["bn2"])
    sd, bd = fold_bn(*params["bnd"])

    # conv1 weights -> (Cout_p, K1p); b1 rides on the ones-row of the center
    # tap (column 13*CP + Cin) so the same matmul adds the bias for free.
    w1r = jnp.transpose(params["w1"] * s1[:, None, None, None, None],
                        (2, 3, 4, 1, 0)).reshape(27, Cin, Cout)
    blk = jnp.zeros((27, CP, Cout_p), jnp.float32)
    blk = blk.at[:, :Cin, :Cout].set(w1r)
    blk = blk.at[13, Cin, :Cout].set(b1)
    w1m = jnp.zeros((Cout_p, K1p), jnp.float32).at[:, :K1].set(
        blk.reshape(K1, Cout_p).T)

    # conv2 weights -> per-tap (Cout_p, Cout_p) stack
    w2r = jnp.transpose(params["w2"] * s2[:, None, None, None, None],
                        (2, 3, 4, 0, 1)).reshape(27, Cout, Cout)
    w2s = jnp.zeros((27, Cout_p, Cout_p), jnp.float32).at[:, :Cout, :Cout].set(w2r)

    # downsample (1x1x1) weights; total bias b2+bd rides on the ones-row column
    wdm = jnp.zeros((Cout_p, CP), jnp.float32)
    wdm = wdm.at[:Cout, :Cin].set(params["wd"][:, :, 0, 0, 0] * sd[:, None])
    wdm = wdm.at[:Cout, Cin].set(b2 + bd)

    # ---- pack input: zero-padded volume flattened on lanes, HALO-long zero
    # head, channels padded to CP with a constant-1 "bias" row at index Cin ----
    LF = Dp * Hp * Wp
    LINW = max((nT - 1) * QT + LBX, HALO + LF)
    xp = jnp.pad(x_ncdhw.astype(jnp.float32),
                 ((0, 0), (0, 0), (1, 1), (1, 1), (1, 1)))
    x_packed = jnp.zeros((N, CP, LINW), jnp.float32)
    x_packed = x_packed.at[:, :Cin, HALO:HALO + LF].set(xp.reshape(N, Cin, LF))
    x_packed = x_packed.at[:, Cin, :].set(1.0)
    # Materialize per-tile halo windows: every block is a plain Blocked
    # (auto-pipelined) DMA and all in-kernel slices are static.
    x_win = jnp.stack([lax.slice_in_dim(x_packed, t * QT, t * QT + LBX, axis=2)
                       for t in range(nT)], axis=1)        # (N, nT, CP, LBX)

    # per-tile validity mask over the extended conv1 range
    pos = jnp.arange(nT)[:, None] * QT + jnp.arange(QE)[None, :] - HALO
    r = pos % (Hp * Wp)
    valid = (pos >= 0) & (pos < Q) & (r // Wp < H) & (r % Wp < W)
    mask_w = valid.astype(jnp.float32)[:, None, :]          # (nT, 1, QE)

    kernel = make_resblock_kernel(Hp, Wp, CP, QT, QE, HALO, S, K1, K1p)

    # explicit VMEM budget (v7x has only 64 MiB physical / 32 MiB scoped)
    def pb(shape):
        *lead, sdim, ldim = shape
        n = 1
        for a in lead:
            n *= a
        return n * _round_up(sdim, SUB) * _round_up(ldim, LANE) * 4

    vmem_est = (2 * (pb((CP, LBX)) + pb((Cout_p, K1p)) + pb((27, Cout_p, Cout_p))
                     + pb((Cout_p, CP)) + pb((1, QE)) + pb((Cout_p, QT)))
                + pb((K1p, QE)) + pb((Cout_p, QE)))
    vmem_limit = int(min(max(2 * vmem_est + (8 << 20), 32 << 20), 48 << 20))

    out_flat = pl.pallas_call(
        kernel,
        out_shape=jax.ShapeDtypeStruct((N, Cout_p, Qp), jnp.float32),
        grid=(N, nT),
        in_specs=[
            pl.BlockSpec((None, None, CP, LBX), lambda n, t: (n, t, 0, 0)),
            pl.BlockSpec((Cout_p, K1p), lambda n, t: (0, 0)),
            pl.BlockSpec((27, Cout_p, Cout_p), lambda n, t: (0, 0, 0)),
            pl.BlockSpec((Cout_p, CP), lambda n, t: (0, 0)),
            pl.BlockSpec((None, 1, QE), lambda n, t: (t, 0, 0)),
        ],
        out_specs=pl.BlockSpec((None, Cout_p, QT), lambda n, t: (n, 0, t)),
        scratch_shapes=[
            pltpu.VMEM((K1p, QE), jnp.float32),      # conv1 im2col slab
            pltpu.VMEM((Cout_p, QE), jnp.float32),   # conv1 activation (+halo)
        ],
        compiler_params=pltpu.CompilerParams(
            dimension_semantics=("parallel", "parallel"),
            vmem_limit_bytes=vmem_limit),
    )(x_win, w1m, w2s, wdm, mask_w)

    # De-pad: drop channel padding, positions >= Q and the H/W pad columns.
    # TODO(synk): at large volumes hand the padded (Cout_p, Qp) layout to the
    #             consumer instead of this extra HBM round-trip.
    out = out_flat[:, :Cout, :Q].reshape(N, Cout, D, Hp, Wp)[:, :, :, :H, :W]
    return out


# --------------------------------------------------------------------------
# Pure-JAX reference (mirrors the PyTorch module in eval mode)
# --------------------------------------------------------------------------
def ref_resblock(x, params):
    dn = ("NCDHW", "OIDHW", "NCDHW")

    def bn(y, stats):
        g, b, m, v = stats
        rs = lambda a: a[None, :, None, None, None]
        return (y - rs(m)) / jnp.sqrt(rs(v) + EPS) * rs(g) + rs(b)

    out = lax.conv_general_dilated(x, params["w1"], (1, 1, 1),
                                   [(1, 1)] * 3, dimension_numbers=dn)
    out = jnp.maximum(bn(out, params["bn1"]), 0.0)
    out = lax.conv_general_dilated(out, params["w2"], (1, 1, 1),
                                   [(1, 1)] * 3, dimension_numbers=dn)
    out = bn(out, params["bn2"])
    res = lax.conv_general_dilated(x, params["wd"], (1, 1, 1),
                                   [(0, 0)] * 3, dimension_numbers=dn)
    res = bn(res, params["bnd"])
    return jnp.maximum(out + res, 0.0)


# --------------------------------------------------------------------------
# Main
# --------------------------------------------------------------------------
if __name__ == "__main__":
    key = jax.random.PRNGKey(0)
    ks = jax.random.split(key, 8)

    N, Cin, Cout, D, H, W = 2, 4, 8, 8, 8, 8

    x = jax.random.normal(ks[0], (N, Cin, D, H, W), jnp.float32)

    w1 = jax.random.normal(ks[1], (Cout, Cin, 3, 3, 3), jnp.float32) * 0.1
    w2 = jax.random.normal(ks[2], (Cout, Cout, 3, 3, 3), jnp.float32) * 0.1
    wd = jax.random.normal(ks[3], (Cout, Cin, 1, 1, 1), jnp.float32) * 0.1

    def bn_params(k, c):
        k1, k2, k3, k4 = jax.random.split(k, 4)
        gamma = 0.5 + jax.random.uniform(k1, (c,), jnp.float32)
        beta = 0.1 * jax.random.normal(k2, (c,), jnp.float32)
        mean = 0.1 * jax.random.normal(k3, (c,), jnp.float32)
        var = 0.5 + jax.random.uniform(k4, (c,), jnp.float32)
        return (gamma, beta, mean, var)

    params = {
        "w1": w1,
        "w2": w2,
        "wd": wd,
        "bn1": bn_params(ks[4], Cout),
        "bn2": bn_params(ks[5], Cout),
        "bnd": bn_params(ks[6], Cout),
    }

    y = jax.block_until_ready(resblock_forward(x, params))

    y_ref = ref_resblock(x, params)
    err = float(jnp.max(jnp.abs(y - y_ref)))
    assert y.shape == (N, Cout, D, H, W), y.shape
    assert err < 2e-3, f"max abs error {err}"

    print("KERNEL_OK")
</pallas_src>

<mosaic_0001>
module attributes {stable_mosaic.version = 11 : i64} {
  func.func @kernel(%arg0: i32, %arg1: i32, %arg2: memref<1x1x8x1024xf32, #tpu.memory_space<vmem>>, %arg3: memref<8x256xf32, #tpu.memory_space<vmem>>, %arg4: memref<27x8x8xf32, #tpu.memory_space<vmem>>, %arg5: memref<8x8xf32, #tpu.memory_space<vmem>>, %arg6: memref<1x1x768xf32, #tpu.memory_space<vmem>>, %arg7: memref<1x8x512xf32, #tpu.memory_space<vmem>>, %arg8: memref<256x768xf32, #tpu.memory_space<vmem>>, %arg9: memref<8x768xf32, #tpu.memory_space<vmem>>) attributes {dimension_semantics = [#tpu.dimension_semantics<parallel>, #tpu.dimension_semantics<parallel>], iteration_bounds = array<i64: 2, 2>, scalar_prefetch = 0 : i64, scratch_operands = 2 : i64, tpu.core_type = #tpu.core_type<tc>, window_params = [{transform_indices = @transform_0, window_bounds = array<i64: 1, 1, 8, 1024>}, {pipeline_mode = #tpu.pipeline_mode<synchronous>, transform_indices = @transform_1, window_bounds = array<i64: 8, 256>}, {pipeline_mode = #tpu.pipeline_mode<synchronous>, transform_indices = @transform_2, window_bounds = array<i64: 27, 8, 8>}, {pipeline_mode = #tpu.pipeline_mode<synchronous>, transform_indices = @transform_3, window_bounds = array<i64: 8, 8>}, {transform_indices = @transform_4, window_bounds = array<i64: 1, 1, 768>}, {transform_indices = @transform_5, window_bounds = array<i64: 1, 8, 512>}]} {
    %c0 = arith.constant 0 : index
    %c0_0 = arith.constant 0 : index
    %c0_1 = arith.constant 0 : index
    %c0_2 = arith.constant 0 : index
    %0 = vector.load %arg2[%c0, %c0_0, %c0_1, %c0_2] : memref<1x1x8x1024xf32, #tpu.memory_space<vmem>>, vector<1x1x8x768xf32>
    %1 = vector.shape_cast %0 : vector<1x1x8x768xf32> to vector<8x768xf32>
    %c0_3 = arith.constant 0 : index
    %c0_4 = arith.constant 0 : index
    %2 = vector.load %arg8[%c0_3, %c0_4] : memref<256x768xf32, #tpu.memory_space<vmem>>, vector<8x768xf32>
    tpu.vector_store %arg8[%c0_3, %c0_4], %1 {strides = array<i32>} : memref<256x768xf32, #tpu.memory_space<vmem>>, vector<8x768xf32>,
    %c0_5 = arith.constant 0 : index
    %c0_6 = arith.constant 0 : index
    %c0_7 = arith.constant 0 : index
    %c1 = arith.constant 1 : index
    %3 = vector.load %arg2[%c0_5, %c0_6, %c0_7, %c1] : memref<1x1x8x1024xf32, #tpu.memory_space<vmem>>, vector<1x1x8x768xf32>
    %4 = vector.shape_cast %3 : vector<1x1x8x768xf32> to vector<8x768xf32>
    %c8 = arith.constant 8 : index
    %c0_8 = arith.constant 0 : index
    %5 = vector.load %arg8[%c8, %c0_8] : memref<256x768xf32, #tpu.memory_space<vmem>>, vector<8x768xf32>
    tpu.vector_store %arg8[%c8, %c0_8], %4 {strides = array<i32>} : memref<256x768xf32, #tpu.memory_space<vmem>>, vector<8x768xf32>,
    %c0_9 = arith.constant 0 : index
    %c0_10 = arith.constant 0 : index
    %c0_11 = arith.constant 0 : index
    %c2 = arith.constant 2 : index
    %6 = vector.load %arg2[%c0_9, %c0_10, %c0_11, %c2] : memref<1x1x8x1024xf32, #tpu.memory_space<vmem>>, vector<1x1x8x768xf32>
    %7 = vector.shape_cast %6 : vector<1x1x8x768xf32> to vector<8x768xf32>
    %c16 = arith.constant 16 : index
    %c0_12 = arith.constant 0 : index
    %8 = vector.load %arg8[%c16, %c0_12] : memref<256x768xf32, #tpu.memory_space<vmem>>, vector<8x768xf32>
    tpu.vector_store %arg8[%c16, %c0_12], %7 {strides = array<i32>} : memref<256x768xf32, #tpu.memory_space<vmem>>, vector<8x768xf32>,
    %c0_13 = arith.constant 0 : index
    %c0_14 = arith.constant 0 : index
    %c0_15 = arith.constant 0 : index
    %c10 = arith.constant 10 : index
    %9 = vector.load %arg2[%c0_13, %c0_14, %c0_15, %c10] : memref<1x1x8x1024xf32, #tpu.memory_space<vmem>>, vector<1x1x8x768xf32>
    %10 = vector.shape_cast %9 : vector<1x1x8x768xf32> to vector<8x768xf32>
    %c24 = arith.constant 24 : index
    %c0_16 = arith.constant 0 : index
    %11 = vector.load %arg8[%c24, %c0_16] : memref<256x768xf32, #tpu.memory_space<vmem>>, vector<8x768xf32>
    tpu.vector_store %arg8[%c24, %c0_16], %10 {strides = array<i32>} : memref<256x768xf32, #tpu.memory_space<vmem>>, vector<8x768xf32>,
    %c0_17 = arith.constant 0 : index
    %c0_18 = arith.constant 0 : index
    %c0_19 = arith.constant 0 : index
    %c11 = arith.constant 11 : index
    %12 = vector.load %arg2[%c0_17, %c0_18, %c0_19, %c11] : memref<1x1x8x1024xf32, #tpu.memory_space<vmem>>, vector<1x1x8x768xf32>
    %13 = vector.shape_cast %12 : vector<1x1x8x768xf32> to vector<8x768xf32>
    %c32 = arith.constant 32 : index
    %c0_20 = arith.constant 0 : index
    %14 = vector.load %arg8[%c32, %c0_20] : memref<256x768xf32, #tpu.memory_space<vmem>>, vector<8x768xf32>
    tpu.vector_store %arg8[%c32, %c0_20], %13 {strides = array<i32>} : memref<256x768xf32, #tpu.memory_space<vmem>>, vector<8x768xf32>,
    %c0_21 = arith.constant 0 : index
    %c0_22 = arith.constant 0 : index
    %c0_23 = arith.constant 0 : index
    %c12 = arith.constant 12 : index
    %15 = vector.load %arg2[%c0_21, %c0_22, %c0_23, %c12] : memref<1x1x8x1024xf32, #tpu.memory_space<vmem>>, vector<1x1x8x768xf32>
    %16 = vector.shape_cast %15 : vector<1x1x8x768xf32> to vector<8x768xf32>
    %c40 = arith.constant 40 : index
    %c0_24 = arith.constant 0 : index
    %17 = vector.load %arg8[%c40, %c0_24] : memref<256x768xf32, #tpu.memory_space<vmem>>, vector<8x768xf32>
    tpu.vector_store %arg8[%c40, %c0_24], %16 {strides = array<i32>} : memref<256x768xf32, #tpu.memory_space<vmem>>, vector<8x768xf32>,
    %c0_25 = arith.constant 0 : index
    %c0_26 = arith.constant 0 : index
    %c0_27 = arith.constant 0 : index
    %c20 = arith.constant 20 : index
    %18 = vector.load %arg2[%c0_25, %c0_26, %c0_27, %c20] : memref<1x1x8x1024xf32, #tpu.memory_space<vmem>>, vector<1x1x8x768xf32>
    %19 = vector.shape_cast %18 : vector<1x1x8x768xf32> to vector<8x768xf32>
    %c48 = arith.constant 48 : index
    %c0_28 = arith.constant 0 : index
    %20 = vector.load %arg8[%c48, %c0_28] : memref<256x768xf32, #tpu.memory_space<vmem>>, vector<8x768xf32>
    tpu.vector_store %arg8[%c48, %c0_28], %19 {strides = array<i32>} : memref<256x768xf32, #tpu.memory_space<vmem>>, vector<8x768xf32>,
    %c0_29 = arith.constant 0 : index
    %c0_30 = arith.constant 0 : index
    %c0_31 = arith.constant 0 : index
    %c21 = arith.constant 21 : index
    %21 = vector.load %arg2[%c0_29, %c0_30, %c0_31, %c21] : memref<1x1x8x1024xf32, #tpu.memory_space<vmem>>, vector<1x1x8x768xf32>
    %22 = vector.shape_cast %21 : vector<1x1x8x768xf32> to vector<8x768xf32>
    %c56 = arith.constant 56 : index
    %c0_32 = arith.constant 0 : index
    %23 = vector.load %arg8[%c56, %c0_32] : memref<256x768xf32, #tpu.memory_space<vmem>>, vector<8x768xf32>
    tpu.vector_store %arg8[%c56, %c0_32], %22 {strides = array<i32>} : memref<256x768xf32, #tpu.memory_space<vmem>>, vector<8x768xf32>,
    %c0_33 = arith.constant 0 : index
    %c0_34 = arith.constant 0 : index
    %c0_35 = arith.constant 0 : index
    %c22 = arith.constant 22 : index
    %24 = vector.load %arg2[%c0_33, %c0_34, %c0_35, %c22] : memref<1x1x8x1024xf32, #tpu.memory_space<vmem>>, vector<1x1x8x768xf32>
    %25 = vector.shape_cast %24 : vector<1x1x8x768xf32> to vector<8x768xf32>
    %c64 = arith.constant 64 : index
    %c0_36 = arith.constant 0 : index
    %26 = vector.load %arg8[%c64, %c0_36] : memref<256x768xf32, #tpu.memory_space<vmem>>, vector<8x768xf32>
    tpu.vector_store %arg8[%c64, %c0_36], %25 {strides = array<i32>} : memref<256x768xf32, #tpu.memory_space<vmem>>, vector<8x768xf32>,
    %c0_37 = arith.constant 0 : index
    %c0_38 = arith.constant 0 : index
    %c0_39 = arith.constant 0 : index
    %c100 = arith.constant 100 : index
    %27 = vector.load %arg2[%c0_37, %c0_38, %c0_39, %c100] : memref<1x1x8x1024xf32, #tpu.memory_space<vmem>>, vector<1x1x8x768xf32>
    %28 = vector.shape_cast %27 : vector<1x1x8x768xf32> to vector<8x768xf32>
    %c72 = arith.constant 72 : index
    %c0_40 = arith.constant 0 : index
    %29 = vector.load %arg8[%c72, %c0_40] : memref<256x768xf32, #tpu.memory_space<vmem>>, vector<8x768xf32>
    tpu.vector_store %arg8[%c72, %c0_40], %28 {strides = array<i32>} : memref<256x768xf32, #tpu.memory_space<vmem>>, vector<8x768xf32>,
    %c0_41 = arith.constant 0 : index
    %c0_42 = arith.constant 0 : index
    %c0_43 = arith.constant 0 : index
    %c101 = arith.constant 101 : index
    %30 = vector.load %arg2[%c0_41, %c0_42, %c0_43, %c101] : memref<1x1x8x1024xf32, #tpu.memory_space<vmem>>, vector<1x1x8x768xf32>
    %31 = vector.shape_cast %30 : vector<1x1x8x768xf32> to vector<8x768xf32>
    %c80 = arith.constant 80 : index
    %c0_44 = arith.constant 0 : index
    %32 = vector.load %arg8[%c80, %c0_44] : memref<256x768xf32, #tpu.memory_space<vmem>>, vector<8x768xf32>
    tpu.vector_store %arg8[%c80, %c0_44], %31 {strides = array<i32>} : memref<256x768xf32, #tpu.memory_space<vmem>>, vector<8x768xf32>,
    %c0_45 = arith.constant 0 : index
    %c0_46 = arith.constant 0 : index
    %c0_47 = arith.constant 0 : index
    %c102 = arith.constant 102 : index
    %33 = vector.load %arg2[%c0_45, %c0_46, %c0_47, %c102] : memref<1x1x8x1024xf32, #tpu.memory_space<vmem>>, vector<1x1x8x768xf32>
    %34 = vector.shape_cast %33 : vector<1x1x8x768xf32> to vector<8x768xf32>
    %c88 = arith.constant 88 : index
    %c0_48 = arith.constant 0 : index
    %35 = vector.load %arg8[%c88, %c0_48] : memref<256x768xf32, #tpu.memory_space<vmem>>, vector<8x768xf32>
    tpu.vector_store %arg8[%c88, %c0_48], %34 {strides = array<i32>} : memref<256x768xf32, #tpu.memory_space<vmem>>, vector<8x768xf32>,
    %c0_49 = arith.constant 0 : index
    %c0_50 = arith.constant 0 : index
    %c0_51 = arith.constant 0 : index
    %c110 = arith.constant 110 : index
    %36 = vector.load %arg2[%c0_49, %c0_50, %c0_51, %c110] : memref<1x1x8x1024xf32, #tpu.memory_space<vmem>>, vector<1x1x8x768xf32>
    %37 = vector.shape_cast %36 : vector<1x1x8x768xf32> to vector<8x768xf32>
    %c96 = arith.constant 96 : index
    %c0_52 = arith.constant 0 : index
    %38 = vector.load %arg8[%c96, %c0_52] : memref<256x768xf32, #tpu.memory_space<vmem>>, vector<8x768xf32>
    tpu.vector_store %arg8[%c96, %c0_52], %37 {strides = array<i32>} : memref<256x768xf32, #tpu.memory_space<vmem>>, vector<8x768xf32>,
    %c0_53 = arith.constant 0 : index
    %c0_54 = arith.constant 0 : index
    %c0_55 = arith.constant 0 : index
    %c111 = arith.constant 111 : index
    %39 = vector.load %arg2[%c0_53, %c0_54, %c0_55, %c111] : memref<1x1x8x1024xf32, #tpu.memory_space<vmem>>, vector<1x1x8x768xf32>
    %40 = vector.shape_cast %39 : vector<1x1x8x768xf32> to vector<8x768xf32>
    %c104 = arith.constant 104 : index
    %c0_56 = arith.constant 0 : index
    %41 = vector.load %arg8[%c104, %c0_56] : memref<256x768xf32, #tpu.memory_space<vmem>>, vector<8x768xf32>
    tpu.vector_store %arg8[%c104, %c0_56], %40 {strides = array<i32>} : memref<256x768xf32, #tpu.memory_space<vmem>>, vector<8x768xf32>,
    %c0_57 = arith.constant 0 : index
    %c0_58 = arith.constant 0 : index
    %c0_59 = arith.constant 0 : index
    %c112 = arith.constant 112 : index
    %42 = vector.load %arg2[%c0_57, %c0_58, %c0_59, %c112] : memref<1x1x8x1024xf32, #tpu.memory_space<vmem>>, vector<1x1x8x768xf32>
    %43 = vector.shape_cast %42 : vector<1x1x8x768xf32> to vector<8x768xf32>
    %c112_60 = arith.constant 112 : index
    %c0_61 = arith.constant 0 : index
    %44 = vector.load %arg8[%c112_60, %c0_61] : memref<256x768xf32, #tpu.memory_space<vmem>>, vector<8x768xf32>
    tpu.vector_store %arg8[%c112_60, %c0_61], %43 {strides = array<i32>} : memref<256x768xf32, #tpu.memory_space<vmem>>, vector<8x768xf32>,
    %c0_62 = arith.constant 0 : index
    %c0_63 = arith.constant 0 : index
    %c0_64 = arith.constant 0 : index
    %c120 = arith.constant 120 : index
    %45 = vector.load %arg2[%c0_62, %c0_63, %c0_64, %c120] : memref<1x1x8x1024xf32, #tpu.memory_space<vmem>>, vector<1x1x8x768xf32>
    %46 = vector.shape_cast %45 : vector<1x1x8x768xf32> to vector<8x768xf32>
    %c120_65 = arith.constant 120 : index
    %c0_66 = arith.constant 0 : index
    %47 = vector.load %arg8[%c120_65, %c0_66] : memref<256x768xf32, #tpu.memory_space<vmem>>, vector<8x768xf32>
    tpu.vector_store %arg8[%c120_65, %c0_66], %46 {strides = array<i32>} : memref<256x768xf32, #tpu.memory_space<vmem>>, vector<8x768xf32>,
    %c0_67 = arith.constant 0 : index
    %c0_68 = arith.constant 0 : index
    %c0_69 = arith.constant 0 : index
    %c121 = arith.constant 121 : index
    %48 = vector.load %arg2[%c0_67, %c0_68, %c0_69, %c121] : memref<1x1x8x1024xf32, #tpu.memory_space<vmem>>, vector<1x1x8x768xf32>
    %49 = vector.shape_cast %48 : vector<1x1x8x768xf32> to vector<8x768xf32>
    %c128 = arith.constant 128 : index
    %c0_70 = arith.constant 0 : index
    %50 = vector.load %arg8[%c128, %c0_70] : memref<256x768xf32, #tpu.memory_space<vmem>>, vector<8x768xf32>
    tpu.vector_store %arg8[%c128, %c0_70], %49 {strides = array<i32>} : memref<256x768xf32, #tpu.memory_space<vmem>>, vector<8x768xf32>,
    %c0_71 = arith.constant 0 : index
    %c0_72 = arith.constant 0 : index
    %c0_73 = arith.constant 0 : index
    %c122 = arith.constant 122 : index
    %51 = vector.load %arg2[%c0_71, %c0_72, %c0_73, %c122] : memref<1x1x8x1024xf32, #tpu.memory_space<vmem>>, vector<1x1x8x768xf32>
    %52 = vector.shape_cast %51 : vector<1x1x8x768xf32> to vector<8x768xf32>
    %c136 = arith.constant 136 : index
    %c0_74 = arith.constant 0 : index
    %53 = vector.load %arg8[%c136, %c0_74] : memref<256x768xf32, #tpu.memory_space<vmem>>, vector<8x768xf32>
    tpu.vector_store %arg8[%c136, %c0_74], %52 {strides = array<i32>} : memref<256x768xf32, #tpu.memory_space<vmem>>, vector<8x768xf32>,
    %c0_75 = arith.constant 0 : index
    %c0_76 = arith.constant 0 : index
    %c0_77 = arith.constant 0 : index
    %c200 = arith.constant 200 : index
    %54 = vector.load %arg2[%c0_75, %c0_76, %c0_77, %c200] : memref<1x1x8x1024xf32, #tpu.memory_space<vmem>>, vector<1x1x8x768xf32>
    %55 = vector.shape_cast %54 : vector<1x1x8x768xf32> to vector<8x768xf32>
    %c144 = arith.constant 144 : index
    %c0_78 = arith.constant 0 : index
    %56 = vector.load %arg8[%c144, %c0_78] : memref<256x768xf32, #tpu.memory_space<vmem>>, vector<8x768xf32>
    tpu.vector_store %arg8[%c144, %c0_78], %55 {strides = array<i32>} : memref<256x768xf32, #tpu.memory_space<vmem>>, vector<8x768xf32>,
    %c0_79 = arith.constant 0 : index
    %c0_80 = arith.constant 0 : index
    %c0_81 = arith.constant 0 : index
    %c201 = arith.constant 201 : index
    %57 = vector.load %arg2[%c0_79, %c0_80, %c0_81, %c201] : memref<1x1x8x1024xf32, #tpu.memory_space<vmem>>, vector<1x1x8x768xf32>
    %58 = vector.shape_cast %57 : vector<1x1x8x768xf32> to vector<8x768xf32>
    %c152 = arith.constant 152 : index
    %c0_82 = arith.constant 0 : index
    %59 = vector.load %arg8[%c152, %c0_82] : memref<256x768xf32, #tpu.memory_space<vmem>>, vector<8x768xf32>
    tpu.vector_store %arg8[%c152, %c0_82], %58 {strides = array<i32>} : memref<256x768xf32, #tpu.memory_space<vmem>>, vector<8x768xf32>,
    %c0_83 = arith.constant 0 : index
    %c0_84 = arith.constant 0 : index
    %c0_85 = arith.constant 0 : index
    %c202 = arith.constant 202 : index
    %60 = vector.load %arg2[%c0_83, %c0_84, %c0_85, %c202] : memref<1x1x8x1024xf32, #tpu.memory_space<vmem>>, vector<1x1x8x768xf32>
    %61 = vector.shape_cast %60 : vector<1x1x8x768xf32> to vector<8x768xf32>
    %c160 = arith.constant 160 : index
    %c0_86 = arith.constant 0 : index
    %62 = vector.load %arg8[%c160, %c0_86] : memref<256x768xf32, #tpu.memory_space<vmem>>, vector<8x768xf32>
    tpu.vector_store %arg8[%c160, %c0_86], %61 {strides = array<i32>} : memref<256x768xf32, #tpu.memory_space<vmem>>, vector<8x768xf32>,
    %c0_87 = arith.constant 0 : index
    %c0_88 = arith.constant 0 : index
    %c0_89 = arith.constant 0 : index
    %c210 = arith.constant 210 : index
    %63 = vector.load %arg2[%c0_87, %c0_88, %c0_89, %c210] : memref<1x1x8x1024xf32, #tpu.memory_space<vmem>>, vector<1x1x8x768xf32>
    %64 = vector.shape_cast %63 : vector<1x1x8x768xf32> to vector<8x768xf32>
    %c168 = arith.constant 168 : index
    %c0_90 = arith.constant 0 : index
    %65 = vector.load %arg8[%c168, %c0_90] : memref<256x768xf32, #tpu.memory_space<vmem>>, vector<8x768xf32>
    tpu.vector_store %arg8[%c168, %c0_90], %64 {strides = array<i32>} : memref<256x768xf32, #tpu.memory_space<vmem>>, vector<8x768xf32>,
    %c0_91 = arith.constant 0 : index
    %c0_92 = arith.constant 0 : index
    %c0_93 = arith.constant 0 : index
    %c211 = arith.constant 211 : index
    %66 = vector.load %arg2[%c0_91, %c0_92, %c0_93, %c211] : memref<1x1x8x1024xf32, #tpu.memory_space<vmem>>, vector<1x1x8x768xf32>
    %67 = vector.shape_cast %66 : vector<1x1x8x768xf32> to vector<8x768xf32>
    %c176 = arith.constant 176 : index
    %c0_94 = arith.constant 0 : index
    %68 = vector.load %arg8[%c176, %c0_94] : memref<256x768xf32, #tpu.memory_space<vmem>>, vector<8x768xf32>
    tpu.vector_store %arg8[%c176, %c0_94], %67 {strides = array<i32>} : memref<256x768xf32, #tpu.memory_space<vmem>>, vector<8x768xf32>,
    %c0_95 = arith.constant 0 : index
    %c0_96 = arith.constant 0 : index
    %c0_97 = arith.constant 0 : index
    %c212 = arith.constant 212 : index
    %69 = vector.load %arg2[%c0_95, %c0_96, %c0_97, %c212] : memref<1x1x8x1024xf32, #tpu.memory_space<vmem>>, vector<1x1x8x768xf32>
    %70 = vector.shape_cast %69 : vector<1x1x8x768xf32> to vector<8x768xf32>
    %c184 = arith.constant 184 : index
    %c0_98 = arith.constant 0 : index
    %71 = vector.load %arg8[%c184, %c0_98] : memref<256x768xf32, #tpu.memory_space<vmem>>, vector<8x768xf32>
    tpu.vector_store %arg8[%c184, %c0_98], %70 {strides = array<i32>} : memref<256x768xf32, #tpu.memory_space<vmem>>, vector<8x768xf32>,
    %c0_99 = arith.constant 0 : index
    %c0_100 = arith.constant 0 : index
    %c0_101 = arith.constant 0 : index
    %c220 = arith.constant 220 : index
    %72 = vector.load %arg2[%c0_99, %c0_100, %c0_101, %c220] : memref<1x1x8x1024xf32, #tpu.memory_space<vmem>>, vector<1x1x8x768xf32>
    %73 = vector.shape_cast %72 : vector<1x1x8x768xf32> to vector<8x768xf32>
    %c192 = arith.constant 192 : index
    %c0_102 = arith.constant 0 : index
    %74 = vector.load %arg8[%c192, %c0_102] : memref<256x768xf32, #tpu.memory_space<vmem>>, vector<8x768xf32>
    tpu.vector_store %arg8[%c192, %c0_102], %73 {strides = array<i32>} : memref<256x768xf32, #tpu.memory_space<vmem>>, vector<8x768xf32>,
    %c0_103 = arith.constant 0 : index
    %c0_104 = arith.constant 0 : index
    %c0_105 = arith.constant 0 : index
    %c221 = arith.constant 221 : index
    %75 = vector.load %arg2[%c0_103, %c0_104, %c0_105, %c221] : memref<1x1x8x1024xf32, #tpu.memory_space<vmem>>, vector<1x1x8x768xf32>
    %76 = vector.shape_cast %75 : vector<1x1x8x768xf32> to vector<8x768xf32>
    %c200_106 = arith.constant 200 : index
    %c0_107 = arith.constant 0 : index
    %77 = vector.load %arg8[%c200_106, %c0_107] : memref<256x768xf32, #tpu.memory_space<vmem>>, vector<8x768xf32>
    tpu.vector_store %arg8[%c200_106, %c0_107], %76 {strides = array<i32>} : memref<256x768xf32, #tpu.memory_space<vmem>>, vector<8x768xf32>,
    %c0_108 = arith.constant 0 : index
    %c0_109 = arith.constant 0 : index
    %c0_110 = arith.constant 0 : index
    %c222 = arith.constant 222 : index
    %78 = vector.load %arg2[%c0_108, %c0_109, %c0_110, %c222] : memref<1x1x8x1024xf32, #tpu.memory_space<vmem>>, vector<1x1x8x768xf32>
    %79 = vector.shape_cast %78 : vector<1x1x8x768xf32> to vector<8x768xf32>
    %c208 = arith.constant 208 : index
    %c0_111 = arith.constant 0 : index
    %80 = vector.load %arg8[%c208, %c0_111] : memref<256x768xf32, #tpu.memory_space<vmem>>, vector<8x768xf32>
    tpu.vector_store %arg8[%c208, %c0_111], %79 {strides = array<i32>} : memref<256x768xf32, #tpu.memory_space<vmem>>, vector<8x768xf32>,
    %cst = arith.constant 0.000000e+00 : f32
    %81 = vector.broadcast %cst : f32 to vector<40x768xf32>
    %c216 = arith.constant 216 : index
    %c0_112 = arith.constant 0 : index
    %82 = vector.load %arg8[%c216, %c0_112] : memref<256x768xf32, #tpu.memory_space<vmem>>, vector<40x768xf32>
    tpu.vector_store %arg8[%c216, %c0_112], %81 {strides = array<i32>} : memref<256x768xf32, #tpu.memory_space<vmem>>, vector<40x768xf32>,
    %c0_113 = arith.constant 0 : index
    %c0_114 = arith.constant 0 : index
    %83 = vector.load %arg3[%c0_113, %c0_114] : memref<8x256xf32, #tpu.memory_space<vmem>>, vector<8x256xf32>
    %c0_115 = arith.constant 0 : index
    %c0_116 = arith.constant 0 : index
    %84 = vector.load %arg8[%c0_115, %c0_116] : memref<256x768xf32, #tpu.memory_space<vmem>>, vector<256x768xf32>
    %cst_117 = arith.constant dense<0.000000e+00> : vector<8x768xf32>
    %85 = tpu.matmul %83, %84, %cst_117 {dimension_numbers = #tpu.dot_dimension_numbers<[1], [0], [0], [1], [0, 0, 1, 1], [], []>} : vector<8x256xf32>, vector<256x768xf32>, vector<8x768xf32> -> vector<8x768xf32>
    %cst_118 = arith.constant 0.000000e+00 : f32
    %86 = vector.broadcast %cst_118 : f32 to vector<8x768xf32>
    %87 = arith.maximumf %85, %86 : vector<8x768xf32>
    %c0_119 = arith.constant 0 : index
    %c0_120 = arith.constant 0 : index
    %c0_121 = arith.constant 0 : index
    %88 = vector.load %arg6[%c0_119, %c0_120, %c0_121] : memref<1x1x768xf32, #tpu.memory_space<vmem>>, vector<1x1x768xf32>
    %89 = vector.shape_cast %88 : vector<1x1x768xf32> to vector<1x768xf32>
    %90 = vector.broadcast %89 : vector<1x768xf32> to vector<8x768xf32>
    %91 = arith.mulf %87, %90 : vector<8x768xf32>
    %c0_122 = arith.constant 0 : index
    %c0_123 = arith.constant 0 : index
    %92 = vector.load %arg9[%c0_122, %c0_123] : memref<8x768xf32, #tpu.memory_space<vmem>>, vector<8x768xf32>
    tpu.vector_store %arg9[%c0_122, %c0_123], %91 {strides = array<i32>} : memref<8x768xf32, #tpu.memory_space<vmem>>, vector<8x768xf32>,
    %c0_124 = arith.constant 0 : index
    %c0_125 = arith.constant 0 : index
    %93 = vector.load %arg5[%c0_124, %c0_125] : memref<8x8xf32, #tpu.memory_space<vmem>>, vector<8x8xf32>
    %c0_126 = arith.constant 0 : index
    %c0_127 = arith.constant 0 : index
    %c0_128 = arith.constant 0 : index
    %c239 = arith.constant 239 : index
    %94 = vector.load %arg2[%c0_126, %c0_127, %c0_128, %c239] : memref<1x1x8x1024xf32, #tpu.memory_space<vmem>>, vector<1x1x8x512xf32>
    %95 = vector.shape_cast %94 : vector<1x1x8x512xf32> to vector<8x512xf32>
    %cst_129 = arith.constant dense<0.000000e+00> : vector<8x512xf32>
    %96 = tpu.matmul %93, %95, %cst_129 {dimension_numbers = #tpu.dot_dimension_numbers<[1], [0], [0], [1], [0, 0, 1, 1], [], []>} : vector<8x8xf32>, vector<8x512xf32>, vector<8x512xf32> -> vector<8x512xf32>
    %c0_130 = arith.constant 0 : index
    %c0_131 = arith.constant 0 : index
    %c0_132 = arith.constant 0 : index
    %97 = vector.load %arg4[%c0_130, %c0_131, %c0_132] : memref<27x8x8xf32, #tpu.memory_space<vmem>>, vector<1x8x8xf32>
    %98 = vector.shape_cast %97 : vector<1x8x8xf32> to vector<8x8xf32>
    %c0_133 = arith.constant 0 : index
    %c17 = arith.constant 17 : index
    %99 = vector.load %arg9[%c0_133, %c17] : memref<8x768xf32, #tpu.memory_space<vmem>>, vector<8x512xf32>
    %cst_134 = arith.constant dense<0.000000e+00> : vector<8x512xf32>
    %100 = tpu.matmul %98, %99, %cst_134 {dimension_numbers = #tpu.dot_dimension_numbers<[1], [0], [0], [1], [0, 0, 1, 1], [], []>} : vector<8x8xf32>, vector<8x512xf32>, vector<8x512xf32> -> vector<8x512xf32>
    %101 = arith.addf %96, %100 : vector<8x512xf32>
    %c1_135 = arith.constant 1 : index
    %c0_136 = arith.constant 0 : index
    %c0_137 = arith.constant 0 : index
    %102 = vector.load %arg4[%c1_135, %c0_136, %c0_137] : memref<27x8x8xf32, #tpu.memory_space<vmem>>, vector<1x8x8xf32>
    %103 = vector.shape_cast %102 : vector<1x8x8xf32> to vector<8x8xf32>
    %c0_138 = arith.constant 0 : index
    %c18 = arith.constant 18 : index
    %104 = vector.load %arg9[%c0_138, %c18] : memref<8x768xf32, #tpu.memory_space<vmem>>, vector<8x512xf32>
    %cst_139 = arith.constant dense<0.000000e+00> : vector<8x512xf32>
    %105 = tpu.matmul %103, %104, %cst_139 {dimension_numbers = #tpu.dot_dimension_numbers<[1], [0], [0], [1], [0, 0, 1, 1], [], []>} : vector<8x8xf32>, vector<8x512xf32>, vector<8x512xf32> -> vector<8x512xf32>
    %106 = arith.addf %101, %105 : vector<8x512xf32>
    %c2_140 = arith.constant 2 : index
    %c0_141 = arith.constant 0 : index
    %c0_142 = arith.constant 0 : index
    %107 = vector.load %arg4[%c2_140, %c0_141, %c0_142] : memref<27x8x8xf32, #tpu.memory_space<vmem>>, vector<1x8x8xf32>
    %108 = vector.shape_cast %107 : vector<1x8x8xf32> to vector<8x8xf32>
    %c0_143 = arith.constant 0 : index
    %c19 = arith.constant 19 : index
    %109 = vector.load %arg9[%c0_143, %c19] : memref<8x768xf32, #tpu.memory_space<vmem>>, vector<8x512xf32>
    %cst_144 = arith.constant dense<0.000000e+00> : vector<8x512xf32>
    %110 = tpu.matmul %108, %109, %cst_144 {dimension_numbers = #tpu.dot_dimension_numbers<[1], [0], [0], [1], [0, 0, 1, 1], [], []>} : vector<8x8xf32>, vector<8x512xf32>, vector<8x512xf32> -> vector<8x512xf32>
    %111 = arith.addf %106, %110 : vector<8x512xf32>
    %c3 = arith.constant 3 : index
    %c0_145 = arith.constant 0 : index
    %c0_146 = arith.constant 0 : index
    %112 = vector.load %arg4[%c3, %c0_145, %c0_146] : memref<27x8x8xf32, #tpu.memory_space<vmem>>, vector<1x8x8xf32>
    %113 = vector.shape_cast %112 : vector<1x8x8xf32> to vector<8x8xf32>
    %c0_147 = arith.constant 0 : index
    %c27 = arith.constant 27 : index
    %114 = vector.load %arg9[%c0_147, %c27] : memref<8x768xf32, #tpu.memory_space<vmem>>, vector<8x512xf32>
    %cst_148 = arith.constant dense<0.000000e+00> : vector<8x512xf32>
    %115 = tpu.matmul %113, %114, %cst_148 {dimension_numbers = #tpu.dot_dimension_numbers<[1], [0], [0], [1], [0, 0, 1, 1], [], []>} : vector<8x8xf32>, vector<8x512xf32>, vector<8x512xf32> -> vector<8x512xf32>
    %116 = arith.addf %111, %115 : vector<8x512xf32>
    %c4 = arith.constant 4 : index
    %c0_149 = arith.constant 0 : index
    %c0_150 = arith.constant 0 : index
    %117 = vector.load %arg4[%c4, %c0_149, %c0_150] : memref<27x8x8xf32, #tpu.memory_space<vmem>>, vector<1x8x8xf32>
    %118 = vector.shape_cast %117 : vector<1x8x8xf32> to vector<8x8xf32>
    %c0_151 = arith.constant 0 : index
    %c28 = arith.constant 28 : index
    %119 = vector.load %arg9[%c0_151, %c28] : memref<8x768xf32, #tpu.memory_space<vmem>>, vector<8x512xf32>
    %cst_152 = arith.constant dense<0.000000e+00> : vector<8x512xf32>
    %120 = tpu.matmul %118, %119, %cst_152 {dimension_numbers = #tpu.dot_dimension_numbers<[1], [0], [0], [1], [0, 0, 1, 1], [], []>} : vector<8x8xf32>, vector<8x512xf32>, vector<8x512xf32> -> vector<8x512xf32>
    %121 = arith.addf %116, %120 : vector<8x512xf32>
    %c5 = arith.constant 5 : index
    %c0_153 = arith.constant 0 : index
    %c0_154 = arith.constant 0 : index
    %122 = vector.load %arg4[%c5, %c0_153, %c0_154] : memref<27x8x8xf32, #tpu.memory_space<vmem>>, vector<1x8x8xf32>
    %123 = vector.shape_cast %122 : vector<1x8x8xf32> to vector<8x8xf32>
    %c0_155 = arith.constant 0 : index
    %c29 = arith.constant 29 : index
    %124 = vector.load %arg9[%c0_155, %c29] : memref<8x768xf32, #tpu.memory_space<vmem>>, vector<8x512xf32>
    %cst_156 = arith.constant dense<0.000000e+00> : vector<8x512xf32>
    %125 = tpu.matmul %123, %124, %cst_156 {dimension_numbers = #tpu.dot_dimension_numbers<[1], [0], [0], [1], [0, 0, 1, 1], [], []>} : vector<8x8xf32>, vector<8x512xf32>, vector<8x512xf32> -> vector<8x512xf32>
    %126 = arith.addf %121, %125 : vector<8x512xf32>
    %c6 = arith.constant 6 : index
    %c0_157 = arith.constant 0 : index
    %c0_158 = arith.constant 0 : index
    %127 = vector.load %arg4[%c6, %c0_157, %c0_158] : memref<27x8x8xf32, #tpu.memory_space<vmem>>, vector<1x8x8xf32>
    %128 = vector.shape_cast %127 : vector<1x8x8xf32> to vector<8x8xf32>
    %c0_159 = arith.constant 0 : index
    %c37 = arith.constant 37 : index
    %129 = vector.load %arg9[%c0_159, %c37] : memref<8x768xf32, #tpu.memory_space<vmem>>, vector<8x512xf32>
    %cst_160 = arith.constant dense<0.000000e+00> : vector<8x512xf32>
    %130 = tpu.matmul %128, %129, %cst_160 {dimension_numbers = #tpu.dot_dimension_numbers<[1], [0], [0], [1], [0, 0, 1, 1], [], []>} : vector<8x8xf32>, vector<8x512xf32>, vector<8x512xf32> -> vector<8x512xf32>
    %131 = arith.addf %126, %130 : vector<8x512xf32>
    %c7 = arith.constant 7 : index
    %c0_161 = arith.constant 0 : index
    %c0_162 = arith.constant 0 : index
    %132 = vector.load %arg4[%c7, %c0_161, %c0_162] : memref<27x8x8xf32, #tpu.memory_space<vmem>>, vector<1x8x8xf32>
    %133 = vector.shape_cast %132 : vector<1x8x8xf32> to vector<8x8xf32>
    %c0_163 = arith.constant 0 : index
    %c38 = arith.constant 38 : index
    %134 = vector.load %arg9[%c0_163, %c38] : memref<8x768xf32, #tpu.memory_space<vmem>>, vector<8x512xf32>
    %cst_164 = arith.constant dense<0.000000e+00> : vector<8x512xf32>
    %135 = tpu.matmul %133, %134, %cst_164 {dimension_numbers = #tpu.dot_dimension_numbers<[1], [0], [0], [1], [0, 0, 1, 1], [], []>} : vector<8x8xf32>, vector<8x512xf32>, vector<8x512xf32> -> vector<8x512xf32>
    %136 = arith.addf %131, %135 : vector<8x512xf32>
    %c8_165 = arith.constant 8 : index
    %c0_166 = arith.constant 0 : index
    %c0_167 = arith.constant 0 : index
    %137 = vector.load %arg4[%c8_165, %c0_166, %c0_167] : memref<27x8x8xf32, #tpu.memory_space<vmem>>, vector<1x8x8xf32>
    %138 = vector.shape_cast %137 : vector<1x8x8xf32> to vector<8x8xf32>
    %c0_168 = arith.constant 0 : index
    %c39 = arith.constant 39 : index
    %139 = vector.load %arg9[%c0_168, %c39] : memref<8x768xf32, #tpu.memory_space<vmem>>, vector<8x512xf32>
    %cst_169 = arith.constant dense<0.000000e+00> : vector<8x512xf32>
    %140 = tpu.matmul %138, %139, %cst_169 {dimension_numbers = #tpu.dot_dimension_numbers<[1], [0], [0], [1], [0, 0, 1, 1], [], []>} : vector<8x8xf32>, vector<8x512xf32>, vector<8x512xf32> -> vector<8x512xf32>
    %141 = arith.addf %136, %140 : vector<8x512xf32>
    %c9 = arith.constant 9 : index
    %c0_170 = arith.constant 0 : index
    %c0_171 = arith.constant 0 : index
    %142 = vector.load %arg4[%c9, %c0_170, %c0_171] : memref<27x8x8xf32, #tpu.memory_space<vmem>>, vector<1x8x8xf32>
    %143 = vector.shape_cast %142 : vector<1x8x8xf32> to vector<8x8xf32>
    %c0_172 = arith.constant 0 : index
    %c117 = arith.constant 117 : index
    %144 = vector.load %arg9[%c0_172, %c117] : memref<8x768xf32, #tpu.memory_space<vmem>>, vector<8x512xf32>
    %cst_173 = arith.constant dense<0.000000e+00> : vector<8x512xf32>
    %145 = tpu.matmul %143, %144, %cst_173 {dimension_numbers = #tpu.dot_dimension_numbers<[1], [0], [0], [1], [0, 0, 1, 1], [], []>} : vector<8x8xf32>, vector<8x512xf32>, vector<8x512xf32> -> vector<8x512xf32>
    %146 = arith.addf %141, %145 : vector<8x512xf32>
    %c10_174 = arith.constant 10 : index
    %c0_175 = arith.constant 0 : index
    %c0_176 = arith.constant 0 : index
    %147 = vector.load %arg4[%c10_174, %c0_175, %c0_176] : memref<27x8x8xf32, #tpu.memory_space<vmem>>, vector<1x8x8xf32>
    %148 = vector.shape_cast %147 : vector<1x8x8xf32> to vector<8x8xf32>
    %c0_177 = arith.constant 0 : index
    %c118 = arith.constant 118 : index
    %149 = vector.load %arg9[%c0_177, %c118] : memref<8x768xf32, #tpu.memory_space<vmem>>, vector<8x512xf32>
    %cst_178 = arith.constant dense<0.000000e+00> : vector<8x512xf32>
    %150 = tpu.matmul %148, %149, %cst_178 {dimension_numbers = #tpu.dot_dimension_numbers<[1], [0], [0], [1], [0, 0, 1, 1], [], []>} : vector<8x8xf32>, vector<8x512xf32>, vector<8x512xf32> -> vector<8x512xf32>
    %151 = arith.addf %146, %150 : vector<8x512xf32>
    %c11_179 = arith.constant 11 : index
    %c0_180 = arith.constant 0 : index
    %c0_181 = arith.constant 0 : index
    %152 = vector.load %arg4[%c11_179, %c0_180, %c0_181] : memref<27x8x8xf32, #tpu.memory_space<vmem>>, vector<1x8x8xf32>
    %153 = vector.shape_cast %152 : vector<1x8x8xf32> to vector<8x8xf32>
    %c0_182 = arith.constant 0 : index
    %c119 = arith.constant 119 : index
    %154 = vector.load %arg9[%c0_182, %c119] : memref<8x768xf32, #tpu.memory_space<vmem>>, vector<8x512xf32>
    %cst_183 = arith.constant dense<0.000000e+00> : vector<8x512xf32>
    %155 = tpu.matmul %153, %154, %cst_183 {dimension_numbers = #tpu.dot_dimension_numbers<[1], [0], [0], [1], [0, 0, 1, 1], [], []>} : vector<8x8xf32>, vector<8x512xf32>, vector<8x512xf32> -> vector<8x512xf32>
    %156 = arith.addf %151, %155 : vector<8x512xf32>
    %c12_184 = arith.constant 12 : index
    %c0_185 = arith.constant 0 : index
    %c0_186 = arith.constant 0 : index
    %157 = vector.load %arg4[%c12_184, %c0_185, %c0_186] : memref<27x8x8xf32, #tpu.memory_space<vmem>>, vector<1x8x8xf32>
    %158 = vector.shape_cast %157 : vector<1x8x8xf32> to vector<8x8xf32>
    %c0_187 = arith.constant 0 : index
    %c127 = arith.constant 127 : index
    %159 = vector.load %arg9[%c0_187, %c127] : memref<8x768xf32, #tpu.memory_space<vmem>>, vector<8x512xf32>
    %cst_188 = arith.constant dense<0.000000e+00> : vector<8x512xf32>
    %160 = tpu.matmul %158, %159, %cst_188 {dimension_numbers = #tpu.dot_dimension_numbers<[1], [0], [0], [1], [0, 0, 1, 1], [], []>} : vector<8x8xf32>, vector<8x512xf32>, vector<8x512xf32> -> vector<8x512xf32>
    %161 = arith.addf %156, %160 : vector<8x512xf32>
    %c13 = arith.constant 13 : index
    %c0_189 = arith.constant 0 : index
    %c0_190 = arith.constant 0 : index
    %162 = vector.load %arg4[%c13, %c0_189, %c0_190] : memref<27x8x8xf32, #tpu.memory_space<vmem>>, vector<1x8x8xf32>
    %163 = vector.shape_cast %162 : vector<1x8x8xf32> to vector<8x8xf32>
    %c0_191 = arith.constant 0 : index
    %c128_192 = arith.constant 128 : index
    %164 = vector.load %arg9[%c0_191, %c128_192] : memref<8x768xf32, #tpu.memory_space<vmem>>, vector<8x512xf32>
    %cst_193 = arith.constant dense<0.000000e+00> : vector<8x512xf32>
    %165 = tpu.matmul %163, %164, %cst_193 {dimension_numbers = #tpu.dot_dimension_numbers<[1], [0], [0], [1], [0, 0, 1, 1], [], []>} : vector<8x8xf32>, vector<8x512xf32>, vector<8x512xf32> -> vector<8x512xf32>
    %166 = arith.addf %161, %165 : vector<8x512xf32>
    %c14 = arith.constant 14 : index
    %c0_194 = arith.constant 0 : index
    %c0_195 = arith.constant 0 : index
    %167 = vector.load %arg4[%c14, %c0_194, %c0_195] : memref<27x8x8xf32, #tpu.memory_space<vmem>>, vector<1x8x8xf32>
    %168 = vector.shape_cast %167 : vector<1x8x8xf32> to vector<8x8xf32>
    %c0_196 = arith.constant 0 : index
    %c129 = arith.constant 129 : index
    %169 = vector.load %arg9[%c0_196, %c129] : memref<8x768xf32, #tpu.memory_space<vmem>>, vector<8x512xf32>
    %cst_197 = arith.constant dense<0.000000e+00> : vector<8x512xf32>
    %170 = tpu.matmul %168, %169, %cst_197 {dimension_numbers = #tpu.dot_dimension_numbers<[1], [0], [0], [1], [0, 0, 1, 1], [], []>} : vector<8x8xf32>, vector<8x512xf32>, vector<8x512xf32> -> vector<8x512xf32>
    %171 = arith.addf %166, %170 : vector<8x512xf32>
    %c15 = arith.constant 15 : index
    %c0_198 = arith.constant 0 : index
    %c0_199 = arith.constant 0 : index
    %172 = vector.load %arg4[%c15, %c0_198, %c0_199] : memref<27x8x8xf32, #tpu.memory_space<vmem>>, vector<1x8x8xf32>
    %173 = vector.shape_cast %172 : vector<1x8x8xf32> to vector<8x8xf32>
    %c0_200 = arith.constant 0 : index
    %c137 = arith.constant 137 : index
    %174 = vector.load %arg9[%c0_200, %c137] : memref<8x768xf32, #tpu.memory_space<vmem>>, vector<8x512xf32>
    %cst_201 = arith.constant dense<0.000000e+00> : vector<8x512xf32>
    %175 = tpu.matmul %173, %174, %cst_201 {dimension_numbers = #tpu.dot_dimension_numbers<[1], [0], [0], [1], [0, 0, 1, 1], [], []>} : vector<8x8xf32>, vector<8x512xf32>, vector<8x512xf32> -> vector<8x512xf32>
    %176 = arith.addf %171, %175 : vector<8x512xf32>
    %c16_202 = arith.constant 16 : index
    %c0_203 = arith.constant 0 : index
    %c0_204 = arith.constant 0 : index
    %177 = vector.load %arg4[%c16_202, %c0_203, %c0_204] : memref<27x8x8xf32, #tpu.memory_space<vmem>>, vector<1x8x8xf32>
    %178 = vector.shape_cast %177 : vector<1x8x8xf32> to vector<8x8xf32>
    %c0_205 = arith.constant 0 : index
    %c138 = arith.constant 138 : index
    %179 = vector.load %arg9[%c0_205, %c138] : memref<8x768xf32, #tpu.memory_space<vmem>>, vector<8x512xf32>
    %cst_206 = arith.constant dense<0.000000e+00> : vector<8x512xf32>
    %180 = tpu.matmul %178, %179, %cst_206 {dimension_numbers = #tpu.dot_dimension_numbers<[1], [0], [0], [1], [0, 0, 1, 1], [], []>} : vector<8x8xf32>, vector<8x512xf32>, vector<8x512xf32> -> vector<8x512xf32>
    %181 = arith.addf %176, %180 : vector<8x512xf32>
    %c17_207 = arith.constant 17 : index
    %c0_208 = arith.constant 0 : index
    %c0_209 = arith.constant 0 : index
    %182 = vector.load %arg4[%c17_207, %c0_208, %c0_209] : memref<27x8x8xf32, #tpu.memory_space<vmem>>, vector<1x8x8xf32>
    %183 = vector.shape_cast %182 : vector<1x8x8xf32> to vector<8x8xf32>
    %c0_210 = arith.constant 0 : index
    %c139 = arith.constant 139 : index
    %184 = vector.load %arg9[%c0_210, %c139] : memref<8x768xf32, #tpu.memory_space<vmem>>, vector<8x512xf32>
    %cst_211 = arith.constant dense<0.000000e+00> : vector<8x512xf32>
    %185 = tpu.matmul %183, %184, %cst_211 {dimension_numbers = #tpu.dot_dimension_numbers<[1], [0], [0], [1], [0, 0, 1, 1], [], []>} : vector<8x8xf32>, vector<8x512xf32>, vector<8x512xf32> -> vector<8x512xf32>
    %186 = arith.addf %181, %185 : vector<8x512xf32>
    %c18_212 = arith.constant 18 : index
    %c0_213 = arith.constant 0 : index
    %c0_214 = arith.constant 0 : index
    %187 = vector.load %arg4[%c18_212, %c0_213, %c0_214] : memref<27x8x8xf32, #tpu.memory_space<vmem>>, vector<1x8x8xf32>
    %188 = vector.shape_cast %187 : vector<1x8x8xf32> to vector<8x8xf32>
    %c0_215 = arith.constant 0 : index
    %c217 = arith.constant 217 : index
    %189 = vector.load %arg9[%c0_215, %c217] : memref<8x768xf32, #tpu.memory_space<vmem>>, vector<8x512xf32>
    %cst_216 = arith.constant dense<0.000000e+00> : vector<8x512xf32>
    %190 = tpu.matmul %188, %189, %cst_216 {dimension_numbers = #tpu.dot_dimension_numbers<[1], [0], [0], [1], [0, 0, 1, 1], [], []>} : vector<8x8xf32>, vector<8x512xf32>, vector<8x512xf32> -> vector<8x512xf32>
    %191 = arith.addf %186, %190 : vector<8x512xf32>
    %c19_217 = arith.constant 19 : index
    %c0_218 = arith.constant 0 : index
    %c0_219 = arith.constant 0 : index
    %192 = vector.load %arg4[%c19_217, %c0_218, %c0_219] : memref<27x8x8xf32, #tpu.memory_space<vmem>>, vector<1x8x8xf32>
    %193 = vector.shape_cast %192 : vector<1x8x8xf32> to vector<8x8xf32>
    %c0_220 = arith.constant 0 : index
    %c218 = arith.constant 218 : index
    %194 = vector.load %arg9[%c0_220, %c218] : memref<8x768xf32, #tpu.memory_space<vmem>>, vector<8x512xf32>
    %cst_221 = arith.constant dense<0.000000e+00> : vector<8x512xf32>
    %195 = tpu.matmul %193, %194, %cst_221 {dimension_numbers = #tpu.dot_dimension_numbers<[1], [0], [0], [1], [0, 0, 1, 1], [], []>} : vector<8x8xf32>, vector<8x512xf32>, vector<8x512xf32> -> vector<8x512xf32>
    %196 = arith.addf %191, %195 : vector<8x512xf32>
    %c20_222 = arith.constant 20 : index
    %c0_223 = arith.constant 0 : index
    %c0_224 = arith.constant 0 : index
    %197 = vector.load %arg4[%c20_222, %c0_223, %c0_224] : memref<27x8x8xf32, #tpu.memory_space<vmem>>, vector<1x8x8xf32>
    %198 = vector.shape_cast %197 : vector<1x8x8xf32> to vector<8x8xf32>
    %c0_225 = arith.constant 0 : index
    %c219 = arith.constant 219 : index
    %199 = vector.load %arg9[%c0_225, %c219] : memref<8x768xf32, #tpu.memory_space<vmem>>, vector<8x512xf32>
    %cst_226 = arith.constant dense<0.000000e+00> : vector<8x512xf32>
    %200 = tpu.matmul %198, %199, %cst_226 {dimension_numbers = #tpu.dot_dimension_numbers<[1], [0], [0], [1], [0, 0, 1, 1], [], []>} : vector<8x8xf32>, vector<8x512xf32>, vector<8x512xf32> -> vector<8x512xf32>
    %201 = arith.addf %196, %200 : vector<8x512xf32>
    %c21_227 = arith.constant 21 : index
    %c0_228 = arith.constant 0 : index
    %c0_229 = arith.constant 0 : index
    %202 = vector.load %arg4[%c21_227, %c0_228, %c0_229] : memref<27x8x8xf32, #tpu.memory_space<vmem>>, vector<1x8x8xf32>
    %203 = vector.shape_cast %202 : vector<1x8x8xf32> to vector<8x8xf32>
    %c0_230 = arith.constant 0 : index
    %c227 = arith.constant 227 : index
    %204 = vector.load %arg9[%c0_230, %c227] : memref<8x768xf32, #tpu.memory_space<vmem>>, vector<8x512xf32>
    %cst_231 = arith.constant dense<0.000000e+00> : vector<8x512xf32>
    %205 = tpu.matmul %203, %204, %cst_231 {dimension_numbers = #tpu.dot_dimension_numbers<[1], [0], [0], [1], [0, 0, 1, 1], [], []>} : vector<8x8xf32>, vector<8x512xf32>, vector<8x512xf32> -> vector<8x512xf32>
    %206 = arith.addf %201, %205 : vector<8x512xf32>
    %c22_232 = arith.constant 22 : index
    %c0_233 = arith.constant 0 : index
    %c0_234 = arith.constant 0 : index
    %207 = vector.load %arg4[%c22_232, %c0_233, %c0_234] : memref<27x8x8xf32, #tpu.memory_space<vmem>>, vector<1x8x8xf32>
    %208 = vector.shape_cast %207 : vector<1x8x8xf32> to vector<8x8xf32>
    %c0_235 = arith.constant 0 : index
    %c228 = arith.constant 228 : index
    %209 = vector.load %arg9[%c0_235, %c228] : memref<8x768xf32, #tpu.memory_space<vmem>>, vector<8x512xf32>
    %cst_236 = arith.constant dense<0.000000e+00> : vector<8x512xf32>
    %210 = tpu.matmul %208, %209, %cst_236 {dimension_numbers = #tpu.dot_dimension_numbers<[1], [0], [0], [1], [0, 0, 1, 1], [], []>} : vector<8x8xf32>, vector<8x512xf32>, vector<8x512xf32> -> vector<8x512xf32>
    %211 = arith.addf %206, %210 : vector<8x512xf32>
    %c23 = arith.constant 23 : index
    %c0_237 = arith.constant 0 : index
    %c0_238 = arith.constant 0 : index
    %212 = vector.load %arg4[%c23, %c0_237, %c0_238] : memref<27x8x8xf32, #tpu.memory_space<vmem>>, vector<1x8x8xf32>
    %213 = vector.shape_cast %212 : vector<1x8x8xf32> to vector<8x8xf32>
    %c0_239 = arith.constant 0 : index
    %c229 = arith.constant 229 : index
    %214 = vector.load %arg9[%c0_239, %c229] : memref<8x768xf32, #tpu.memory_space<vmem>>, vector<8x512xf32>
    %cst_240 = arith.constant dense<0.000000e+00> : vector<8x512xf32>
    %215 = tpu.matmul %213, %214, %cst_240 {dimension_numbers = #tpu.dot_dimension_numbers<[1], [0], [0], [1], [0, 0, 1, 1], [], []>} : vector<8x8xf32>, vector<8x512xf32>, vector<8x512xf32> -> vector<8x512xf32>
    %216 = arith.addf %211, %215 : vector<8x512xf32>
    %c24_241 = arith.constant 24 : index
    %c0_242 = arith.constant 0 : index
    %c0_243 = arith.constant 0 : index
    %217 = vector.load %arg4[%c24_241, %c0_242, %c0_243] : memref<27x8x8xf32, #tpu.memory_space<vmem>>, vector<1x8x8xf32>
    %218 = vector.shape_cast %217 : vector<1x8x8xf32> to vector<8x8xf32>
    %c0_244 = arith.constant 0 : index
    %c237 = arith.constant 237 : index
    %219 = vector.load %arg9[%c0_244, %c237] : memref<8x768xf32, #tpu.memory_space<vmem>>, vector<8x512xf32>
    %cst_245 = arith.constant dense<0.000000e+00> : vector<8x512xf32>
    %220 = tpu.matmul %218, %219, %cst_245 {dimension_numbers = #tpu.dot_dimension_numbers<[1], [0], [0], [1], [0, 0, 1, 1], [], []>} : vector<8x8xf32>, vector<8x512xf32>, vector<8x512xf32> -> vector<8x512xf32>
    %221 = arith.addf %216, %220 : vector<8x512xf32>
    %c25 = arith.constant 25 : index
    %c0_246 = arith.constant 0 : index
    %c0_247 = arith.constant 0 : index
    %222 = vector.load %arg4[%c25, %c0_246, %c0_247] : memref<27x8x8xf32, #tpu.memory_space<vmem>>, vector<1x8x8xf32>
    %223 = vector.shape_cast %222 : vector<1x8x8xf32> to vector<8x8xf32>
    %c0_248 = arith.constant 0 : index
    %c238 = arith.constant 238 : index
    %224 = vector.load %arg9[%c0_248, %c238] : memref<8x768xf32, #tpu.memory_space<vmem>>, vector<8x512xf32>
    %cst_249 = arith.constant dense<0.000000e+00> : vector<8x512xf32>
    %225 = tpu.matmul %223, %224, %cst_249 {dimension_numbers = #tpu.dot_dimension_numbers<[1], [0], [0], [1], [0, 0, 1, 1], [], []>} : vector<8x8xf32>, vector<8x512xf32>, vector<8x512xf32> -> vector<8x512xf32>
    %226 = arith.addf %221, %225 : vector<8x512xf32>
    %c26 = arith.constant 26 : index
    %c0_250 = arith.constant 0 : index
    %c0_251 = arith.constant 0 : index
    %227 = vector.load %arg4[%c26, %c0_250, %c0_251] : memref<27x8x8xf32, #tpu.memory_space<vmem>>, vector<1x8x8xf32>
    %228 = vector.shape_cast %227 : vector<1x8x8xf32> to vector<8x8xf32>
    %c0_252 = arith.constant 0 : index
    %c239_253 = arith.constant 239 : index
    %229 = vector.load %arg9[%c0_252, %c239_253] : memref<8x768xf32, #tpu.memory_space<vmem>>, vector<8x512xf32>
    %cst_254 = arith.constant dense<0.000000e+00> : vector<8x512xf32>
    %230 = tpu.matmul %228, %229, %cst_254 {dimension_numbers = #tpu.dot_dimension_numbers<[1], [0], [0], [1], [0, 0, 1, 1], [], []>} : vector<8x8xf32>, vector<8x512xf32>, vector<8x512xf32> -> vector<8x512xf32>
    %231 = arith.addf %226, %230 : vector<8x512xf32>
    %cst_255 = arith.constant 0.000000e+00 : f32
    %232 = vector.broadcast %cst_255 : f32 to vector<8x512xf32>
    %233 = arith.maximumf %231, %232 : vector<8x512xf32>
    %c0_256 = arith.constant 0 : index
    %c0_257 = arith.constant 0 : index
    %c0_258 = arith.constant 0 : index
    %234 = vector.load %arg7[%c0_256, %c0_257, %c0_258] : memref<1x8x512xf32, #tpu.memory_space<vmem>>, vector<1x8x512xf32>
    %235 = vector.shape_cast %234 : vector<1x8x512xf32> to vector<8x512xf32>
    %236 = vector.shape_cast %233 : vector<8x512xf32> to vector<1x8x512xf32>
    tpu.vector_store %arg7[%c0_256, %c0_257, %c0_258], %236 {strides = array<i32>} : memref<1x8x512xf32, #tpu.memory_space<vmem>>, vector<1x8x512xf32>,
    return
  }
  func.func @transform_0(%arg0: i32, %arg1: i32) -> (i32, i32, i32, i32) {
    %c0_i32 = arith.constant 0 : i32
    %c0_i32_0 = arith.constant 0 : i32
    %c0_i32_1 = arith.constant 0 : i32
    return %arg0, %arg1, %c0_i32, %c0_i32_0 : i32, i32, i32, i32
  }
  func.func @transform_1(%arg0: i32, %arg1: i32) -> (i32, i32) {
    %c0_i32 = arith.constant 0 : i32
    %c0_i32_0 = arith.constant 0 : i32
    %c0_i32_1 = arith.constant 0 : i32
    return %c0_i32, %c0_i32_0 : i32, i32
  }
  func.func @transform_2(%arg0: i32, %arg1: i32) -> (i32, i32, i32) {
    %c0_i32 = arith.constant 0 : i32
    %c0_i32_0 = arith.constant 0 : i32
    %c0_i32_1 = arith.constant 0 : i32
    %c0_i32_2 = arith.constant 0 : i32
    return %c0_i32, %c0_i32_0, %c0_i32_1 : i32, i32, i32
  }
  func.func @transform_3(%arg0: i32, %arg1: i32) -> (i32, i32) {
    %c0_i32 = arith.constant 0 : i32
    %c0_i32_0 = arith.constant 0 : i32
    %c0_i32_1 = arith.constant 0 : i32
    return %c0_i32, %c0_i32_0 : i32, i32
  }
  func.func @transform_4(%arg0: i32, %arg1: i32) -> (i32, i32, i32) {
    %c0_i32 = arith.constant 0 : i32
    %c0_i32_0 = arith.constant 0 : i32
    %c0_i32_1 = arith.constant 0 : i32
    return %arg1, %c0_i32, %c0_i32_0 : i32, i32, i32
  }
  func.func @transform_5(%arg0: i32, %arg1: i32) -> (i32, i32, i32) {
    %c0_i32 = arith.constant 0 : i32
    %c0_i32_0 = arith.constant 0 : i32
    return %arg0, %c0_i32, %arg1 : i32, i32, i32
  }
}

</mosaic_0001>

<llo_original>
// kernel: resblock_forward.1
$region0: #{resblock_forward.1}
  #allocation0 [shape = 'u32[]', space=smem, size = 0x4, offset = 0x4, fixed_abs, tag = 'smem constant byte address 0x4 - core index']
  #allocation1 [shape = 'u32[144,128]{1,0:T(1,128)}', space=vmem, size = 0x12000, scoped, tag = 'internal scratch']
  #allocation2 [shape = 'f32[256,768]{1,0:T(8,128)}', space=vmem, size = 0xc0000, scoped, tag = 'scratch operand']
  #allocation3 [shape = 'f32[8,768]{1,0:T(8,128)}', space=vmem, size = 0x6000, scoped, tag = 'scratch operand']
  %s0 = inlined_call_operand.vmem [shape: f32[2,2,8,1024], index: 0, kind: input, shape index: {}]
  %s1 = inlined_call_operand.vmem [shape: f32[8,256], index: 1, kind: input, shape index: {}]
  %s2 = inlined_call_operand.vmem [shape: f32[27,8,8], index: 2, kind: input, shape index: {}]
  %s3 = inlined_call_operand.vmem [shape: f32[8,8], index: 3, kind: input, shape index: {}]
  %s4 = inlined_call_operand.vmem [shape: f32[2,1,768], index: 4, kind: input, shape index: {}]
  %s5 = inlined_call_operand.vmem [shape: f32[2,8,1024], index: 5, kind: output, shape index: {}]
  %s6 = sld [smem:[#allocation0]]
  $region53: #{resblock_forward.1} parent=0
    _
  %s8 = ssub.s32 1, %s6
  %s9 = scalar_select 0, %s8, %s6
  loop: start=0, step=1, limit=6
  $region2: #{resblock_forward.1} parent=0 // loop_pre_header
    _
  $region3: #{resblock_forward.1} parent=0 // loop_header
    %s11 = sphi 0, %s15
    %p12 = scmp.ge.s32.totalorder %s11, 6
    %s18 = sphi 0, %s30
    %s19 = sphi 0, %s26
    %s20 = sphi 0, %s18
    %s21 = sphi 0, %s19
    %s22 = sphi 0, %s20
    %s23 = sphi 0, %s21
    %s35 = sphi 0, %s37
    %s38 = sphi 0, %s35
    %s39 = sphi 0, %s38
    %s55 = sphi 0, %s39
    %s59 = sphi 0, %s59
    %s61 = sphi 0, %s59
    %s62 = sphi 0, %s61
    %s76 = sphi 0, %s62
    %s80 = sphi 0, %s80
    %s82 = sphi 0, %s80
    %s83 = sphi 0, %s82
    %s97 = sphi 0, %s83
    %s101 = sphi 0, %s101
    %s103 = sphi 0, %s101
    %s104 = sphi 0, %s103
    %s118 = sphi 0, %s104
    %s124 = sphi 0, %s126
    %s127 = sphi 0, %s124
    %s128 = sphi 0, %s127
    %s144 = sphi 0, %s128
    %s152 = sphi 0, %s154
    %s155 = sphi 0, %s152
    %s156 = sphi 0, %s155
    %s172 = sphi 0, %s156
  $region4: #{resblock_forward.1} parent=0 // loop_header_branch
    %14 = sbr.rel (%p12) target = $region8
  $region5: #{resblock_forward.1} parent=0 // loop_body
    %s16 = ssub.s32 %s11, 1
    %s17 = ssub.s32 %s11, 2
    %s24 = sadd.s32 1, %s19
    %p25 = scmp.ge.s32.totalorder %s24, 2
    %s26 = scalar_select %p25, 0, %s24
    %s27 = sadd.s32 1, %s18
    %s28 = scalar_select %p25, %s27, %s18
    %p29 = scmp.ge.s32.totalorder %s28, 2
    %s30 = scalar_select %p29, 0, %s28
    %s31 = ssub.s32 %s18, %s30
    %s32 = ssub.s32 %s19, %s26
    %s33 = sor.u32 %s31, %s32
    %p34 = scmp.eq.s32.totalorder %s33, 0
    %s36 = sadd.s32 %s35, 1
    %s37 = scalar_select %p34, %s35, %s36
    %p40 = pneg %p34
    %p41 = scmp.eq.s32.totalorder %s11, 3
    %p42 = por %p40, %p41
    %p43 = scmp.ne.s32.totalorder %s35, %s38
    %p44 = scmp.eq.s32.totalorder %s11, 0
    %p45 = por %p43, %p44
    %p46 = scmp.ne.s32.totalorder %s35, %s38
    %p47 = scmp.eq.s32.totalorder %s16, 3
    %p48 = por %p46, %p47
    %p49 = scmp.ne.s32.totalorder %s38, %s39
    %p50 = scmp.eq.s32.totalorder %s16, 0
    %p51 = por %p49, %p50
    %p52 = scmp.ne.s32.totalorder %s38, %s39
    %p53 = scmp.eq.s32.totalorder %s17, 3
    %p54 = por %p52, %p53
    %p56 = scmp.ne.s32.totalorder %s39, %s55
    %p57 = scmp.eq.s32.totalorder %s17, 0
    %p58 = por %p56, %p57
    %s60 = sadd.s32 %s59, 1
    %p63 = scmp.eq.s32.totalorder %s11, 3
    %p64 = scmp.ne.s32.totalorder %s59, %s61
    %p65 = scmp.eq.s32.totalorder %s11, 0
    %p66 = por %p64, %p65
    %p67 = scmp.ne.s32.totalorder %s59, %s61
    %p68 = scmp.eq.s32.totalorder %s16, 3
    %p69 = por %p67, %p68
    %p70 = scmp.ne.s32.totalorder %s61, %s62
    %p71 = scmp.eq.s32.totalorder %s16, 0
    %p72 = por %p70, %p71
    %p73 = scmp.ne.s32.totalorder %s61, %s62
    %p74 = scmp.eq.s32.totalorder %s17, 3
    %p75 = por %p73, %p74
    %p77 = scmp.ne.s32.totalorder %s62, %s76
    %p78 = scmp.eq.s32.totalorder %s17, 0
    %p79 = por %p77, %p78
    %s81 = sadd.s32 %s80, 1
    %p84 = scmp.eq.s32.totalorder %s11, 3
    %p85 = scmp.ne.s32.totalorder %s80, %s82
    %p86 = scmp.eq.s32.totalorder %s11, 0
    %p87 = por %p85, %p86
    %p88 = scmp.ne.s32.totalorder %s80, %s82
    %p89 = scmp.eq.s32.totalorder %s16, 3
    %p90 = por %p88, %p89
    %p91 = scmp.ne.s32.totalorder %s82, %s83
    %p92 = scmp.eq.s32.totalorder %s16, 0
    %p93 = por %p91, %p92
    %p94 = scmp.ne.s32.totalorder %s82, %s83
    %p95 = scmp.eq.s32.totalorder %s17, 3
    %p96 = por %p94, %p95
    %p98 = scmp.ne.s32.totalorder %s83, %s97
    %p99 = scmp.eq.s32.totalorder %s17, 0
    %p100 = por %p98, %p99
    %s102 = sadd.s32 %s101, 1
    %p105 = scmp.eq.s32.totalorder %s11, 3
    %p106 = scmp.ne.s32.totalorder %s101, %s103
    %p107 = scmp.eq.s32.totalorder %s11, 0
    %p108 = por %p106, %p107
    %p109 = scmp.ne.s32.totalorder %s101, %s103
    %p110 = scmp.eq.s32.totalorder %s16, 3
    %p111 = por %p109, %p110
    %p112 = scmp.ne.s32.totalorder %s103, %s104
    %p113 = scmp.eq.s32.totalorder %s16, 0
    %p114 = por %p112, %p113
    %p115 = scmp.ne.s32.totalorder %s103, %s104
    %p116 = scmp.eq.s32.totalorder %s17, 3
    %p117 = por %p115, %p116
    %p119 = scmp.ne.s32.totalorder %s104, %s118
    %p120 = scmp.eq.s32.totalorder %s17, 0
    %p121 = por %p119, %p120
    %s122 = ssub.s32 %s19, %s26
    %p123 = scmp.eq.s32.totalorder %s122, 0
    %s125 = sadd.s32 %s124, 1
    %s126 = scalar_select %p123, %s124, %s125
    %p129 = pneg %p123
    %p130 = scmp.eq.s32.totalorder %s11, 3
    %p131 = por %p129, %p130
    %p132 = scmp.ne.s32.totalorder %s124, %s127
    %p133 = scmp.eq.s32.totalorder %s11, 0
    %p134 = por %p132, %p133
    %p135 = scmp.ne.s32.totalorder %s124, %s127
    %p136 = scmp.eq.s32.totalorder %s16, 3
    %p137 = por %p135, %p136
    %p138 = scmp.ne.s32.totalorder %s127, %s128
    %p139 = scmp.eq.s32.totalorder %s16, 0
    %p140 = por %p138, %p139
    %p141 = scmp.ne.s32.totalorder %s127, %s128
    %p142 = scmp.eq.s32.totalorder %s17, 3
    %p143 = por %p141, %p142
    %p145 = scmp.ne.s32.totalorder %s128, %s144
    %p146 = scmp.eq.s32.totalorder %s17, 0
    %p147 = por %p145, %p146
    %s148 = ssub.s32 %s18, %s30
    %s149 = ssub.s32 %s19, %s26
    %s150 = sor.u32 %s148, %s149
    %p151 = scmp.eq.s32.totalorder %s150, 0
    %s153 = sadd.s32 %s152, 1
    %s154 = scalar_select %p151, %s152, %s153
    %p157 = pneg %p151
    %p158 = scmp.eq.s32.totalorder %s11, 3
    %p159 = por %p157, %p158
    %p160 = scmp.ne.s32.totalorder %s152, %s155
    %p161 = scmp.eq.s32.totalorder %s11, 0
    %p162 = por %p160, %p161
    %p163 = scmp.ne.s32.totalorder %s152, %s155
    %p164 = scmp.eq.s32.totalorder %s16, 3
    %p165 = por %p163, %p164
    %p166 = scmp.ne.s32.totalorder %s155, %s156
    %p167 = scmp.eq.s32.totalorder %s16, 0
    %p168 = por %p166, %p167
    %p169 = scmp.ne.s32.totalorder %s155, %s156
    %p170 = scmp.eq.s32.totalorder %s17, 3
    %p171 = por %p169, %p170
    %p173 = scmp.ne.s32.totalorder %s156, %s172
    %p174 = scmp.eq.s32.totalorder %s17, 0
    %p175 = por %p173, %p174
    %p176 = scmp.le.s32.totalorder 1, %s11
    %p177 = scmp.lt.s32.totalorder %s11, 5
    %p178 = pnand %p176, %p177
    %p179 = pneg %p178
    // Predicated region
    $region9: #{resblock_forward.1} parent=5 // pred_check
      _
    $region10: #{resblock_forward.1} parent=5 // pred_check_branch
      %181 = sbr.rel (%p178) target = $region12
    $region11: #{resblock_forward.1} parent=5 // pred_region
      %s182 = ssub.s32 %s11, 1
      // Predicated region
      $region13: #{resblock_forward.1} parent=11 // pred_check
        %p183 = pneg %p72
      $region14: #{resblock_forward.1} parent=11 // pred_check_branch
        %185 = sbr.rel (%p183) target = $region16
      $region15: #{resblock_forward.1} parent=11 // pred_region
        _
      $region16: #{resblock_forward.1} parent=11 // pred_fallthru
        _
      // Predicated region
      $region17: #{resblock_forward.1} parent=11 // pred_check
        %p186 = pneg %p93
      $region18: #{resblock_forward.1} parent=11 // pred_check_branch
        %188 = sbr.rel (%p186) target = $region20
      $region19: #{resblock_forward.1} parent=11 // pred_region
        _
      $region20: #{resblock_forward.1} parent=11 // pred_fallthru
        _
      // Predicated region
      $region21: #{resblock_forward.1} parent=11 // pred_check
        %p189 = pneg %p114
      $region22: #{resblock_forward.1} parent=11 // pred_check_branch
        %191 = sbr.rel (%p189) target = $region24
      $region23: #{resblock_forward.1} parent=11 // pred_region
        _
      $region24: #{resblock_forward.1} parent=11 // pred_fallthru
        _
    $region12: #{resblock_forward.1} parent=5 // pred_fallthru
      _
    %p192 = scmp.lt.s32.totalorder %s11, 4
    // Predicated region
    $region25: #{resblock_forward.1} parent=5 // pred_check
      %p193 = pneg %p192
    $region26: #{resblock_forward.1} parent=5 // pred_check_branch
      %195 = sbr.rel (%p193) target = $region28
    $region27: #{resblock_forward.1} parent=5 // pred_region
      // Predicated region
      $region29: #{resblock_forward.1} parent=27 // pred_check
        %p196 = pneg %p45
      $region30: #{resblock_forward.1} parent=27 // pred_check_branch
        %198 = sbr.rel (%p196) target = $region32
      $region31: #{resblock_forward.1} parent=27 // pred_region
        %p199 = scmp.lt.s32.totalorder %s18, 1
        %s200 = scalar_select %p199, %s18, 1
        %p201 = scmp.lt.s32.totalorder %s19, 1
        %s202 = scalar_select %p201, %s19, 1
        %s203 = smul.addr %s202, 8
        %s204 = smul.addr %s200, 16
        %s205 = sadd.s32 %s203, %s204
        %s206 = smul.addr %s205, 8
        %s207 = scalar_lea.vmem %s0, %s206
      $region32: #{resblock_forward.1} parent=27 // pred_fallthru
        _
      // Predicated region
      $region33: #{resblock_forward.1} parent=27 // pred_check
        %p208 = pneg %p134
      $region34: #{resblock_forward.1} parent=27 // pred_check_branch
        %210 = sbr.rel (%p208) target = $region36
      $region35: #{resblock_forward.1} parent=27 // pred_region
        %p211 = scmp.lt.s32.totalorder %s19, 1
        %s212 = scalar_select %p211, %s19, 1
        %s213 = smul.addr %s212, 6
        %s214 = scalar_lea.vmem %s4, %s213
      $region36: #{resblock_forward.1} parent=27 // pred_fallthru
        _
    $region28: #{resblock_forward.1} parent=5 // pred_fallthru
      _
    %p215 = scmp.le.s32.totalorder 1, %s11
    %p216 = scmp.lt.s32.totalorder %s11, 5
    %p217 = pnand %p215, %p216
    %p218 = pneg %p217
    // Predicated region
    $region37: #{resblock_forward.1} parent=5 // pred_check
      _
    $region38: #{resblock_forward.1} parent=5 // pred_check_branch
      %220 = sbr.rel (%p217) target = $region40
    $region39: #{resblock_forward.1} parent=5 // pred_region
      %s221 = ssub.s32 %s11, 1
      %p222 = scmp.lt.s32.totalorder %s20, 1
      %s223 = scalar_select %p222, %s20, 1
      %p224 = scmp.lt.s32.totalorder %s21, 1
      %s225 = scalar_select %p224, %s21, 1
      %s226 = smul.addr %s225, 8
      %s227 = smul.addr %s223, 16
      %s228 = sadd.s32 %s226, %s227
      %s229 = smul.addr %s228, 8
      %s230 = scalar_lea.vmem %s0, %s229
      %p231 = pneg %p51
      %p232 = pneg %p48
      %p233 = pneg %p72
      %p234 = pneg %p69
      %p235 = pneg %p93
      %p236 = pneg %p90
      %p237 = pneg %p114
      %p238 = pneg %p111
      %p239 = scmp.lt.s32.totalorder %s21, 1
      %s240 = scalar_select %p239, %s21, 1
      %s241 = smul.addr %s240, 6
      %s242 = scalar_lea.vmem %s4, %s241
      %p243 = pneg %p140
      %p244 = pneg %p137
      %p245 = pneg %p168
      %p246 = pneg %p165
      %s247 = smul.u32 4, %s21
      %p248 = scmp.lt.s32.totalorder %s20, 1
      %s249 = scalar_select %p248, %s20, 1
      %p250 = scmp.lt.s32.totalorder %s247, 7
      %s251 = scalar_select %p250, %s247, 7
      %s252 = smul.addr %s249, 8
      %s253 = sadd.s32 %s251, %s252
      %s254 = smul.addr %s253, 8
      %s255 = scalar_lea.vmem %s5, %s254
      %p256 = scmp.lt.s32.totalorder %s20, 1
      %s257 = scalar_select %p256, %s20, 1
      %p258 = scmp.lt.s32.totalorder %s21, 1
      %s259 = scalar_select %p258, %s21, 1
      %s260 = smul.addr %s259, 8
      %s261 = smul.addr %s257, 16
      %s262 = sadd.s32 %s260, %s261
      %s263 = smul.addr %s262, 8
      %s264 = scalar_lea.vmem %s0, %s263
      %p265 = scmp.lt.s32.totalorder %s21, 1
      %s266 = scalar_select %p265, %s21, 1
      %s267 = smul.addr %s266, 6
      %s268 = scalar_lea.vmem %s4, %s267
      %s269 = smul.u32 4, %s21
      %p270 = scmp.lt.s32.totalorder %s20, 1
      %s271 = scalar_select %p270, %s20, 1
      %p272 = scmp.lt.s32.totalorder %s269, 7
      %s273 = scalar_select %p272, %s269, 7
      %s274 = smul.addr %s271, 8
      %s275 = sadd.s32 %s273, %s274
      %s276 = smul.addr %s275, 8
      %s277 = scalar_lea.vmem %s5, %s276
      %s278 = smul.u32 4, %s21
      %v279 = vld [vmem:[%s264] sm:$0xff]
      %v280 = vld [vmem:[%s264 + $0x8] sm:$0xff]
      %v281 = vld [vmem:[%s264 + $0x10] sm:$0xff]
      %v282 = vld [vmem:[%s264 + $0x18] sm:$0xff]
      %v283 = vld [vmem:[%s264 + $0x20] sm:$0xff]
      %v284 = vld [vmem:[%s264 + $0x28] sm:$0xff]
      %285 = vst [vmem:[#allocation2] sm:$0xff] %v279
      %286 = vst [vmem:[#allocation2 + $0x8] sm:$0xff] %v280
      %287 = vst [vmem:[#allocation2 + $0x10] sm:$0xff] %v281
      %288 = vst [vmem:[#allocation2 + $0x18] sm:$0xff] %v282
      %289 = vst [vmem:[#allocation2 + $0x20] sm:$0xff] %v283
      %290 = vst [vmem:[#allocation2 + $0x28] sm:$0xff] %v284
      %v291 = vld [vmem:[%s264] sm:$0xff]
      %v292 = vld [vmem:[%s264 + $0x8] sm:$0xff]
      %v293 = vld [vmem:[%s264 + $0x10] sm:$0xff]
      %v294 = vld [vmem:[%s264 + $0x18] sm:$0xff]
      %v295 = vld [vmem:[%s264 + $0x20] sm:$0xff]
      %v296 = vld [vmem:[%s264 + $0x28] sm:$0xff]
      %v297 = vld [vmem:[%s264 + $0x30] sm:$0xff]
      %305 = vrot.lane.b32.xlu0 %v291, 127
      %v306 = vpop.permute.xlu0 %305
      %307 = vrot.lane.b32.xlu0 %v292, 127
      %v308 = vpop.permute.xlu0 %307
      %309 = vrot.lane.b32.xlu0 %v293, 127
      %v310 = vpop.permute.xlu0 %309
      %311 = vrot.lane.b32.xlu0 %v294, 127
      %v312 = vpop.permute.xlu0 %311
      %313 = vrot.lane.b32.xlu0 %v295, 127
      %v314 = vpop.permute.xlu0 %313
      %315 = vrot.lane.b32.xlu0 %v296, 127
      %v316 = vpop.permute.xlu0 %315
      %317 = vrot.lane.b32.xlu0 %v297, 127
      %v318 = vpop.permute.xlu0 %317
      %vm319 = vcmask 1039360
      %v320 = vsel %vm319, %v306, %v308
      %v321 = vsel %vm319, %v308, %v310
      %v322 = vsel %vm319, %v310, %v312
      %v323 = vsel %vm319, %v312, %v314
      %v324 = vsel %vm319, %v314, %v316
      %v325 = vsel %vm319, %v316, %v318
      %332 = vst [vmem:[#allocation2 + $0x30] sm:$0xff] %v320
      %333 = vst [vmem:[#allocation2 + $0x38] sm:$0xff] %v321
      %334 = vst [vmem:[#allocation2 + $0x40] sm:$0xff] %v322
      %335 = vst [vmem:[#allocation2 + $0x48] sm:$0xff] %v323
      %336 = vst [vmem:[#allocation2 + $0x50] sm:$0xff] %v324
      %337 = vst [vmem:[#allocation2 + $0x58] sm:$0xff] %v325
      %v338 = vld [vmem:[%s264] sm:$0xff]
      %v339 = vld [vmem:[%s264 + $0x8] sm:$0xff]
      %v340 = vld [vmem:[%s264 + $0x10] sm:$0xff]
      %v341 = vld [vmem:[%s264 + $0x18] sm:$0xff]
      %v342 = vld [vmem:[%s264 + $0x20] sm:$0xff]
      %v343 = vld [vmem:[%s264 + $0x28] sm:$0xff]
      %v344 = vld [vmem:[%s264 + $0x30] sm:$0xff]
      %352 = vrot.lane.b32.xlu0 %v338, 126
      %v353 = vpop.permute.xlu0 %352
      %354 = vrot.lane.b32.xlu0 %v339, 126
      %v355 = vpop.permute.xlu0 %354
      %356 = vrot.lane.b32.xlu0 %v340, 126
      %v357 = vpop.permute.xlu0 %356
      %358 = vrot.lane.b32.xlu0 %v341, 126
      %v359 = vpop.permute.xlu0 %358
      %360 = vrot.lane.b32.xlu0 %v342, 126
      %v361 = vpop.permute.xlu0 %360
      %362 = vrot.lane.b32.xlu0 %v343, 126
      %v363 = vpop.permute.xlu0 %362
      %364 = vrot.lane.b32.xlu0 %v344, 126
      %v365 = vpop.permute.xlu0 %364
      %vm366 = vcmask 1031168
      %v367 = vsel %vm366, %v353, %v355
      %v368 = vsel %vm366, %v355, %v357
      %v369 = vsel %vm366, %v357, %v359
      %v370 = vsel %vm366, %v359, %v361
      %v371 = vsel %vm366, %v361, %v363
      %v372 = vsel %vm366, %v363, %v365
      %379 = vst [vmem:[#allocation2 + $0x60] sm:$0xff] %v367
      %380 = vst [vmem:[#allocation2 + $0x68] sm:$0xff] %v368
      %381 = vst [vmem:[#allocation2 + $0x70] sm:$0xff] %v369
      %382 = vst [vmem:[#allocation2 + $0x78] sm:$0xff] %v370
      %383 = vst [vmem:[#allocation2 + $0x80] sm:$0xff] %v371
      %384 = vst [vmem:[#allocation2 + $0x88] sm:$0xff] %v372
      %v385 = vld [vmem:[%s264] sm:$0xff]
      %v386 = vld [vmem:[%s264 + $0x8] sm:$0xff]
      %v387 = vld [vmem:[%s264 + $0x10] sm:$0xff]
      %v388 = vld [vmem:[%s264 + $0x18] sm:$0xff]
      %v389 = vld [vmem:[%s264 + $0x20] sm:$0xff]
      %v390 = vld [vmem:[%s264 + $0x28] sm:$0xff]
      %v391 = vld [vmem:[%s264 + $0x30] sm:$0xff]
      %399 = vrot.lane.b32.xlu0 %v385, 118
      %v400 = vpop.permute.xlu0 %399
      %401 = vrot.lane.b32.xlu0 %v386, 118
      %v402 = vpop.permute.xlu0 %401
      %403 = vrot.lane.b32.xlu0 %v387, 118
      %v404 = vpop.permute.xlu0 %403
      %405 = vrot.lane.b32.xlu0 %v388, 118
      %v406 = vpop.permute.xlu0 %405
      %407 = vrot.lane.b32.xlu0 %v389, 118
      %v408 = vpop.permute.xlu0 %407
      %409 = vrot.lane.b32.xlu0 %v390, 118
      %v410 = vpop.permute.xlu0 %409
      %411 = vrot.lane.b32.xlu0 %v391, 118
      %v412 = vpop.permute.xlu0 %411
      %vm413 = vcmask 965632
      %v414 = vsel %vm413, %v400, %v402
      %v415 = vsel %vm413, %v402, %v404
      %v416 = vsel %vm413, %v404, %v406
      %v417 = vsel %vm413, %v406, %v408
      %v418 = vsel %vm413, %v408, %v410
      %v419 = vsel %vm413, %v410, %v412
      %426 = vst [vmem:[#allocation2 + $0x90] sm:$0xff] %v414
      %427 = vst [vmem:[#allocation2 + $0x98] sm:$0xff] %v415
      %428 = vst [vmem:[#allocation2 + $0xa0] sm:$0xff] %v416
      %429 = vst [vmem:[#allocation2 + $0xa8] sm:$0xff] %v417
      %430 = vst [vmem:[#allocation2 + $0xb0] sm:$0xff] %v418
      %431 = vst [vmem:[#allocation2 + $0xb8] sm:$0xff] %v419
      %v432 = vld [vmem:[%s264] sm:$0xff]
      %v433 = vld [vmem:[%s264 + $0x8] sm:$0xff]
      %v434 = vld [vmem:[%s264 + $0x10] sm:$0xff]
      %v435 = vld [vmem:[%s264 + $0x18] sm:$0xff]
      %v436 = vld [vmem:[%s264 + $0x20] sm:$0xff]
      %v437 = vld [vmem:[%s264 + $0x28] sm:$0xff]
      %v438 = vld [vmem:[%s264 + $0x30] sm:$0xff]
      %446 = vrot.lane.b32.xlu0 %v432, 117
      %v447 = vpop.permute.xlu0 %446
      %448 = vrot.lane.b32.xlu0 %v433, 117
      %v449 = vpop.permute.xlu0 %448
      %450 = vrot.lane.b32.xlu0 %v434, 117
      %v451 = vpop.permute.xlu0 %450
      %452 = vrot.lane.b32.xlu0 %v435, 117
      %v453 = vpop.permute.xlu0 %452
      %454 = vrot.lane.b32.xlu0 %v436, 117
      %v455 = vpop.permute.xlu0 %454
      %456 = vrot.lane.b32.xlu0 %v437, 117
      %v457 = vpop.permute.xlu0 %456
      %458 = vrot.lane.b32.xlu0 %v438, 117
      %v459 = vpop.permute.xlu0 %458
      %vm460 = vcmask 957440
      %v461 = vsel %vm460, %v447, %v449
      %v462 = vsel %vm460, %v449, %v451
      %v463 = vsel %vm460, %v451, %v453
      %v464 = vsel %vm460, %v453, %v455
      %v465 = vsel %vm460, %v455, %v457
      %v466 = vsel %vm460, %v457, %v459
      %473 = vst [vmem:[#allocation2 + $0xc0] sm:$0xff] %v461
      %474 = vst [vmem:[#allocation2 + $0xc8] sm:$0xff] %v462
      %475 = vst [vmem:[#allocation2 + $0xd0] sm:$0xff] %v463
      %476 = vst [vmem:[#allocation2 + $0xd8] sm:$0xff] %v464
      %477 = vst [vmem:[#allocation2 + $0xe0] sm:$0xff] %v465
      %478 = vst [vmem:[#allocation2 + $0xe8] sm:$0xff] %v466
      %v479 = vld [vmem:[%s264] sm:$0xff]
      %v480 = vld [vmem:[%s264 + $0x8] sm:$0xff]
      %v481 = vld [vmem:[%s264 + $0x10] sm:$0xff]
      %v482 = vld [vmem:[%s264 + $0x18] sm:$0xff]
      %v483 = vld [vmem:[%s264 + $0x20] sm:$0xff]
      %v484 = vld [vmem:[%s264 + $0x28] sm:$0xff]
      %v485 = vld [vmem:[%s264 + $0x30] sm:$0xff]
      %493 = vrot.lane.b32.xlu0 %v479, 116
      %v494 = vpop.permute.xlu0 %493
      %495 = vrot.lane.b32.xlu0 %v480, 116
      %v496 = vpop.permute.xlu0 %495
      %497 = vrot.lane.b32.xlu0 %v481, 116
      %v498 = vpop.permute.xlu0 %497
      %499 = vrot.lane.b32.xlu0 %v482, 116
      %v500 = vpop.permute.xlu0 %499
      %501 = vrot.lane.b32.xlu0 %v483, 116
      %v502 = vpop.permute.xlu0 %501
      %503 = vrot.lane.b32.xlu0 %v484, 116
      %v504 = vpop.permute.xlu0 %503
      %505 = vrot.lane.b32.xlu0 %v485, 116
      %v506 = vpop.permute.xlu0 %505
      %vm507 = vcmask 949248
      %v508 = vsel %vm507, %v494, %v496
      %v509 = vsel %vm507, %v496, %v498
      %v510 = vsel %vm507, %v498, %v500
      %v511 = vsel %vm507, %v500, %v502
      %v512 = vsel %vm507, %v502, %v504
      %v513 = vsel %vm507, %v504, %v506
      %520 = vst [vmem:[#allocation2 + $0xf0] sm:$0xff] %v508
      %521 = vst [vmem:[#allocation2 + $0xf8] sm:$0xff] %v509
      %522 = vst [vmem:[#allocation2 + $0x100] sm:$0xff] %v510
      %523 = vst [vmem:[#allocation2 + $0x108] sm:$0xff] %v511
      %524 = vst [vmem:[#allocation2 + $0x110] sm:$0xff] %v512
      %525 = vst [vmem:[#allocation2 + $0x118] sm:$0xff] %v513
      %v526 = vld [vmem:[%s264] sm:$0xff]
      %v527 = vld [vmem:[%s264 + $0x8] sm:$0xff]
      %v528 = vld [vmem:[%s264 + $0x10] sm:$0xff]
      %v529 = vld [vmem:[%s264 + $0x18] sm:$0xff]
      %v530 = vld [vmem:[%s264 + $0x20] sm:$0xff]
      %v531 = vld [vmem:[%s264 + $0x28] sm:$0xff]
      %v532 = vld [vmem:[%s264 + $0x30] sm:$0xff]
      %540 = vrot.lane.b32.xlu0 %v526, 108
      %v541 = vpop.permute.xlu0 %540
      %542 = vrot.lane.b32.xlu0 %v527, 108
      %v543 = vpop.permute.xlu0 %542
      %544 = vrot.lane.b32.xlu0 %v528, 108
      %v545 = vpop.permute.xlu0 %544
      %546 = vrot.lane.b32.xlu0 %v529, 108
      %v547 = vpop.permute.xlu0 %546
      %548 = vrot.lane.b32.xlu0 %v530, 108
      %v549 = vpop.permute.xlu0 %548
      %550 = vrot.lane.b32.xlu0 %v531, 108
      %v551 = vpop.permute.xlu0 %550
      %552 = vrot.lane.b32.xlu0 %v532, 108
      %v553 = vpop.permute.xlu0 %552
      %vm554 = vcmask 883712
      %v555 = vsel %vm554, %v541, %v543
      %v556 = vsel %vm554, %v543, %v545
      %v557 = vsel %vm554, %v545, %v547
      %v558 = vsel %vm554, %v547, %v549
      %v559 = vsel %vm554, %v549, %v551
      %v560 = vsel %vm554, %v551, %v553
      %567 = vst [vmem:[#allocation2 + $0x120] sm:$0xff] %v555
      %568 = vst [vmem:[#allocation2 + $0x128] sm:$0xff] %v556
      %569 = vst [vmem:[#allocation2 + $0x130] sm:$0xff] %v557
      %570 = vst [vmem:[#allocation2 + $0x138] sm:$0xff] %v558
      %571 = vst [vmem:[#allocation2 + $0x140] sm:$0xff] %v559
      %572 = vst [vmem:[#allocation2 + $0x148] sm:$0xff] %v560
      %v573 = vld [vmem:[%s264] sm:$0xff]
      %v574 = vld [vmem:[%s264 + $0x8] sm:$0xff]
      %v575 = vld [vmem:[%s264 + $0x10] sm:$0xff]
      %v576 = vld [vmem:[%s264 + $0x18] sm:$0xff]
      %v577 = vld [vmem:[%s264 + $0x20] sm:$0xff]
      %v578 = vld [vmem:[%s264 + $0x28] sm:$0xff]
      %v579 = vld [vmem:[%s264 + $0x30] sm:$0xff]
      %587 = vrot.lane.b32.xlu0 %v573, 107
      %v588 = vpop.permute.xlu0 %587
      %589 = vrot.lane.b32.xlu0 %v574, 107
      %v590 = vpop.permute.xlu0 %589
      %591 = vrot.lane.b32.xlu0 %v575, 107
      %v592 = vpop.permute.xlu0 %591
      %593 = vrot.lane.b32.xlu0 %v576, 107
      %v594 = vpop.permute.xlu0 %593
      %595 = vrot.lane.b32.xlu0 %v577, 107
      %v596 = vpop.permute.xlu0 %595
      %597 = vrot.lane.b32.xlu0 %v578, 107
      %v598 = vpop.permute.xlu0 %597
      %599 = vrot.lane.b32.xlu0 %v579, 107
      %v600 = vpop.permute.xlu0 %599
      %vm601 = vcmask 875520
      %v602 = vsel %vm601, %v588, %v590
      %v603 = vsel %vm601, %v590, %v592
      %v604 = vsel %vm601, %v592, %v594
      %v605 = vsel %vm601, %v594, %v596
      %v606 = vsel %vm601, %v596, %v598
      %v607 = vsel %vm601, %v598, %v600
      %614 = vst [vmem:[#allocation2 + $0x150] sm:$0xff] %v602
      %615 = vst [vmem:[#allocation2 + $0x158] sm:$0xff] %v603
      %616 = vst [vmem:[#allocation2 + $0x160] sm:$0xff] %v604
      %617 = vst [vmem:[#allocation2 + $0x168] sm:$0xff] %v605
      %618 = vst [vmem:[#allocation2 + $0x170] sm:$0xff] %v606
      %619 = vst [vmem:[#allocation2 + $0x178] sm:$0xff] %v607
      %v620 = vld [vmem:[%s264] sm:$0xff]
      %v621 = vld [vmem:[%s264 + $0x8] sm:$0xff]
      %v622 = vld [vmem:[%s264 + $0x10] sm:$0xff]
      %v623 = vld [vmem:[%s264 + $0x18] sm:$0xff]
      %v624 = vld [vmem:[%s264 + $0x20] sm:$0xff]
      %v625 = vld [vmem:[%s264 + $0x28] sm:$0xff]
      %v626 = vld [vmem:[%s264 + $0x30] sm:$0xff]
      %634 = vrot.lane.b32.xlu0 %v620, 106
      %v635 = vpop.permute.xlu0 %634
      %636 = vrot.lane.b32.xlu0 %v621, 106
      %v637 = vpop.permute.xlu0 %636
      %638 = vrot.lane.b32.xlu0 %v622, 106
      %v639 = vpop.permute.xlu0 %638
      %640 = vrot.lane.b32.xlu0 %v623, 106
      %v641 = vpop.permute.xlu0 %640
      %642 = vrot.lane.b32.xlu0 %v624, 106
      %v643 = vpop.permute.xlu0 %642
      %644 = vrot.lane.b32.xlu0 %v625, 106
      %v645 = vpop.permute.xlu0 %644
      %646 = vrot.lane.b32.xlu0 %v626, 106
      %v647 = vpop.permute.xlu0 %646
      %vm648 = vcmask 867328
      %v649 = vsel %vm648, %v635, %v637
      %v650 = vsel %vm648, %v637, %v639
      %v651 = vsel %vm648, %v639, %v641
      %v652 = vsel %vm648, %v641, %v643
      %v653 = vsel %vm648, %v643, %v645
      %v654 = vsel %vm648, %v645, %v647
      %661 = vst [vmem:[#allocation2 + $0x180] sm:$0xff] %v649
      %662 = vst [vmem:[#allocation2 + $0x188] sm:$0xff] %v650
      %663 = vst [vmem:[#allocation2 + $0x190] sm:$0xff] %v651
      %664 = vst [vmem:[#allocation2 + $0x198] sm:$0xff] %v652
      %665 = vst [vmem:[#allocation2 + $0x1a0] sm:$0xff] %v653
      %666 = vst [vmem:[#allocation2 + $0x1a8] sm:$0xff] %v654
      %v667 = vld [vmem:[%s264] sm:$0xff]
      %v668 = vld [vmem:[%s264 + $0x8] sm:$0xff]
      %v669 = vld [vmem:[%s264 + $0x10] sm:$0xff]
      %v670 = vld [vmem:[%s264 + $0x18] sm:$0xff]
      %v671 = vld [vmem:[%s264 + $0x20] sm:$0xff]
      %v672 = vld [vmem:[%s264 + $0x28] sm:$0xff]
      %v673 = vld [vmem:[%s264 + $0x30] sm:$0xff]
      %681 = vrot.lane.b32.xlu0 %v667, 28
      %v682 = vpop.permute.xlu0 %681
      %683 = vrot.lane.b32.xlu0 %v668, 28
      %v684 = vpop.permute.xlu0 %683
      %685 = vrot.lane.b32.xlu0 %v669, 28
      %v686 = vpop.permute.xlu0 %685
      %687 = vrot.lane.b32.xlu0 %v670, 28
      %v688 = vpop.permute.xlu0 %687
      %689 = vrot.lane.b32.xlu0 %v671, 28
      %v690 = vpop.permute.xlu0 %689
      %691 = vrot.lane.b32.xlu0 %v672, 28
      %v692 = vpop.permute.xlu0 %691
      %693 = vrot.lane.b32.xlu0 %v673, 28
      %v694 = vpop.permute.xlu0 %693
      %vm695 = vcmask 228352
      %v696 = vsel %vm695, %v682, %v684
      %v697 = vsel %vm695, %v684, %v686
      %v698 = vsel %vm695, %v686, %v688
      %v699 = vsel %vm695, %v688, %v690
      %v700 = vsel %vm695, %v690, %v692
      %v701 = vsel %vm695, %v692, %v694
      %708 = vst [vmem:[#allocation2 + $0x1b0] sm:$0xff] %v696
      %709 = vst [vmem:[#allocation2 + $0x1b8] sm:$0xff] %v697
      %710 = vst [vmem:[#allocation2 + $0x1c0] sm:$0xff] %v698
      %711 = vst [vmem:[#allocation2 + $0x1c8] sm:$0xff] %v699
      %712 = vst [vmem:[#allocation2 + $0x1d0] sm:$0xff] %v700
      %713 = vst [vmem:[#allocation2 + $0x1d8] sm:$0xff] %v701
      %v714 = vld [vmem:[%s264] sm:$0xff]
      %v715 = vld [vmem:[%s264 + $0x8] sm:$0xff]
      %v716 = vld [vmem:[%s264 + $0x10] sm:$0xff]
      %v717 = vld [vmem:[%s264 + $0x18] sm:$0xff]
      %v718 = vld [vmem:[%s264 + $0x20] sm:$0xff]
      %v719 = vld [vmem:[%s264 + $0x28] sm:$0xff]
      %v720 = vld [vmem:[%s264 + $0x30] sm:$0xff]
      %728 = vrot.lane.b32.xlu0 %v714, 27
      %v729 = vpop.permute.xlu0 %728
      %730 = vrot.lane.b32.xlu0 %v715, 27
      %v731 = vpop.permute.xlu0 %730
      %732 = vrot.lane.b32.xlu0 %v716, 27
      %v733 = vpop.permute.xlu0 %732
      %734 = vrot.lane.b32.xlu0 %v717, 27
      %v735 = vpop.permute.xlu0 %734
      %736 = vrot.lane.b32.xlu0 %v718, 27
      %v737 = vpop.permute.xlu0 %736
      %738 = vrot.lane.b32.xlu0 %v719, 27
      %v739 = vpop.permute.xlu0 %738
      %740 = vrot.lane.b32.xlu0 %v720, 27
      %v741 = vpop.permute.xlu0 %740
      %vm742 = vcmask 220160
      %v743 = vsel %vm742, %v729, %v731
      %v744 = vsel %vm742, %v731, %v733
      %v745 = vsel %vm742, %v733, %v735
      %v746 = vsel %vm742, %v735, %v737
      %v747 = vsel %vm742, %v737, %v739
      %v748 = vsel %vm742, %v739, %v741
      %755 = vst [vmem:[#allocation2 + $0x1e0] sm:$0xff] %v743
      %756 = vst [vmem:[#allocation2 + $0x1e8] sm:$0xff] %v744
      %757 = vst [vmem:[#allocation2 + $0x1f0] sm:$0xff] %v745
      %758 = vst [vmem:[#allocation2 + $0x1f8] sm:$0xff] %v746
      %759 = vst [vmem:[#allocation2 + $0x200] sm:$0xff] %v747
      %760 = vst [vmem:[#allocation2 + $0x208] sm:$0xff] %v748
      %v761 = vld [vmem:[%s264] sm:$0xff]
      %v762 = vld [vmem:[%s264 + $0x8] sm:$0xff]
      %v763 = vld [vmem:[%s264 + $0x10] sm:$0xff]
      %v764 = vld [vmem:[%s264 + $0x18] sm:$0xff]
      %v765 = vld [vmem:[%s264 + $0x20] sm:$0xff]
      %v766 = vld [vmem:[%s264 + $0x28] sm:$0xff]
      %v767 = vld [vmem:[%s264 + $0x30] sm:$0xff]
      %775 = vrot.lane.b32.xlu0 %v761, 26
      %v776 = vpop.permute.xlu0 %775
      %777 = vrot.lane.b32.xlu0 %v762, 26
      %v778 = vpop.permute.xlu0 %777
      %779 = vrot.lane.b32.xlu0 %v763, 26
      %v780 = vpop.permute.xlu0 %779
      %781 = vrot.lane.b32.xlu0 %v764, 26
      %v782 = vpop.permute.xlu0 %781
      %783 = vrot.lane.b32.xlu0 %v765, 26
      %v784 = vpop.permute.xlu0 %783
      %785 = vrot.lane.b32.xlu0 %v766, 26
      %v786 = vpop.permute.xlu0 %785
      %787 = vrot.lane.b32.xlu0 %v767, 26
      %v788 = vpop.permute.xlu0 %787
      %vm789 = vcmask 211968
      %v790 = vsel %vm789, %v776, %v778
      %v791 = vsel %vm789, %v778, %v780
      %v792 = vsel %vm789, %v780, %v782
      %v793 = vsel %vm789, %v782, %v784
      %v794 = vsel %vm789, %v784, %v786
      %v795 = vsel %vm789, %v786, %v788
      %802 = vst [vmem:[#allocation2 + $0x210] sm:$0xff] %v790
      %803 = vst [vmem:[#allocation2 + $0x218] sm:$0xff] %v791
      %804 = vst [vmem:[#allocation2 + $0x220] sm:$0xff] %v792
      %805 = vst [vmem:[#allocation2 + $0x228] sm:$0xff] %v793
      %806 = vst [vmem:[#allocation2 + $0x230] sm:$0xff] %v794
      %807 = vst [vmem:[#allocation2 + $0x238] sm:$0xff] %v795
      %v808 = vld [vmem:[%s264] sm:$0xff]
      %v809 = vld [vmem:[%s264 + $0x8] sm:$0xff]
      %v810 = vld [vmem:[%s264 + $0x10] sm:$0xff]
      %v811 = vld [vmem:[%s264 + $0x18] sm:$0xff]
      %v812 = vld [vmem:[%s264 + $0x20] sm:$0xff]
      %v813 = vld [vmem:[%s264 + $0x28] sm:$0xff]
      %v814 = vld [vmem:[%s264 + $0x30] sm:$0xff]
      %822 = vrot.lane.b32.xlu0 %v808, 18
      %v823 = vpop.permute.xlu0 %822
      %824 = vrot.lane.b32.xlu0 %v809, 18
      %v825 = vpop.permute.xlu0 %824
      %826 = vrot.lane.b32.xlu0 %v810, 18
      %v827 = vpop.permute.xlu0 %826
      %828 = vrot.lane.b32.xlu0 %v811, 18
      %v829 = vpop.permute.xlu0 %828
      %830 = vrot.lane.b32.xlu0 %v812, 18
      %v831 = vpop.permute.xlu0 %830
      %832 = vrot.lane.b32.xlu0 %v813, 18
      %v833 = vpop.permute.xlu0 %832
      %834 = vrot.lane.b32.xlu0 %v814, 18
      %v835 = vpop.permute.xlu0 %834
      %vm836 = vcmask 146432
      %v837 = vsel %vm836, %v823, %v825
      %v838 = vsel %vm836, %v825, %v827
      %v839 = vsel %vm836, %v827, %v829
      %v840 = vsel %vm836, %v829, %v831
      %v841 = vsel %vm836, %v831, %v833
      %v842 = vsel %vm836, %v833, %v835
      %849 = vst [vmem:[#allocation2 + $0x240] sm:$0xff] %v837
      %850 = vst [vmem:[#allocation2 + $0x248] sm:$0xff] %v838
      %851 = vst [vmem:[#allocation2 + $0x250] sm:$0xff] %v839
      %852 = vst [vmem:[#allocation2 + $0x258] sm:$0xff] %v840
      %853 = vst [vmem:[#allocation2 + $0x260] sm:$0xff] %v841
      %854 = vst [vmem:[#allocation2 + $0x268] sm:$0xff] %v842
      %v855 = vld [vmem:[%s264] sm:$0xff]
      %v856 = vld [vmem:[%s264 + $0x8] sm:$0xff]
      %v857 = vld [vmem:[%s264 + $0x10] sm:$0xff]
      %v858 = vld [vmem:[%s264 + $0x18] sm:$0xff]
      %v859 = vld [vmem:[%s264 + $0x20] sm:$0xff]
      %v860 = vld [vmem:[%s264 + $0x28] sm:$0xff]
      %v861 = vld [vmem:[%s264 + $0x30] sm:$0xff]
      %869 = vrot.lane.b32.xlu0 %v855, 17
      %v870 = vpop.permute.xlu0 %869
      %871 = vrot.lane.b32.xlu0 %v856, 17
      %v872 = vpop.permute.xlu0 %871
      %873 = vrot.lane.b32.xlu0 %v857, 17
      %v874 = vpop.permute.xlu0 %873
      %875 = vrot.lane.b32.xlu0 %v858, 17
      %v876 = vpop.permute.xlu0 %875
      %877 = vrot.lane.b32.xlu0 %v859, 17
      %v878 = vpop.permute.xlu0 %877
      %879 = vrot.lane.b32.xlu0 %v860, 17
      %v880 = vpop.permute.xlu0 %879
      %881 = vrot.lane.b32.xlu0 %v861, 17
      %v882 = vpop.permute.xlu0 %881
      %vm883 = vcmask 138240
      %v884 = vsel %vm883, %v870, %v872
      %v885 = vsel %vm883, %v872, %v874
      %v886 = vsel %vm883, %v874, %v876
      %v887 = vsel %vm883, %v876, %v878
      %v888 = vsel %vm883, %v878, %v880
      %v889 = vsel %vm883, %v880, %v882
      %896 = vst [vmem:[#allocation2 + $0x270] sm:$0xff] %v884
      %897 = vst [vmem:[#allocation2 + $0x278] sm:$0xff] %v885
      %898 = vst [vmem:[#allocation2 + $0x280] sm:$0xff] %v886
      %899 = vst [vmem:[#allocation2 + $0x288] sm:$0xff] %v887
      %900 = vst [vmem:[#allocation2 + $0x290] sm:$0xff] %v888
      %901 = vst [vmem:[#allocation2 + $0x298] sm:$0xff] %v889
      %v902 = vld [vmem:[%s264] sm:$0xff]
      %v903 = vld [vmem:[%s264 + $0x8] sm:$0xff]
      %v904 = vld [vmem:[%s264 + $0x10] sm:$0xff]
      %v905 = vld [vmem:[%s264 + $0x18] sm:$0xff]
      %v906 = vld [vmem:[%s264 + $0x20] sm:$0xff]
      %v907 = vld [vmem:[%s264 + $0x28] sm:$0xff]
      %v908 = vld [vmem:[%s264 + $0x30] sm:$0xff]
      %916 = vrot.lane.b32.xlu0 %v902, 16
      %v917 = vpop.permute.xlu0 %916
      %918 = vrot.lane.b32.xlu0 %v903, 16
      %v919 = vpop.permute.xlu0 %918
      %920 = vrot.lane.b32.xlu0 %v904, 16
      %v921 = vpop.permute.xlu0 %920
      %922 = vrot.lane.b32.xlu0 %v905, 16
      %v923 = vpop.permute.xlu0 %922
      %924 = vrot.lane.b32.xlu0 %v906, 16
      %v925 = vpop.permute.xlu0 %924
      %926 = vrot.lane.b32.xlu0 %v907, 16
      %v927 = vpop.permute.xlu0 %926
      %928 = vrot.lane.b32.xlu0 %v908, 16
      %v929 = vpop.permute.xlu0 %928
      %vm930 = vcmask 130048
      %v931 = vsel %vm930, %v917, %v919
      %v932 = vsel %vm930, %v919, %v921
      %v933 = vsel %vm930, %v921, %v923
      %v934 = vsel %vm930, %v923, %v925
      %v935 = vsel %vm930, %v925, %v927
      %v936 = vsel %vm930, %v927, %v929
      %943 = vst [vmem:[#allocation2 + $0x2a0] sm:$0xff] %v931
      %944 = vst [vmem:[#allocation2 + $0x2a8] sm:$0xff] %v932
      %945 = vst [vmem:[#allocation2 + $0x2b0] sm:$0xff] %v933
      %946 = vst [vmem:[#allocation2 + $0x2b8] sm:$0xff] %v934
      %947 = vst [vmem:[#allocation2 + $0x2c0] sm:$0xff] %v935
      %948 = vst [vmem:[#allocation2 + $0x2c8] sm:$0xff] %v936
      %v949 = vld [vmem:[%s264] sm:$0xff]
      %v950 = vld [vmem:[%s264 + $0x8] sm:$0xff]
      %v951 = vld [vmem:[%s264 + $0x10] sm:$0xff]
      %v952 = vld [vmem:[%s264 + $0x18] sm:$0xff]
      %v953 = vld [vmem:[%s264 + $0x20] sm:$0xff]
      %v954 = vld [vmem:[%s264 + $0x28] sm:$0xff]
      %v955 = vld [vmem:[%s264 + $0x30] sm:$0xff]
      %963 = vrot.lane.b32.xlu0 %v949, 8
      %v964 = vpop.permute.xlu0 %963
      %965 = vrot.lane.b32.xlu0 %v950, 8
      %v966 = vpop.permute.xlu0 %965
      %967 = vrot.lane.b32.xlu0 %v951, 8
      %v968 = vpop.permute.xlu0 %967
      %969 = vrot.lane.b32.xlu0 %v952, 8
      %v970 = vpop.permute.xlu0 %969
      %971 = vrot.lane.b32.xlu0 %v953, 8
      %v972 = vpop.permute.xlu0 %971
      %973 = vrot.lane.b32.xlu0 %v954, 8
      %v974 = vpop.permute.xlu0 %973
      %975 = vrot.lane.b32.xlu0 %v955, 8
      %v976 = vpop.permute.xlu0 %975
      %vm977 = vcmask 64512
      %v978 = vsel %vm977, %v964, %v966
      %v979 = vsel %vm977, %v966, %v968
      %v980 = vsel %vm977, %v968, %v970
      %v981 = vsel %vm977, %v970, %v972
      %v982 = vsel %vm977, %v972, %v974
      %v983 = vsel %vm977, %v974, %v976
      %990 = vst [vmem:[#allocation2 + $0x2d0] sm:$0xff] %v978
      %991 = vst [vmem:[#allocation2 + $0x2d8] sm:$0xff] %v979
      %992 = vst [vmem:[#allocation2 + $0x2e0] sm:$0xff] %v980
      %993 = vst [vmem:[#allocation2 + $0x2e8] sm:$0xff] %v981
      %994 = vst [vmem:[#allocation2 + $0x2f0] sm:$0xff] %v982
      %995 = vst [vmem:[#allocation2 + $0x2f8] sm:$0xff] %v983
      %v996 = vld [vmem:[%s264] sm:$0xff]
      %v997 = vld [vmem:[%s264 + $0x8] sm:$0xff]
      %v998 = vld [vmem:[%s264 + $0x10] sm:$0xff]
      %v999 = vld [vmem:[%s264 + $0x18] sm:$0xff]
      %v1000 = vld [vmem:[%s264 + $0x20] sm:$0xff]
      %v1001 = vld [vmem:[%s264 + $0x28] sm:$0xff]
      %v1002 = vld [vmem:[%s264 + $0x30] sm:$0xff]
      %1010 = vrot.lane.b32.xlu0 %v996, 7
      %v1011 = vpop.permute.xlu0 %1010
      %1012 = vrot.lane.b32.xlu0 %v997, 7
      %v1013 = vpop.permute.xlu0 %1012
      %1014 = vrot.lane.b32.xlu0 %v998, 7
      %v1015 = vpop.permute.xlu0 %1014
      %1016 = vrot.lane.b32.xlu0 %v999, 7
      %v1017 = vpop.permute.xlu0 %1016
      %1018 = vrot.lane.b32.xlu0 %v1000, 7
      %v1019 = vpop.permute.xlu0 %1018
      %1020 = vrot.lane.b32.xlu0 %v1001, 7
      %v1021 = vpop.permute.xlu0 %1020
      %1022 = vrot.lane.b32.xlu0 %v1002, 7
      %v1023 = vpop.permute.xlu0 %1022
      %vm1024 = vcmask 56320
      %v1025 = vsel %vm1024, %v1011, %v1013
      %v1026 = vsel %vm1024, %v1013, %v1015
      %v1027 = vsel %vm1024, %v1015, %v1017
      %v1028 = vsel %vm1024, %v1017, %v1019
      %v1029 = vsel %vm1024, %v1019, %v1021
      %v1030 = vsel %vm1024, %v1021, %v1023
      %1037 = vst [vmem:[#allocation2 + $0x300] sm:$0xff] %v1025
      %1038 = vst [vmem:[#allocation2 + $0x308] sm:$0xff] %v1026
      %1039 = vst [vmem:[#allocation2 + $0x310] sm:$0xff] %v1027
      %1040 = vst [vmem:[#allocation2 + $0x318] sm:$0xff] %v1028
      %1041 = vst [vmem:[#allocation2 + $0x320] sm:$0xff] %v1029
      %1042 = vst [vmem:[#allocation2 + $0x328] sm:$0xff] %v1030
      %v1043 = vld [vmem:[%s264] sm:$0xff]
      %v1044 = vld [vmem:[%s264 + $0x8] sm:$0xff]
      %v1045 = vld [vmem:[%s264 + $0x10] sm:$0xff]
      %v1046 = vld [vmem:[%s264 + $0x18] sm:$0xff]
      %v1047 = vld [vmem:[%s264 + $0x20] sm:$0xff]
      %v1048 = vld [vmem:[%s264 + $0x28] sm:$0xff]
      %v1049 = vld [vmem:[%s264 + $0x30] sm:$0xff]
      %1057 = vrot.lane.b32.xlu0 %v1043, 6
      %v1058 = vpop.permute.xlu0 %1057
      %1059 = vrot.lane.b32.xlu0 %v1044, 6
      %v1060 = vpop.permute.xlu0 %1059
      %1061 = vrot.lane.b32.xlu0 %v1045, 6
      %v1062 = vpop.permute.xlu0 %1061
      %1063 = vrot.lane.b32.xlu0 %v1046, 6
      %v1064 = vpop.permute.xlu0 %1063
      %1065 = vrot.lane.b32.xlu0 %v1047, 6
      %v1066 = vpop.permute.xlu0 %1065
      %1067 = vrot.lane.b32.xlu0 %v1048, 6
      %v1068 = vpop.permute.xlu0 %1067
      %1069 = vrot.lane.b32.xlu0 %v1049, 6
      %v1070 = vpop.permute.xlu0 %1069
      %vm1071 = vcmask 48128
      %v1072 = vsel %vm1071, %v1058, %v1060
      %v1073 = vsel %vm1071, %v1060, %v1062
      %v1074 = vsel %vm1071, %v1062, %v1064
      %v1075 = vsel %vm1071, %v1064, %v1066
      %v1076 = vsel %vm1071, %v1066, %v1068
      %v1077 = vsel %vm1071, %v1068, %v1070
      %1084 = vst [vmem:[#allocation2 + $0x330] sm:$0xff] %v1072
      %1085 = vst [vmem:[#allocation2 + $0x338] sm:$0xff] %v1073
      %1086 = vst [vmem:[#allocation2 + $0x340] sm:$0xff] %v1074
      %1087 = vst [vmem:[#allocation2 + $0x348] sm:$0xff] %v1075
      %1088 = vst [vmem:[#allocation2 + $0x350] sm:$0xff] %v1076
      %1089 = vst [vmem:[#allocation2 + $0x358] sm:$0xff] %v1077
      %v1090 = vld [vmem:[%s264 + $0x8] sm:$0xff]
      %v1091 = vld [vmem:[%s264 + $0x10] sm:$0xff]
      %v1092 = vld [vmem:[%s264 + $0x18] sm:$0xff]
      %v1093 = vld [vmem:[%s264 + $0x20] sm:$0xff]
      %v1094 = vld [vmem:[%s264 + $0x28] sm:$0xff]
      %v1095 = vld [vmem:[%s264 + $0x30] sm:$0xff]
      %v1096 = vld [vmem:[%s264 + $0x38] sm:$0xff]
      %1104 = vrot.lane.b32.xlu0 %v1090, 56
      %v1105 = vpop.permute.xlu0 %1104
      %1106 = vrot.lane.b32.xlu0 %v1091, 56
      %v1107 = vpop.permute.xlu0 %1106
      %1108 = vrot.lane.b32.xlu0 %v1092, 56
      %v1109 = vpop.permute.xlu0 %1108
      %1110 = vrot.lane.b32.xlu0 %v1093, 56
      %v1111 = vpop.permute.xlu0 %1110
      %1112 = vrot.lane.b32.xlu0 %v1094, 56
      %v1113 = vpop.permute.xlu0 %1112
      %1114 = vrot.lane.b32.xlu0 %v1095, 56
      %v1115 = vpop.permute.xlu0 %1114
      %1116 = vrot.lane.b32.xlu0 %v1096, 56
      %v1117 = vpop.permute.xlu0 %1116
      %vm1118 = vcmask 457728
      %v1119 = vsel %vm1118, %v1105, %v1107
      %v1120 = vsel %vm1118, %v1107, %v1109
      %v1121 = vsel %vm1118, %v1109, %v1111
      %v1122 = vsel %vm1118, %v1111, %v1113
      %v1123 = vsel %vm1118, %v1113, %v1115
      %v1124 = vsel %vm1118, %v1115, %v1117
      %1131 = vst [vmem:[#allocation2 + $0x360] sm:$0xff] %v1119
      %1132 = vst [vmem:[#allocation2 + $0x368] sm:$0xff] %v1120
      %1133 = vst [vmem:[#allocation2 + $0x370] sm:$0xff] %v1121
      %1134 = vst [vmem:[#allocation2 + $0x378] sm:$0xff] %v1122
      %1135 = vst [vmem:[#allocation2 + $0x380] sm:$0xff] %v1123
      %1136 = vst [vmem:[#allocation2 + $0x388] sm:$0xff] %v1124
      %v1137 = vld [vmem:[%s264 + $0x8] sm:$0xff]
      %v1138 = vld [vmem:[%s264 + $0x10] sm:$0xff]
      %v1139 = vld [vmem:[%s264 + $0x18] sm:$0xff]
      %v1140 = vld [vmem:[%s264 + $0x20] sm:$0xff]
      %v1141 = vld [vmem:[%s264 + $0x28] sm:$0xff]
      %v1142 = vld [vmem:[%s264 + $0x30] sm:$0xff]
      %v1143 = vld [vmem:[%s264 + $0x38] sm:$0xff]
      %1151 = vrot.lane.b32.xlu0 %v1137, 55
      %v1152 = vpop.permute.xlu0 %1151
      %1153 = vrot.lane.b32.xlu0 %v1138, 55
      %v1154 = vpop.permute.xlu0 %1153
      %1155 = vrot.lane.b32.xlu0 %v1139, 55
      %v1156 = vpop.permute.xlu0 %1155
      %1157 = vrot.lane.b32.xlu0 %v1140, 55
      %v1158 = vpop.permute.xlu0 %1157
      %1159 = vrot.lane.b32.xlu0 %v1141, 55
      %v1160 = vpop.permute.xlu0 %1159
      %1161 = vrot.lane.b32.xlu0 %v1142, 55
      %v1162 = vpop.permute.xlu0 %1161
      %1163 = vrot.lane.b32.xlu0 %v1143, 55
      %v1164 = vpop.permute.xlu0 %1163
      %vm1165 = vcmask 449536
      %v1166 = vsel %vm1165, %v1152, %v1154
      %v1167 = vsel %vm1165, %v1154, %v1156
      %v1168 = vsel %vm1165, %v1156, %v1158
      %v1169 = vsel %vm1165, %v1158, %v1160
      %v1170 = vsel %vm1165, %v1160, %v1162
      %v1171 = vsel %vm1165, %v1162, %v1164
      %1178 = vst [vmem:[#allocation2 + $0x390] sm:$0xff] %v1166
      %1179 = vst [vmem:[#allocation2 + $0x398] sm:$0xff] %v1167
      %1180 = vst [vmem:[#allocation2 + $0x3a0] sm:$0xff] %v1168
      %1181 = vst [vmem:[#allocation2 + $0x3a8] sm:$0xff] %v1169
      %1182 = vst [vmem:[#allocation2 + $0x3b0] sm:$0xff] %v1170
      %1183 = vst [vmem:[#allocation2 + $0x3b8] sm:$0xff] %v1171
      %v1184 = vld [vmem:[%s264 + $0x8] sm:$0xff]
      %v1185 = vld [vmem:[%s264 + $0x10] sm:$0xff]
      %v1186 = vld [vmem:[%s264 + $0x18] sm:$0xff]
      %v1187 = vld [vmem:[%s264 + $0x20] sm:$0xff]
      %v1188 = vld [vmem:[%s264 + $0x28] sm:$0xff]
      %v1189 = vld [vmem:[%s264 + $0x30] sm:$0xff]
      %v1190 = vld [vmem:[%s264 + $0x38] sm:$0xff]
      %1198 = vrot.lane.b32.xlu0 %v1184, 54
      %v1199 = vpop.permute.xlu0 %1198
      %1200 = vrot.lane.b32.xlu0 %v1185, 54
      %v1201 = vpop.permute.xlu0 %1200
      %1202 = vrot.lane.b32.xlu0 %v1186, 54
      %v1203 = vpop.permute.xlu0 %1202
      %1204 = vrot.lane.b32.xlu0 %v1187, 54
      %v1205 = vpop.permute.xlu0 %1204
      %1206 = vrot.lane.b32.xlu0 %v1188, 54
      %v1207 = vpop.permute.xlu0 %1206
      %1208 = vrot.lane.b32.xlu0 %v1189, 54
      %v1209 = vpop.permute.xlu0 %1208
      %1210 = vrot.lane.b32.xlu0 %v1190, 54
      %v1211 = vpop.permute.xlu0 %1210
      %vm1212 = vcmask 441344
      %v1213 = vsel %vm1212, %v1199, %v1201
      %v1214 = vsel %vm1212, %v1201, %v1203
      %v1215 = vsel %vm1212, %v1203, %v1205
      %v1216 = vsel %vm1212, %v1205, %v1207
      %v1217 = vsel %vm1212, %v1207, %v1209
      %v1218 = vsel %vm1212, %v1209, %v1211
      %1225 = vst [vmem:[#allocation2 + $0x3c0] sm:$0xff] %v1213
      %1226 = vst [vmem:[#allocation2 + $0x3c8] sm:$0xff] %v1214
      %1227 = vst [vmem:[#allocation2 + $0x3d0] sm:$0xff] %v1215
      %1228 = vst [vmem:[#allocation2 + $0x3d8] sm:$0xff] %v1216
      %1229 = vst [vmem:[#allocation2 + $0x3e0] sm:$0xff] %v1217
      %1230 = vst [vmem:[#allocation2 + $0x3e8] sm:$0xff] %v1218
      %v1231 = vld [vmem:[%s264 + $0x8] sm:$0xff]
      %v1232 = vld [vmem:[%s264 + $0x10] sm:$0xff]
      %v1233 = vld [vmem:[%s264 + $0x18] sm:$0xff]
      %v1234 = vld [vmem:[%s264 + $0x20] sm:$0xff]
      %v1235 = vld [vmem:[%s264 + $0x28] sm:$0xff]
      %v1236 = vld [vmem:[%s264 + $0x30] sm:$0xff]
      %v1237 = vld [vmem:[%s264 + $0x38] sm:$0xff]
      %1245 = vrot.lane.b32.xlu0 %v1231, 46
      %v1246 = vpop.permute.xlu0 %1245
      %1247 = vrot.lane.b32.xlu0 %v1232, 46
      %v1248 = vpop.permute.xlu0 %1247
      %1249 = vrot.lane.b32.xlu0 %v1233, 46
      %v1250 = vpop.permute.xlu0 %1249
      %1251 = vrot.lane.b32.xlu0 %v1234, 46
      %v1252 = vpop.permute.xlu0 %1251
      %1253 = vrot.lane.b32.xlu0 %v1235, 46
      %v1254 = vpop.permute.xlu0 %1253
      %1255 = vrot.lane.b32.xlu0 %v1236, 46
      %v1256 = vpop.permute.xlu0 %1255
      %1257 = vrot.lane.b32.xlu0 %v1237, 46
      %v1258 = vpop.permute.xlu0 %1257
      %vm1259 = vcmask 375808
      %v1260 = vsel %vm1259, %v1246, %v1248
      %v1261 = vsel %vm1259, %v1248, %v1250
      %v1262 = vsel %vm1259, %v1250, %v1252
      %v1263 = vsel %vm1259, %v1252, %v1254
      %v1264 = vsel %vm1259, %v1254, %v1256
      %v1265 = vsel %vm1259, %v1256, %v1258
      %1272 = vst [vmem:[#allocation2 + $0x3f0] sm:$0xff] %v1260
      %1273 = vst [vmem:[#allocation2 + $0x3f8] sm:$0xff] %v1261
      %1274 = vst [vmem:[#allocation2 + $0x400] sm:$0xff] %v1262
      %1275 = vst [vmem:[#allocation2 + $0x408] sm:$0xff] %v1263
      %1276 = vst [vmem:[#allocation2 + $0x410] sm:$0xff] %v1264
      %1277 = vst [vmem:[#allocation2 + $0x418] sm:$0xff] %v1265
      %v1278 = vld [vmem:[%s264 + $0x8] sm:$0xff]
      %v1279 = vld [vmem:[%s264 + $0x10] sm:$0xff]
      %v1280 = vld [vmem:[%s264 + $0x18] sm:$0xff]
      %v1281 = vld [vmem:[%s264 + $0x20] sm:$0xff]
      %v1282 = vld [vmem:[%s264 + $0x28] sm:$0xff]
      %v1283 = vld [vmem:[%s264 + $0x30] sm:$0xff]
      %v1284 = vld [vmem:[%s264 + $0x38] sm:$0xff]
      %1292 = vrot.lane.b32.xlu0 %v1278, 45
      %v1293 = vpop.permute.xlu0 %1292
      %1294 = vrot.lane.b32.xlu0 %v1279, 45
      %v1295 = vpop.permute.xlu0 %1294
      %1296 = vrot.lane.b32.xlu0 %v1280, 45
      %v1297 = vpop.permute.xlu0 %1296
      %1298 = vrot.lane.b32.xlu0 %v1281, 45
      %v1299 = vpop.permute.xlu0 %1298
      %1300 = vrot.lane.b32.xlu0 %v1282, 45
      %v1301 = vpop.permute.xlu0 %1300
      %1302 = vrot.lane.b32.xlu0 %v1283, 45
      %v1303 = vpop.permute.xlu0 %1302
      %1304 = vrot.lane.b32.xlu0 %v1284, 45
      %v1305 = vpop.permute.xlu0 %1304
      %vm1306 = vcmask 367616
      %v1307 = vsel %vm1306, %v1293, %v1295
      %v1308 = vsel %vm1306, %v1295, %v1297
      %v1309 = vsel %vm1306, %v1297, %v1299
      %v1310 = vsel %vm1306, %v1299, %v1301
      %v1311 = vsel %vm1306, %v1301, %v1303
      %v1312 = vsel %vm1306, %v1303, %v1305
      %1319 = vst [vmem:[#allocation2 + $0x420] sm:$0xff] %v1307
      %1320 = vst [vmem:[#allocation2 + $0x428] sm:$0xff] %v1308
      %1321 = vst [vmem:[#allocation2 + $0x430] sm:$0xff] %v1309
      %1322 = vst [vmem:[#allocation2 + $0x438] sm:$0xff] %v1310
      %1323 = vst [vmem:[#allocation2 + $0x440] sm:$0xff] %v1311
      %1324 = vst [vmem:[#allocation2 + $0x448] sm:$0xff] %v1312
      %v1325 = vld [vmem:[%s264 + $0x8] sm:$0xff]
      %v1326 = vld [vmem:[%s264 + $0x10] sm:$0xff]
      %v1327 = vld [vmem:[%s264 + $0x18] sm:$0xff]
      %v1328 = vld [vmem:[%s264 + $0x20] sm:$0xff]
      %v1329 = vld [vmem:[%s264 + $0x28] sm:$0xff]
      %v1330 = vld [vmem:[%s264 + $0x30] sm:$0xff]
      %v1331 = vld [vmem:[%s264 + $0x38] sm:$0xff]
      %1339 = vrot.lane.b32.xlu0 %v1325, 44
      %v1340 = vpop.permute.xlu0 %1339
      %1341 = vrot.lane.b32.xlu0 %v1326, 44
      %v1342 = vpop.permute.xlu0 %1341
      %1343 = vrot.lane.b32.xlu0 %v1327, 44
      %v1344 = vpop.permute.xlu0 %1343
      %1345 = vrot.lane.b32.xlu0 %v1328, 44
      %v1346 = vpop.permute.xlu0 %1345
      %1347 = vrot.lane.b32.xlu0 %v1329, 44
      %v1348 = vpop.permute.xlu0 %1347
      %1349 = vrot.lane.b32.xlu0 %v1330, 44
      %v1350 = vpop.permute.xlu0 %1349
      %1351 = vrot.lane.b32.xlu0 %v1331, 44
      %v1352 = vpop.permute.xlu0 %1351
      %vm1353 = vcmask 359424
      %v1354 = vsel %vm1353, %v1340, %v1342
      %v1355 = vsel %vm1353, %v1342, %v1344
      %v1356 = vsel %vm1353, %v1344, %v1346
      %v1357 = vsel %vm1353, %v1346, %v1348
      %v1358 = vsel %vm1353, %v1348, %v1350
      %v1359 = vsel %vm1353, %v1350, %v1352
      %1366 = vst [vmem:[#allocation2 + $0x450] sm:$0xff] %v1354
      %1367 = vst [vmem:[#allocation2 + $0x458] sm:$0xff] %v1355
      %1368 = vst [vmem:[#allocation2 + $0x460] sm:$0xff] %v1356
      %1369 = vst [vmem:[#allocation2 + $0x468] sm:$0xff] %v1357
      %1370 = vst [vmem:[#allocation2 + $0x470] sm:$0xff] %v1358
      %1371 = vst [vmem:[#allocation2 + $0x478] sm:$0xff] %v1359
      %v1372 = vld [vmem:[%s264 + $0x8] sm:$0xff]
      %v1373 = vld [vmem:[%s264 + $0x10] sm:$0xff]
      %v1374 = vld [vmem:[%s264 + $0x18] sm:$0xff]
      %v1375 = vld [vmem:[%s264 + $0x20] sm:$0xff]
      %v1376 = vld [vmem:[%s264 + $0x28] sm:$0xff]
      %v1377 = vld [vmem:[%s264 + $0x30] sm:$0xff]
      %v1378 = vld [vmem:[%s264 + $0x38] sm:$0xff]
      %1386 = vrot.lane.b32.xlu0 %v1372, 36
      %v1387 = vpop.permute.xlu0 %1386
      %1388 = vrot.lane.b32.xlu0 %v1373, 36
      %v1389 = vpop.permute.xlu0 %1388
      %1390 = vrot.lane.b32.xlu0 %v1374, 36
      %v1391 = vpop.permute.xlu0 %1390
      %1392 = vrot.lane.b32.xlu0 %v1375, 36
      %v1393 = vpop.permute.xlu0 %1392
      %1394 = vrot.lane.b32.xlu0 %v1376, 36
      %v1395 = vpop.permute.xlu0 %1394
      %1396 = vrot.lane.b32.xlu0 %v1377, 36
      %v1397 = vpop.permute.xlu0 %1396
      %1398 = vrot.lane.b32.xlu0 %v1378, 36
      %v1399 = vpop.permute.xlu0 %1398
      %vm1400 = vcmask 293888
      %v1401 = vsel %vm1400, %v1387, %v1389
      %v1402 = vsel %vm1400, %v1389, %v1391
      %v1403 = vsel %vm1400, %v1391, %v1393
      %v1404 = vsel %vm1400, %v1393, %v1395
      %v1405 = vsel %vm1400, %v1395, %v1397
      %v1406 = vsel %vm1400, %v1397, %v1399
      %1413 = vst [vmem:[#allocation2 + $0x480] sm:$0xff] %v1401
      %1414 = vst [vmem:[#allocation2 + $0x488] sm:$0xff] %v1402
      %1415 = vst [vmem:[#allocation2 + $0x490] sm:$0xff] %v1403
      %1416 = vst [vmem:[#allocation2 + $0x498] sm:$0xff] %v1404
      %1417 = vst [vmem:[#allocation2 + $0x4a0] sm:$0xff] %v1405
      %1418 = vst [vmem:[#allocation2 + $0x4a8] sm:$0xff] %v1406
      %v1419 = vld [vmem:[%s264 + $0x8] sm:$0xff]
      %v1420 = vld [vmem:[%s264 + $0x10] sm:$0xff]
      %v1421 = vld [vmem:[%s264 + $0x18] sm:$0xff]
      %v1422 = vld [vmem:[%s264 + $0x20] sm:$0xff]
      %v1423 = vld [vmem:[%s264 + $0x28] sm:$0xff]
      %v1424 = vld [vmem:[%s264 + $0x30] sm:$0xff]
      %v1425 = vld [vmem:[%s264 + $0x38] sm:$0xff]
      %1433 = vrot.lane.b32.xlu0 %v1419, 35
      %v1434 = vpop.permute.xlu0 %1433
      %1435 = vrot.lane.b32.xlu0 %v1420, 35
      %v1436 = vpop.permute.xlu0 %1435
      %1437 = vrot.lane.b32.xlu0 %v1421, 35
      %v1438 = vpop.permute.xlu0 %1437
      %1439 = vrot.lane.b32.xlu0 %v1422, 35
      %v1440 = vpop.permute.xlu0 %1439
      %1441 = vrot.lane.b32.xlu0 %v1423, 35
      %v1442 = vpop.permute.xlu0 %1441
      %1443 = vrot.lane.b32.xlu0 %v1424, 35
      %v1444 = vpop.permute.xlu0 %1443
      %1445 = vrot.lane.b32.xlu0 %v1425, 35
      %v1446 = vpop.permute.xlu0 %1445
      %vm1447 = vcmask 285696
      %v1448 = vsel %vm1447, %v1434, %v1436
      %v1449 = vsel %vm1447, %v1436, %v1438
      %v1450 = vsel %vm1447, %v1438, %v1440
      %v1451 = vsel %vm1447, %v1440, %v1442
      %v1452 = vsel %vm1447, %v1442, %v1444
      %v1453 = vsel %vm1447, %v1444, %v1446
      %1460 = vst [vmem:[#allocation2 + $0x4b0] sm:$0xff] %v1448
      %1461 = vst [vmem:[#allocation2 + $0x4b8] sm:$0xff] %v1449
      %1462 = vst [vmem:[#allocation2 + $0x4c0] sm:$0xff] %v1450
      %1463 = vst [vmem:[#allocation2 + $0x4c8] sm:$0xff] %v1451
      %1464 = vst [vmem:[#allocation2 + $0x4d0] sm:$0xff] %v1452
      %1465 = vst [vmem:[#allocation2 + $0x4d8] sm:$0xff] %v1453
      %v1466 = vld [vmem:[%s264 + $0x8] sm:$0xff]
      %v1467 = vld [vmem:[%s264 + $0x10] sm:$0xff]
      %v1468 = vld [vmem:[%s264 + $0x18] sm:$0xff]
      %v1469 = vld [vmem:[%s264 + $0x20] sm:$0xff]
      %v1470 = vld [vmem:[%s264 + $0x28] sm:$0xff]
      %v1471 = vld [vmem:[%s264 + $0x30] sm:$0xff]
      %v1472 = vld [vmem:[%s264 + $0x38] sm:$0xff]
      %1480 = vrot.lane.b32.xlu0 %v1466, 34
      %v1481 = vpop.permute.xlu0 %1480
      %1482 = vrot.lane.b32.xlu0 %v1467, 34
      %v1483 = vpop.permute.xlu0 %1482
      %1484 = vrot.lane.b32.xlu0 %v1468, 34
      %v1485 = vpop.permute.xlu0 %1484
      %1486 = vrot.lane.b32.xlu0 %v1469, 34
      %v1487 = vpop.permute.xlu0 %1486
      %1488 = vrot.lane.b32.xlu0 %v1470, 34
      %v1489 = vpop.permute.xlu0 %1488
      %1490 = vrot.lane.b32.xlu0 %v1471, 34
      %v1491 = vpop.permute.xlu0 %1490
      %1492 = vrot.lane.b32.xlu0 %v1472, 34
      %v1493 = vpop.permute.xlu0 %1492
      %vm1494 = vcmask 277504
      %v1495 = vsel %vm1494, %v1481, %v1483
      %v1496 = vsel %vm1494, %v1483, %v1485
      %v1497 = vsel %vm1494, %v1485, %v1487
      %v1498 = vsel %vm1494, %v1487, %v1489
      %v1499 = vsel %vm1494, %v1489, %v1491
      %v1500 = vsel %vm1494, %v1491, %v1493
      %1507 = vst [vmem:[#allocation2 + $0x4e0] sm:$0xff] %v1495
      %1508 = vst [vmem:[#allocation2 + $0x4e8] sm:$0xff] %v1496
      %1509 = vst [vmem:[#allocation2 + $0x4f0] sm:$0xff] %v1497
      %1510 = vst [vmem:[#allocation2 + $0x4f8] sm:$0xff] %v1498
      %1511 = vst [vmem:[#allocation2 + $0x500] sm:$0xff] %v1499
      %1512 = vst [vmem:[#allocation2 + $0x508] sm:$0xff] %v1500
      %1513 = vst [vmem:[#allocation2 + $0x510] sm:$0xff] 0.0
      %1514 = vst [vmem:[#allocation2 + $0x518] sm:$0xff] 0.0
      %1515 = vst [vmem:[#allocation2 + $0x520] sm:$0xff] 0.0
      %1516 = vst [vmem:[#allocation2 + $0x528] sm:$0xff] 0.0
      %1517 = vst [vmem:[#allocation2 + $0x530] sm:$0xff] 0.0
      %1518 = vst [vmem:[#allocation2 + $0x538] sm:$0xff] 0.0
      %1519 = vst [vmem:[#allocation2 + $0x540] sm:$0xff] 0.0
      %1520 = vst [vmem:[#allocation2 + $0x548] sm:$0xff] 0.0
      %1521 = vst [vmem:[#allocation2 + $0x550] sm:$0xff] 0.0
      %1522 = vst [vmem:[#allocation2 + $0x558] sm:$0xff] 0.0
      %1523 = vst [vmem:[#allocation2 + $0x560] sm:$0xff] 0.0
      %1524 = vst [vmem:[#allocation2 + $0x568] sm:$0xff] 0.0
      %1525 = vst [vmem:[#allocation2 + $0x570] sm:$0xff] 0.0
      %1526 = vst [vmem:[#allocation2 + $0x578] sm:$0xff] 0.0
      %1527 = vst [vmem:[#allocation2 + $0x580] sm:$0xff] 0.0
      %1528 = vst [vmem:[#allocation2 + $0x588] sm:$0xff] 0.0
      %1529 = vst [vmem:[#allocation2 + $0x590] sm:$0xff] 0.0
      %1530 = vst [vmem:[#allocation2 + $0x598] sm:$0xff] 0.0
      %1531 = vst [vmem:[#allocation2 + $0x5a0] sm:$0xff] 0.0
      %1532 = vst [vmem:[#allocation2 + $0x5a8] sm:$0xff] 0.0
      %1533 = vst [vmem:[#allocation2 + $0x5b0] sm:$0xff] 0.0
      %1534 = vst [vmem:[#allocation2 + $0x5b8] sm:$0xff] 0.0
      %1535 = vst [vmem:[#allocation2 + $0x5c0] sm:$0xff] 0.0
      %1536 = vst [vmem:[#allocation2 + $0x5c8] sm:$0xff] 0.0
      %1537 = vst [vmem:[#allocation2 + $0x5d0] sm:$0xff] 0.0
      %1538 = vst [vmem:[#allocation2 + $0x5d8] sm:$0xff] 0.0
      %1539 = vst [vmem:[#allocation2 + $0x5e0] sm:$0xff] 0.0
      %1540 = vst [vmem:[#allocation2 + $0x5e8] sm:$0xff] 0.0
      %1541 = vst [vmem:[#allocation2 + $0x5f0] sm:$0xff] 0.0
      %1542 = vst [vmem:[#allocation2 + $0x5f8] sm:$0xff] 0.0
      %v1543 = vld [vmem:[%s1] sm:$0xff]
      %v1544 = vld [vmem:[%s1 + $0x8] sm:$0xff]
      %v1545 = vld [vmem:[#allocation2] sm:$0xff]
      %v1546 = vld [vmem:[#allocation2 + $0x8] sm:$0xff]
      %v1547 = vld [vmem:[#allocation2 + $0x10] sm:$0xff]
      %v1548 = vld [vmem:[#allocation2 + $0x18] sm:$0xff]
      %v1549 = vld [vmem:[#allocation2 + $0x20] sm:$0xff]
      %v1550 = vld [vmem:[#allocation2 + $0x28] sm:$0xff]
      %v1551 = vld [vmem:[#allocation2 + $0x30] sm:$0xff]
      %v1552 = vld [vmem:[#allocation2 + $0x38] sm:$0xff]
      %v1553 = vld [vmem:[#allocation2 + $0x40] sm:$0xff]
      %v1554 = vld [vmem:[#allocation2 + $0x48] sm:$0xff]
      %v1555 = vld [vmem:[#allocation2 + $0x50] sm:$0xff]
      %v1556 = vld [vmem:[#allocation2 + $0x58] sm:$0xff]
      %v1557 = vld [vmem:[#allocation2 + $0x60] sm:$0xff]
      %v1558 = vld [vmem:[#allocation2 + $0x68] sm:$0xff]
      %v1559 = vld [vmem:[#allocation2 + $0x70] sm:$0xff]
      %v1560 = vld [vmem:[#allocation2 + $0x78] sm:$0xff]
      %v1561 = vld [vmem:[#allocation2 + $0x80] sm:$0xff]
      %v1562 = vld [vmem:[#allocation2 + $0x88] sm:$0xff]
      %v1563 = vld [vmem:[#allocation2 + $0x90] sm:$0xff]
      %v1564 = vld [vmem:[#allocation2 + $0x98] sm:$0xff]
      %v1565 = vld [vmem:[#allocation2 + $0xa0] sm:$0xff]
      %v1566 = vld [vmem:[#allocation2 + $0xa8] sm:$0xff]
      %v1567 = vld [vmem:[#allocation2 + $0xb0] sm:$0xff]
      %v1568 = vld [vmem:[#allocation2 + $0xb8] sm:$0xff]
      %v1569 = vld [vmem:[#allocation2 + $0xc0] sm:$0xff]
      %v1570 = vld [vmem:[#allocation2 + $0xc8] sm:$0xff]
      %v1571 = vld [vmem:[#allocation2 + $0xd0] sm:$0xff]
      %v1572 = vld [vmem:[#allocation2 + $0xd8] sm:$0xff]
      %v1573 = vld [vmem:[#allocation2 + $0xe0] sm:$0xff]
      %v1574 = vld [vmem:[#allocation2 + $0xe8] sm:$0xff]
      %v1575 = vld [vmem:[#allocation2 + $0xf0] sm:$0xff]
      %v1576 = vld [vmem:[#allocation2 + $0xf8] sm:$0xff]
      %v1577 = vld [vmem:[#allocation2 + $0x100] sm:$0xff]
      %v1578 = vld [vmem:[#allocation2 + $0x108] sm:$0xff]
      %v1579 = vld [vmem:[#allocation2 + $0x110] sm:$0xff]
      %v1580 = vld [vmem:[#allocation2 + $0x118] sm:$0xff]
      %v1581 = vld [vmem:[#allocation2 + $0x120] sm:$0xff]
      %v1582 = vld [vmem:[#allocation2 + $0x128] sm:$0xff]
      %v1583 = vld [vmem:[#allocation2 + $0x130] sm:$0xff]
      %v1584 = vld [vmem:[#allocation2 + $0x138] sm:$0xff]
      %v1585 = vld [vmem:[#allocation2 + $0x140] sm:$0xff]
      %v1586 = vld [vmem:[#allocation2 + $0x148] sm:$0xff]
      %v1587 = vld [vmem:[#allocation2 + $0x150] sm:$0xff]
      %v1588 = vld [vmem:[#allocation2 + $0x158] sm:$0xff]
      %v1589 = vld [vmem:[#allocation2 + $0x160] sm:$0xff]
      %v1590 = vld [vmem:[#allocation2 + $0x168] sm:$0xff]
      %v1591 = vld [vmem:[#allocation2 + $0x170] sm:$0xff]
      %v1592 = vld [vmem:[#allocation2 + $0x178] sm:$0xff]
      %v1593 = vld [vmem:[#allocation2 + $0x180] sm:$0xff]
      %v1594 = vld [vmem:[#allocation2 + $0x188] sm:$0xff]
      %v1595 = vld [vmem:[#allocation2 + $0x190] sm:$0xff]
      %v1596 = vld [vmem:[#allocation2 + $0x198] sm:$0xff]
      %v1597 = vld [vmem:[#allocation2 + $0x1a0] sm:$0xff]
      %v1598 = vld [vmem:[#allocation2 + $0x1a8] sm:$0xff]
      %v1599 = vld [vmem:[#allocation2 + $0x1b0] sm:$0xff]
      %v1600 = vld [vmem:[#allocation2 + $0x1b8] sm:$0xff]
      %v1601 = vld [vmem:[#allocation2 + $0x1c0] sm:$0xff]
      %v1602 = vld [vmem:[#allocation2 + $0x1c8] sm:$0xff]
      %v1603 = vld [vmem:[#allocation2 + $0x1d0] sm:$0xff]
      %v1604 = vld [vmem:[#allocation2 + $0x1d8] sm:$0xff]
      %v1605 = vld [vmem:[#allocation2 + $0x1e0] sm:$0xff]
      %v1606 = vld [vmem:[#allocation2 + $0x1e8] sm:$0xff]
      %v1607 = vld [vmem:[#allocation2 + $0x1f0] sm:$0xff]
      %v1608 = vld [vmem:[#allocation2 + $0x1f8] sm:$0xff]
      %v1609 = vld [vmem:[#allocation2 + $0x200] sm:$0xff]
      %v1610 = vld [vmem:[#allocation2 + $0x208] sm:$0xff]
      %v1611 = vld [vmem:[#allocation2 + $0x210] sm:$0xff]
      %v1612 = vld [vmem:[#allocation2 + $0x218] sm:$0xff]
      %v1613 = vld [vmem:[#allocation2 + $0x220] sm:$0xff]
      %v1614 = vld [vmem:[#allocation2 + $0x228] sm:$0xff]
      %v1615 = vld [vmem:[#allocation2 + $0x230] sm:$0xff]
      %v1616 = vld [vmem:[#allocation2 + $0x238] sm:$0xff]
      %v1617 = vld [vmem:[#allocation2 + $0x240] sm:$0xff]
      %v1618 = vld [vmem:[#allocation2 + $0x248] sm:$0xff]
      %v1619 = vld [vmem:[#allocation2 + $0x250] sm:$0xff]
      %v1620 = vld [vmem:[#allocation2 + $0x258] sm:$0xff]
      %v1621 = vld [vmem:[#allocation2 + $0x260] sm:$0xff]
      %v1622 = vld [vmem:[#allocation2 + $0x268] sm:$0xff]
      %v1623 = vld [vmem:[#allocation2 + $0x270] sm:$0xff]
      %v1624 = vld [vmem:[#allocation2 + $0x278] sm:$0xff]
      %v1625 = vld [vmem:[#allocation2 + $0x280] sm:$0xff]
      %v1626 = vld [vmem:[#allocation2 + $0x288] sm:$0xff]
      %v1627 = vld [vmem:[#allocation2 + $0x290] sm:$0xff]
      %v1628 = vld [vmem:[#allocation2 + $0x298] sm:$0xff]
      %v1629 = vld [vmem:[#allocation2 + $0x2a0] sm:$0xff]
      %v1630 = vld [vmem:[#allocation2 + $0x2a8] sm:$0xff]
      %v1631 = vld [vmem:[#allocation2 + $0x2b0] sm:$0xff]
      %v1632 = vld [vmem:[#allocation2 + $0x2b8] sm:$0xff]
      %v1633 = vld [vmem:[#allocation2 + $0x2c0] sm:$0xff]
      %v1634 = vld [vmem:[#allocation2 + $0x2c8] sm:$0xff]
      %v1635 = vld [vmem:[#allocation2 + $0x2d0] sm:$0xff]
      %v1636 = vld [vmem:[#allocation2 + $0x2d8] sm:$0xff]
      %v1637 = vld [vmem:[#allocation2 + $0x2e0] sm:$0xff]
      %v1638 = vld [vmem:[#allocation2 + $0x2e8] sm:$0xff]
      %v1639 = vld [vmem:[#allocation2 + $0x2f0] sm:$0xff]
      %v1640 = vld [vmem:[#allocation2 + $0x2f8] sm:$0xff]
      %v1641 = vld [vmem:[#allocation2 + $0x300] sm:$0xff]
      %v1642 = vld [vmem:[#allocation2 + $0x308] sm:$0xff]
      %v1643 = vld [vmem:[#allocation2 + $0x310] sm:$0xff]
      %v1644 = vld [vmem:[#allocation2 + $0x318] sm:$0xff]
      %v1645 = vld [vmem:[#allocation2 + $0x320] sm:$0xff]
      %v1646 = vld [vmem:[#allocation2 + $0x328] sm:$0xff]
      %v1647 = vld [vmem:[#allocation2 + $0x330] sm:$0xff]
      %v1648 = vld [vmem:[#allocation2 + $0x338] sm:$0xff]
      %v1649 = vld [vmem:[#allocation2 + $0x340] sm:$0xff]
      %v1650 = vld [vmem:[#allocation2 + $0x348] sm:$0xff]
      %v1651 = vld [vmem:[#allocation2 + $0x350] sm:$0xff]
      %v1652 = vld [vmem:[#allocation2 + $0x358] sm:$0xff]
      %v1653 = vld [vmem:[#allocation2 + $0x360] sm:$0xff]
      %v1654 = vld [vmem:[#allocation2 + $0x368] sm:$0xff]
      %v1655 = vld [vmem:[#allocation2 + $0x370] sm:$0xff]
      %v1656 = vld [vmem:[#allocation2 + $0x378] sm:$0xff]
      %v1657 = vld [vmem:[#allocation2 + $0x380] sm:$0xff]
      %v1658 = vld [vmem:[#allocation2 + $0x388] sm:$0xff]
      %v1659 = vld [vmem:[#allocation2 + $0x390] sm:$0xff]
      %v1660 = vld [vmem:[#allocation2 + $0x398] sm:$0xff]
      %v1661 = vld [vmem:[#allocation2 + $0x3a0] sm:$0xff]
      %v1662 = vld [vmem:[#allocation2 + $0x3a8] sm:$0xff]
      %v1663 = vld [vmem:[#allocation2 + $0x3b0] sm:$0xff]
      %v1664 = vld [vmem:[#allocation2 + $0x3b8] sm:$0xff]
      %v1665 = vld [vmem:[#allocation2 + $0x3c0] sm:$0xff]
      %v1666 = vld [vmem:[#allocation2 + $0x3c8] sm:$0xff]
      %v1667 = vld [vmem:[#allocation2 + $0x3d0] sm:$0xff]
      %v1668 = vld [vmem:[#allocation2 + $0x3d8] sm:$0xff]
      %v1669 = vld [vmem:[#allocation2 + $0x3e0] sm:$0xff]
      %v1670 = vld [vmem:[#allocation2 + $0x3e8] sm:$0xff]
      %v1671 = vld [vmem:[#allocation2 + $0x3f0] sm:$0xff]
      %v1672 = vld [vmem:[#allocation2 + $0x3f8] sm:$0xff]
      %v1673 = vld [vmem:[#allocation2 + $0x400] sm:$0xff]
      %v1674 = vld [vmem:[#allocation2 + $0x408] sm:$0xff]
      %v1675 = vld [vmem:[#allocation2 + $0x410] sm:$0xff]
      %v1676 = vld [vmem:[#allocation2 + $0x418] sm:$0xff]
      %v1677 = vld [vmem:[#allocation2 + $0x420] sm:$0xff]
      %v1678 = vld [vmem:[#allocation2 + $0x428] sm:$0xff]
      %v1679 = vld [vmem:[#allocation2 + $0x430] sm:$0xff]
      %v1680 = vld [vmem:[#allocation2 + $0x438] sm:$0xff]
      %v1681 = vld [vmem:[#allocation2 + $0x440] sm:$0xff]
      %v1682 = vld [vmem:[#allocation2 + $0x448] sm:$0xff]
      %v1683 = vld [vmem:[#allocation2 + $0x450] sm:$0xff]
      %v1684 = vld [vmem:[#allocation2 + $0x458] sm:$0xff]
      %v1685 = vld [vmem:[#allocation2 + $0x460] sm:$0xff]
      %v1686 = vld [vmem:[#allocation2 + $0x468] sm:$0xff]
      %v1687 = vld [vmem:[#allocation2 + $0x470] sm:$0xff]
      %v1688 = vld [vmem:[#allocation2 + $0x478] sm:$0xff]
      %v1689 = vld [vmem:[#allocation2 + $0x480] sm:$0xff]
      %v1690 = vld [vmem:[#allocation2 + $0x488] sm:$0xff]
      %v1691 = vld [vmem:[#allocation2 + $0x490] sm:$0xff]
      %v1692 = vld [vmem:[#allocation2 + $0x498] sm:$0xff]
      %v1693 = vld [vmem:[#allocation2 + $0x4a0] sm:$0xff]
      %v1694 = vld [vmem:[#allocation2 + $0x4a8] sm:$0xff]
      %v1695 = vld [vmem:[#allocation2 + $0x4b0] sm:$0xff]
      %v1696 = vld [vmem:[#allocation2 + $0x4b8] sm:$0xff]
      %v1697 = vld [vmem:[#allocation2 + $0x4c0] sm:$0xff]
      %v1698 = vld [vmem:[#allocation2 + $0x4c8] sm:$0xff]
      %v1699 = vld [vmem:[#allocation2 + $0x4d0] sm:$0xff]
      %v1700 = vld [vmem:[#allocation2 + $0x4d8] sm:$0xff]
      %v1701 = vld [vmem:[#allocation2 + $0x4e0] sm:$0xff]
      %v1702 = vld [vmem:[#allocation2 + $0x4e8] sm:$0xff]
      %v1703 = vld [vmem:[#allocation2 + $0x4f0] sm:$0xff]
      %v1704 = vld [vmem:[#allocation2 + $0x4f8] sm:$0xff]
      %v1705 = vld [vmem:[#allocation2 + $0x500] sm:$0xff]
      %v1706 = vld [vmem:[#allocation2 + $0x508] sm:$0xff]
      %v1707 = vld [vmem:[#allocation2 + $0x510] sm:$0xff]
      %v1708 = vld [vmem:[#allocation2 + $0x518] sm:$0xff]
      %v1709 = vld [vmem:[#allocation2 + $0x520] sm:$0xff]
      %v1710 = vld [vmem:[#allocation2 + $0x528] sm:$0xff]
      %v1711 = vld [vmem:[#allocation2 + $0x530] sm:$0xff]
      %v1712 = vld [vmem:[#allocation2 + $0x538] sm:$0xff]
      %v1713 = vld [vmem:[#allocation2 + $0x540] sm:$0xff]
      %v1714 = vld [vmem:[#allocation2 + $0x548] sm:$0xff]
      %v1715 = vld [vmem:[#allocation2 + $0x550] sm:$0xff]
      %v1716 = vld [vmem:[#allocation2 + $0x558] sm:$0xff]
      %v1717 = vld [vmem:[#allocation2 + $0x560] sm:$0xff]
      %v1718 = vld [vmem:[#allocation2 + $0x568] sm:$0xff]
      %v1719 = vld [vmem:[#allocation2 + $0x570] sm:$0xff]
      %v1720 = vld [vmem:[#allocation2 + $0x578] sm:$0xff]
      %v1721 = vld [vmem:[#allocation2 + $0x580] sm:$0xff]
      %v1722 = vld [vmem:[#allocation2 + $0x588] sm:$0xff]
      %v1723 = vld [vmem:[#allocation2 + $0x590] sm:$0xff]
      %v1724 = vld [vmem:[#allocation2 + $0x598] sm:$0xff]
      %v1725 = vld [vmem:[#allocation2 + $0x5a0] sm:$0xff]
      %v1726 = vld [vmem:[#allocation2 + $0x5a8] sm:$0xff]
      %v1727 = vld [vmem:[#allocation2 + $0x5b0] sm:$0xff]
      %v1728 = vld [vmem:[#allocation2 + $0x5b8] sm:$0xff]
      %v1729 = vld [vmem:[#allocation2 + $0x5c0] sm:$0xff]
      %v1730 = vld [vmem:[#allocation2 + $0x5c8] sm:$0xff]
      %v1731 = vld [vmem:[#allocation2 + $0x5d0] sm:$0xff]
      %v1732 = vld [vmem:[#allocation2 + $0x5d8] sm:$0xff]
      %v1733 = vld [vmem:[#allocation2 + $0x5e0] sm:$0xff]
      %v1734 = vld [vmem:[#allocation2 + $0x5e8] sm:$0xff]
      %v1735 = vld [vmem:[#allocation2 + $0x5f0] sm:$0xff]
      %v1736 = vld [vmem:[#allocation2 + $0x5f8] sm:$0xff]
      %1737 = vmatprep.subr.mxu0 %v1546
      %1738 = vmatpush1.msra.mxu0 %v1545
      %1739 = vmatprep.subr.mxu0 %v1552
      %1740 = vmatpush1.msra.mxu0 %v1551
      %1741 = vmatprep.subr.mxu0 %v1558
      %1742 = vmatpush1.msra.mxu0 %v1557
      %1743 = vmatprep.subr.mxu0 %v1564
      %1744 = vmatpush1.msra.mxu0 %v1563
      %1745 = vmatprep.subr.mxu0 %v1570
      %1746 = vmatpush1.msra.mxu0 %v1569
      %1747 = vmatprep.subr.mxu0 %v1576
      %1748 = vmatpush1.msra.mxu0 %v1575
      %1749 = vmatprep.subr.mxu0 %v1582
      %1750 = vmatpush1.msra.mxu0 %v1581
      %1751 = vmatprep.subr.mxu0 %v1588
      %1752 = vmatpush1.msra.mxu0 %v1587
      %1753 = vmatprep.subr.mxu0 %v1594
      %1754 = vmatpush1.msra.mxu0 %v1593
      %1755 = vmatprep.subr.mxu0 %v1600
      %1756 = vmatpush1.msra.mxu0 %v1599
      %1757 = vmatprep.subr.mxu0 %v1606
      %1758 = vmatpush1.msra.mxu0 %v1605
      %1759 = vmatprep.subr.mxu0 %v1612
      %1760 = vmatpush1.msra.mxu0 %v1611
      %1761 = vmatprep.subr.mxu0 %v1618
      %1762 = vmatpush1.msra.mxu0 %v1617
      %1763 = vmatprep.subr.mxu0 %v1624
      %1764 = vmatpush1.msra.mxu0 %v1623
      %1765 = vmatprep.subr.mxu0 %v1630
      %1766 = vmatpush1.msra.mxu0 %v1629
      %1767 = vmatprep.subr.mxu0 %v1636
      %1768 = vmatpush1.msra.mxu0 %v1635
      %1769 = vmatprep.subr.mxu0 %v1642
      %1770 = vmatpush1.msra.mxu0 %v1641
      %1771 = vmatprep.subr.mxu0 %v1648
      %1772 = vmatpush1.msra.mxu0 %v1647
      %1773 = vmatprep.subr.mxu0 %v1654
      %1774 = vmatpush1.msra.mxu0 %v1653
      %1775 = vmatprep.subr.mxu0 %v1660
      %1776 = vmatpush1.msra.mxu0 %v1659
      %1777 = vmatprep.subr.mxu0 %v1666
      %1778 = vmatpush1.msra.mxu0 %v1665
      %1779 = vmatprep.subr.mxu0 %v1672
      %1780 = vmatpush1.msra.mxu0 %v1671
      %1781 = vmatprep.subr.mxu0 %v1678
      %1782 = vmatpush1.msra.mxu0 %v1677
      %1783 = vmatprep.subr.mxu0 %v1684
      %1784 = vmatpush1.msra.mxu0 %v1683
      %1785 = vmatprep.subr.mxu0 %v1690
      %1786 = vmatpush1.msra.mxu0 %v1689
      %1787 = vmatprep.subr.mxu0 %v1696
      %1788 = vmatpush1.msra.mxu0 %v1695
      %1789 = vmatprep.subr.mxu0 %v1702
      %1790 = vmatpush1.msra.mxu0 %v1701
      %1791 = vmatprep.subr.mxu0 %v1708
      %1792 = vmatpush1.msra.mxu0 %v1707
      %1793 = vmatprep.subr.mxu0 %v1714
      %1794 = vmatpush1.msra.mxu0 %v1713
      %1795 = vmatprep.subr.mxu0 %v1720
      %1796 = vmatpush1.msra.mxu0 %v1719
      %1797 = vmatprep.subr.mxu0 %v1726
      %1798 = vmatpush1.msra.mxu0 %v1725
      %1799 = vmatprep.subr.mxu0 %v1732
      %1800 = vmatpush1.msra.mxu0 %v1731
      %1801 = vmatprep.mubr.f32.mxu0 %v1544
      %1802 = vmatmul.mubr.f32.gmra.mrb[0].mxu0 %v1543
      %v1803 = vpop.f32.mrb[0].mxu0
      %v1804 = vadd.f32 0.0, %v1803
      %v1805 = vpop.f32.mrb[0].mxu0
      %v1806 = vadd.f32 0.0, %v1805
      %1807 = vdwg.mxu0
      %1808 = vmatprep.subr.mxu0 %v1548
      %1809 = vmatpush1.msra.mxu0 %v1547
      %1810 = vmatprep.subr.mxu0 %v1554
      %1811 = vmatpush1.msra.mxu0 %v1553
      %1812 = vmatprep.subr.mxu0 %v1560
      %1813 = vmatpush1.msra.mxu0 %v1559
      %1814 = vmatprep.subr.mxu0 %v1566
      %1815 = vmatpush1.msra.mxu0 %v1565
      %1816 = vmatprep.subr.mxu0 %v1572
      %1817 = vmatpush1.msra.mxu0 %v1571
      %1818 = vmatprep.subr.mxu0 %v1578
      %1819 = vmatpush1.msra.mxu0 %v1577
      %1820 = vmatprep.subr.mxu0 %v1584
      %1821 = vmatpush1.msra.mxu0 %v1583
      %1822 = vmatprep.subr.mxu0 %v1590
      %1823 = vmatpush1.msra.mxu0 %v1589
      %1824 = vmatprep.subr.mxu0 %v1596
      %1825 = vmatpush1.msra.mxu0 %v1595
      %1826 = vmatprep.subr.mxu0 %v1602
      %1827 = vmatpush1.msra.mxu0 %v1601
      %1828 = vmatprep.subr.mxu0 %v1608
      %1829 = vmatpush1.msra.mxu0 %v1607
      %1830 = vmatprep.subr.mxu0 %v1614
      %1831 = vmatpush1.msra.mxu0 %v1613
      %1832 = vmatprep.subr.mxu0 %v1620
      %1833 = vmatpush1.msra.mxu0 %v1619
      %1834 = vmatprep.subr.mxu0 %v1626
      %1835 = vmatpush1.msra.mxu0 %v1625
      %1836 = vmatprep.subr.mxu0 %v1632
      %1837 = vmatpush1.msra.mxu0 %v1631
      %1838 = vmatprep.subr.mxu0 %v1638
      %1839 = vmatpush1.msra.mxu0 %v1637
      %1840 = vmatprep.subr.mxu0 %v1644
      %1841 = vmatpush1.msra.mxu0 %v1643
      %1842 = vmatprep.subr.mxu0 %v1650
      %1843 = vmatpush1.msra.mxu0 %v1649
      %1844 = vmatprep.subr.mxu0 %v1656
      %1845 = vmatpush1.msra.mxu0 %v1655
      %1846 = vmatprep.subr.mxu0 %v1662
      %1847 = vmatpush1.msra.mxu0 %v1661
      %1848 = vmatprep.subr.mxu0 %v1668
      %1849 = vmatpush1.msra.mxu0 %v1667
      %1850 = vmatprep.subr.mxu0 %v1674
      %1851 = vmatpush1.msra.mxu0 %v1673
      %1852 = vmatprep.subr.mxu0 %v1680
      %1853 = vmatpush1.msra.mxu0 %v1679
      %1854 = vmatprep.subr.mxu0 %v1686
      %1855 = vmatpush1.msra.mxu0 %v1685
      %1856 = vmatprep.subr.mxu0 %v1692
      %1857 = vmatpush1.msra.mxu0 %v1691
      %1858 = vmatprep.subr.mxu0 %v1698
      %1859 = vmatpush1.msra.mxu0 %v1697
      %1860 = vmatprep.subr.mxu0 %v1704
      %1861 = vmatpush1.msra.mxu0 %v1703
      %1862 = vmatprep.subr.mxu0 %v1710
      %1863 = vmatpush1.msra.mxu0 %v1709
      %1864 = vmatprep.subr.mxu0 %v1716
      %1865 = vmatpush1.msra.mxu0 %v1715
      %1866 = vmatprep.subr.mxu0 %v1722
      %1867 = vmatpush1.msra.mxu0 %v1721
      %1868 = vmatprep.subr.mxu0 %v1728
      %1869 = vmatpush1.msra.mxu0 %v1727
      %1870 = vmatprep.subr.mxu0 %v1734
      %1871 = vmatpush1.msra.mxu0 %v1733
      %1872 = vmatprep.mubr.f32.mxu0 %v1544
      %1873 = vmatmul.mubr.f32.gmra.mrb[0].mxu0 %v1543
      %v1874 = vpop.f32.mrb[0].mxu0
      %v1875 = vadd.f32 0.0, %v1874
      %v1876 = vpop.f32.mrb[0].mxu0
      %v1877 = vadd.f32 0.0, %v1876
      %1878 = vdwg.mxu0
      %1879 = vmatprep.subr.mxu0 %v1550
      %1880 = vmatpush1.msra.mxu0 %v1549
      %1881 = vmatprep.subr.mxu0 %v1556
      %1882 = vmatpush1.msra.mxu0 %v1555
      %1883 = vmatprep.subr.mxu0 %v1562
      %1884 = vmatpush1.msra.mxu0 %v1561
      %1885 = vmatprep.subr.mxu0 %v1568
      %1886 = vmatpush1.msra.mxu0 %v1567
      %1887 = vmatprep.subr.mxu0 %v1574
      %1888 = vmatpush1.msra.mxu0 %v1573
      %1889 = vmatprep.subr.mxu0 %v1580
      %1890 = vmatpush1.msra.mxu0 %v1579
      %1891 = vmatprep.subr.mxu0 %v1586
      %1892 = vmatpush1.msra.mxu0 %v1585
      %1893 = vmatprep.subr.mxu0 %v1592
      %1894 = vmatpush1.msra.mxu0 %v1591
      %1895 = vmatprep.subr.mxu0 %v1598
      %1896 = vmatpush1.msra.mxu0 %v1597
      %1897 = vmatprep.subr.mxu0 %v1604
      %1898 = vmatpush1.msra.mxu0 %v1603
      %1899 = vmatprep.subr.mxu0 %v1610
      %1900 = vmatpush1.msra.mxu0 %v1609
      %1901 = vmatprep.subr.mxu0 %v1616
      %1902 = vmatpush1.msra.mxu0 %v1615
      %1903 = vmatprep.subr.mxu0 %v1622
      %1904 = vmatpush1.msra.mxu0 %v1621
      %1905 = vmatprep.subr.mxu0 %v1628
      %1906 = vmatpush1.msra.mxu0 %v1627
      %1907 = vmatprep.subr.mxu0 %v1634
      %1908 = vmatpush1.msra.mxu0 %v1633
      %1909 = vmatprep.subr.mxu0 %v1640
      %1910 = vmatpush1.msra.mxu0 %v1639
      %1911 = vmatprep.subr.mxu0 %v1646
      %1912 = vmatpush1.msra.mxu0 %v1645
      %1913 = vmatprep.subr.mxu0 %v1652
      %1914 = vmatpush1.msra.mxu0 %v1651
      %1915 = vmatprep.subr.mxu0 %v1658
      %1916 = vmatpush1.msra.mxu0 %v1657
      %1917 = vmatprep.subr.mxu0 %v1664
      %1918 = vmatpush1.msra.mxu0 %v1663
      %1919 = vmatprep.subr.mxu0 %v1670
      %1920 = vmatpush1.msra.mxu0 %v1669
      %1921 = vmatprep.subr.mxu0 %v1676
      %1922 = vmatpush1.msra.mxu0 %v1675
      %1923 = vmatprep.subr.mxu0 %v1682
      %1924 = vmatpush1.msra.mxu0 %v1681
      %1925 = vmatprep.subr.mxu0 %v1688
      %1926 = vmatpush1.msra.mxu0 %v1687
      %1927 = vmatprep.subr.mxu0 %v1694
      %1928 = vmatpush1.msra.mxu0 %v1693
      %1929 = vmatprep.subr.mxu0 %v1700
      %1930 = vmatpush1.msra.mxu0 %v1699
      %1931 = vmatprep.subr.mxu0 %v1706
      %1932 = vmatpush1.msra.mxu0 %v1705
      %1933 = vmatprep.subr.mxu0 %v1712
      %1934 = vmatpush1.msra.mxu0 %v1711
      %1935 = vmatprep.subr.mxu0 %v1718
      %1936 = vmatpush1.msra.mxu0 %v1717
      %1937 = vmatprep.subr.mxu0 %v1724
      %1938 = vmatpush1.msra.mxu0 %v1723
      %1939 = vmatprep.subr.mxu0 %v1730
      %1940 = vmatpush1.msra.mxu0 %v1729
      %1941 = vmatprep.subr.mxu0 %v1736
      %1942 = vmatpush1.msra.mxu0 %v1735
      %1943 = vmatprep.mubr.f32.mxu0 %v1544
      %1944 = vmatmul.mubr.f32.gmra.mrb[0].mxu0 %v1543
      %v1945 = vpop.f32.mrb[0].mxu0
      %v1946 = vadd.f32 0.0, %v1945
      %v1947 = vpop.f32.mrb[0].mxu0
      %v1948 = vadd.f32 0.0, %v1947
      %1949 = vdwg.mxu0
      %v1950 = vmax.f32 %v1804, 0.0
      %v1951 = vmax.f32 %v1806, 0.0
      %v1952 = vmax.f32 %v1875, 0.0
      %v1953 = vmax.f32 %v1877, 0.0
      %v1954 = vmax.f32 %v1946, 0.0
      %v1955 = vmax.f32 %v1948, 0.0
      %v1956 = vld [vmem:[%s268] sm:$0x3f]
      %v1958 = vlaneseq
      %v1959 = vshrl.u32 %v1958, 7
      %v1960 = vsub.s32 0, %v1959
      %v1961 = vrot.slane %v1956, %v1960
      %v1962 = vlaneseq
      %v1963 = vshrl.u32 %v1962, 7
      %v1964 = vsub.s32 1, %v1963
      %v1965 = vrot.slane %v1956, %v1964
      %v1966 = vlaneseq
      %v1967 = vshrl.u32 %v1966, 7
      %v1968 = vsub.s32 2, %v1967
      %v1969 = vrot.slane %v1956, %v1968
      %v1970 = vlaneseq
      %v1971 = vshrl.u32 %v1970, 7
      %v1972 = vsub.s32 3, %v1971
      %v1973 = vrot.slane %v1956, %v1972
      %v1974 = vlaneseq
      %v1975 = vshrl.u32 %v1974, 7
      %v1976 = vsub.s32 4, %v1975
      %v1977 = vrot.slane %v1956, %v1976
      %v1978 = vlaneseq
      %v1979 = vshrl.u32 %v1978, 7
      %v1980 = vsub.s32 5, %v1979
      %v1981 = vrot.slane %v1956, %v1980
      %v1988 = vmul.f32 %v1950, %v1961
      %v1989 = vmul.f32 %v1951, %v1965
      %v1990 = vmul.f32 %v1952, %v1969
      %v1991 = vmul.f32 %v1953, %v1973
      %v1992 = vmul.f32 %v1954, %v1977
      %v1993 = vmul.f32 %v1955, %v1981
      %1994 = vst [vmem:[#allocation3] sm:$0xff] %v1988
      %1995 = vst [vmem:[#allocation3 + $0x8] sm:$0xff] %v1989
      %1996 = vst [vmem:[#allocation3 + $0x10] sm:$0xff] %v1990
      %1997 = vst [vmem:[#allocation3 + $0x18] sm:$0xff] %v1991
      %1998 = vst [vmem:[#allocation3 + $0x20] sm:$0xff] %v1992
      %1999 = vst [vmem:[#allocation3 + $0x28] sm:$0xff] %v1993
      %v2000 = vld [vmem:[%s3] sm:$0xff]
      %v2001 = vld [vmem:[%s264 + $0x8] sm:$0xff]
      %v2002 = vld [vmem:[%s264 + $0x10] sm:$0xff]
      %v2003 = vld [vmem:[%s264 + $0x18] sm:$0xff]
      %v2004 = vld [vmem:[%s264 + $0x20] sm:$0xff]
      %v2005 = vld [vmem:[%s264 + $0x28] sm:$0xff]
      %v2006 = vld [vmem:[%s2] sm:$0xff]
      %v2007 = vld [vmem:[#allocation3] sm:$0xff]
      %v2008 = vld [vmem:[#allocation3 + $0x8] sm:$0xff]
      %v2009 = vld [vmem:[#allocation3 + $0x10] sm:$0xff]
      %v2010 = vld [vmem:[#allocation3 + $0x18] sm:$0xff]
      %v2011 = vld [vmem:[#allocation3 + $0x20] sm:$0xff]
      %2017 = vrot.lane.b32.xlu0 %v2007, 111
      %v2018 = vpop.permute.xlu0 %2017
      %2019 = vrot.lane.b32.xlu0 %v2008, 111
      %v2020 = vpop.permute.xlu0 %2019
      %2021 = vrot.lane.b32.xlu0 %v2009, 111
      %v2022 = vpop.permute.xlu0 %2021
      %2023 = vrot.lane.b32.xlu0 %v2010, 111
      %v2024 = vpop.permute.xlu0 %2023
      %2025 = vrot.lane.b32.xlu0 %v2011, 111
      %v2026 = vpop.permute.xlu0 %2025
      %vm2027 = vcmask 908288
      %v2028 = vsel %vm2027, %v2018, %v2020
      %v2029 = vsel %vm2027, %v2020, %v2022
      %v2030 = vsel %vm2027, %v2022, %v2024
      %v2031 = vsel %vm2027, %v2024, %v2026
      %v2037 = vsel %vm977, %v2006, 0
      %2039 = vmatprep.subr.mxu0 %v2029
      %2040 = vmatpush1.msra.mxu0 %v2028
      %2041 = vmatprep.subr.mxu0 0.0
      %2042 = vmatpush1.msra.mxu0 0.0
      %2043 = vmatprep.subr.mxu0 0.0
      %2044 = vmatpush1.msra.mxu0 0.0
      %2045 = vmatprep.subr.mxu0 0.0
      %2046 = vmatpush1.msra.mxu0 0.0
      %2047 = vmatprep.subr.mxu0 0.0
      %2048 = vmatpush1.msra.mxu0 0.0
      %2049 = vmatprep.subr.mxu0 0.0
      %2050 = vmatpush1.msra.mxu0 0.0
      %2051 = vmatprep.subr.mxu0 0.0
      %2052 = vmatpush1.msra.mxu0 0.0
      %2053 = vmatprep.subr.mxu0 0.0
      %2054 = vmatpush1.msra.mxu0 0.0
      %2055 = vmatprep.subr.mxu0 0.0
      %2056 = vmatpush1.msra.mxu0 0.0
      %2057 = vmatprep.subr.mxu0 0.0
      %2058 = vmatpush1.msra.mxu0 0.0
      %2059 = vmatprep.subr.mxu0 0.0
      %2060 = vmatpush1.msra.mxu0 0.0
      %2061 = vmatprep.subr.mxu0 0.0
      %2062 = vmatpush1.msra.mxu0 0.0
      %2063 = vmatprep.subr.mxu0 0.0
      %2064 = vmatpush1.msra.mxu0 0.0
      %2065 = vmatprep.subr.mxu0 0.0
      %2066 = vmatpush1.msra.mxu0 0.0
      %2067 = vmatprep.subr.mxu0 0.0
      %2068 = vmatpush1.msra.mxu0 0.0
      %2069 = vmatprep.subr.mxu0 0.0
      %2070 = vmatpush1.msra.mxu0 0.0
      %2071 = vmatprep.subr.mxu0 0.0
      %2072 = vmatpush1.msra.mxu0 0.0
      %2073 = vmatprep.subr.mxu0 0.0
      %2074 = vmatpush1.msra.mxu0 0.0
      %2075 = vmatprep.subr.mxu0 0.0
      %2076 = vmatpush1.msra.mxu0 0.0
      %2077 = vmatprep.subr.mxu0 0.0
      %2078 = vmatpush1.msra.mxu0 0.0
      %2079 = vmatprep.subr.mxu0 0.0
      %2080 = vmatpush1.msra.mxu0 0.0
      %2081 = vmatprep.subr.mxu0 0.0
      %2082 = vmatpush1.msra.mxu0 0.0
      %2083 = vmatprep.subr.mxu0 0.0
      %2084 = vmatpush1.msra.mxu0 0.0
      %2085 = vmatprep.subr.mxu0 0.0
      %2086 = vmatpush1.msra.mxu0 0.0
      %2087 = vmatprep.subr.mxu0 0.0
      %2088 = vmatpush1.msra.mxu0 0.0
      %2089 = vmatprep.subr.mxu0 0.0
      %2090 = vmatpush1.msra.mxu0 0.0
      %2091 = vmatprep.subr.mxu0 0.0
      %2092 = vmatpush1.msra.mxu0 0.0
      %2093 = vmatprep.subr.mxu0 0.0
      %2094 = vmatpush1.msra.mxu0 0.0
      %2095 = vmatprep.subr.mxu0 0.0
      %2096 = vmatpush1.msra.mxu0 0.0
      %2097 = vmatprep.subr.mxu0 0.0
      %2098 = vmatpush1.msra.mxu0 0.0
      %2099 = vmatprep.subr.mxu0 0.0
      %2100 = vmatpush1.msra.mxu0 0.0
      %2101 = vmatprep.subr.mxu0 0.0
      %2102 = vmatpush1.msra.mxu0 0.0
      %2103 = vmatprep.mubr.f32.mxu0 0.0
      %2104 = vmatmul.mubr.f32.gmra.mrb[0].mxu0 %v2037
      %v2105 = vpop.f32.mrb[0].mxu0
      %v2106 = vadd.f32 0.0, %v2105
      %v2107 = vpop.f32.mrb[0].mxu0
      %v2108 = vadd.f32 0.0, %v2107
      %2109 = vdwg.mxu0
      %2110 = vmatprep.subr.mxu0 %v2031
      %2111 = vmatpush1.msra.mxu0 %v2030
      %2112 = vmatprep.subr.mxu0 0.0
      %2113 = vmatpush1.msra.mxu0 0.0
      %2114 = vmatprep.subr.mxu0 0.0
      %2115 = vmatpush1.msra.mxu0 0.0
      %2116 = vmatprep.subr.mxu0 0.0
      %2117 = vmatpush1.msra.mxu0 0.0
      %2118 = vmatprep.subr.mxu0 0.0
      %2119 = vmatpush1.msra.mxu0 0.0
      %2120 = vmatprep.subr.mxu0 0.0
      %2121 = vmatpush1.msra.mxu0 0.0
      %2122 = vmatprep.subr.mxu0 0.0
      %2123 = vmatpush1.msra.mxu0 0.0
      %2124 = vmatprep.subr.mxu0 0.0
      %2125 = vmatpush1.msra.mxu0 0.0
      %2126 = vmatprep.subr.mxu0 0.0
      %2127 = vmatpush1.msra.mxu0 0.0
      %2128 = vmatprep.subr.mxu0 0.0
      %2129 = vmatpush1.msra.mxu0 0.0
      %2130 = vmatprep.subr.mxu0 0.0
      %2131 = vmatpush1.msra.mxu0 0.0
      %2132 = vmatprep.subr.mxu0 0.0
      %2133 = vmatpush1.msra.mxu0 0.0
      %2134 = vmatprep.subr.mxu0 0.0
      %2135 = vmatpush1.msra.mxu0 0.0
      %2136 = vmatprep.subr.mxu0 0.0
      %2137 = vmatpush1.msra.mxu0 0.0
      %2138 = vmatprep.subr.mxu0 0.0
      %2139 = vmatpush1.msra.mxu0 0.0
      %2140 = vmatprep.subr.mxu0 0.0
      %2141 = vmatpush1.msra.mxu0 0.0
      %2142 = vmatprep.subr.mxu0 0.0
      %2143 = vmatpush1.msra.mxu0 0.0
      %2144 = vmatprep.subr.mxu0 0.0
      %2145 = vmatpush1.msra.mxu0 0.0
      %2146 = vmatprep.subr.mxu0 0.0
      %2147 = vmatpush1.msra.mxu0 0.0
      %2148 = vmatprep.subr.mxu0 0.0
      %2149 = vmatpush1.msra.mxu0 0.0
      %2150 = vmatprep.subr.mxu0 0.0
      %2151 = vmatpush1.msra.mxu0 0.0
      %2152 = vmatprep.subr.mxu0 0.0
      %2153 = vmatpush1.msra.mxu0 0.0
      %2154 = vmatprep.subr.mxu0 0.0
      %2155 = vmatpush1.msra.mxu0 0.0
      %2156 = vmatprep.subr.mxu0 0.0
      %2157 = vmatpush1.msra.mxu0 0.0
      %2158 = vmatprep.subr.mxu0 0.0
      %2159 = vmatpush1.msra.mxu0 0.0
      %2160 = vmatprep.subr.mxu0 0.0
      %2161 = vmatpush1.msra.mxu0 0.0
      %2162 = vmatprep.subr.mxu0 0.0
      %2163 = vmatpush1.msra.mxu0 0.0
      %2164 = vmatprep.subr.mxu0 0.0
      %2165 = vmatpush1.msra.mxu0 0.0
      %2166 = vmatprep.subr.mxu0 0.0
      %2167 = vmatpush1.msra.mxu0 0.0
      %2168 = vmatprep.subr.mxu0 0.0
      %2169 = vmatpush1.msra.mxu0 0.0
      %2170 = vmatprep.subr.mxu0 0.0
      %2171 = vmatpush1.msra.mxu0 0.0
      %2172 = vmatprep.subr.mxu0 0.0
      %2173 = vmatpush1.msra.mxu0 0.0
      %2174 = vmatprep.mubr.f32.mxu0 0.0
      %2175 = vmatmul.mubr.f32.gmra.mrb[0].mxu0 %v2037
      %v2176 = vpop.f32.mrb[0].mxu0
      %v2177 = vadd.f32 0.0, %v2176
      %v2178 = vpop.f32.mrb[0].mxu0
      %v2179 = vadd.f32 0.0, %v2178
      %2180 = vdwg.mxu0
      %2186 = vrot.lane.b32.xlu0 %v2001, 17
      %v2187 = vpop.permute.xlu0 %2186
      %2188 = vrot.lane.b32.xlu0 %v2002, 17
      %v2189 = vpop.permute.xlu0 %2188
      %2190 = vrot.lane.b32.xlu0 %v2003, 17
      %v2191 = vpop.permute.xlu0 %2190
      %2192 = vrot.lane.b32.xlu0 %v2004, 17
      %v2193 = vpop.permute.xlu0 %2192
      %2194 = vrot.lane.b32.xlu0 %v2005, 17
      %v2195 = vpop.permute.xlu0 %2194
      %v2196 = vsel %vm883, %v2187, %v2189
      %v2197 = vsel %vm883, %v2189, %v2191
      %v2198 = vsel %vm883, %v2191, %v2193
      %v2199 = vsel %vm883, %v2193, %v2195
      %v2205 = vsel %vm977, %v2000, 0
      %2207 = vmatprep.subr.mxu0 %v2197
      %2208 = vmatpush1.msra.mxu0 %v2196
      %2209 = vmatprep.subr.mxu0 0.0
      %2210 = vmatpush1.msra.mxu0 0.0
      %2211 = vmatprep.subr.mxu0 0.0
      %2212 = vmatpush1.msra.mxu0 0.0
      %2213 = vmatprep.subr.mxu0 0.0
      %2214 = vmatpush1.msra.mxu0 0.0
      %2215 = vmatprep.subr.mxu0 0.0
      %2216 = vmatpush1.msra.mxu0 0.0
      %2217 = vmatprep.subr.mxu0 0.0
      %2218 = vmatpush1.msra.mxu0 0.0
      %2219 = vmatprep.subr.mxu0 0.0
      %2220 = vmatpush1.msra.mxu0 0.0
      %2221 = vmatprep.subr.mxu0 0.0
      %2222 = vmatpush1.msra.mxu0 0.0
      %2223 = vmatprep.subr.mxu0 0.0
      %2224 = vmatpush1.msra.mxu0 0.0
      %2225 = vmatprep.subr.mxu0 0.0
      %2226 = vmatpush1.msra.mxu0 0.0
      %2227 = vmatprep.subr.mxu0 0.0
      %2228 = vmatpush1.msra.mxu0 0.0
      %2229 = vmatprep.subr.mxu0 0.0
      %2230 = vmatpush1.msra.mxu0 0.0
      %2231 = vmatprep.subr.mxu0 0.0
      %2232 = vmatpush1.msra.mxu0 0.0
      %2233 = vmatprep.subr.mxu0 0.0
      %2234 = vmatpush1.msra.mxu0 0.0
      %2235 = vmatprep.subr.mxu0 0.0
      %2236 = vmatpush1.msra.mxu0 0.0
      %2237 = vmatprep.subr.mxu0 0.0
      %2238 = vmatpush1.msra.mxu0 0.0
      %2239 = vmatprep.subr.mxu0 0.0
      %2240 = vmatpush1.msra.mxu0 0.0
      %2241 = vmatprep.subr.mxu0 0.0
      %2242 = vmatpush1.msra.mxu0 0.0
      %2243 = vmatprep.subr.mxu0 0.0
      %2244 = vmatpush1.msra.mxu0 0.0
      %2245 = vmatprep.subr.mxu0 0.0
      %2246 = vmatpush1.msra.mxu0 0.0
      %2247 = vmatprep.subr.mxu0 0.0
      %2248 = vmatpush1.msra.mxu0 0.0
      %2249 = vmatprep.subr.mxu0 0.0
      %2250 = vmatpush1.msra.mxu0 0.0
      %2251 = vmatprep.subr.mxu0 0.0
      %2252 = vmatpush1.msra.mxu0 0.0
      %2253 = vmatprep.subr.mxu0 0.0
      %2254 = vmatpush1.msra.mxu0 0.0
      %2255 = vmatprep.subr.mxu0 0.0
      %2256 = vmatpush1.msra.mxu0 0.0
      %2257 = vmatprep.subr.mxu0 0.0
      %2258 = vmatpush1.msra.mxu0 0.0
      %2259 = vmatprep.subr.mxu0 0.0
      %2260 = vmatpush1.msra.mxu0 0.0
      %2261 = vmatprep.subr.mxu0 0.0
      %2262 = vmatpush1.msra.mxu0 0.0
      %2263 = vmatprep.subr.mxu0 0.0
      %2264 = vmatpush1.msra.mxu0 0.0
      %2265 = vmatprep.subr.mxu0 0.0
      %2266 = vmatpush1.msra.mxu0 0.0
      %2267 = vmatprep.subr.mxu0 0.0
      %2268 = vmatpush1.msra.mxu0 0.0
      %2269 = vmatprep.subr.mxu0 0.0
      %2270 = vmatpush1.msra.mxu0 0.0
      %2271 = vmatprep.mubr.f32.mxu0 0.0
      %2272 = vmatmul.mubr.f32.gmra.mrb[0].mxu0 %v2205
      %v2273 = vpop.f32.mrb[0].mxu0
      %v2274 = vadd.f32 %v2106, %v2273
      %v2275 = vpop.f32.mrb[0].mxu0
      %v2276 = vadd.f32 %v2108, %v2275
      %2277 = vdwg.mxu0
      %2278 = vmatprep.subr.mxu0 %v2199
      %2279 = vmatpush1.msra.mxu0 %v2198
      %2280 = vmatprep.subr.mxu0 0.0
      %2281 = vmatpush1.msra.mxu0 0.0
      %2282 = vmatprep.subr.mxu0 0.0
      %2283 = vmatpush1.msra.mxu0 0.0
      %2284 = vmatprep.subr.mxu0 0.0
      %2285 = vmatpush1.msra.mxu0 0.0
      %2286 = vmatprep.subr.mxu0 0.0
      %2287 = vmatpush1.msra.mxu0 0.0
      %2288 = vmatprep.subr.mxu0 0.0
      %2289 = vmatpush1.msra.mxu0 0.0
      %2290 = vmatprep.subr.mxu0 0.0
      %2291 = vmatpush1.msra.mxu0 0.0
      %2292 = vmatprep.subr.mxu0 0.0
      %2293 = vmatpush1.msra.mxu0 0.0
      %2294 = vmatprep.subr.mxu0 0.0
      %2295 = vmatpush1.msra.mxu0 0.0
      %2296 = vmatprep.subr.mxu0 0.0
      %2297 = vmatpush1.msra.mxu0 0.0
      %2298 = vmatprep.subr.mxu0 0.0
      %2299 = vmatpush1.msra.mxu0 0.0
      %2300 = vmatprep.subr.mxu0 0.0
      %2301 = vmatpush1.msra.mxu0 0.0
      %2302 = vmatprep.subr.mxu0 0.0
      %2303 = vmatpush1.msra.mxu0 0.0
      %2304 = vmatprep.subr.mxu0 0.0
      %2305 = vmatpush1.msra.mxu0 0.0
      %2306 = vmatprep.subr.mxu0 0.0
      %2307 = vmatpush1.msra.mxu0 0.0
      %2308 = vmatprep.subr.mxu0 0.0
      %2309 = vmatpush1.msra.mxu0 0.0
      %2310 = vmatprep.subr.mxu0 0.0
      %2311 = vmatpush1.msra.mxu0 0.0
      %2312 = vmatprep.subr.mxu0 0.0
      %2313 = vmatpush1.msra.mxu0 0.0
      %2314 = vmatprep.subr.mxu0 0.0
      %2315 = vmatpush1.msra.mxu0 0.0
      %2316 = vmatprep.subr.mxu0 0.0
      %2317 = vmatpush1.msra.mxu0 0.0
      %2318 = vmatprep.subr.mxu0 0.0
      %2319 = vmatpush1.msra.mxu0 0.0
      %2320 = vmatprep.subr.mxu0 0.0
      %2321 = vmatpush1.msra.mxu0 0.0
      %2322 = vmatprep.subr.mxu0 0.0
      %2323 = vmatpush1.msra.mxu0 0.0
      %2324 = vmatprep.subr.mxu0 0.0
      %2325 = vmatpush1.msra.mxu0 0.0
      %2326 = vmatprep.subr.mxu0 0.0
      %2327 = vmatpush1.msra.mxu0 0.0
      %2328 = vmatprep.subr.mxu0 0.0
      %2329 = vmatpush1.msra.mxu0 0.0
      %2330 = vmatprep.subr.mxu0 0.0
      %2331 = vmatpush1.msra.mxu0 0.0
      %2332 = vmatprep.subr.mxu0 0.0
      %2333 = vmatpush1.msra.mxu0 0.0
      %2334 = vmatprep.subr.mxu0 0.0
      %2335 = vmatpush1.msra.mxu0 0.0
      %2336 = vmatprep.subr.mxu0 0.0
      %2337 = vmatpush1.msra.mxu0 0.0
      %2338 = vmatprep.subr.mxu0 0.0
      %2339 = vmatpush1.msra.mxu0 0.0
      %2340 = vmatprep.subr.mxu0 0.0
      %2341 = vmatpush1.msra.mxu0 0.0
      %2342 = vmatprep.mubr.f32.mxu0 0.0
      %2343 = vmatmul.mubr.f32.gmra.mrb[0].mxu0 %v2205
      %v2344 = vpop.f32.mrb[0].mxu0
      %v2345 = vadd.f32 %v2177, %v2344
      %v2346 = vpop.f32.mrb[0].mxu0
      %v2347 = vadd.f32 %v2179, %v2346
      %2348 = vdwg.mxu0
      %s2349 = scalar_lea.vmem %s2, 8
      %v2350 = vld [vmem:[%s2349] sm:$0xff]
      %2351 = vrot.lane.b32.xlu0 %v2007, 110
      %v2352 = vpop.permute.xlu0 %2351
      %2353 = vrot.lane.b32.xlu0 %v2008, 110
      %v2354 = vpop.permute.xlu0 %2353
      %2355 = vrot.lane.b32.xlu0 %v2009, 110
      %v2356 = vpop.permute.xlu0 %2355
      %2357 = vrot.lane.b32.xlu0 %v2010, 110
      %v2358 = vpop.permute.xlu0 %2357
      %2359 = vrot.lane.b32.xlu0 %v2011, 110
      %v2360 = vpop.permute.xlu0 %2359
      %vm2361 = vcmask 900096
      %v2362 = vsel %vm2361, %v2352, %v2354
      %v2363 = vsel %vm2361, %v2354, %v2356
      %v2364 = vsel %vm2361, %v2356, %v2358
      %v2365 = vsel %vm2361, %v2358, %v2360
      %v2371 = vsel %vm977, %v2350, 0
      %2373 = vmatprep.subr.mxu0 %v2363
      %2374 = vmatpush1.msra.mxu0 %v2362
      %2375 = vmatprep.subr.mxu0 0.0
      %2376 = vmatpush1.msra.mxu0 0.0
      %2377 = vmatprep.subr.mxu0 0.0
      %2378 = vmatpush1.msra.mxu0 0.0
      %2379 = vmatprep.subr.mxu0 0.0
      %2380 = vmatpush1.msra.mxu0 0.0
      %2381 = vmatprep.subr.mxu0 0.0
      %2382 = vmatpush1.msra.mxu0 0.0
      %2383 = vmatprep.subr.mxu0 0.0
      %2384 = vmatpush1.msra.mxu0 0.0
      %2385 = vmatprep.subr.mxu0 0.0
      %2386 = vmatpush1.msra.mxu0 0.0
      %2387 = vmatprep.subr.mxu0 0.0
      %2388 = vmatpush1.msra.mxu0 0.0
      %2389 = vmatprep.subr.mxu0 0.0
      %2390 = vmatpush1.msra.mxu0 0.0
      %2391 = vmatprep.subr.mxu0 0.0
      %2392 = vmatpush1.msra.mxu0 0.0
      %2393 = vmatprep.subr.mxu0 0.0
      %2394 = vmatpush1.msra.mxu0 0.0
      %2395 = vmatprep.subr.mxu0 0.0
      %2396 = vmatpush1.msra.mxu0 0.0
      %2397 = vmatprep.subr.mxu0 0.0
      %2398 = vmatpush1.msra.mxu0 0.0
      %2399 = vmatprep.subr.mxu0 0.0
      %2400 = vmatpush1.msra.mxu0 0.0
      %2401 = vmatprep.subr.mxu0 0.0
      %2402 = vmatpush1.msra.mxu0 0.0
      %2403 = vmatprep.subr.mxu0 0.0
      %2404 = vmatpush1.msra.mxu0 0.0
      %2405 = vmatprep.subr.mxu0 0.0
      %2406 = vmatpush1.msra.mxu0 0.0
      %2407 = vmatprep.subr.mxu0 0.0
      %2408 = vmatpush1.msra.mxu0 0.0
      %2409 = vmatprep.subr.mxu0 0.0
      %2410 = vmatpush1.msra.mxu0 0.0
      %2411 = vmatprep.subr.mxu0 0.0
      %2412 = vmatpush1.msra.mxu0 0.0
      %2413 = vmatprep.subr.mxu0 0.0
      %2414 = vmatpush1.msra.mxu0 0.0
      %2415 = vmatprep.subr.mxu0 0.0
      %2416 = vmatpush1.msra.mxu0 0.0
      %2417 = vmatprep.subr.mxu0 0.0
      %2418 = vmatpush1.msra.mxu0 0.0
      %2419 = vmatprep.subr.mxu0 0.0
      %2420 = vmatpush1.msra.mxu0 0.0
      %2421 = vmatprep.subr.mxu0 0.0
      %2422 = vmatpush1.msra.mxu0 0.0
      %2423 = vmatprep.subr.mxu0 0.0
      %2424 = vmatpush1.msra.mxu0 0.0
      %2425 = vmatprep.subr.mxu0 0.0
      %2426 = vmatpush1.msra.mxu0 0.0
      %2427 = vmatprep.subr.mxu0 0.0
      %2428 = vmatpush1.msra.mxu0 0.0
      %2429 = vmatprep.subr.mxu0 0.0
      %2430 = vmatpush1.msra.mxu0 0.0
      %2431 = vmatprep.subr.mxu0 0.0
      %2432 = vmatpush1.msra.mxu0 0.0
      %2433 = vmatprep.subr.mxu0 0.0
      %2434 = vmatpush1.msra.mxu0 0.0
      %2435 = vmatprep.subr.mxu0 0.0
      %2436 = vmatpush1.msra.mxu0 0.0
      %2437 = vmatprep.mubr.f32.mxu0 0.0
      %2438 = vmatmul.mubr.f32.gmra.mrb[0].mxu0 %v2371
      %v2439 = vpop.f32.mrb[0].mxu0
      %v2440 = vadd.f32 0.0, %v2439
      %v2441 = vpop.f32.mrb[0].mxu0
      %v2442 = vadd.f32 0.0, %v2441
      %2443 = vdwg.mxu0
      %2444 = vmatprep.subr.mxu0 %v2365
      %2445 = vmatpush1.msra.mxu0 %v2364
      %2446 = vmatprep.subr.mxu0 0.0
      %2447 = vmatpush1.msra.mxu0 0.0
      %2448 = vmatprep.subr.mxu0 0.0
      %2449 = vmatpush1.msra.mxu0 0.0
      %2450 = vmatprep.subr.mxu0 0.0
      %2451 = vmatpush1.msra.mxu0 0.0
      %2452 = vmatprep.subr.mxu0 0.0
      %2453 = vmatpush1.msra.mxu0 0.0
      %2454 = vmatprep.subr.mxu0 0.0
      %2455 = vmatpush1.msra.mxu0 0.0
      %2456 = vmatprep.subr.mxu0 0.0
      %2457 = vmatpush1.msra.mxu0 0.0
      %2458 = vmatprep.subr.mxu0 0.0
      %2459 = vmatpush1.msra.mxu0 0.0
      %2460 = vmatprep.subr.mxu0 0.0
      %2461 = vmatpush1.msra.mxu0 0.0
      %2462 = vmatprep.subr.mxu0 0.0
      %2463 = vmatpush1.msra.mxu0 0.0
      %2464 = vmatprep.subr.mxu0 0.0
      %2465 = vmatpush1.msra.mxu0 0.0
      %2466 = vmatprep.subr.mxu0 0.0
      %2467 = vmatpush1.msra.mxu0 0.0
      %2468 = vmatprep.subr.mxu0 0.0
      %2469 = vmatpush1.msra.mxu0 0.0
      %2470 = vmatprep.subr.mxu0 0.0
      %2471 = vmatpush1.msra.mxu0 0.0
      %2472 = vmatprep.subr.mxu0 0.0
      %2473 = vmatpush1.msra.mxu0 0.0
      %2474 = vmatprep.subr.mxu0 0.0
      %2475 = vmatpush1.msra.mxu0 0.0
      %2476 = vmatprep.subr.mxu0 0.0
      %2477 = vmatpush1.msra.mxu0 0.0
      %2478 = vmatprep.subr.mxu0 0.0
      %2479 = vmatpush1.msra.mxu0 0.0
      %2480 = vmatprep.subr.mxu0 0.0
      %2481 = vmatpush1.msra.mxu0 0.0
      %2482 = vmatprep.subr.mxu0 0.0
      %2483 = vmatpush1.msra.mxu0 0.0
      %2484 = vmatprep.subr.mxu0 0.0
      %2485 = vmatpush1.msra.mxu0 0.0
      %2486 = vmatprep.subr.mxu0 0.0
      %2487 = vmatpush1.msra.mxu0 0.0
      %2488 = vmatprep.subr.mxu0 0.0
      %2489 = vmatpush1.msra.mxu0 0.0
      %2490 = vmatprep.subr.mxu0 0.0
      %2491 = vmatpush1.msra.mxu0 0.0
      %2492 = vmatprep.subr.mxu0 0.0
      %2493 = vmatpush1.msra.mxu0 0.0
      %2494 = vmatprep.subr.mxu0 0.0
      %2495 = vmatpush1.msra.mxu0 0.0
      %2496 = vmatprep.subr.mxu0 0.0
      %2497 = vmatpush1.msra.mxu0 0.0
      %2498 = vmatprep.subr.mxu0 0.0
      %2499 = vmatpush1.msra.mxu0 0.0
      %2500 = vmatprep.subr.mxu0 0.0
      %2501 = vmatpush1.msra.mxu0 0.0
      %2502 = vmatprep.subr.mxu0 0.0
      %2503 = vmatpush1.msra.mxu0 0.0
      %2504 = vmatprep.subr.mxu0 0.0
      %2505 = vmatpush1.msra.mxu0 0.0
      %2506 = vmatprep.subr.mxu0 0.0
      %2507 = vmatpush1.msra.mxu0 0.0
      %2508 = vmatprep.mubr.f32.mxu0 0.0
      %2509 = vmatmul.mubr.f32.gmra.mrb[0].mxu0 %v2371
      %v2510 = vpop.f32.mrb[0].mxu0
      %v2511 = vadd.f32 0.0, %v2510
      %v2512 = vpop.f32.mrb[0].mxu0
      %v2513 = vadd.f32 0.0, %v2512
      %2514 = vdwg.mxu0
      %v2515 = vadd.f32 %v2274, %v2440
      %v2516 = vadd.f32 %v2276, %v2442
      %v2517 = vadd.f32 %v2345, %v2511
      %v2518 = vadd.f32 %v2347, %v2513
      %s2519 = scalar_lea.vmem %s2, 16
      %v2520 = vld [vmem:[%s2519] sm:$0xff]
      %2521 = vrot.lane.b32.xlu0 %v2007, 109
      %v2522 = vpop.permute.xlu0 %2521
      %2523 = vrot.lane.b32.xlu0 %v2008, 109
      %v2524 = vpop.permute.xlu0 %2523
      %2525 = vrot.lane.b32.xlu0 %v2009, 109
      %v2526 = vpop.permute.xlu0 %2525
      %2527 = vrot.lane.b32.xlu0 %v2010, 109
      %v2528 = vpop.permute.xlu0 %2527
      %2529 = vrot.lane.b32.xlu0 %v2011, 109
      %v2530 = vpop.permute.xlu0 %2529
      %vm2531 = vcmask 891904
      %v2532 = vsel %vm2531, %v2522, %v2524
      %v2533 = vsel %vm2531, %v2524, %v2526
      %v2534 = vsel %vm2531, %v2526, %v2528
      %v2535 = vsel %vm2531, %v2528, %v2530
      %v2541 = vsel %vm977, %v2520, 0
      %2543 = vmatprep.subr.mxu0 %v2533
      %2544 = vmatpush1.msra.mxu0 %v2532
      %2545 = vmatprep.subr.mxu0 0.0
      %2546 = vmatpush1.msra.mxu0 0.0
      %2547 = vmatprep.subr.mxu0 0.0
      %2548 = vmatpush1.msra.mxu0 0.0
      %2549 = vmatprep.subr.mxu0 0.0
      %2550 = vmatpush1.msra.mxu0 0.0
      %2551 = vmatprep.subr.mxu0 0.0
      %2552 = vmatpush1.msra.mxu0 0.0
      %2553 = vmatprep.subr.mxu0 0.0
      %2554 = vmatpush1.msra.mxu0 0.0
      %2555 = vmatprep.subr.mxu0 0.0
      %2556 = vmatpush1.msra.mxu0 0.0
      %2557 = vmatprep.subr.mxu0 0.0
      %2558 = vmatpush1.msra.mxu0 0.0
      %2559 = vmatprep.subr.mxu0 0.0
      %2560 = vmatpush1.msra.mxu0 0.0
      %2561 = vmatprep.subr.mxu0 0.0
      %2562 = vmatpush1.msra.mxu0 0.0
      %2563 = vmatprep.subr.mxu0 0.0
      %2564 = vmatpush1.msra.mxu0 0.0
      %2565 = vmatprep.subr.mxu0 0.0
      %2566 = vmatpush1.msra.mxu0 0.0
      %2567 = vmatprep.subr.mxu0 0.0
      %2568 = vmatpush1.msra.mxu0 0.0
      %2569 = vmatprep.subr.mxu0 0.0
      %2570 = vmatpush1.msra.mxu0 0.0
      %2571 = vmatprep.subr.mxu0 0.0
      %2572 = vmatpush1.msra.mxu0 0.0
      %2573 = vmatprep.subr.mxu0 0.0
      %2574 = vmatpush1.msra.mxu0 0.0
      %2575 = vmatprep.subr.mxu0 0.0
      %2576 = vmatpush1.msra.mxu0 0.0
      %2577 = vmatprep.subr.mxu0 0.0
      %2578 = vmatpush1.msra.mxu0 0.0
      %2579 = vmatprep.subr.mxu0 0.0
      %2580 = vmatpush1.msra.mxu0 0.0
      %2581 = vmatprep.subr.mxu0 0.0
      %2582 = vmatpush1.msra.mxu0 0.0
      %2583 = vmatprep.subr.mxu0 0.0
      %2584 = vmatpush1.msra.mxu0 0.0
      %2585 = vmatprep.subr.mxu0 0.0
      %2586 = vmatpush1.msra.mxu0 0.0
      %2587 = vmatprep.subr.mxu0 0.0
      %2588 = vmatpush1.msra.mxu0 0.0
      %2589 = vmatprep.subr.mxu0 0.0
      %2590 = vmatpush1.msra.mxu0 0.0
      %2591 = vmatprep.subr.mxu0 0.0
      %2592 = vmatpush1.msra.mxu0 0.0
      %2593 = vmatprep.subr.mxu0 0.0
      %2594 = vmatpush1.msra.mxu0 0.0
      %2595 = vmatprep.subr.mxu0 0.0
      %2596 = vmatpush1.msra.mxu0 0.0
      %2597 = vmatprep.subr.mxu0 0.0
      %2598 = vmatpush1.msra.mxu0 0.0
      %2599 = vmatprep.subr.mxu0 0.0
      %2600 = vmatpush1.msra.mxu0 0.0
      %2601 = vmatprep.subr.mxu0 0.0
      %2602 = vmatpush1.msra.mxu0 0.0
      %2603 = vmatprep.subr.mxu0 0.0
      %2604 = vmatpush1.msra.mxu0 0.0
      %2605 = vmatprep.subr.mxu0 0.0
      %2606 = vmatpush1.msra.mxu0 0.0
      %2607 = vmatprep.mubr.f32.mxu0 0.0
      %2608 = vmatmul.mubr.f32.gmra.mrb[0].mxu0 %v2541
      %v2609 = vpop.f32.mrb[0].mxu0
      %v2610 = vadd.f32 0.0, %v2609
      %v2611 = vpop.f32.mrb[0].mxu0
      %v2612 = vadd.f32 0.0, %v2611
      %2613 = vdwg.mxu0
      %2614 = vmatprep.subr.mxu0 %v2535
      %2615 = vmatpush1.msra.mxu0 %v2534
      %2616 = vmatprep.subr.mxu0 0.0
      %2617 = vmatpush1.msra.mxu0 0.0
      %2618 = vmatprep.subr.mxu0 0.0
      %2619 = vmatpush1.msra.mxu0 0.0
      %2620 = vmatprep.subr.mxu0 0.0
      %2621 = vmatpush1.msra.mxu0 0.0
      %2622 = vmatprep.subr.mxu0 0.0
      %2623 = vmatpush1.msra.mxu0 0.0
      %2624 = vmatprep.subr.mxu0 0.0
      %2625 = vmatpush1.msra.mxu0 0.0
      %2626 = vmatprep.subr.mxu0 0.0
      %2627 = vmatpush1.msra.mxu0 0.0
      %2628 = vmatprep.subr.mxu0 0.0
      %2629 = vmatpush1.msra.mxu0 0.0
      %2630 = vmatprep.subr.mxu0 0.0
      %2631 = vmatpush1.msra.mxu0 0.0
      %2632 = vmatprep.subr.mxu0 0.0
      %2633 = vmatpush1.msra.mxu0 0.0
      %2634 = vmatprep.subr.mxu0 0.0
      %2635 = vmatpush1.msra.mxu0 0.0
      %2636 = vmatprep.subr.mxu0 0.0
      %2637 = vmatpush1.msra.mxu0 0.0
      %2638 = vmatprep.subr.mxu0 0.0
      %2639 = vmatpush1.msra.mxu0 0.0
      %2640 = vmatprep.subr.mxu0 0.0
      %2641 = vmatpush1.msra.mxu0 0.0
      %2642 = vmatprep.subr.mxu0 0.0
      %2643 = vmatpush1.msra.mxu0 0.0
      %2644 = vmatprep.subr.mxu0 0.0
      %2645 = vmatpush1.msra.mxu0 0.0
      %2646 = vmatprep.subr.mxu0 0.0
      %2647 = vmatpush1.msra.mxu0 0.0
      %2648 = vmatprep.subr.mxu0 0.0
      %2649 = vmatpush1.msra.mxu0 0.0
      %2650 = vmatprep.subr.mxu0 0.0
      %2651 = vmatpush1.msra.mxu0 0.0
      %2652 = vmatprep.subr.mxu0 0.0
      %2653 = vmatpush1.msra.mxu0 0.0
      %2654 = vmatprep.subr.mxu0 0.0
      %2655 = vmatpush1.msra.mxu0 0.0
      %2656 = vmatprep.subr.mxu0 0.0
      %2657 = vmatpush1.msra.mxu0 0.0
      %2658 = vmatprep.subr.mxu0 0.0
      %2659 = vmatpush1.msra.mxu0 0.0
      %2660 = vmatprep.subr.mxu0 0.0
      %2661 = vmatpush1.msra.mxu0 0.0
      %2662 = vmatprep.subr.mxu0 0.0
      %2663 = vmatpush1.msra.mxu0 0.0
      %2664 = vmatprep.subr.mxu0 0.0
      %2665 = vmatpush1.msra.mxu0 0.0
      %2666 = vmatprep.subr.mxu0 0.0
      %2667 = vmatpush1.msra.mxu0 0.0
      %2668 = vmatprep.subr.mxu0 0.0
      %2669 = vmatpush1.msra.mxu0 0.0
      %2670 = vmatprep.subr.mxu0 0.0
      %2671 = vmatpush1.msra.mxu0 0.0
      %2672 = vmatprep.subr.mxu0 0.0
      %2673 = vmatpush1.msra.mxu0 0.0
      %2674 = vmatprep.subr.mxu0 0.0
      %2675 = vmatpush1.msra.mxu0 0.0
      %2676 = vmatprep.subr.mxu0 0.0
      %2677 = vmatpush1.msra.mxu0 0.0
      %2678 = vmatprep.mubr.f32.mxu0 0.0
      %2679 = vmatmul.mubr.f32.gmra.mrb[0].mxu0 %v2541
      %v2680 = vpop.f32.mrb[0].mxu0
      %v2681 = vadd.f32 0.0, %v2680
      %v2682 = vpop.f32.mrb[0].mxu0
      %v2683 = vadd.f32 0.0, %v2682
      %2684 = vdwg.mxu0
      %v2685 = vadd.f32 %v2515, %v2610
      %v2686 = vadd.f32 %v2516, %v2612
      %v2687 = vadd.f32 %v2517, %v2681
      %v2688 = vadd.f32 %v2518, %v2683
      %s2689 = scalar_lea.vmem %s2, 24
      %v2690 = vld [vmem:[%s2689] sm:$0xff]
      %2691 = vrot.lane.b32.xlu0 %v2007, 101
      %v2692 = vpop.permute.xlu0 %2691
      %2693 = vrot.lane.b32.xlu0 %v2008, 101
      %v2694 = vpop.permute.xlu0 %2693
      %2695 = vrot.lane.b32.xlu0 %v2009, 101
      %v2696 = vpop.permute.xlu0 %2695
      %2697 = vrot.lane.b32.xlu0 %v2010, 101
      %v2698 = vpop.permute.xlu0 %2697
      %2699 = vrot.lane.b32.xlu0 %v2011, 101
      %v2700 = vpop.permute.xlu0 %2699
      %vm2701 = vcmask 826368
      %v2702 = vsel %vm2701, %v2692, %v2694
      %v2703 = vsel %vm2701, %v2694, %v2696
      %v2704 = vsel %vm2701, %v2696, %v2698
      %v2705 = vsel %vm2701, %v2698, %v2700
      %v2711 = vsel %vm977, %v2690, 0
      %2713 = vmatprep.subr.mxu0 %v2703
      %2714 = vmatpush1.msra.mxu0 %v2702
      %2715 = vmatprep.subr.mxu0 0.0
      %2716 = vmatpush1.msra.mxu0 0.0
      %2717 = vmatprep.subr.mxu0 0.0
      %2718 = vmatpush1.msra.mxu0 0.0
      %2719 = vmatprep.subr.mxu0 0.0
      %2720 = vmatpush1.msra.mxu0 0.0
      %2721 = vmatprep.subr.mxu0 0.0
      %2722 = vmatpush1.msra.mxu0 0.0
      %2723 = vmatprep.subr.mxu0 0.0
      %2724 = vmatpush1.msra.mxu0 0.0
      %2725 = vmatprep.subr.mxu0 0.0
      %2726 = vmatpush1.msra.mxu0 0.0
      %2727 = vmatprep.subr.mxu0 0.0
      %2728 = vmatpush1.msra.mxu0 0.0
      %2729 = vmatprep.subr.mxu0 0.0
      %2730 = vmatpush1.msra.mxu0 0.0
      %2731 = vmatprep.subr.mxu0 0.0
      %2732 = vmatpush1.msra.mxu0 0.0
      %2733 = vmatprep.subr.mxu0 0.0
      %2734 = vmatpush1.msra.mxu0 0.0
      %2735 = vmatprep.subr.mxu0 0.0
      %2736 = vmatpush1.msra.mxu0 0.0
      %2737 = vmatprep.subr.mxu0 0.0
      %2738 = vmatpush1.msra.mxu0 0.0
      %2739 = vmatprep.subr.mxu0 0.0
      %2740 = vmatpush1.msra.mxu0 0.0
      %2741 = vmatprep.subr.mxu0 0.0
      %2742 = vmatpush1.msra.mxu0 0.0
      %2743 = vmatprep.subr.mxu0 0.0
      %2744 = vmatpush1.msra.mxu0 0.0
      %2745 = vmatprep.subr.mxu0 0.0
      %2746 = vmatpush1.msra.mxu0 0.0
      %2747 = vmatprep.subr.mxu0 0.0
      %2748 = vmatpush1.msra.mxu0 0.0
      %2749 = vmatprep.subr.mxu0 0.0
      %2750 = vmatpush1.msra.mxu0 0.0
      %2751 = vmatprep.subr.mxu0 0.0
      %2752 = vmatpush1.msra.mxu0 0.0
      %2753 = vmatprep.subr.mxu0 0.0
      %2754 = vmatpush1.msra.mxu0 0.0
      %2755 = vmatprep.subr.mxu0 0.0
      %2756 = vmatpush1.msra.mxu0 0.0
      %2757 = vmatprep.subr.mxu0 0.0
      %2758 = vmatpush1.msra.mxu0 0.0
      %2759 = vmatprep.subr.mxu0 0.0
      %2760 = vmatpush1.msra.mxu0 0.0
      %2761 = vmatprep.subr.mxu0 0.0
      %2762 = vmatpush1.msra.mxu0 0.0
      %2763 = vmatprep.subr.mxu0 0.0
      %2764 = vmatpush1.msra.mxu0 0.0
      %2765 = vmatprep.subr.mxu0 0.0
      %2766 = vmatpush1.msra.mxu0 0.0
      %2767 = vmatprep.subr.mxu0 0.0
      %2768 = vmatpush1.msra.mxu0 0.0
      %2769 = vmatprep.subr.mxu0 0.0
      %2770 = vmatpush1.msra.mxu0 0.0
      %2771 = vmatprep.subr.mxu0 0.0
      %2772 = vmatpush1.msra.mxu0 0.0
      %2773 = vmatprep.subr.mxu0 0.0
      %2774 = vmatpush1.msra.mxu0 0.0
      %2775 = vmatprep.subr.mxu0 0.0
      %2776 = vmatpush1.msra.mxu0 0.0
      %2777 = vmatprep.mubr.f32.mxu0 0.0
      %2778 = vmatmul.mubr.f32.gmra.mrb[0].mxu0 %v2711
      %v2779 = vpop.f32.mrb[0].mxu0
      %v2780 = vadd.f32 0.0, %v2779
      %v2781 = vpop.f32.mrb[0].mxu0
      %v2782 = vadd.f32 0.0, %v2781
      %2783 = vdwg.mxu0
      %2784 = vmatprep.subr.mxu0 %v2705
      %2785 = vmatpush1.msra.mxu0 %v2704
      %2786 = vmatprep.subr.mxu0 0.0
      %2787 = vmatpush1.msra.mxu0 0.0
      %2788 = vmatprep.subr.mxu0 0.0
      %2789 = vmatpush1.msra.mxu0 0.0
      %2790 = vmatprep.subr.mxu0 0.0
      %2791 = vmatpush1.msra.mxu0 0.0
      %2792 = vmatprep.subr.mxu0 0.0
      %2793 = vmatpush1.msra.mxu0 0.0
      %2794 = vmatprep.subr.mxu0 0.0
      %2795 = vmatpush1.msra.mxu0 0.0
      %2796 = vmatprep.subr.mxu0 0.0
      %2797 = vmatpush1.msra.mxu0 0.0
      %2798 = vmatprep.subr.mxu0 0.0
      %2799 = vmatpush1.msra.mxu0 0.0
      %2800 = vmatprep.subr.mxu0 0.0
      %2801 = vmatpush1.msra.mxu0 0.0
      %2802 = vmatprep.subr.mxu0 0.0
      %2803 = vmatpush1.msra.mxu0 0.0
      %2804 = vmatprep.subr.mxu0 0.0
      %2805 = vmatpush1.msra.mxu0 0.0
      %2806 = vmatprep.subr.mxu0 0.0
      %2807 = vmatpush1.msra.mxu0 0.0
      %2808 = vmatprep.subr.mxu0 0.0
      %2809 = vmatpush1.msra.mxu0 0.0
      %2810 = vmatprep.subr.mxu0 0.0
      %2811 = vmatpush1.msra.mxu0 0.0
      %2812 = vmatprep.subr.mxu0 0.0
      %2813 = vmatpush1.msra.mxu0 0.0
      %2814 = vmatprep.subr.mxu0 0.0
      %2815 = vmatpush1.msra.mxu0 0.0
      %2816 = vmatprep.subr.mxu0 0.0
      %2817 = vmatpush1.msra.mxu0 0.0
      %2818 = vmatprep.subr.mxu0 0.0
      %2819 = vmatpush1.msra.mxu0 0.0
      %2820 = vmatprep.subr.mxu0 0.0
      %2821 = vmatpush1.msra.mxu0 0.0
      %2822 = vmatprep.subr.mxu0 0.0
      %2823 = vmatpush1.msra.mxu0 0.0
      %2824 = vmatprep.subr.mxu0 0.0
      %2825 = vmatpush1.msra.mxu0 0.0
      %2826 = vmatprep.subr.mxu0 0.0
      %2827 = vmatpush1.msra.mxu0 0.0
      %2828 = vmatprep.subr.mxu0 0.0
      %2829 = vmatpush1.msra.mxu0 0.0
      %2830 = vmatprep.subr.mxu0 0.0
      %2831 = vmatpush1.msra.mxu0 0.0
      %2832 = vmatprep.subr.mxu0 0.0
      %2833 = vmatpush1.msra.mxu0 0.0
      %2834 = vmatprep.subr.mxu0 0.0
      %2835 = vmatpush1.msra.mxu0 0.0
      %2836 = vmatprep.subr.mxu0 0.0
      %2837 = vmatpush1.msra.mxu0 0.0
      %2838 = vmatprep.subr.mxu0 0.0
      %2839 = vmatpush1.msra.mxu0 0.0
      %2840 = vmatprep.subr.mxu0 0.0
      %2841 = vmatpush1.msra.mxu0 0.0
      %2842 = vmatprep.subr.mxu0 0.0
      %2843 = vmatpush1.msra.mxu0 0.0
      %2844 = vmatprep.subr.mxu0 0.0
      %2845 = vmatpush1.msra.mxu0 0.0
      %2846 = vmatprep.subr.mxu0 0.0
      %2847 = vmatpush1.msra.mxu0 0.0
      %2848 = vmatprep.mubr.f32.mxu0 0.0
      %2849 = vmatmul.mubr.f32.gmra.mrb[0].mxu0 %v2711
      %v2850 = vpop.f32.mrb[0].mxu0
      %v2851 = vadd.f32 0.0, %v2850
      %v2852 = vpop.f32.mrb[0].mxu0
      %v2853 = vadd.f32 0.0, %v2852
      %2854 = vdwg.mxu0
      %v2855 = vadd.f32 %v2685, %v2780
      %v2856 = vadd.f32 %v2686, %v2782
      %v2857 = vadd.f32 %v2687, %v2851
      %v2858 = vadd.f32 %v2688, %v2853
      %s2859 = scalar_lea.vmem %s2, 32
      %v2860 = vld [vmem:[%s2859] sm:$0xff]
      %2861 = vrot.lane.b32.xlu0 %v2007, 100
      %v2862 = vpop.permute.xlu0 %2861
      %2863 = vrot.lane.b32.xlu0 %v2008, 100
      %v2864 = vpop.permute.xlu0 %2863
      %2865 = vrot.lane.b32.xlu0 %v2009, 100
      %v2866 = vpop.permute.xlu0 %2865
      %2867 = vrot.lane.b32.xlu0 %v2010, 100
      %v2868 = vpop.permute.xlu0 %2867
      %2869 = vrot.lane.b32.xlu0 %v2011, 100
      %v2870 = vpop.permute.xlu0 %2869
      %vm2871 = vcmask 818176
      %v2872 = vsel %vm2871, %v2862, %v2864
      %v2873 = vsel %vm2871, %v2864, %v2866
      %v2874 = vsel %vm2871, %v2866, %v2868
      %v2875 = vsel %vm2871, %v2868, %v2870
      %v2881 = vsel %vm977, %v2860, 0
      %2883 = vmatprep.subr.mxu0 %v2873
      %2884 = vmatpush1.msra.mxu0 %v2872
      %2885 = vmatprep.subr.mxu0 0.0
      %2886 = vmatpush1.msra.mxu0 0.0
      %2887 = vmatprep.subr.mxu0 0.0
      %2888 = vmatpush1.msra.mxu0 0.0
      %2889 = vmatprep.subr.mxu0 0.0
      %2890 = vmatpush1.msra.mxu0 0.0
      %2891 = vmatprep.subr.mxu0 0.0
      %2892 = vmatpush1.msra.mxu0 0.0
      %2893 = vmatprep.subr.mxu0 0.0
      %2894 = vmatpush1.msra.mxu0 0.0
      %2895 = vmatprep.subr.mxu0 0.0
      %2896 = vmatpush1.msra.mxu0 0.0
      %2897 = vmatprep.subr.mxu0 0.0
      %2898 = vmatpush1.msra.mxu0 0.0
      %2899 = vmatprep.subr.mxu0 0.0
      %2900 = vmatpush1.msra.mxu0 0.0
      %2901 = vmatprep.subr.mxu0 0.0
      %2902 = vmatpush1.msra.mxu0 0.0
      %2903 = vmatprep.subr.mxu0 0.0
      %2904 = vmatpush1.msra.mxu0 0.0
      %2905 = vmatprep.subr.mxu0 0.0
      %2906 = vmatpush1.msra.mxu0 0.0
      %2907 = vmatprep.subr.mxu0 0.0
      %2908 = vmatpush1.msra.mxu0 0.0
      %2909 = vmatprep.subr.mxu0 0.0
      %2910 = vmatpush1.msra.mxu0 0.0
      %2911 = vmatprep.subr.mxu0 0.0
      %2912 = vmatpush1.msra.mxu0 0.0
      %2913 = vmatprep.subr.mxu0 0.0
      %2914 = vmatpush1.msra.mxu0 0.0
      %2915 = vmatprep.subr.mxu0 0.0
      %2916 = vmatpush1.msra.mxu0 0.0
      %2917 = vmatprep.subr.mxu0 0.0
      %2918 = vmatpush1.msra.mxu0 0.0
      %2919 = vmatprep.subr.mxu0 0.0
      %2920 = vmatpush1.msra.mxu0 0.0
      %2921 = vmatprep.subr.mxu0 0.0
      %2922 = vmatpush1.msra.mxu0 0.0
      %2923 = vmatprep.subr.mxu0 0.0
      %2924 = vmatpush1.msra.mxu0 0.0
      %2925 = vmatprep.subr.mxu0 0.0
      %2926 = vmatpush1.msra.mxu0 0.0
      %2927 = vmatprep.subr.mxu0 0.0
      %2928 = vmatpush1.msra.mxu0 0.0
      %2929 = vmatprep.subr.mxu0 0.0
      %2930 = vmatpush1.msra.mxu0 0.0
      %2931 = vmatprep.subr.mxu0 0.0
      %2932 = vmatpush1.msra.mxu0 0.0
      %2933 = vmatprep.subr.mxu0 0.0
      %2934 = vmatpush1.msra.mxu0 0.0
      %2935 = vmatprep.subr.mxu0 0.0
      %2936 = vmatpush1.msra.mxu0 0.0
      %2937 = vmatprep.subr.mxu0 0.0
      %2938 = vmatpush1.msra.mxu0 0.0
      %2939 = vmatprep.subr.mxu0 0.0
      %2940 = vmatpush1.msra.mxu0 0.0
      %2941 = vmatprep.subr.mxu0 0.0
      %2942 = vmatpush1.msra.mxu0 0.0
      %2943 = vmatprep.subr.mxu0 0.0
      %2944 = vmatpush1.msra.mxu0 0.0
      %2945 = vmatprep.subr.mxu0 0.0
      %2946 = vmatpush1.msra.mxu0 0.0
      %2947 = vmatprep.mubr.f32.mxu0 0.0
      %2948 = vmatmul.mubr.f32.gmra.mrb[0].mxu0 %v2881
      %v2949 = vpop.f32.mrb[0].mxu0
      %v2950 = vadd.f32 0.0, %v2949
      %v2951 = vpop.f32.mrb[0].mxu0
      %v2952 = vadd.f32 0.0, %v2951
      %2953 = vdwg.mxu0
      %2954 = vmatprep.subr.mxu0 %v2875
      %2955 = vmatpush1.msra.mxu0 %v2874
      %2956 = vmatprep.subr.mxu0 0.0
      %2957 = vmatpush1.msra.mxu0 0.0
      %2958 = vmatprep.subr.mxu0 0.0
      %2959 = vmatpush1.msra.mxu0 0.0
      %2960 = vmatprep.subr.mxu0 0.0
      %2961 = vmatpush1.msra.mxu0 0.0
      %2962 = vmatprep.subr.mxu0 0.0
      %2963 = vmatpush1.msra.mxu0 0.0
      %2964 = vmatprep.subr.mxu0 0.0
      %2965 = vmatpush1.msra.mxu0 0.0
      %2966 = vmatprep.subr.mxu0 0.0
      %2967 = vmatpush1.msra.mxu0 0.0
      %2968 = vmatprep.subr.mxu0 0.0
      %2969 = vmatpush1.msra.mxu0 0.0
      %2970 = vmatprep.subr.mxu0 0.0
      %2971 = vmatpush1.msra.mxu0 0.0
      %2972 = vmatprep.subr.mxu0 0.0
      %2973 = vmatpush1.msra.mxu0 0.0
      %2974 = vmatprep.subr.mxu0 0.0
      %2975 = vmatpush1.msra.mxu0 0.0
      %2976 = vmatprep.subr.mxu0 0.0
      %2977 = vmatpush1.msra.mxu0 0.0
      %2978 = vmatprep.subr.mxu0 0.0
      %2979 = vmatpush1.msra.mxu0 0.0
      %2980 = vmatprep.subr.mxu0 0.0
      %2981 = vmatpush1.msra.mxu0 0.0
      %2982 = vmatprep.subr.mxu0 0.0
      %2983 = vmatpush1.msra.mxu0 0.0
      %2984 = vmatprep.subr.mxu0 0.0
      %2985 = vmatpush1.msra.mxu0 0.0
      %2986 = vmatprep.subr.mxu0 0.0
      %2987 = vmatpush1.msra.mxu0 0.0
      %2988 = vmatprep.subr.mxu0 0.0
      %2989 = vmatpush1.msra.mxu0 0.0
      %2990 = vmatprep.subr.mxu0 0.0
      %2991 = vmatpush1.msra.mxu0 0.0
      %2992 = vmatprep.subr.mxu0 0.0
      %2993 = vmatpush1.msra.mxu0 0.0
      %2994 = vmatprep.subr.mxu0 0.0
      %2995 = vmatpush1.msra.mxu0 0.0
      %2996 = vmatprep.subr.mxu0 0.0
      %2997 = vmatpush1.msra.mxu0 0.0
      %2998 = vmatprep.subr.mxu0 0.0
      %2999 = vmatpush1.msra.mxu0 0.0
      %3000 = vmatprep.subr.mxu0 0.0
      %3001 = vmatpush1.msra.mxu0 0.0
      %3002 = vmatprep.subr.mxu0 0.0
      %3003 = vmatpush1.msra.mxu0 0.0
      %3004 = vmatprep.subr.mxu0 0.0
      %3005 = vmatpush1.msra.mxu0 0.0
      %3006 = vmatprep.subr.mxu0 0.0
      %3007 = vmatpush1.msra.mxu0 0.0
      %3008 = vmatprep.subr.mxu0 0.0
      %3009 = vmatpush1.msra.mxu0 0.0
      %3010 = vmatprep.subr.mxu0 0.0
      %3011 = vmatpush1.msra.mxu0 0.0
      %3012 = vmatprep.subr.mxu0 0.0
      %3013 = vmatpush1.msra.mxu0 0.0
      %3014 = vmatprep.subr.mxu0 0.0
      %3015 = vmatpush1.msra.mxu0 0.0
      %3016 = vmatprep.subr.mxu0 0.0
      %3017 = vmatpush1.msra.mxu0 0.0
      %3018 = vmatprep.mubr.f32.mxu0 0.0
      %3019 = vmatmul.mubr.f32.gmra.mrb[0].mxu0 %v2881
      %v3020 = vpop.f32.mrb[0].mxu0
      %v3021 = vadd.f32 0.0, %v3020
      %v3022 = vpop.f32.mrb[0].mxu0
      %v3023 = vadd.f32 0.0, %v3022
      %3024 = vdwg.mxu0
      %v3025 = vadd.f32 %v2855, %v2950
      %v3026 = vadd.f32 %v2856, %v2952
      %v3027 = vadd.f32 %v2857, %v3021
      %v3028 = vadd.f32 %v2858, %v3023
      %s3029 = scalar_lea.vmem %s2, 40
      %v3030 = vld [vmem:[%s3029] sm:$0xff]
      %3031 = vrot.lane.b32.xlu0 %v2007, 99
      %v3032 = vpop.permute.xlu0 %3031
      %3033 = vrot.lane.b32.xlu0 %v2008, 99
      %v3034 = vpop.permute.xlu0 %3033
      %3035 = vrot.lane.b32.xlu0 %v2009, 99
      %v3036 = vpop.permute.xlu0 %3035
      %3037 = vrot.lane.b32.xlu0 %v2010, 99
      %v3038 = vpop.permute.xlu0 %3037
      %3039 = vrot.lane.b32.xlu0 %v2011, 99
      %v3040 = vpop.permute.xlu0 %3039
      %vm3041 = vcmask 809984
      %v3042 = vsel %vm3041, %v3032, %v3034
      %v3043 = vsel %vm3041, %v3034, %v3036
      %v3044 = vsel %vm3041, %v3036, %v3038
      %v3045 = vsel %vm3041, %v3038, %v3040
      %v3051 = vsel %vm977, %v3030, 0
      %3053 = vmatprep.subr.mxu0 %v3043
      %3054 = vmatpush1.msra.mxu0 %v3042
      %3055 = vmatprep.subr.mxu0 0.0
      %3056 = vmatpush1.msra.mxu0 0.0
      %3057 = vmatprep.subr.mxu0 0.0
      %3058 = vmatpush1.msra.mxu0 0.0
      %3059 = vmatprep.subr.mxu0 0.0
      %3060 = vmatpush1.msra.mxu0 0.0
      %3061 = vmatprep.subr.mxu0 0.0
      %3062 = vmatpush1.msra.mxu0 0.0
      %3063 = vmatprep.subr.mxu0 0.0
      %3064 = vmatpush1.msra.mxu0 0.0
      %3065 = vmatprep.subr.mxu0 0.0
      %3066 = vmatpush1.msra.mxu0 0.0
      %3067 = vmatprep.subr.mxu0 0.0
      %3068 = vmatpush1.msra.mxu0 0.0
      %3069 = vmatprep.subr.mxu0 0.0
      %3070 = vmatpush1.msra.mxu0 0.0
      %3071 = vmatprep.subr.mxu0 0.0
      %3072 = vmatpush1.msra.mxu0 0.0
      %3073 = vmatprep.subr.mxu0 0.0
      %3074 = vmatpush1.msra.mxu0 0.0
      %3075 = vmatprep.subr.mxu0 0.0
      %3076 = vmatpush1.msra.mxu0 0.0
      %3077 = vmatprep.subr.mxu0 0.0
      %3078 = vmatpush1.msra.mxu0 0.0
      %3079 = vmatprep.subr.mxu0 0.0
      %3080 = vmatpush1.msra.mxu0 0.0
      %3081 = vmatprep.subr.mxu0 0.0
      %3082 = vmatpush1.msra.mxu0 0.0
      %3083 = vmatprep.subr.mxu0 0.0
      %3084 = vmatpush1.msra.mxu0 0.0
      %3085 = vmatprep.subr.mxu0 0.0
      %3086 = vmatpush1.msra.mxu0 0.0
      %3087 = vmatprep.subr.mxu0 0.0
      %3088 = vmatpush1.msra.mxu0 0.0
      %3089 = vmatprep.subr.mxu0 0.0
      %3090 = vmatpush1.msra.mxu0 0.0
      %3091 = vmatprep.subr.mxu0 0.0
      %3092 = vmatpush1.msra.mxu0 0.0
      %3093 = vmatprep.subr.mxu0 0.0
      %3094 = vmatpush1.msra.mxu0 0.0
      %3095 = vmatprep.subr.mxu0 0.0
      %3096 = vmatpush1.msra.mxu0 0.0
      %3097 = vmatprep.subr.mxu0 0.0
      %3098 = vmatpush1.msra.mxu0 0.0
      %3099 = vmatprep.subr.mxu0 0.0
      %3100 = vmatpush1.msra.mxu0 0.0
      %3101 = vmatprep.subr.mxu0 0.0
      %3102 = vmatpush1.msra.mxu0 0.0
      %3103 = vmatprep.subr.mxu0 0.0
      %3104 = vmatpush1.msra.mxu0 0.0
      %3105 = vmatprep.subr.mxu0 0.0
      %3106 = vmatpush1.msra.mxu0 0.0
      %3107 = vmatprep.subr.mxu0 0.0
      %3108 = vmatpush1.msra.mxu0 0.0
      %3109 = vmatprep.subr.mxu0 0.0
      %3110 = vmatpush1.msra.mxu0 0.0
      %3111 = vmatprep.subr.mxu0 0.0
      %3112 = vmatpush1.msra.mxu0 0.0
      %3113 = vmatprep.subr.mxu0 0.0
      %3114 = vmatpush1.msra.mxu0 0.0
      %3115 = vmatprep.subr.mxu0 0.0
      %3116 = vmatpush1.msra.mxu0 0.0
      %3117 = vmatprep.mubr.f32.mxu0 0.0
      %3118 = vmatmul.mubr.f32.gmra.mrb[0].mxu0 %v3051
      %v3119 = vpop.f32.mrb[0].mxu0
      %v3120 = vadd.f32 0.0, %v3119
      %v3121 = vpop.f32.mrb[0].mxu0
      %v3122 = vadd.f32 0.0, %v3121
      %3123 = vdwg.mxu0
      %3124 = vmatprep.subr.mxu0 %v3045
      %3125 = vmatpush1.msra.mxu0 %v3044
      %3126 = vmatprep.subr.mxu0 0.0
      %3127 = vmatpush1.msra.mxu0 0.0
      %3128 = vmatprep.subr.mxu0 0.0
      %3129 = vmatpush1.msra.mxu0 0.0
      %3130 = vmatprep.subr.mxu0 0.0
      %3131 = vmatpush1.msra.mxu0 0.0
      %3132 = vmatprep.subr.mxu0 0.0
      %3133 = vmatpush1.msra.mxu0 0.0
      %3134 = vmatprep.subr.mxu0 0.0
      %3135 = vmatpush1.msra.mxu0 0.0
      %3136 = vmatprep.subr.mxu0 0.0
      %3137 = vmatpush1.msra.mxu0 0.0
      %3138 = vmatprep.subr.mxu0 0.0
      %3139 = vmatpush1.msra.mxu0 0.0
      %3140 = vmatprep.subr.mxu0 0.0
      %3141 = vmatpush1.msra.mxu0 0.0
      %3142 = vmatprep.subr.mxu0 0.0
      %3143 = vmatpush1.msra.mxu0 0.0
      %3144 = vmatprep.subr.mxu0 0.0
      %3145 = vmatpush1.msra.mxu0 0.0
      %3146 = vmatprep.subr.mxu0 0.0
      %3147 = vmatpush1.msra.mxu0 0.0
      %3148 = vmatprep.subr.mxu0 0.0
      %3149 = vmatpush1.msra.mxu0 0.0
      %3150 = vmatprep.subr.mxu0 0.0
      %3151 = vmatpush1.msra.mxu0 0.0
      %3152 = vmatprep.subr.mxu0 0.0
      %3153 = vmatpush1.msra.mxu0 0.0
      %3154 = vmatprep.subr.mxu0 0.0
      %3155 = vmatpush1.msra.mxu0 0.0
      %3156 = vmatprep.subr.mxu0 0.0
      %3157 = vmatpush1.msra.mxu0 0.0
      %3158 = vmatprep.subr.mxu0 0.0
      %3159 = vmatpush1.msra.mxu0 0.0
      %3160 = vmatprep.subr.mxu0 0.0
      %3161 = vmatpush1.msra.mxu0 0.0
      %3162 = vmatprep.subr.mxu0 0.0
      %3163 = vmatpush1.msra.mxu0 0.0
      %3164 = vmatprep.subr.mxu0 0.0
      %3165 = vmatpush1.msra.mxu0 0.0
      %3166 = vmatprep.subr.mxu0 0.0
      %3167 = vmatpush1.msra.mxu0 0.0
      %3168 = vmatprep.subr.mxu0 0.0
      %3169 = vmatpush1.msra.mxu0 0.0
      %3170 = vmatprep.subr.mxu0 0.0
      %3171 = vmatpush1.msra.mxu0 0.0
      %3172 = vmatprep.subr.mxu0 0.0
      %3173 = vmatpush1.msra.mxu0 0.0
      %3174 = vmatprep.subr.mxu0 0.0
      %3175 = vmatpush1.msra.mxu0 0.0
      %3176 = vmatprep.subr.mxu0 0.0
      %3177 = vmatpush1.msra.mxu0 0.0
      %3178 = vmatprep.subr.mxu0 0.0
      %3179 = vmatpush1.msra.mxu0 0.0
      %3180 = vmatprep.subr.mxu0 0.0
      %3181 = vmatpush1.msra.mxu0 0.0
      %3182 = vmatprep.subr.mxu0 0.0
      %3183 = vmatpush1.msra.mxu0 0.0
      %3184 = vmatprep.subr.mxu0 0.0
      %3185 = vmatpush1.msra.mxu0 0.0
      %3186 = vmatprep.subr.mxu0 0.0
      %3187 = vmatpush1.msra.mxu0 0.0
      %3188 = vmatprep.mubr.f32.mxu0 0.0
      %3189 = vmatmul.mubr.f32.gmra.mrb[0].mxu0 %v3051
      %v3190 = vpop.f32.mrb[0].mxu0
      %v3191 = vadd.f32 0.0, %v3190
      %v3192 = vpop.f32.mrb[0].mxu0
      %v3193 = vadd.f32 0.0, %v3192
      %3194 = vdwg.mxu0
      %v3195 = vadd.f32 %v3025, %v3120
      %v3196 = vadd.f32 %v3026, %v3122
      %v3197 = vadd.f32 %v3027, %v3191
      %v3198 = vadd.f32 %v3028, %v3193
      %s3199 = scalar_lea.vmem %s2, 48
      %v3200 = vld [vmem:[%s3199] sm:$0xff]
      %3201 = vrot.lane.b32.xlu0 %v2007, 91
      %v3202 = vpop.permute.xlu0 %3201
      %3203 = vrot.lane.b32.xlu0 %v2008, 91
      %v3204 = vpop.permute.xlu0 %3203
      %3205 = vrot.lane.b32.xlu0 %v2009, 91
      %v3206 = vpop.permute.xlu0 %3205
      %3207 = vrot.lane.b32.xlu0 %v2010, 91
      %v3208 = vpop.permute.xlu0 %3207
      %3209 = vrot.lane.b32.xlu0 %v2011, 91
      %v3210 = vpop.permute.xlu0 %3209
      %vm3211 = vcmask 744448
      %v3212 = vsel %vm3211, %v3202, %v3204
      %v3213 = vsel %vm3211, %v3204, %v3206
      %v3214 = vsel %vm3211, %v3206, %v3208
      %v3215 = vsel %vm3211, %v3208, %v3210
      %v3221 = vsel %vm977, %v3200, 0
      %3223 = vmatprep.subr.mxu0 %v3213
      %3224 = vmatpush1.msra.mxu0 %v3212
      %3225 = vmatprep.subr.mxu0 0.0
      %3226 = vmatpush1.msra.mxu0 0.0
      %3227 = vmatprep.subr.mxu0 0.0
      %3228 = vmatpush1.msra.mxu0 0.0
      %3229 = vmatprep.subr.mxu0 0.0
      %3230 = vmatpush1.msra.mxu0 0.0
      %3231 = vmatprep.subr.mxu0 0.0
      %3232 = vmatpush1.msra.mxu0 0.0
      %3233 = vmatprep.subr.mxu0 0.0
      %3234 = vmatpush1.msra.mxu0 0.0
      %3235 = vmatprep.subr.mxu0 0.0
      %3236 = vmatpush1.msra.mxu0 0.0
      %3237 = vmatprep.subr.mxu0 0.0
      %3238 = vmatpush1.msra.mxu0 0.0
      %3239 = vmatprep.subr.mxu0 0.0
      %3240 = vmatpush1.msra.mxu0 0.0
      %3241 = vmatprep.subr.mxu0 0.0
      %3242 = vmatpush1.msra.mxu0 0.0
      %3243 = vmatprep.subr.mxu0 0.0
      %3244 = vmatpush1.msra.mxu0 0.0
      %3245 = vmatprep.subr.mxu0 0.0
      %3246 = vmatpush1.msra.mxu0 0.0
      %3247 = vmatprep.subr.mxu0 0.0
      %3248 = vmatpush1.msra.mxu0 0.0
      %3249 = vmatprep.subr.mxu0 0.0
      %3250 = vmatpush1.msra.mxu0 0.0
      %3251 = vmatprep.subr.mxu0 0.0
      %3252 = vmatpush1.msra.mxu0 0.0
      %3253 = vmatprep.subr.mxu0 0.0
      %3254 = vmatpush1.msra.mxu0 0.0
      %3255 = vmatprep.subr.mxu0 0.0
      %3256 = vmatpush1.msra.mxu0 0.0
      %3257 = vmatprep.subr.mxu0 0.0
      %3258 = vmatpush1.msra.mxu0 0.0
      %3259 = vmatprep.subr.mxu0 0.0
      %3260 = vmatpush1.msra.mxu0 0.0
      %3261 = vmatprep.subr.mxu0 0.0
      %3262 = vmatpush1.msra.mxu0 0.0
      %3263 = vmatprep.subr.mxu0 0.0
      %3264 = vmatpush1.msra.mxu0 0.0
      %3265 = vmatprep.subr.mxu0 0.0
      %3266 = vmatpush1.msra.mxu0 0.0
      %3267 = vmatprep.subr.mxu0 0.0
      %3268 = vmatpush1.msra.mxu0 0.0
      %3269 = vmatprep.subr.mxu0 0.0
      %3270 = vmatpush1.msra.mxu0 0.0
      %3271 = vmatprep.subr.mxu0 0.0
      %3272 = vmatpush1.msra.mxu0 0.0
      %3273 = vmatprep.subr.mxu0 0.0
      %3274 = vmatpush1.msra.mxu0 0.0
      %3275 = vmatprep.subr.mxu0 0.0
      %3276 = vmatpush1.msra.mxu0 0.0
      %3277 = vmatprep.subr.mxu0 0.0
      %3278 = vmatpush1.msra.mxu0 0.0
      %3279 = vmatprep.subr.mxu0 0.0
      %3280 = vmatpush1.msra.mxu0 0.0
      %3281 = vmatprep.subr.mxu0 0.0
      %3282 = vmatpush1.msra.mxu0 0.0
      %3283 = vmatprep.subr.mxu0 0.0
      %3284 = vmatpush1.msra.mxu0 0.0
      %3285 = vmatprep.subr.mxu0 0.0
      %3286 = vmatpush1.msra.mxu0 0.0
      %3287 = vmatprep.mubr.f32.mxu0 0.0
      %3288 = vmatmul.mubr.f32.gmra.mrb[0].mxu0 %v3221
      %v3289 = vpop.f32.mrb[0].mxu0
      %v3290 = vadd.f32 0.0, %v3289
      %v3291 = vpop.f32.mrb[0].mxu0
      %v3292 = vadd.f32 0.0, %v3291
      %3293 = vdwg.mxu0
      %3294 = vmatprep.subr.mxu0 %v3215
      %3295 = vmatpush1.msra.mxu0 %v3214
      %3296 = vmatprep.subr.mxu0 0.0
      %3297 = vmatpush1.msra.mxu0 0.0
      %3298 = vmatprep.subr.mxu0 0.0
      %3299 = vmatpush1.msra.mxu0 0.0
      %3300 = vmatprep.subr.mxu0 0.0
      %3301 = vmatpush1.msra.mxu0 0.0
      %3302 = vmatprep.subr.mxu0 0.0
      %3303 = vmatpush1.msra.mxu0 0.0
      %3304 = vmatprep.subr.mxu0 0.0
      %3305 = vmatpush1.msra.mxu0 0.0
      %3306 = vmatprep.subr.mxu0 0.0
      %3307 = vmatpush1.msra.mxu0 0.0
      %3308 = vmatprep.subr.mxu0 0.0
      %3309 = vmatpush1.msra.mxu0 0.0
      %3310 = vmatprep.subr.mxu0 0.0
      %3311 = vmatpush1.msra.mxu0 0.0
      %3312 = vmatprep.subr.mxu0 0.0
      %3313 = vmatpush1.msra.mxu0 0.0
      %3314 = vmatprep.subr.mxu0 0.0
      %3315 = vmatpush1.msra.mxu0 0.0
      %3316 = vmatprep.subr.mxu0 0.0
      %3317 = vmatpush1.msra.mxu0 0.0
      %3318 = vmatprep.subr.mxu0 0.0
      %3319 = vmatpush1.msra.mxu0 0.0
      %3320 = vmatprep.subr.mxu0 0.0
      %3321 = vmatpush1.msra.mxu0 0.0
      %3322 = vmatprep.subr.mxu0 0.0
      %3323 = vmatpush1.msra.mxu0 0.0
      %3324 = vmatprep.subr.mxu0 0.0
      %3325 = vmatpush1.msra.mxu0 0.0
      %3326 = vmatprep.subr.mxu0 0.0
      %3327 = vmatpush1.msra.mxu0 0.0
      %3328 = vmatprep.subr.mxu0 0.0
      %3329 = vmatpush1.msra.mxu0 0.0
      %3330 = vmatprep.subr.mxu0 0.0
      %3331 = vmatpush1.msra.mxu0 0.0
      %3332 = vmatprep.subr.mxu0 0.0
      %3333 = vmatpush1.msra.mxu0 0.0
      %3334 = vmatprep.subr.mxu0 0.0
      %3335 = vmatpush1.msra.mxu0 0.0
      %3336 = vmatprep.subr.mxu0 0.0
      %3337 = vmatpush1.msra.mxu0 0.0
      %3338 = vmatprep.subr.mxu0 0.0
      %3339 = vmatpush1.msra.mxu0 0.0
      %3340 = vmatprep.subr.mxu0 0.0
      %3341 = vmatpush1.msra.mxu0 0.0
      %3342 = vmatprep.subr.mxu0 0.0
      %3343 = vmatpush1.msra.mxu0 0.0
      %3344 = vmatprep.subr.mxu0 0.0
      %3345 = vmatpush1.msra.mxu0 0.0
      %3346 = vmatprep.subr.mxu0 0.0
      %3347 = vmatpush1.msra.mxu0 0.0
      %3348 = vmatprep.subr.mxu0 0.0
      %3349 = vmatpush1.msra.mxu0 0.0
      %3350 = vmatprep.subr.mxu0 0.0
      %3351 = vmatpush1.msra.mxu0 0.0
      %3352 = vmatprep.subr.mxu0 0.0
      %3353 = vmatpush1.msra.mxu0 0.0
      %3354 = vmatprep.subr.mxu0 0.0
      %3355 = vmatpush1.msra.mxu0 0.0
      %3356 = vmatprep.subr.mxu0 0.0
      %3357 = vmatpush1.msra.mxu0 0.0
      %3358 = vmatprep.mubr.f32.mxu0 0.0
      %3359 = vmatmul.mubr.f32.gmra.mrb[0].mxu0 %v3221
      %v3360 = vpop.f32.mrb[0].mxu0
      %v3361 = vadd.f32 0.0, %v3360
      %v3362 = vpop.f32.mrb[0].mxu0
      %v3363 = vadd.f32 0.0, %v3362
      %3364 = vdwg.mxu0
      %v3365 = vadd.f32 %v3195, %v3290
      %v3366 = vadd.f32 %v3196, %v3292
      %v3367 = vadd.f32 %v3197, %v3361
      %v3368 = vadd.f32 %v3198, %v3363
      %s3369 = scalar_lea.vmem %s2, 56
      %v3370 = vld [vmem:[%s3369] sm:$0xff]
      %3371 = vrot.lane.b32.xlu0 %v2007, 90
      %v3372 = vpop.permute.xlu0 %3371
      %3373 = vrot.lane.b32.xlu0 %v2008, 90
      %v3374 = vpop.permute.xlu0 %3373
      %3375 = vrot.lane.b32.xlu0 %v2009, 90
      %v3376 = vpop.permute.xlu0 %3375
      %3377 = vrot.lane.b32.xlu0 %v2010, 90
      %v3378 = vpop.permute.xlu0 %3377
      %3379 = vrot.lane.b32.xlu0 %v2011, 90
      %v3380 = vpop.permute.xlu0 %3379
      %vm3381 = vcmask 736256
      %v3382 = vsel %vm3381, %v3372, %v3374
      %v3383 = vsel %vm3381, %v3374, %v3376
      %v3384 = vsel %vm3381, %v3376, %v3378
      %v3385 = vsel %vm3381, %v3378, %v3380
      %v3391 = vsel %vm977, %v3370, 0
      %3393 = vmatprep.subr.mxu0 %v3383
      %3394 = vmatpush1.msra.mxu0 %v3382
      %3395 = vmatprep.subr.mxu0 0.0
      %3396 = vmatpush1.msra.mxu0 0.0
      %3397 = vmatprep.subr.mxu0 0.0
      %3398 = vmatpush1.msra.mxu0 0.0
      %3399 = vmatprep.subr.mxu0 0.0
      %3400 = vmatpush1.msra.mxu0 0.0
      %3401 = vmatprep.subr.mxu0 0.0
      %3402 = vmatpush1.msra.mxu0 0.0
      %3403 = vmatprep.subr.mxu0 0.0
      %3404 = vmatpush1.msra.mxu0 0.0
      %3405 = vmatprep.subr.mxu0 0.0
      %3406 = vmatpush1.msra.mxu0 0.0
      %3407 = vmatprep.subr.mxu0 0.0
      %3408 = vmatpush1.msra.mxu0 0.0
      %3409 = vmatprep.subr.mxu0 0.0
      %3410 = vmatpush1.msra.mxu0 0.0
      %3411 = vmatprep.subr.mxu0 0.0
      %3412 = vmatpush1.msra.mxu0 0.0
      %3413 = vmatprep.subr.mxu0 0.0
      %3414 = vmatpush1.msra.mxu0 0.0
      %3415 = vmatprep.subr.mxu0 0.0
      %3416 = vmatpush1.msra.mxu0 0.0
      %3417 = vmatprep.subr.mxu0 0.0
      %3418 = vmatpush1.msra.mxu0 0.0
      %3419 = vmatprep.subr.mxu0 0.0
      %3420 = vmatpush1.msra.mxu0 0.0
      %3421 = vmatprep.subr.mxu0 0.0
      %3422 = vmatpush1.msra.mxu0 0.0
      %3423 = vmatprep.subr.mxu0 0.0
      %3424 = vmatpush1.msra.mxu0 0.0
      %3425 = vmatprep.subr.mxu0 0.0
      %3426 = vmatpush1.msra.mxu0 0.0
      %3427 = vmatprep.subr.mxu0 0.0
      %3428 = vmatpush1.msra.mxu0 0.0
      %3429 = vmatprep.subr.mxu0 0.0
      %3430 = vmatpush1.msra.mxu0 0.0
      %3431 = vmatprep.subr.mxu0 0.0
      %3432 = vmatpush1.msra.mxu0 0.0
      %3433 = vmatprep.subr.mxu0 0.0
      %3434 = vmatpush1.msra.mxu0 0.0
      %3435 = vmatprep.subr.mxu0 0.0
      %3436 = vmatpush1.msra.mxu0 0.0
      %3437 = vmatprep.subr.mxu0 0.0
      %3438 = vmatpush1.msra.mxu0 0.0
      %3439 = vmatprep.subr.mxu0 0.0
      %3440 = vmatpush1.msra.mxu0 0.0
      %3441 = vmatprep.subr.mxu0 0.0
      %3442 = vmatpush1.msra.mxu0 0.0
      %3443 = vmatprep.subr.mxu0 0.0
      %3444 = vmatpush1.msra.mxu0 0.0
      %3445 = vmatprep.subr.mxu0 0.0
      %3446 = vmatpush1.msra.mxu0 0.0
      %3447 = vmatprep.subr.mxu0 0.0
      %3448 = vmatpush1.msra.mxu0 0.0
      %3449 = vmatprep.subr.mxu0 0.0
      %3450 = vmatpush1.msra.mxu0 0.0
      %3451 = vmatprep.subr.mxu0 0.0
      %3452 = vmatpush1.msra.mxu0 0.0
      %3453 = vmatprep.subr.mxu0 0.0
      %3454 = vmatpush1.msra.mxu0 0.0
      %3455 = vmatprep.subr.mxu0 0.0
      %3456 = vmatpush1.msra.mxu0 0.0
      %3457 = vmatprep.mubr.f32.mxu0 0.0
      %3458 = vmatmul.mubr.f32.gmra.mrb[0].mxu0 %v3391
      %v3459 = vpop.f32.mrb[0].mxu0
      %v3460 = vadd.f32 0.0, %v3459
      %v3461 = vpop.f32.mrb[0].mxu0
      %v3462 = vadd.f32 0.0, %v3461
      %3463 = vdwg.mxu0
      %3464 = vmatprep.subr.mxu0 %v3385
      %3465 = vmatpush1.msra.mxu0 %v3384
      %3466 = vmatprep.subr.mxu0 0.0
      %3467 = vmatpush1.msra.mxu0 0.0
      %3468 = vmatprep.subr.mxu0 0.0
      %3469 = vmatpush1.msra.mxu0 0.0
      %3470 = vmatprep.subr.mxu0 0.0
      %3471 = vmatpush1.msra.mxu0 0.0
      %3472 = vmatprep.subr.mxu0 0.0
      %3473 = vmatpush1.msra.mxu0 0.0
      %3474 = vmatprep.subr.mxu0 0.0
      %3475 = vmatpush1.msra.mxu0 0.0
      %3476 = vmatprep.subr.mxu0 0.0
      %3477 = vmatpush1.msra.mxu0 0.0
      %3478 = vmatprep.subr.mxu0 0.0
      %3479 = vmatpush1.msra.mxu0 0.0
      %3480 = vmatprep.subr.mxu0 0.0
      %3481 = vmatpush1.msra.mxu0 0.0
      %3482 = vmatprep.subr.mxu0 0.0
      %3483 = vmatpush1.msra.mxu0 0.0
      %3484 = vmatprep.subr.mxu0 0.0
      %3485 = vmatpush1.msra.mxu0 0.0
      %3486 = vmatprep.subr.mxu0 0.0
      %3487 = vmatpush1.msra.mxu0 0.0
      %3488 = vmatprep.subr.mxu0 0.0
      %3489 = vmatpush1.msra.mxu0 0.0
      %3490 = vmatprep.subr.mxu0 0.0
      %3491 = vmatpush1.msra.mxu0 0.0
      %3492 = vmatprep.subr.mxu0 0.0
      %3493 = vmatpush1.msra.mxu0 0.0
      %3494 = vmatprep.subr.mxu0 0.0
      %3495 = vmatpush1.msra.mxu0 0.0
      %3496 = vmatprep.subr.mxu0 0.0
      %3497 = vmatpush1.msra.mxu0 0.0
      %3498 = vmatprep.subr.mxu0 0.0
      %3499 = vmatpush1.msra.mxu0 0.0
      %3500 = vmatprep.subr.mxu0 0.0
      %3501 = vmatpush1.msra.mxu0 0.0
      %3502 = vmatprep.subr.mxu0 0.0
      %3503 = vmatpush1.msra.mxu0 0.0
      %3504 = vmatprep.subr.mxu0 0.0
      %3505 = vmatpush1.msra.mxu0 0.0
      %3506 = vmatprep.subr.mxu0 0.0
      %3507 = vmatpush1.msra.mxu0 0.0
      %3508 = vmatprep.subr.mxu0 0.0
      %3509 = vmatpush1.msra.mxu0 0.0
      %3510 = vmatprep.subr.mxu0 0.0
      %3511 = vmatpush1.msra.mxu0 0.0
      %3512 = vmatprep.subr.mxu0 0.0
      %3513 = vmatpush1.msra.mxu0 0.0
      %3514 = vmatprep.subr.mxu0 0.0
      %3515 = vmatpush1.msra.mxu0 0.0
      %3516 = vmatprep.subr.mxu0 0.0
      %3517 = vmatpush1.msra.mxu0 0.0
      %3518 = vmatprep.subr.mxu0 0.0
      %3519 = vmatpush1.msra.mxu0 0.0
      %3520 = vmatprep.subr.mxu0 0.0
      %3521 = vmatpush1.msra.mxu0 0.0
      %3522 = vmatprep.subr.mxu0 0.0
      %3523 = vmatpush1.msra.mxu0 0.0
      %3524 = vmatprep.subr.mxu0 0.0
      %3525 = vmatpush1.msra.mxu0 0.0
      %3526 = vmatprep.subr.mxu0 0.0
      %3527 = vmatpush1.msra.mxu0 0.0
      %3528 = vmatprep.mubr.f32.mxu0 0.0
      %3529 = vmatmul.mubr.f32.gmra.mrb[0].mxu0 %v3391
      %v3530 = vpop.f32.mrb[0].mxu0
      %v3531 = vadd.f32 0.0, %v3530
      %v3532 = vpop.f32.mrb[0].mxu0
      %v3533 = vadd.f32 0.0, %v3532
      %3534 = vdwg.mxu0
      %v3535 = vadd.f32 %v3365, %v3460
      %v3536 = vadd.f32 %v3366, %v3462
      %v3537 = vadd.f32 %v3367, %v3531
      %v3538 = vadd.f32 %v3368, %v3533
      %s3539 = scalar_lea.vmem %s2, 64
      %v3540 = vld [vmem:[%s3539] sm:$0xff]
      %3541 = vrot.lane.b32.xlu0 %v2007, 89
      %v3542 = vpop.permute.xlu0 %3541
      %3543 = vrot.lane.b32.xlu0 %v2008, 89
      %v3544 = vpop.permute.xlu0 %3543
      %3545 = vrot.lane.b32.xlu0 %v2009, 89
      %v3546 = vpop.permute.xlu0 %3545
      %3547 = vrot.lane.b32.xlu0 %v2010, 89
      %v3548 = vpop.permute.xlu0 %3547
      %3549 = vrot.lane.b32.xlu0 %v2011, 89
      %v3550 = vpop.permute.xlu0 %3549
      %vm3551 = vcmask 728064
      %v3552 = vsel %vm3551, %v3542, %v3544
      %v3553 = vsel %vm3551, %v3544, %v3546
      %v3554 = vsel %vm3551, %v3546, %v3548
      %v3555 = vsel %vm3551, %v3548, %v3550
      %v3561 = vsel %vm977, %v3540, 0
      %3563 = vmatprep.subr.mxu0 %v3553
      %3564 = vmatpush1.msra.mxu0 %v3552
      %3565 = vmatprep.subr.mxu0 0.0
      %3566 = vmatpush1.msra.mxu0 0.0
      %3567 = vmatprep.subr.mxu0 0.0
      %3568 = vmatpush1.msra.mxu0 0.0
      %3569 = vmatprep.subr.mxu0 0.0
      %3570 = vmatpush1.msra.mxu0 0.0
      %3571 = vmatprep.subr.mxu0 0.0
      %3572 = vmatpush1.msra.mxu0 0.0
      %3573 = vmatprep.subr.mxu0 0.0
      %3574 = vmatpush1.msra.mxu0 0.0
      %3575 = vmatprep.subr.mxu0 0.0
      %3576 = vmatpush1.msra.mxu0 0.0
      %3577 = vmatprep.subr.mxu0 0.0
      %3578 = vmatpush1.msra.mxu0 0.0
      %3579 = vmatprep.subr.mxu0 0.0
      %3580 = vmatpush1.msra.mxu0 0.0
      %3581 = vmatprep.subr.mxu0 0.0
      %3582 = vmatpush1.msra.mxu0 0.0
      %3583 = vmatprep.subr.mxu0 0.0
      %3584 = vmatpush1.msra.mxu0 0.0
      %3585 = vmatprep.subr.mxu0 0.0
      %3586 = vmatpush1.msra.mxu0 0.0
      %3587 = vmatprep.subr.mxu0 0.0
      %3588 = vmatpush1.msra.mxu0 0.0
      %3589 = vmatprep.subr.mxu0 0.0
      %3590 = vmatpush1.msra.mxu0 0.0
      %3591 = vmatprep.subr.mxu0 0.0
      %3592 = vmatpush1.msra.mxu0 0.0
      %3593 = vmatprep.subr.mxu0 0.0
      %3594 = vmatpush1.msra.mxu0 0.0
      %3595 = vmatprep.subr.mxu0 0.0
      %3596 = vmatpush1.msra.mxu0 0.0
      %3597 = vmatprep.subr.mxu0 0.0
      %3598 = vmatpush1.msra.mxu0 0.0
      %3599 = vmatprep.subr.mxu0 0.0
      %3600 = vmatpush1.msra.mxu0 0.0
      %3601 = vmatprep.subr.mxu0 0.0
      %3602 = vmatpush1.msra.mxu0 0.0
      %3603 = vmatprep.subr.mxu0 0.0
      %3604 = vmatpush1.msra.mxu0 0.0
      %3605 = vmatprep.subr.mxu0 0.0
      %3606 = vmatpush1.msra.mxu0 0.0
      %3607 = vmatprep.subr.mxu0 0.0
      %3608 = vmatpush1.msra.mxu0 0.0
      %3609 = vmatprep.subr.mxu0 0.0
      %3610 = vmatpush1.msra.mxu0 0.0
      %3611 = vmatprep.subr.mxu0 0.0
      %3612 = vmatpush1.msra.mxu0 0.0
      %3613 = vmatprep.subr.mxu0 0.0
      %3614 = vmatpush1.msra.mxu0 0.0
      %3615 = vmatprep.subr.mxu0 0.0
      %3616 = vmatpush1.msra.mxu0 0.0
      %3617 = vmatprep.subr.mxu0 0.0
      %3618 = vmatpush1.msra.mxu0 0.0
      %3619 = vmatprep.subr.mxu0 0.0
      %3620 = vmatpush1.msra.mxu0 0.0
      %3621 = vmatprep.subr.mxu0 0.0
      %3622 = vmatpush1.msra.mxu0 0.0
      %3623 = vmatprep.subr.mxu0 0.0
      %3624 = vmatpush1.msra.mxu0 0.0
      %3625 = vmatprep.subr.mxu0 0.0
      %3626 = vmatpush1.msra.mxu0 0.0
      %3627 = vmatprep.mubr.f32.mxu0 0.0
      %3628 = vmatmul.mubr.f32.gmra.mrb[0].mxu0 %v3561
      %v3629 = vpop.f32.mrb[0].mxu0
      %v3630 = vadd.f32 0.0, %v3629
      %v3631 = vpop.f32.mrb[0].mxu0
      %v3632 = vadd.f32 0.0, %v3631
      %3633 = vdwg.mxu0
      %3634 = vmatprep.subr.mxu0 %v3555
      %3635 = vmatpush1.msra.mxu0 %v3554
      %3636 = vmatprep.subr.mxu0 0.0
      %3637 = vmatpush1.msra.mxu0 0.0
      %3638 = vmatprep.subr.mxu0 0.0
      %3639 = vmatpush1.msra.mxu0 0.0
      %3640 = vmatprep.subr.mxu0 0.0
      %3641 = vmatpush1.msra.mxu0 0.0
      %3642 = vmatprep.subr.mxu0 0.0
      %3643 = vmatpush1.msra.mxu0 0.0
      %3644 = vmatprep.subr.mxu0 0.0
      %3645 = vmatpush1.msra.mxu0 0.0
      %3646 = vmatprep.subr.mxu0 0.0
      %3647 = vmatpush1.msra.mxu0 0.0
      %3648 = vmatprep.subr.mxu0 0.0
      %3649 = vmatpush1.msra.mxu0 0.0
      %3650 = vmatprep.subr.mxu0 0.0
      %3651 = vmatpush1.msra.mxu0 0.0
      %3652 = vmatprep.subr.mxu0 0.0
      %3653 = vmatpush1.msra.mxu0 0.0
      %3654 = vmatprep.subr.mxu0 0.0
      %3655 = vmatpush1.msra.mxu0 0.0
      %3656 = vmatprep.subr.mxu0 0.0
      %3657 = vmatpush1.msra.mxu0 0.0
      %3658 = vmatprep.subr.mxu0 0.0
      %3659 = vmatpush1.msra.mxu0 0.0
      %3660 = vmatprep.subr.mxu0 0.0
      %3661 = vmatpush1.msra.mxu0 0.0
      %3662 = vmatprep.subr.mxu0 0.0
      %3663 = vmatpush1.msra.mxu0 0.0
      %3664 = vmatprep.subr.mxu0 0.0
      %3665 = vmatpush1.msra.mxu0 0.0
      %3666 = vmatprep.subr.mxu0 0.0
      %3667 = vmatpush1.msra.mxu0 0.0
      %3668 = vmatprep.subr.mxu0 0.0
      %3669 = vmatpush1.msra.mxu0 0.0
      %3670 = vmatprep.subr.mxu0 0.0
      %3671 = vmatpush1.msra.mxu0 0.0
      %3672 = vmatprep.subr.mxu0 0.0
      %3673 = vmatpush1.msra.mxu0 0.0
      %3674 = vmatprep.subr.mxu0 0.0
      %3675 = vmatpush1.msra.mxu0 0.0
      %3676 = vmatprep.subr.mxu0 0.0
      %3677 = vmatpush1.msra.mxu0 0.0
      %3678 = vmatprep.subr.mxu0 0.0
      %3679 = vmatpush1.msra.mxu0 0.0
      %3680 = vmatprep.subr.mxu0 0.0
      %3681 = vmatpush1.msra.mxu0 0.0
      %3682 = vmatprep.subr.mxu0 0.0
      %3683 = vmatpush1.msra.mxu0 0.0
      %3684 = vmatprep.subr.mxu0 0.0
      %3685 = vmatpush1.msra.mxu0 0.0
      %3686 = vmatprep.subr.mxu0 0.0
      %3687 = vmatpush1.msra.mxu0 0.0
      %3688 = vmatprep.subr.mxu0 0.0
      %3689 = vmatpush1.msra.mxu0 0.0
      %3690 = vmatprep.subr.mxu0 0.0
      %3691 = vmatpush1.msra.mxu0 0.0
      %3692 = vmatprep.subr.mxu0 0.0
      %3693 = vmatpush1.msra.mxu0 0.0
      %3694 = vmatprep.subr.mxu0 0.0
      %3695 = vmatpush1.msra.mxu0 0.0
      %3696 = vmatprep.subr.mxu0 0.0
      %3697 = vmatpush1.msra.mxu0 0.0
      %3698 = vmatprep.mubr.f32.mxu0 0.0
      %3699 = vmatmul.mubr.f32.gmra.mrb[0].mxu0 %v3561
      %v3700 = vpop.f32.mrb[0].mxu0
      %v3701 = vadd.f32 0.0, %v3700
      %v3702 = vpop.f32.mrb[0].mxu0
      %v3703 = vadd.f32 0.0, %v3702
      %3704 = vdwg.mxu0
      %v3705 = vadd.f32 %v3535, %v3630
      %v3706 = vadd.f32 %v3536, %v3632
      %v3707 = vadd.f32 %v3537, %v3701
      %v3708 = vadd.f32 %v3538, %v3703
      %s3709 = scalar_lea.vmem %s2, 72
      %v3710 = vld [vmem:[%s3709] sm:$0xff]
      %3711 = vrot.lane.b32.xlu0 %v2007, 11
      %v3712 = vpop.permute.xlu0 %3711
      %3713 = vrot.lane.b32.xlu0 %v2008, 11
      %v3714 = vpop.permute.xlu0 %3713
      %3715 = vrot.lane.b32.xlu0 %v2009, 11
      %v3716 = vpop.permute.xlu0 %3715
      %3717 = vrot.lane.b32.xlu0 %v2010, 11
      %v3718 = vpop.permute.xlu0 %3717
      %3719 = vrot.lane.b32.xlu0 %v2011, 11
      %v3720 = vpop.permute.xlu0 %3719
      %vm3721 = vcmask 89088
      %v3722 = vsel %vm3721, %v3712, %v3714
      %v3723 = vsel %vm3721, %v3714, %v3716
      %v3724 = vsel %vm3721, %v3716, %v3718
      %v3725 = vsel %vm3721, %v3718, %v3720
      %v3731 = vsel %vm977, %v3710, 0
      %3733 = vmatprep.subr.mxu0 %v3723
      %3734 = vmatpush1.msra.mxu0 %v3722
      %3735 = vmatprep.subr.mxu0 0.0
      %3736 = vmatpush1.msra.mxu0 0.0
      %3737 = vmatprep.subr.mxu0 0.0
      %3738 = vmatpush1.msra.mxu0 0.0
      %3739 = vmatprep.subr.mxu0 0.0
      %3740 = vmatpush1.msra.mxu0 0.0
      %3741 = vmatprep.subr.mxu0 0.0
      %3742 = vmatpush1.msra.mxu0 0.0
      %3743 = vmatprep.subr.mxu0 0.0
      %3744 = vmatpush1.msra.mxu0 0.0
      %3745 = vmatprep.subr.mxu0 0.0
      %3746 = vmatpush1.msra.mxu0 0.0
      %3747 = vmatprep.subr.mxu0 0.0
      %3748 = vmatpush1.msra.mxu0 0.0
      %3749 = vmatprep.subr.mxu0 0.0
      %3750 = vmatpush1.msra.mxu0 0.0
      %3751 = vmatprep.subr.mxu0 0.0
      %3752 = vmatpush1.msra.mxu0 0.0
      %3753 = vmatprep.subr.mxu0 0.0
      %3754 = vmatpush1.msra.mxu0 0.0
      %3755 = vmatprep.subr.mxu0 0.0
      %3756 = vmatpush1.msra.mxu0 0.0
      %3757 = vmatprep.subr.mxu0 0.0
      %3758 = vmatpush1.msra.mxu0 0.0
      %3759 = vmatprep.subr.mxu0 0.0
      %3760 = vmatpush1.msra.mxu0 0.0
      %3761 = vmatprep.subr.mxu0 0.0
      %3762 = vmatpush1.msra.mxu0 0.0
      %3763 = vmatprep.subr.mxu0 0.0
      %3764 = vmatpush1.msra.mxu0 0.0
      %3765 = vmatprep.subr.mxu0 0.0
      %3766 = vmatpush1.msra.mxu0 0.0
      %3767 = vmatprep.subr.mxu0 0.0
      %3768 = vmatpush1.msra.mxu0 0.0
      %3769 = vmatprep.subr.mxu0 0.0
      %3770 = vmatpush1.msra.mxu0 0.0
      %3771 = vmatprep.subr.mxu0 0.0
      %3772 = vmatpush1.msra.mxu0 0.0
      %3773 = vmatprep.subr.mxu0 0.0
      %3774 = vmatpush1.msra.mxu0 0.0
      %3775 = vmatprep.subr.mxu0 0.0
      %3776 = vmatpush1.msra.mxu0 0.0
      %3777 = vmatprep.subr.mxu0 0.0
      %3778 = vmatpush1.msra.mxu0 0.0
      %3779 = vmatprep.subr.mxu0 0.0
      %3780 = vmatpush1.msra.mxu0 0.0
      %3781 = vmatprep.subr.mxu0 0.0
      %3782 = vmatpush1.msra.mxu0 0.0
      %3783 = vmatprep.subr.mxu0 0.0
      %3784 = vmatpush1.msra.mxu0 0.0
      %3785 = vmatprep.subr.mxu0 0.0
      %3786 = vmatpush1.msra.mxu0 0.0
      %3787 = vmatprep.subr.mxu0 0.0
      %3788 = vmatpush1.msra.mxu0 0.0
      %3789 = vmatprep.subr.mxu0 0.0
      %3790 = vmatpush1.msra.mxu0 0.0
      %3791 = vmatprep.subr.mxu0 0.0
      %3792 = vmatpush1.msra.mxu0 0.0
      %3793 = vmatprep.subr.mxu0 0.0
      %3794 = vmatpush1.msra.mxu0 0.0
      %3795 = vmatprep.subr.mxu0 0.0
      %3796 = vmatpush1.msra.mxu0 0.0
      %3797 = vmatprep.mubr.f32.mxu0 0.0
      %3798 = vmatmul.mubr.f32.gmra.mrb[0].mxu0 %v3731
      %v3799 = vpop.f32.mrb[0].mxu0
      %v3800 = vadd.f32 0.0, %v3799
      %v3801 = vpop.f32.mrb[0].mxu0
      %v3802 = vadd.f32 0.0, %v3801
      %3803 = vdwg.mxu0
      %3804 = vmatprep.subr.mxu0 %v3725
      %3805 = vmatpush1.msra.mxu0 %v3724
      %3806 = vmatprep.subr.mxu0 0.0
      %3807 = vmatpush1.msra.mxu0 0.0
      %3808 = vmatprep.subr.mxu0 0.0
      %3809 = vmatpush1.msra.mxu0 0.0
      %3810 = vmatprep.subr.mxu0 0.0
      %3811 = vmatpush1.msra.mxu0 0.0
      %3812 = vmatprep.subr.mxu0 0.0
      %3813 = vmatpush1.msra.mxu0 0.0
      %3814 = vmatprep.subr.mxu0 0.0
      %3815 = vmatpush1.msra.mxu0 0.0
      %3816 = vmatprep.subr.mxu0 0.0
      %3817 = vmatpush1.msra.mxu0 0.0
      %3818 = vmatprep.subr.mxu0 0.0
      %3819 = vmatpush1.msra.mxu0 0.0
      %3820 = vmatprep.subr.mxu0 0.0
      %3821 = vmatpush1.msra.mxu0 0.0
      %3822 = vmatprep.subr.mxu0 0.0
      %3823 = vmatpush1.msra.mxu0 0.0
      %3824 = vmatprep.subr.mxu0 0.0
      %3825 = vmatpush1.msra.mxu0 0.0
      %3826 = vmatprep.subr.mxu0 0.0
      %3827 = vmatpush1.msra.mxu0 0.0
      %3828 = vmatprep.subr.mxu0 0.0
      %3829 = vmatpush1.msra.mxu0 0.0
      %3830 = vmatprep.subr.mxu0 0.0
      %3831 = vmatpush1.msra.mxu0 0.0
      %3832 = vmatprep.subr.mxu0 0.0
      %3833 = vmatpush1.msra.mxu0 0.0
      %3834 = vmatprep.subr.mxu0 0.0
      %3835 = vmatpush1.msra.mxu0 0.0
      %3836 = vmatprep.subr.mxu0 0.0
      %3837 = vmatpush1.msra.mxu0 0.0
      %3838 = vmatprep.subr.mxu0 0.0
      %3839 = vmatpush1.msra.mxu0 0.0
      %3840 = vmatprep.subr.mxu0 0.0
      %3841 = vmatpush1.msra.mxu0 0.0
      %3842 = vmatprep.subr.mxu0 0.0
      %3843 = vmatpush1.msra.mxu0 0.0
      %3844 = vmatprep.subr.mxu0 0.0
      %3845 = vmatpush1.msra.mxu0 0.0
      %3846 = vmatprep.subr.mxu0 0.0
      %3847 = vmatpush1.msra.mxu0 0.0
      %3848 = vmatprep.subr.mxu0 0.0
      %3849 = vmatpush1.msra.mxu0 0.0
      %3850 = vmatprep.subr.mxu0 0.0
      %3851 = vmatpush1.msra.mxu0 0.0
      %3852 = vmatprep.subr.mxu0 0.0
      %3853 = vmatpush1.msra.mxu0 0.0
      %3854 = vmatprep.subr.mxu0 0.0
      %3855 = vmatpush1.msra.mxu0 0.0
      %3856 = vmatprep.subr.mxu0 0.0
      %3857 = vmatpush1.msra.mxu0 0.0
      %3858 = vmatprep.subr.mxu0 0.0
      %3859 = vmatpush1.msra.mxu0 0.0
      %3860 = vmatprep.subr.mxu0 0.0
      %3861 = vmatpush1.msra.mxu0 0.0
      %3862 = vmatprep.subr.mxu0 0.0
      %3863 = vmatpush1.msra.mxu0 0.0
      %3864 = vmatprep.subr.mxu0 0.0
      %3865 = vmatpush1.msra.mxu0 0.0
      %3866 = vmatprep.subr.mxu0 0.0
      %3867 = vmatpush1.msra.mxu0 0.0
      %3868 = vmatprep.mubr.f32.mxu0 0.0
      %3869 = vmatmul.mubr.f32.gmra.mrb[0].mxu0 %v3731
      %v3870 = vpop.f32.mrb[0].mxu0
      %v3871 = vadd.f32 0.0, %v3870
      %v3872 = vpop.f32.mrb[0].mxu0
      %v3873 = vadd.f32 0.0, %v3872
      %3874 = vdwg.mxu0
      %v3875 = vadd.f32 %v3705, %v3800
      %v3876 = vadd.f32 %v3706, %v3802
      %v3877 = vadd.f32 %v3707, %v3871
      %v3878 = vadd.f32 %v3708, %v3873
      %s3879 = scalar_lea.vmem %s2, 80
      %v3880 = vld [vmem:[%s3879] sm:$0xff]
      %3881 = vrot.lane.b32.xlu0 %v2007, 10
      %v3882 = vpop.permute.xlu0 %3881
      %3883 = vrot.lane.b32.xlu0 %v2008, 10
      %v3884 = vpop.permute.xlu0 %3883
      %3885 = vrot.lane.b32.xlu0 %v2009, 10
      %v3886 = vpop.permute.xlu0 %3885
      %3887 = vrot.lane.b32.xlu0 %v2010, 10
      %v3888 = vpop.permute.xlu0 %3887
      %3889 = vrot.lane.b32.xlu0 %v2011, 10
      %v3890 = vpop.permute.xlu0 %3889
      %vm3891 = vcmask 80896
      %v3892 = vsel %vm3891, %v3882, %v3884
      %v3893 = vsel %vm3891, %v3884, %v3886
      %v3894 = vsel %vm3891, %v3886, %v3888
      %v3895 = vsel %vm3891, %v3888, %v3890
      %v3901 = vsel %vm977, %v3880, 0
      %3903 = vmatprep.subr.mxu0 %v3893
      %3904 = vmatpush1.msra.mxu0 %v3892
      %3905 = vmatprep.subr.mxu0 0.0
      %3906 = vmatpush1.msra.mxu0 0.0
      %3907 = vmatprep.subr.mxu0 0.0
      %3908 = vmatpush1.msra.mxu0 0.0
      %3909 = vmatprep.subr.mxu0 0.0
      %3910 = vmatpush1.msra.mxu0 0.0
      %3911 = vmatprep.subr.mxu0 0.0
      %3912 = vmatpush1.msra.mxu0 0.0
      %3913 = vmatprep.subr.mxu0 0.0
      %3914 = vmatpush1.msra.mxu0 0.0
      %3915 = vmatprep.subr.mxu0 0.0
      %3916 = vmatpush1.msra.mxu0 0.0
      %3917 = vmatprep.subr.mxu0 0.0
      %3918 = vmatpush1.msra.mxu0 0.0
      %3919 = vmatprep.subr.mxu0 0.0
      %3920 = vmatpush1.msra.mxu0 0.0
      %3921 = vmatprep.subr.mxu0 0.0
      %3922 = vmatpush1.msra.mxu0 0.0
      %3923 = vmatprep.subr.mxu0 0.0
      %3924 = vmatpush1.msra.mxu0 0.0
      %3925 = vmatprep.subr.mxu0 0.0
      %3926 = vmatpush1.msra.mxu0 0.0
      %3927 = vmatprep.subr.mxu0 0.0
      %3928 = vmatpush1.msra.mxu0 0.0
      %3929 = vmatprep.subr.mxu0 0.0
      %3930 = vmatpush1.msra.mxu0 0.0
      %3931 = vmatprep.subr.mxu0 0.0
      %3932 = vmatpush1.msra.mxu0 0.0
      %3933 = vmatprep.subr.mxu0 0.0
      %3934 = vmatpush1.msra.mxu0 0.0
      %3935 = vmatprep.subr.mxu0 0.0
      %3936 = vmatpush1.msra.mxu0 0.0
      %3937 = vmatprep.subr.mxu0 0.0
      %3938 = vmatpush1.msra.mxu0 0.0
      %3939 = vmatprep.subr.mxu0 0.0
      %3940 = vmatpush1.msra.mxu0 0.0
      %3941 = vmatprep.subr.mxu0 0.0
      %3942 = vmatpush1.msra.mxu0 0.0
      %3943 = vmatprep.subr.mxu0 0.0
      %3944 = vmatpush1.msra.mxu0 0.0
      %3945 = vmatprep.subr.mxu0 0.0
      %3946 = vmatpush1.msra.mxu0 0.0
      %3947 = vmatprep.subr.mxu0 0.0
      %3948 = vmatpush1.msra.mxu0 0.0
      %3949 = vmatprep.subr.mxu0 0.0
      %3950 = vmatpush1.msra.mxu0 0.0
      %3951 = vmatprep.subr.mxu0 0.0
      %3952 = vmatpush1.msra.mxu0 0.0
      %3953 = vmatprep.subr.mxu0 0.0
      %3954 = vmatpush1.msra.mxu0 0.0
      %3955 = vmatprep.subr.mxu0 0.0
      %3956 = vmatpush1.msra.mxu0 0.0
      %3957 = vmatprep.subr.mxu0 0.0
      %3958 = vmatpush1.msra.mxu0 0.0
      %3959 = vmatprep.subr.mxu0 0.0
      %3960 = vmatpush1.msra.mxu0 0.0
      %3961 = vmatprep.subr.mxu0 0.0
      %3962 = vmatpush1.msra.mxu0 0.0
      %3963 = vmatprep.subr.mxu0 0.0
      %3964 = vmatpush1.msra.mxu0 0.0
      %3965 = vmatprep.subr.mxu0 0.0
      %3966 = vmatpush1.msra.mxu0 0.0
      %3967 = vmatprep.mubr.f32.mxu0 0.0
      %3968 = vmatmul.mubr.f32.gmra.mrb[0].mxu0 %v3901
      %v3969 = vpop.f32.mrb[0].mxu0
      %v3970 = vadd.f32 0.0, %v3969
      %v3971 = vpop.f32.mrb[0].mxu0
      %v3972 = vadd.f32 0.0, %v3971
      %3973 = vdwg.mxu0
      %3974 = vmatprep.subr.mxu0 %v3895
      %3975 = vmatpush1.msra.mxu0 %v3894
      %3976 = vmatprep.subr.mxu0 0.0
      %3977 = vmatpush1.msra.mxu0 0.0
      %3978 = vmatprep.subr.mxu0 0.0
      %3979 = vmatpush1.msra.mxu0 0.0
      %3980 = vmatprep.subr.mxu0 0.0
      %3981 = vmatpush1.msra.mxu0 0.0
      %3982 = vmatprep.subr.mxu0 0.0
      %3983 = vmatpush1.msra.mxu0 0.0
      %3984 = vmatprep.subr.mxu0 0.0
      %3985 = vmatpush1.msra.mxu0 0.0
      %3986 = vmatprep.subr.mxu0 0.0
      %3987 = vmatpush1.msra.mxu0 0.0
      %3988 = vmatprep.subr.mxu0 0.0
      %3989 = vmatpush1.msra.mxu0 0.0
      %3990 = vmatprep.subr.mxu0 0.0
      %3991 = vmatpush1.msra.mxu0 0.0
      %3992 = vmatprep.subr.mxu0 0.0
      %3993 = vmatpush1.msra.mxu0 0.0
      %3994 = vmatprep.subr.mxu0 0.0
      %3995 = vmatpush1.msra.mxu0 0.0
      %3996 = vmatprep.subr.mxu0 0.0
      %3997 = vmatpush1.msra.mxu0 0.0
      %3998 = vmatprep.subr.mxu0 0.0
      %3999 = vmatpush1.msra.mxu0 0.0
      %4000 = vmatprep.subr.mxu0 0.0
      %4001 = vmatpush1.msra.mxu0 0.0
      %4002 = vmatprep.subr.mxu0 0.0
      %4003 = vmatpush1.msra.mxu0 0.0
      %4004 = vmatprep.subr.mxu0 0.0
      %4005 = vmatpush1.msra.mxu0 0.0
      %4006 = vmatprep.subr.mxu0 0.0
      %4007 = vmatpush1.msra.mxu0 0.0
      %4008 = vmatprep.subr.mxu0 0.0
      %4009 = vmatpush1.msra.mxu0 0.0
      %4010 = vmatprep.subr.mxu0 0.0
      %4011 = vmatpush1.msra.mxu0 0.0
      %4012 = vmatprep.subr.mxu0 0.0
      %4013 = vmatpush1.msra.mxu0 0.0
      %4014 = vmatprep.subr.mxu0 0.0
      %4015 = vmatpush1.msra.mxu0 0.0
      %4016 = vmatprep.subr.mxu0 0.0
      %4017 = vmatpush1.msra.mxu0 0.0
      %4018 = vmatprep.subr.mxu0 0.0
      %4019 = vmatpush1.msra.mxu0 0.0
      %4020 = vmatprep.subr.mxu0 0.0
      %4021 = vmatpush1.msra.mxu0 0.0
      %4022 = vmatprep.subr.mxu0 0.0
      %4023 = vmatpush1.msra.mxu0 0.0
      %4024 = vmatprep.subr.mxu0 0.0
      %4025 = vmatpush1.msra.mxu0 0.0
      %4026 = vmatprep.subr.mxu0 0.0
      %4027 = vmatpush1.msra.mxu0 0.0
      %4028 = vmatprep.subr.mxu0 0.0
      %4029 = vmatpush1.msra.mxu0 0.0
      %4030 = vmatprep.subr.mxu0 0.0
      %4031 = vmatpush1.msra.mxu0 0.0
      %4032 = vmatprep.subr.mxu0 0.0
      %4033 = vmatpush1.msra.mxu0 0.0
      %4034 = vmatprep.subr.mxu0 0.0
      %4035 = vmatpush1.msra.mxu0 0.0
      %4036 = vmatprep.subr.mxu0 0.0
      %4037 = vmatpush1.msra.mxu0 0.0
      %4038 = vmatprep.mubr.f32.mxu0 0.0
      %4039 = vmatmul.mubr.f32.gmra.mrb[0].mxu0 %v3901
      %v4040 = vpop.f32.mrb[0].mxu0
      %v4041 = vadd.f32 0.0, %v4040
      %v4042 = vpop.f32.mrb[0].mxu0
      %v4043 = vadd.f32 0.0, %v4042
      %4044 = vdwg.mxu0
      %v4045 = vadd.f32 %v3875, %v3970
      %v4046 = vadd.f32 %v3876, %v3972
      %v4047 = vadd.f32 %v3877, %v4041
      %v4048 = vadd.f32 %v3878, %v4043
      %s4049 = scalar_lea.vmem %s2, 88
      %v4050 = vld [vmem:[%s4049] sm:$0xff]
      %4051 = vrot.lane.b32.xlu0 %v2007, 9
      %v4052 = vpop.permute.xlu0 %4051
      %4053 = vrot.lane.b32.xlu0 %v2008, 9
      %v4054 = vpop.permute.xlu0 %4053
      %4055 = vrot.lane.b32.xlu0 %v2009, 9
      %v4056 = vpop.permute.xlu0 %4055
      %4057 = vrot.lane.b32.xlu0 %v2010, 9
      %v4058 = vpop.permute.xlu0 %4057
      %4059 = vrot.lane.b32.xlu0 %v2011, 9
      %v4060 = vpop.permute.xlu0 %4059
      %vm4061 = vcmask 72704
      %v4062 = vsel %vm4061, %v4052, %v4054
      %v4063 = vsel %vm4061, %v4054, %v4056
      %v4064 = vsel %vm4061, %v4056, %v4058
      %v4065 = vsel %vm4061, %v4058, %v4060
      %v4071 = vsel %vm977, %v4050, 0
      %4073 = vmatprep.subr.mxu0 %v4063
      %4074 = vmatpush1.msra.mxu0 %v4062
      %4075 = vmatprep.subr.mxu0 0.0
      %4076 = vmatpush1.msra.mxu0 0.0
      %4077 = vmatprep.subr.mxu0 0.0
      %4078 = vmatpush1.msra.mxu0 0.0
      %4079 = vmatprep.subr.mxu0 0.0
      %4080 = vmatpush1.msra.mxu0 0.0
      %4081 = vmatprep.subr.mxu0 0.0
      %4082 = vmatpush1.msra.mxu0 0.0
      %4083 = vmatprep.subr.mxu0 0.0
      %4084 = vmatpush1.msra.mxu0 0.0
      %4085 = vmatprep.subr.mxu0 0.0
      %4086 = vmatpush1.msra.mxu0 0.0
      %4087 = vmatprep.subr.mxu0 0.0
      %4088 = vmatpush1.msra.mxu0 0.0
      %4089 = vmatprep.subr.mxu0 0.0
      %4090 = vmatpush1.msra.mxu0 0.0
      %4091 = vmatprep.subr.mxu0 0.0
      %4092 = vmatpush1.msra.mxu0 0.0
      %4093 = vmatprep.subr.mxu0 0.0
      %4094 = vmatpush1.msra.mxu0 0.0
      %4095 = vmatprep.subr.mxu0 0.0
      %4096 = vmatpush1.msra.mxu0 0.0
      %4097 = vmatprep.subr.mxu0 0.0
      %4098 = vmatpush1.msra.mxu0 0.0
      %4099 = vmatprep.subr.mxu0 0.0
      %4100 = vmatpush1.msra.mxu0 0.0
      %4101 = vmatprep.subr.mxu0 0.0
      %4102 = vmatpush1.msra.mxu0 0.0
      %4103 = vmatprep.subr.mxu0 0.0
      %4104 = vmatpush1.msra.mxu0 0.0
      %4105 = vmatprep.subr.mxu0 0.0
      %4106 = vmatpush1.msra.mxu0 0.0
      %4107 = vmatprep.subr.mxu0 0.0
      %4108 = vmatpush1.msra.mxu0 0.0
      %4109 = vmatprep.subr.mxu0 0.0
      %4110 = vmatpush1.msra.mxu0 0.0
      %4111 = vmatprep.subr.mxu0 0.0
      %4112 = vmatpush1.msra.mxu0 0.0
      %4113 = vmatprep.subr.mxu0 0.0
      %4114 = vmatpush1.msra.mxu0 0.0
      %4115 = vmatprep.subr.mxu0 0.0
      %4116 = vmatpush1.msra.mxu0 0.0
      %4117 = vmatprep.subr.mxu0 0.0
      %4118 = vmatpush1.msra.mxu0 0.0
      %4119 = vmatprep.subr.mxu0 0.0
      %4120 = vmatpush1.msra.mxu0 0.0
      %4121 = vmatprep.subr.mxu0 0.0
      %4122 = vmatpush1.msra.mxu0 0.0
      %4123 = vmatprep.subr.mxu0 0.0
      %4124 = vmatpush1.msra.mxu0 0.0
      %4125 = vmatprep.subr.mxu0 0.0
      %4126 = vmatpush1.msra.mxu0 0.0
      %4127 = vmatprep.subr.mxu0 0.0
      %4128 = vmatpush1.msra.mxu0 0.0
      %4129 = vmatprep.subr.mxu0 0.0
      %4130 = vmatpush1.msra.mxu0 0.0
      %4131 = vmatprep.subr.mxu0 0.0
      %4132 = vmatpush1.msra.mxu0 0.0
      %4133 = vmatprep.subr.mxu0 0.0
      %4134 = vmatpush1.msra.mxu0 0.0
      %4135 = vmatprep.subr.mxu0 0.0
      %4136 = vmatpush1.msra.mxu0 0.0
      %4137 = vmatprep.mubr.f32.mxu0 0.0
      %4138 = vmatmul.mubr.f32.gmra.mrb[0].mxu0 %v4071
      %v4139 = vpop.f32.mrb[0].mxu0
      %v4140 = vadd.f32 0.0, %v4139
      %v4141 = vpop.f32.mrb[0].mxu0
      %v4142 = vadd.f32 0.0, %v4141
      %4143 = vdwg.mxu0
      %4144 = vmatprep.subr.mxu0 %v4065
      %4145 = vmatpush1.msra.mxu0 %v4064
      %4146 = vmatprep.subr.mxu0 0.0
      %4147 = vmatpush1.msra.mxu0 0.0
      %4148 = vmatprep.subr.mxu0 0.0
      %4149 = vmatpush1.msra.mxu0 0.0
      %4150 = vmatprep.subr.mxu0 0.0
      %4151 = vmatpush1.msra.mxu0 0.0
      %4152 = vmatprep.subr.mxu0 0.0
      %4153 = vmatpush1.msra.mxu0 0.0
      %4154 = vmatprep.subr.mxu0 0.0
      %4155 = vmatpush1.msra.mxu0 0.0
      %4156 = vmatprep.subr.mxu0 0.0
      %4157 = vmatpush1.msra.mxu0 0.0
      %4158 = vmatprep.subr.mxu0 0.0
      %4159 = vmatpush1.msra.mxu0 0.0
      %4160 = vmatprep.subr.mxu0 0.0
      %4161 = vmatpush1.msra.mxu0 0.0
      %4162 = vmatprep.subr.mxu0 0.0
      %4163 = vmatpush1.msra.mxu0 0.0
      %4164 = vmatprep.subr.mxu0 0.0
      %4165 = vmatpush1.msra.mxu0 0.0
      %4166 = vmatprep.subr.mxu0 0.0
      %4167 = vmatpush1.msra.mxu0 0.0
      %4168 = vmatprep.subr.mxu0 0.0
      %4169 = vmatpush1.msra.mxu0 0.0
      %4170 = vmatprep.subr.mxu0 0.0
      %4171 = vmatpush1.msra.mxu0 0.0
      %4172 = vmatprep.subr.mxu0 0.0
      %4173 = vmatpush1.msra.mxu0 0.0
      %4174 = vmatprep.subr.mxu0 0.0
      %4175 = vmatpush1.msra.mxu0 0.0
      %4176 = vmatprep.subr.mxu0 0.0
      %4177 = vmatpush1.msra.mxu0 0.0
      %4178 = vmatprep.subr.mxu0 0.0
      %4179 = vmatpush1.msra.mxu0 0.0
      %4180 = vmatprep.subr.mxu0 0.0
      %4181 = vmatpush1.msra.mxu0 0.0
      %4182 = vmatprep.subr.mxu0 0.0
      %4183 = vmatpush1.msra.mxu0 0.0
      %4184 = vmatprep.subr.mxu0 0.0
      %4185 = vmatpush1.msra.mxu0 0.0
      %4186 = vmatprep.subr.mxu0 0.0
      %4187 = vmatpush1.msra.mxu0 0.0
      %4188 = vmatprep.subr.mxu0 0.0
      %4189 = vmatpush1.msra.mxu0 0.0
      %4190 = vmatprep.subr.mxu0 0.0
      %4191 = vmatpush1.msra.mxu0 0.0
      %4192 = vmatprep.subr.mxu0 0.0
      %4193 = vmatpush1.msra.mxu0 0.0
      %4194 = vmatprep.subr.mxu0 0.0
      %4195 = vmatpush1.msra.mxu0 0.0
      %4196 = vmatprep.subr.mxu0 0.0
      %4197 = vmatpush1.msra.mxu0 0.0
      %4198 = vmatprep.subr.mxu0 0.0
      %4199 = vmatpush1.msra.mxu0 0.0
      %4200 = vmatprep.subr.mxu0 0.0
      %4201 = vmatpush1.msra.mxu0 0.0
      %4202 = vmatprep.subr.mxu0 0.0
      %4203 = vmatpush1.msra.mxu0 0.0
      %4204 = vmatprep.subr.mxu0 0.0
      %4205 = vmatpush1.msra.mxu0 0.0
      %4206 = vmatprep.subr.mxu0 0.0
      %4207 = vmatpush1.msra.mxu0 0.0
      %4208 = vmatprep.mubr.f32.mxu0 0.0
      %4209 = vmatmul.mubr.f32.gmra.mrb[0].mxu0 %v4071
      %v4210 = vpop.f32.mrb[0].mxu0
      %v4211 = vadd.f32 0.0, %v4210
      %v4212 = vpop.f32.mrb[0].mxu0
      %v4213 = vadd.f32 0.0, %v4212
      %4214 = vdwg.mxu0
      %v4215 = vadd.f32 %v4045, %v4140
      %v4216 = vadd.f32 %v4046, %v4142
      %v4217 = vadd.f32 %v4047, %v4211
      %v4218 = vadd.f32 %v4048, %v4213
      %s4219 = scalar_lea.vmem %s2, 96
      %v4220 = vld [vmem:[%s4219] sm:$0xff]
      %4221 = vrot.lane.b32.xlu0 %v2007, 1
      %v4222 = vpop.permute.xlu0 %4221
      %4223 = vrot.lane.b32.xlu0 %v2008, 1
      %v4224 = vpop.permute.xlu0 %4223
      %4225 = vrot.lane.b32.xlu0 %v2009, 1
      %v4226 = vpop.permute.xlu0 %4225
      %4227 = vrot.lane.b32.xlu0 %v2010, 1
      %v4228 = vpop.permute.xlu0 %4227
      %4229 = vrot.lane.b32.xlu0 %v2011, 1
      %v4230 = vpop.permute.xlu0 %4229
      %vm4231 = vcmask 7168
      %v4232 = vsel %vm4231, %v4222, %v4224
      %v4233 = vsel %vm4231, %v4224, %v4226
      %v4234 = vsel %vm4231, %v4226, %v4228
      %v4235 = vsel %vm4231, %v4228, %v4230
      %v4241 = vsel %vm977, %v4220, 0
      %4243 = vmatprep.subr.mxu0 %v4233
      %4244 = vmatpush1.msra.mxu0 %v4232
      %4245 = vmatprep.subr.mxu0 0.0
      %4246 = vmatpush1.msra.mxu0 0.0
      %4247 = vmatprep.subr.mxu0 0.0
      %4248 = vmatpush1.msra.mxu0 0.0
      %4249 = vmatprep.subr.mxu0 0.0
      %4250 = vmatpush1.msra.mxu0 0.0
      %4251 = vmatprep.subr.mxu0 0.0
      %4252 = vmatpush1.msra.mxu0 0.0
      %4253 = vmatprep.subr.mxu0 0.0
      %4254 = vmatpush1.msra.mxu0 0.0
      %4255 = vmatprep.subr.mxu0 0.0
      %4256 = vmatpush1.msra.mxu0 0.0
      %4257 = vmatprep.subr.mxu0 0.0
      %4258 = vmatpush1.msra.mxu0 0.0
      %4259 = vmatprep.subr.mxu0 0.0
      %4260 = vmatpush1.msra.mxu0 0.0
      %4261 = vmatprep.subr.mxu0 0.0
      %4262 = vmatpush1.msra.mxu0 0.0
      %4263 = vmatprep.subr.mxu0 0.0
      %4264 = vmatpush1.msra.mxu0 0.0
      %4265 = vmatprep.subr.mxu0 0.0
      %4266 = vmatpush1.msra.mxu0 0.0
      %4267 = vmatprep.subr.mxu0 0.0
      %4268 = vmatpush1.msra.mxu0 0.0
      %4269 = vmatprep.subr.mxu0 0.0
      %4270 = vmatpush1.msra.mxu0 0.0
      %4271 = vmatprep.subr.mxu0 0.0
      %4272 = vmatpush1.msra.mxu0 0.0
      %4273 = vmatprep.subr.mxu0 0.0
      %4274 = vmatpush1.msra.mxu0 0.0
      %4275 = vmatprep.subr.mxu0 0.0
      %4276 = vmatpush1.msra.mxu0 0.0
      %4277 = vmatprep.subr.mxu0 0.0
      %4278 = vmatpush1.msra.mxu0 0.0
      %4279 = vmatprep.subr.mxu0 0.0
      %4280 = vmatpush1.msra.mxu0 0.0
      %4281 = vmatprep.subr.mxu0 0.0
      %4282 = vmatpush1.msra.mxu0 0.0
      %4283 = vmatprep.subr.mxu0 0.0
      %4284 = vmatpush1.msra.mxu0 0.0
      %4285 = vmatprep.subr.mxu0 0.0
      %4286 = vmatpush1.msra.mxu0 0.0
      %4287 = vmatprep.subr.mxu0 0.0
      %4288 = vmatpush1.msra.mxu0 0.0
      %4289 = vmatprep.subr.mxu0 0.0
      %4290 = vmatpush1.msra.mxu0 0.0
      %4291 = vmatprep.subr.mxu0 0.0
      %4292 = vmatpush1.msra.mxu0 0.0
      %4293 = vmatprep.subr.mxu0 0.0
      %4294 = vmatpush1.msra.mxu0 0.0
      %4295 = vmatprep.subr.mxu0 0.0
      %4296 = vmatpush1.msra.mxu0 0.0
      %4297 = vmatprep.subr.mxu0 0.0
      %4298 = vmatpush1.msra.mxu0 0.0
      %4299 = vmatprep.subr.mxu0 0.0
      %4300 = vmatpush1.msra.mxu0 0.0
      %4301 = vmatprep.subr.mxu0 0.0
      %4302 = vmatpush1.msra.mxu0 0.0
      %4303 = vmatprep.subr.mxu0 0.0
      %4304 = vmatpush1.msra.mxu0 0.0
      %4305 = vmatprep.subr.mxu0 0.0
      %4306 = vmatpush1.msra.mxu0 0.0
      %4307 = vmatprep.mubr.f32.mxu0 0.0
      %4308 = vmatmul.mubr.f32.gmra.mrb[0].mxu0 %v4241
      %v4309 = vpop.f32.mrb[0].mxu0
      %v4310 = vadd.f32 0.0, %v4309
      %v4311 = vpop.f32.mrb[0].mxu0
      %v4312 = vadd.f32 0.0, %v4311
      %4313 = vdwg.mxu0
      %4314 = vmatprep.subr.mxu0 %v4235
      %4315 = vmatpush1.msra.mxu0 %v4234
      %4316 = vmatprep.subr.mxu0 0.0
      %4317 = vmatpush1.msra.mxu0 0.0
      %4318 = vmatprep.subr.mxu0 0.0
      %4319 = vmatpush1.msra.mxu0 0.0
      %4320 = vmatprep.subr.mxu0 0.0
      %4321 = vmatpush1.msra.mxu0 0.0
      %4322 = vmatprep.subr.mxu0 0.0
      %4323 = vmatpush1.msra.mxu0 0.0
      %4324 = vmatprep.subr.mxu0 0.0
      %4325 = vmatpush1.msra.mxu0 0.0
      %4326 = vmatprep.subr.mxu0 0.0
      %4327 = vmatpush1.msra.mxu0 0.0
      %4328 = vmatprep.subr.mxu0 0.0
      %4329 = vmatpush1.msra.mxu0 0.0
      %4330 = vmatprep.subr.mxu0 0.0
      %4331 = vmatpush1.msra.mxu0 0.0
      %4332 = vmatprep.subr.mxu0 0.0
      %4333 = vmatpush1.msra.mxu0 0.0
      %4334 = vmatprep.subr.mxu0 0.0
      %4335 = vmatpush1.msra.mxu0 0.0
      %4336 = vmatprep.subr.mxu0 0.0
      %4337 = vmatpush1.msra.mxu0 0.0
      %4338 = vmatprep.subr.mxu0 0.0
      %4339 = vmatpush1.msra.mxu0 0.0
      %4340 = vmatprep.subr.mxu0 0.0
      %4341 = vmatpush1.msra.mxu0 0.0
      %4342 = vmatprep.subr.mxu0 0.0
      %4343 = vmatpush1.msra.mxu0 0.0
      %4344 = vmatprep.subr.mxu0 0.0
      %4345 = vmatpush1.msra.mxu0 0.0
      %4346 = vmatprep.subr.mxu0 0.0
      %4347 = vmatpush1.msra.mxu0 0.0
      %4348 = vmatprep.subr.mxu0 0.0
      %4349 = vmatpush1.msra.mxu0 0.0
      %4350 = vmatprep.subr.mxu0 0.0
      %4351 = vmatpush1.msra.mxu0 0.0
      %4352 = vmatprep.subr.mxu0 0.0
      %4353 = vmatpush1.msra.mxu0 0.0
      %4354 = vmatprep.subr.mxu0 0.0
      %4355 = vmatpush1.msra.mxu0 0.0
      %4356 = vmatprep.subr.mxu0 0.0
      %4357 = vmatpush1.msra.mxu0 0.0
      %4358 = vmatprep.subr.mxu0 0.0
      %4359 = vmatpush1.msra.mxu0 0.0
      %4360 = vmatprep.subr.mxu0 0.0
      %4361 = vmatpush1.msra.mxu0 0.0
      %4362 = vmatprep.subr.mxu0 0.0
      %4363 = vmatpush1.msra.mxu0 0.0
      %4364 = vmatprep.subr.mxu0 0.0
      %4365 = vmatpush1.msra.mxu0 0.0
      %4366 = vmatprep.subr.mxu0 0.0
      %4367 = vmatpush1.msra.mxu0 0.0
      %4368 = vmatprep.subr.mxu0 0.0
      %4369 = vmatpush1.msra.mxu0 0.0
      %4370 = vmatprep.subr.mxu0 0.0
      %4371 = vmatpush1.msra.mxu0 0.0
      %4372 = vmatprep.subr.mxu0 0.0
      %4373 = vmatpush1.msra.mxu0 0.0
      %4374 = vmatprep.subr.mxu0 0.0
      %4375 = vmatpush1.msra.mxu0 0.0
      %4376 = vmatprep.subr.mxu0 0.0
      %4377 = vmatpush1.msra.mxu0 0.0
      %4378 = vmatprep.mubr.f32.mxu0 0.0
      %4379 = vmatmul.mubr.f32.gmra.mrb[0].mxu0 %v4241
      %v4380 = vpop.f32.mrb[0].mxu0
      %v4381 = vadd.f32 0.0, %v4380
      %v4382 = vpop.f32.mrb[0].mxu0
      %v4383 = vadd.f32 0.0, %v4382
      %4384 = vdwg.mxu0
      %v4385 = vadd.f32 %v4215, %v4310
      %v4386 = vadd.f32 %v4216, %v4312
      %v4387 = vadd.f32 %v4217, %v4381
      %v4388 = vadd.f32 %v4218, %v4383
      %s4389 = scalar_lea.vmem %s2, 104
      %v4390 = vld [vmem:[%s4389] sm:$0xff]
      %v4392 = vsel %vm977, %v4390, 0
      %4394 = vmatprep.subr.mxu0 %v2009
      %4395 = vmatpush1.msra.mxu0 %v2008
      %4396 = vmatprep.subr.mxu0 0.0
      %4397 = vmatpush1.msra.mxu0 0.0
      %4398 = vmatprep.subr.mxu0 0.0
      %4399 = vmatpush1.msra.mxu0 0.0
      %4400 = vmatprep.subr.mxu0 0.0
      %4401 = vmatpush1.msra.mxu0 0.0
      %4402 = vmatprep.subr.mxu0 0.0
      %4403 = vmatpush1.msra.mxu0 0.0
      %4404 = vmatprep.subr.mxu0 0.0
      %4405 = vmatpush1.msra.mxu0 0.0
      %4406 = vmatprep.subr.mxu0 0.0
      %4407 = vmatpush1.msra.mxu0 0.0
      %4408 = vmatprep.subr.mxu0 0.0
      %4409 = vmatpush1.msra.mxu0 0.0
      %4410 = vmatprep.subr.mxu0 0.0
      %4411 = vmatpush1.msra.mxu0 0.0
      %4412 = vmatprep.subr.mxu0 0.0
      %4413 = vmatpush1.msra.mxu0 0.0
      %4414 = vmatprep.subr.mxu0 0.0
      %4415 = vmatpush1.msra.mxu0 0.0
      %4416 = vmatprep.subr.mxu0 0.0
      %4417 = vmatpush1.msra.mxu0 0.0
      %4418 = vmatprep.subr.mxu0 0.0
      %4419 = vmatpush1.msra.mxu0 0.0
      %4420 = vmatprep.subr.mxu0 0.0
      %4421 = vmatpush1.msra.mxu0 0.0
      %4422 = vmatprep.subr.mxu0 0.0
      %4423 = vmatpush1.msra.mxu0 0.0
      %4424 = vmatprep.subr.mxu0 0.0
      %4425 = vmatpush1.msra.mxu0 0.0
      %4426 = vmatprep.subr.mxu0 0.0
      %4427 = vmatpush1.msra.mxu0 0.0
      %4428 = vmatprep.subr.mxu0 0.0
      %4429 = vmatpush1.msra.mxu0 0.0
      %4430 = vmatprep.subr.mxu0 0.0
      %4431 = vmatpush1.msra.mxu0 0.0
      %4432 = vmatprep.subr.mxu0 0.0
      %4433 = vmatpush1.msra.mxu0 0.0
      %4434 = vmatprep.subr.mxu0 0.0
      %4435 = vmatpush1.msra.mxu0 0.0
      %4436 = vmatprep.subr.mxu0 0.0
      %4437 = vmatpush1.msra.mxu0 0.0
      %4438 = vmatprep.subr.mxu0 0.0
      %4439 = vmatpush1.msra.mxu0 0.0
      %4440 = vmatprep.subr.mxu0 0.0
      %4441 = vmatpush1.msra.mxu0 0.0
      %4442 = vmatprep.subr.mxu0 0.0
      %4443 = vmatpush1.msra.mxu0 0.0
      %4444 = vmatprep.subr.mxu0 0.0
      %4445 = vmatpush1.msra.mxu0 0.0
      %4446 = vmatprep.subr.mxu0 0.0
      %4447 = vmatpush1.msra.mxu0 0.0
      %4448 = vmatprep.subr.mxu0 0.0
      %4449 = vmatpush1.msra.mxu0 0.0
      %4450 = vmatprep.subr.mxu0 0.0
      %4451 = vmatpush1.msra.mxu0 0.0
      %4452 = vmatprep.subr.mxu0 0.0
      %4453 = vmatpush1.msra.mxu0 0.0
      %4454 = vmatprep.subr.mxu0 0.0
      %4455 = vmatpush1.msra.mxu0 0.0
      %4456 = vmatprep.subr.mxu0 0.0
      %4457 = vmatpush1.msra.mxu0 0.0
      %4458 = vmatprep.mubr.f32.mxu0 0.0
      %4459 = vmatmul.mubr.f32.gmra.mrb[0].mxu0 %v4392
      %v4460 = vpop.f32.mrb[0].mxu0
      %v4461 = vadd.f32 0.0, %v4460
      %v4462 = vpop.f32.mrb[0].mxu0
      %v4463 = vadd.f32 0.0, %v4462
      %4464 = vdwg.mxu0
      %4465 = vmatprep.subr.mxu0 %v2011
      %4466 = vmatpush1.msra.mxu0 %v2010
      %4467 = vmatprep.subr.mxu0 0.0
      %4468 = vmatpush1.msra.mxu0 0.0
      %4469 = vmatprep.subr.mxu0 0.0
      %4470 = vmatpush1.msra.mxu0 0.0
      %4471 = vmatprep.subr.mxu0 0.0
      %4472 = vmatpush1.msra.mxu0 0.0
      %4473 = vmatprep.subr.mxu0 0.0
      %4474 = vmatpush1.msra.mxu0 0.0
      %4475 = vmatprep.subr.mxu0 0.0
      %4476 = vmatpush1.msra.mxu0 0.0
      %4477 = vmatprep.subr.mxu0 0.0
      %4478 = vmatpush1.msra.mxu0 0.0
      %4479 = vmatprep.subr.mxu0 0.0
      %4480 = vmatpush1.msra.mxu0 0.0
      %4481 = vmatprep.subr.mxu0 0.0
      %4482 = vmatpush1.msra.mxu0 0.0
      %4483 = vmatprep.subr.mxu0 0.0
      %4484 = vmatpush1.msra.mxu0 0.0
      %4485 = vmatprep.subr.mxu0 0.0
      %4486 = vmatpush1.msra.mxu0 0.0
      %4487 = vmatprep.subr.mxu0 0.0
      %4488 = vmatpush1.msra.mxu0 0.0
      %4489 = vmatprep.subr.mxu0 0.0
      %4490 = vmatpush1.msra.mxu0 0.0
      %4491 = vmatprep.subr.mxu0 0.0
      %4492 = vmatpush1.msra.mxu0 0.0
      %4493 = vmatprep.subr.mxu0 0.0
      %4494 = vmatpush1.msra.mxu0 0.0
      %4495 = vmatprep.subr.mxu0 0.0
      %4496 = vmatpush1.msra.mxu0 0.0
      %4497 = vmatprep.subr.mxu0 0.0
      %4498 = vmatpush1.msra.mxu0 0.0
      %4499 = vmatprep.subr.mxu0 0.0
      %4500 = vmatpush1.msra.mxu0 0.0
      %4501 = vmatprep.subr.mxu0 0.0
      %4502 = vmatpush1.msra.mxu0 0.0
      %4503 = vmatprep.subr.mxu0 0.0
      %4504 = vmatpush1.msra.mxu0 0.0
      %4505 = vmatprep.subr.mxu0 0.0
      %4506 = vmatpush1.msra.mxu0 0.0
      %4507 = vmatprep.subr.mxu0 0.0
      %4508 = vmatpush1.msra.mxu0 0.0
      %4509 = vmatprep.subr.mxu0 0.0
      %4510 = vmatpush1.msra.mxu0 0.0
      %4511 = vmatprep.subr.mxu0 0.0
      %4512 = vmatpush1.msra.mxu0 0.0
      %4513 = vmatprep.subr.mxu0 0.0
      %4514 = vmatpush1.msra.mxu0 0.0
      %4515 = vmatprep.subr.mxu0 0.0
      %4516 = vmatpush1.msra.mxu0 0.0
      %4517 = vmatprep.subr.mxu0 0.0
      %4518 = vmatpush1.msra.mxu0 0.0
      %4519 = vmatprep.subr.mxu0 0.0
      %4520 = vmatpush1.msra.mxu0 0.0
      %4521 = vmatprep.subr.mxu0 0.0
      %4522 = vmatpush1.msra.mxu0 0.0
      %4523 = vmatprep.subr.mxu0 0.0
      %4524 = vmatpush1.msra.mxu0 0.0
      %4525 = vmatprep.subr.mxu0 0.0
      %4526 = vmatpush1.msra.mxu0 0.0
      %4527 = vmatprep.subr.mxu0 0.0
      %4528 = vmatpush1.msra.mxu0 0.0
      %4529 = vmatprep.mubr.f32.mxu0 0.0
      %4530 = vmatmul.mubr.f32.gmra.mrb[0].mxu0 %v4392
      %v4531 = vpop.f32.mrb[0].mxu0
      %v4532 = vadd.f32 0.0, %v4531
      %v4533 = vpop.f32.mrb[0].mxu0
      %v4534 = vadd.f32 0.0, %v4533
      %4535 = vdwg.mxu0
      %v4536 = vadd.f32 %v4385, %v4461
      %v4537 = vadd.f32 %v4386, %v4463
      %v4538 = vadd.f32 %v4387, %v4532
      %v4539 = vadd.f32 %v4388, %v4534
      %s4540 = scalar_lea.vmem %s2, 112
      %v4541 = vld [vmem:[%s4540] sm:$0xff]
      %v4542 = vld [vmem:[#allocation3 + $0x8] sm:$0xff]
      %v4543 = vld [vmem:[#allocation3 + $0x10] sm:$0xff]
      %v4544 = vld [vmem:[#allocation3 + $0x18] sm:$0xff]
      %v4545 = vld [vmem:[#allocation3 + $0x20] sm:$0xff]
      %v4546 = vld [vmem:[#allocation3 + $0x28] sm:$0xff]
      %4552 = vrot.lane.b32.xlu0 %v4542, 127
      %v4553 = vpop.permute.xlu0 %4552
      %4554 = vrot.lane.b32.xlu0 %v4543, 127
      %v4555 = vpop.permute.xlu0 %4554
      %4556 = vrot.lane.b32.xlu0 %v4544, 127
      %v4557 = vpop.permute.xlu0 %4556
      %4558 = vrot.lane.b32.xlu0 %v4545, 127
      %v4559 = vpop.permute.xlu0 %4558
      %4560 = vrot.lane.b32.xlu0 %v4546, 127
      %v4561 = vpop.permute.xlu0 %4560
      %v4562 = vsel %vm319, %v4553, %v4555
      %v4563 = vsel %vm319, %v4555, %v4557
      %v4564 = vsel %vm319, %v4557, %v4559
      %v4565 = vsel %vm319, %v4559, %v4561
      %v4571 = vsel %vm977, %v4541, 0
      %4573 = vmatprep.subr.mxu0 %v4563
      %4574 = vmatpush1.msra.mxu0 %v4562
      %4575 = vmatprep.subr.mxu0 0.0
      %4576 = vmatpush1.msra.mxu0 0.0
      %4577 = vmatprep.subr.mxu0 0.0
      %4578 = vmatpush1.msra.mxu0 0.0
      %4579 = vmatprep.subr.mxu0 0.0
      %4580 = vmatpush1.msra.mxu0 0.0
      %4581 = vmatprep.subr.mxu0 0.0
      %4582 = vmatpush1.msra.mxu0 0.0
      %4583 = vmatprep.subr.mxu0 0.0
      %4584 = vmatpush1.msra.mxu0 0.0
      %4585 = vmatprep.subr.mxu0 0.0
      %4586 = vmatpush1.msra.mxu0 0.0
      %4587 = vmatprep.subr.mxu0 0.0
      %4588 = vmatpush1.msra.mxu0 0.0
      %4589 = vmatprep.subr.mxu0 0.0
      %4590 = vmatpush1.msra.mxu0 0.0
      %4591 = vmatprep.subr.mxu0 0.0
      %4592 = vmatpush1.msra.mxu0 0.0
      %4593 = vmatprep.subr.mxu0 0.0
      %4594 = vmatpush1.msra.mxu0 0.0
      %4595 = vmatprep.subr.mxu0 0.0
      %4596 = vmatpush1.msra.mxu0 0.0
      %4597 = vmatprep.subr.mxu0 0.0
      %4598 = vmatpush1.msra.mxu0 0.0
      %4599 = vmatprep.subr.mxu0 0.0
      %4600 = vmatpush1.msra.mxu0 0.0
      %4601 = vmatprep.subr.mxu0 0.0
      %4602 = vmatpush1.msra.mxu0 0.0
      %4603 = vmatprep.subr.mxu0 0.0
      %4604 = vmatpush1.msra.mxu0 0.0
      %4605 = vmatprep.subr.mxu0 0.0
      %4606 = vmatpush1.msra.mxu0 0.0
      %4607 = vmatprep.subr.mxu0 0.0
      %4608 = vmatpush1.msra.mxu0 0.0
      %4609 = vmatprep.subr.mxu0 0.0
      %4610 = vmatpush1.msra.mxu0 0.0
      %4611 = vmatprep.subr.mxu0 0.0
      %4612 = vmatpush1.msra.mxu0 0.0
      %4613 = vmatprep.subr.mxu0 0.0
      %4614 = vmatpush1.msra.mxu0 0.0
      %4615 = vmatprep.subr.mxu0 0.0
      %4616 = vmatpush1.msra.mxu0 0.0
      %4617 = vmatprep.subr.mxu0 0.0
      %4618 = vmatpush1.msra.mxu0 0.0
      %4619 = vmatprep.subr.mxu0 0.0
      %4620 = vmatpush1.msra.mxu0 0.0
      %4621 = vmatprep.subr.mxu0 0.0
      %4622 = vmatpush1.msra.mxu0 0.0
      %4623 = vmatprep.subr.mxu0 0.0
      %4624 = vmatpush1.msra.mxu0 0.0
      %4625 = vmatprep.subr.mxu0 0.0
      %4626 = vmatpush1.msra.mxu0 0.0
      %4627 = vmatprep.subr.mxu0 0.0
      %4628 = vmatpush1.msra.mxu0 0.0
      %4629 = vmatprep.subr.mxu0 0.0
      %4630 = vmatpush1.msra.mxu0 0.0
      %4631 = vmatprep.subr.mxu0 0.0
      %4632 = vmatpush1.msra.mxu0 0.0
      %4633 = vmatprep.subr.mxu0 0.0
      %4634 = vmatpush1.msra.mxu0 0.0
      %4635 = vmatprep.subr.mxu0 0.0
      %4636 = vmatpush1.msra.mxu0 0.0
      %4637 = vmatprep.mubr.f32.mxu0 0.0
      %4638 = vmatmul.mubr.f32.gmra.mrb[0].mxu0 %v4571
      %v4639 = vpop.f32.mrb[0].mxu0
      %v4640 = vadd.f32 0.0, %v4639
      %v4641 = vpop.f32.mrb[0].mxu0
      %v4642 = vadd.f32 0.0, %v4641
      %4643 = vdwg.mxu0
      %4644 = vmatprep.subr.mxu0 %v4565
      %4645 = vmatpush1.msra.mxu0 %v4564
      %4646 = vmatprep.subr.mxu0 0.0
      %4647 = vmatpush1.msra.mxu0 0.0
      %4648 = vmatprep.subr.mxu0 0.0
      %4649 = vmatpush1.msra.mxu0 0.0
      %4650 = vmatprep.subr.mxu0 0.0
      %4651 = vmatpush1.msra.mxu0 0.0
      %4652 = vmatprep.subr.mxu0 0.0
      %4653 = vmatpush1.msra.mxu0 0.0
      %4654 = vmatprep.subr.mxu0 0.0
      %4655 = vmatpush1.msra.mxu0 0.0
      %4656 = vmatprep.subr.mxu0 0.0
      %4657 = vmatpush1.msra.mxu0 0.0
      %4658 = vmatprep.subr.mxu0 0.0
      %4659 = vmatpush1.msra.mxu0 0.0
      %4660 = vmatprep.subr.mxu0 0.0
      %4661 = vmatpush1.msra.mxu0 0.0
      %4662 = vmatprep.subr.mxu0 0.0
      %4663 = vmatpush1.msra.mxu0 0.0
      %4664 = vmatprep.subr.mxu0 0.0
      %4665 = vmatpush1.msra.mxu0 0.0
      %4666 = vmatprep.subr.mxu0 0.0
      %4667 = vmatpush1.msra.mxu0 0.0
      %4668 = vmatprep.subr.mxu0 0.0
      %4669 = vmatpush1.msra.mxu0 0.0
      %4670 = vmatprep.subr.mxu0 0.0
      %4671 = vmatpush1.msra.mxu0 0.0
      %4672 = vmatprep.subr.mxu0 0.0
      %4673 = vmatpush1.msra.mxu0 0.0
      %4674 = vmatprep.subr.mxu0 0.0
      %4675 = vmatpush1.msra.mxu0 0.0
      %4676 = vmatprep.subr.mxu0 0.0
      %4677 = vmatpush1.msra.mxu0 0.0
      %4678 = vmatprep.subr.mxu0 0.0
      %4679 = vmatpush1.msra.mxu0 0.0
      %4680 = vmatprep.subr.mxu0 0.0
      %4681 = vmatpush1.msra.mxu0 0.0
      %4682 = vmatprep.subr.mxu0 0.0
      %4683 = vmatpush1.msra.mxu0 0.0
      %4684 = vmatprep.subr.mxu0 0.0
      %4685 = vmatpush1.msra.mxu0 0.0
      %4686 = vmatprep.subr.mxu0 0.0
      %4687 = vmatpush1.msra.mxu0 0.0
      %4688 = vmatprep.subr.mxu0 0.0
      %4689 = vmatpush1.msra.mxu0 0.0
      %4690 = vmatprep.subr.mxu0 0.0
      %4691 = vmatpush1.msra.mxu0 0.0
      %4692 = vmatprep.subr.mxu0 0.0
      %4693 = vmatpush1.msra.mxu0 0.0
      %4694 = vmatprep.subr.mxu0 0.0
      %4695 = vmatpush1.msra.mxu0 0.0
      %4696 = vmatprep.subr.mxu0 0.0
      %4697 = vmatpush1.msra.mxu0 0.0
      %4698 = vmatprep.subr.mxu0 0.0
      %4699 = vmatpush1.msra.mxu0 0.0
      %4700 = vmatprep.subr.mxu0 0.0
      %4701 = vmatpush1.msra.mxu0 0.0
      %4702 = vmatprep.subr.mxu0 0.0
      %4703 = vmatpush1.msra.mxu0 0.0
      %4704 = vmatprep.subr.mxu0 0.0
      %4705 = vmatpush1.msra.mxu0 0.0
      %4706 = vmatprep.subr.mxu0 0.0
      %4707 = vmatpush1.msra.mxu0 0.0
      %4708 = vmatprep.mubr.f32.mxu0 0.0
      %4709 = vmatmul.mubr.f32.gmra.mrb[0].mxu0 %v4571
      %v4710 = vpop.f32.mrb[0].mxu0
      %v4711 = vadd.f32 0.0, %v4710
      %v4712 = vpop.f32.mrb[0].mxu0
      %v4713 = vadd.f32 0.0, %v4712
      %4714 = vdwg.mxu0
      %v4715 = vadd.f32 %v4536, %v4640
      %v4716 = vadd.f32 %v4537, %v4642
      %v4717 = vadd.f32 %v4538, %v4711
      %v4718 = vadd.f32 %v4539, %v4713
      %s4719 = scalar_lea.vmem %s2, 120
      %v4720 = vld [vmem:[%s4719] sm:$0xff]
      %4721 = vrot.lane.b32.xlu0 %v4542, 119
      %v4722 = vpop.permute.xlu0 %4721
      %4723 = vrot.lane.b32.xlu0 %v4543, 119
      %v4724 = vpop.permute.xlu0 %4723
      %4725 = vrot.lane.b32.xlu0 %v4544, 119
      %v4726 = vpop.permute.xlu0 %4725
      %4727 = vrot.lane.b32.xlu0 %v4545, 119
      %v4728 = vpop.permute.xlu0 %4727
      %4729 = vrot.lane.b32.xlu0 %v4546, 119
      %v4730 = vpop.permute.xlu0 %4729
      %vm4731 = vcmask 973824
      %v4732 = vsel %vm4731, %v4722, %v4724
      %v4733 = vsel %vm4731, %v4724, %v4726
      %v4734 = vsel %vm4731, %v4726, %v4728
      %v4735 = vsel %vm4731, %v4728, %v4730
      %v4741 = vsel %vm977, %v4720, 0
      %4743 = vmatprep.subr.mxu0 %v4733
      %4744 = vmatpush1.msra.mxu0 %v4732
      %4745 = vmatprep.subr.mxu0 0.0
      %4746 = vmatpush1.msra.mxu0 0.0
      %4747 = vmatprep.subr.mxu0 0.0
      %4748 = vmatpush1.msra.mxu0 0.0
      %4749 = vmatprep.subr.mxu0 0.0
      %4750 = vmatpush1.msra.mxu0 0.0
      %4751 = vmatprep.subr.mxu0 0.0
      %4752 = vmatpush1.msra.mxu0 0.0
      %4753 = vmatprep.subr.mxu0 0.0
      %4754 = vmatpush1.msra.mxu0 0.0
      %4755 = vmatprep.subr.mxu0 0.0
      %4756 = vmatpush1.msra.mxu0 0.0
      %4757 = vmatprep.subr.mxu0 0.0
      %4758 = vmatpush1.msra.mxu0 0.0
      %4759 = vmatprep.subr.mxu0 0.0
      %4760 = vmatpush1.msra.mxu0 0.0
      %4761 = vmatprep.subr.mxu0 0.0
      %4762 = vmatpush1.msra.mxu0 0.0
      %4763 = vmatprep.subr.mxu0 0.0
      %4764 = vmatpush1.msra.mxu0 0.0
      %4765 = vmatprep.subr.mxu0 0.0
      %4766 = vmatpush1.msra.mxu0 0.0
      %4767 = vmatprep.subr.mxu0 0.0
      %4768 = vmatpush1.msra.mxu0 0.0
      %4769 = vmatprep.subr.mxu0 0.0
      %4770 = vmatpush1.msra.mxu0 0.0
      %4771 = vmatprep.subr.mxu0 0.0
      %4772 = vmatpush1.msra.mxu0 0.0
      %4773 = vmatprep.subr.mxu0 0.0
      %4774 = vmatpush1.msra.mxu0 0.0
      %4775 = vmatprep.subr.mxu0 0.0
      %4776 = vmatpush1.msra.mxu0 0.0
      %4777 = vmatprep.subr.mxu0 0.0
      %4778 = vmatpush1.msra.mxu0 0.0
      %4779 = vmatprep.subr.mxu0 0.0
      %4780 = vmatpush1.msra.mxu0 0.0
      %4781 = vmatprep.subr.mxu0 0.0
      %4782 = vmatpush1.msra.mxu0 0.0
      %4783 = vmatprep.subr.mxu0 0.0
      %4784 = vmatpush1.msra.mxu0 0.0
      %4785 = vmatprep.subr.mxu0 0.0
      %4786 = vmatpush1.msra.mxu0 0.0
      %4787 = vmatprep.subr.mxu0 0.0
      %4788 = vmatpush1.msra.mxu0 0.0
      %4789 = vmatprep.subr.mxu0 0.0
      %4790 = vmatpush1.msra.mxu0 0.0
      %4791 = vmatprep.subr.mxu0 0.0
      %4792 = vmatpush1.msra.mxu0 0.0
      %4793 = vmatprep.subr.mxu0 0.0
      %4794 = vmatpush1.msra.mxu0 0.0
      %4795 = vmatprep.subr.mxu0 0.0
      %4796 = vmatpush1.msra.mxu0 0.0
      %4797 = vmatprep.subr.mxu0 0.0
      %4798 = vmatpush1.msra.mxu0 0.0
      %4799 = vmatprep.subr.mxu0 0.0
      %4800 = vmatpush1.msra.mxu0 0.0
      %4801 = vmatprep.subr.mxu0 0.0
      %4802 = vmatpush1.msra.mxu0 0.0
      %4803 = vmatprep.subr.mxu0 0.0
      %4804 = vmatpush1.msra.mxu0 0.0
      %4805 = vmatprep.subr.mxu0 0.0
      %4806 = vmatpush1.msra.mxu0 0.0
      %4807 = vmatprep.mubr.f32.mxu0 0.0
      %4808 = vmatmul.mubr.f32.gmra.mrb[0].mxu0 %v4741
      %v4809 = vpop.f32.mrb[0].mxu0
      %v4810 = vadd.f32 0.0, %v4809
      %v4811 = vpop.f32.mrb[0].mxu0
      %v4812 = vadd.f32 0.0, %v4811
      %4813 = vdwg.mxu0
      %4814 = vmatprep.subr.mxu0 %v4735
      %4815 = vmatpush1.msra.mxu0 %v4734
      %4816 = vmatprep.subr.mxu0 0.0
      %4817 = vmatpush1.msra.mxu0 0.0
      %4818 = vmatprep.subr.mxu0 0.0
      %4819 = vmatpush1.msra.mxu0 0.0
      %4820 = vmatprep.subr.mxu0 0.0
      %4821 = vmatpush1.msra.mxu0 0.0
      %4822 = vmatprep.subr.mxu0 0.0
      %4823 = vmatpush1.msra.mxu0 0.0
      %4824 = vmatprep.subr.mxu0 0.0
      %4825 = vmatpush1.msra.mxu0 0.0
      %4826 = vmatprep.subr.mxu0 0.0
      %4827 = vmatpush1.msra.mxu0 0.0
      %4828 = vmatprep.subr.mxu0 0.0
      %4829 = vmatpush1.msra.mxu0 0.0
      %4830 = vmatprep.subr.mxu0 0.0
      %4831 = vmatpush1.msra.mxu0 0.0
      %4832 = vmatprep.subr.mxu0 0.0
      %4833 = vmatpush1.msra.mxu0 0.0
      %4834 = vmatprep.subr.mxu0 0.0
      %4835 = vmatpush1.msra.mxu0 0.0
      %4836 = vmatprep.subr.mxu0 0.0
      %4837 = vmatpush1.msra.mxu0 0.0
      %4838 = vmatprep.subr.mxu0 0.0
      %4839 = vmatpush1.msra.mxu0 0.0
      %4840 = vmatprep.subr.mxu0 0.0
      %4841 = vmatpush1.msra.mxu0 0.0
      %4842 = vmatprep.subr.mxu0 0.0
      %4843 = vmatpush1.msra.mxu0 0.0
      %4844 = vmatprep.subr.mxu0 0.0
      %4845 = vmatpush1.msra.mxu0 0.0
      %4846 = vmatprep.subr.mxu0 0.0
      %4847 = vmatpush1.msra.mxu0 0.0
      %4848 = vmatprep.subr.mxu0 0.0
      %4849 = vmatpush1.msra.mxu0 0.0
      %4850 = vmatprep.subr.mxu0 0.0
      %4851 = vmatpush1.msra.mxu0 0.0
      %4852 = vmatprep.subr.mxu0 0.0
      %4853 = vmatpush1.msra.mxu0 0.0
      %4854 = vmatprep.subr.mxu0 0.0
      %4855 = vmatpush1.msra.mxu0 0.0
      %4856 = vmatprep.subr.mxu0 0.0
      %4857 = vmatpush1.msra.mxu0 0.0
      %4858 = vmatprep.subr.mxu0 0.0
      %4859 = vmatpush1.msra.mxu0 0.0
      %4860 = vmatprep.subr.mxu0 0.0
      %4861 = vmatpush1.msra.mxu0 0.0
      %4862 = vmatprep.subr.mxu0 0.0
      %4863 = vmatpush1.msra.mxu0 0.0
      %4864 = vmatprep.subr.mxu0 0.0
      %4865 = vmatpush1.msra.mxu0 0.0
      %4866 = vmatprep.subr.mxu0 0.0
      %4867 = vmatpush1.msra.mxu0 0.0
      %4868 = vmatprep.subr.mxu0 0.0
      %4869 = vmatpush1.msra.mxu0 0.0
      %4870 = vmatprep.subr.mxu0 0.0
      %4871 = vmatpush1.msra.mxu0 0.0
      %4872 = vmatprep.subr.mxu0 0.0
      %4873 = vmatpush1.msra.mxu0 0.0
      %4874 = vmatprep.subr.mxu0 0.0
      %4875 = vmatpush1.msra.mxu0 0.0
      %4876 = vmatprep.subr.mxu0 0.0
      %4877 = vmatpush1.msra.mxu0 0.0
      %4878 = vmatprep.mubr.f32.mxu0 0.0
      %4879 = vmatmul.mubr.f32.gmra.mrb[0].mxu0 %v4741
      %v4880 = vpop.f32.mrb[0].mxu0
      %v4881 = vadd.f32 0.0, %v4880
      %v4882 = vpop.f32.mrb[0].mxu0
      %v4883 = vadd.f32 0.0, %v4882
      %4884 = vdwg.mxu0
      %v4885 = vadd.f32 %v4715, %v4810
      %v4886 = vadd.f32 %v4716, %v4812
      %v4887 = vadd.f32 %v4717, %v4881
      %v4888 = vadd.f32 %v4718, %v4883
      %s4889 = scalar_lea.vmem %s2, 128
      %v4890 = vld [vmem:[%s4889] sm:$0xff]
      %4891 = vrot.lane.b32.xlu0 %v4542, 118
      %v4892 = vpop.permute.xlu0 %4891
      %4893 = vrot.lane.b32.xlu0 %v4543, 118
      %v4894 = vpop.permute.xlu0 %4893
      %4895 = vrot.lane.b32.xlu0 %v4544, 118
      %v4896 = vpop.permute.xlu0 %4895
      %4897 = vrot.lane.b32.xlu0 %v4545, 118
      %v4898 = vpop.permute.xlu0 %4897
      %4899 = vrot.lane.b32.xlu0 %v4546, 118
      %v4900 = vpop.permute.xlu0 %4899
      %v4901 = vsel %vm413, %v4892, %v4894
      %v4902 = vsel %vm413, %v4894, %v4896
      %v4903 = vsel %vm413, %v4896, %v4898
      %v4904 = vsel %vm413, %v4898, %v4900
      %v4910 = vsel %vm977, %v4890, 0
      %4912 = vmatprep.subr.mxu0 %v4902
      %4913 = vmatpush1.msra.mxu0 %v4901
      %4914 = vmatprep.subr.mxu0 0.0
      %4915 = vmatpush1.msra.mxu0 0.0
      %4916 = vmatprep.subr.mxu0 0.0
      %4917 = vmatpush1.msra.mxu0 0.0
      %4918 = vmatprep.subr.mxu0 0.0
      %4919 = vmatpush1.msra.mxu0 0.0
      %4920 = vmatprep.subr.mxu0 0.0
      %4921 = vmatpush1.msra.mxu0 0.0
      %4922 = vmatprep.subr.mxu0 0.0
      %4923 = vmatpush1.msra.mxu0 0.0
      %4924 = vmatprep.subr.mxu0 0.0
      %4925 = vmatpush1.msra.mxu0 0.0
      %4926 = vmatprep.subr.mxu0 0.0
      %4927 = vmatpush1.msra.mxu0 0.0
      %4928 = vmatprep.subr.mxu0 0.0
      %4929 = vmatpush1.msra.mxu0 0.0
      %4930 = vmatprep.subr.mxu0 0.0
      %4931 = vmatpush1.msra.mxu0 0.0
      %4932 = vmatprep.subr.mxu0 0.0
      %4933 = vmatpush1.msra.mxu0 0.0
      %4934 = vmatprep.subr.mxu0 0.0
      %4935 = vmatpush1.msra.mxu0 0.0
      %4936 = vmatprep.subr.mxu0 0.0
      %4937 = vmatpush1.msra.mxu0 0.0
      %4938 = vmatprep.subr.mxu0 0.0
      %4939 = vmatpush1.msra.mxu0 0.0
      %4940 = vmatprep.subr.mxu0 0.0
      %4941 = vmatpush1.msra.mxu0 0.0
      %4942 = vmatprep.subr.mxu0 0.0
      %4943 = vmatpush1.msra.mxu0 0.0
      %4944 = vmatprep.subr.mxu0 0.0
      %4945 = vmatpush1.msra.mxu0 0.0
      %4946 = vmatprep.subr.mxu0 0.0
      %4947 = vmatpush1.msra.mxu0 0.0
      %4948 = vmatprep.subr.mxu0 0.0
      %4949 = vmatpush1.msra.mxu0 0.0
      %4950 = vmatprep.subr.mxu0 0.0
      %4951 = vmatpush1.msra.mxu0 0.0
      %4952 = vmatprep.subr.mxu0 0.0
      %4953 = vmatpush1.msra.mxu0 0.0
      %4954 = vmatprep.subr.mxu0 0.0
      %4955 = vmatpush1.msra.mxu0 0.0
      %4956 = vmatprep.subr.mxu0 0.0
      %4957 = vmatpush1.msra.mxu0 0.0
      %4958 = vmatprep.subr.mxu0 0.0
      %4959 = vmatpush1.msra.mxu0 0.0
      %4960 = vmatprep.subr.mxu0 0.0
      %4961 = vmatpush1.msra.mxu0 0.0
      %4962 = vmatprep.subr.mxu0 0.0
      %4963 = vmatpush1.msra.mxu0 0.0
      %4964 = vmatprep.subr.mxu0 0.0
      %4965 = vmatpush1.msra.mxu0 0.0
      %4966 = vmatprep.subr.mxu0 0.0
      %4967 = vmatpush1.msra.mxu0 0.0
      %4968 = vmatprep.subr.mxu0 0.0
      %4969 = vmatpush1.msra.mxu0 0.0
      %4970 = vmatprep.subr.mxu0 0.0
      %4971 = vmatpush1.msra.mxu0 0.0
      %4972 = vmatprep.subr.mxu0 0.0
      %4973 = vmatpush1.msra.mxu0 0.0
      %4974 = vmatprep.subr.mxu0 0.0
      %4975 = vmatpush1.msra.mxu0 0.0
      %4976 = vmatprep.mubr.f32.mxu0 0.0
      %4977 = vmatmul.mubr.f32.gmra.mrb[0].mxu0 %v4910
      %v4978 = vpop.f32.mrb[0].mxu0
      %v4979 = vadd.f32 0.0, %v4978
      %v4980 = vpop.f32.mrb[0].mxu0
      %v4981 = vadd.f32 0.0, %v4980
      %4982 = vdwg.mxu0
      %4983 = vmatprep.subr.mxu0 %v4904
      %4984 = vmatpush1.msra.mxu0 %v4903
      %4985 = vmatprep.subr.mxu0 0.0
      %4986 = vmatpush1.msra.mxu0 0.0
      %4987 = vmatprep.subr.mxu0 0.0
      %4988 = vmatpush1.msra.mxu0 0.0
      %4989 = vmatprep.subr.mxu0 0.0
      %4990 = vmatpush1.msra.mxu0 0.0
      %4991 = vmatprep.subr.mxu0 0.0
      %4992 = vmatpush1.msra.mxu0 0.0
      %4993 = vmatprep.subr.mxu0 0.0
      %4994 = vmatpush1.msra.mxu0 0.0
      %4995 = vmatprep.subr.mxu0 0.0
      %4996 = vmatpush1.msra.mxu0 0.0
      %4997 = vmatprep.subr.mxu0 0.0
      %4998 = vmatpush1.msra.mxu0 0.0
      %4999 = vmatprep.subr.mxu0 0.0
      %5000 = vmatpush1.msra.mxu0 0.0
      %5001 = vmatprep.subr.mxu0 0.0
      %5002 = vmatpush1.msra.mxu0 0.0
      %5003 = vmatprep.subr.mxu0 0.0
      %5004 = vmatpush1.msra.mxu0 0.0
      %5005 = vmatprep.subr.mxu0 0.0
      %5006 = vmatpush1.msra.mxu0 0.0
      %5007 = vmatprep.subr.mxu0 0.0
      %5008 = vmatpush1.msra.mxu0 0.0
      %5009 = vmatprep.subr.mxu0 0.0
      %5010 = vmatpush1.msra.mxu0 0.0
      %5011 = vmatprep.subr.mxu0 0.0
      %5012 = vmatpush1.msra.mxu0 0.0
      %5013 = vmatprep.subr.mxu0 0.0
      %5014 = vmatpush1.msra.mxu0 0.0
      %5015 = vmatprep.subr.mxu0 0.0
      %5016 = vmatpush1.msra.mxu0 0.0
      %5017 = vmatprep.subr.mxu0 0.0
      %5018 = vmatpush1.msra.mxu0 0.0
      %5019 = vmatprep.subr.mxu0 0.0
      %5020 = vmatpush1.msra.mxu0 0.0
      %5021 = vmatprep.subr.mxu0 0.0
      %5022 = vmatpush1.msra.mxu0 0.0
      %5023 = vmatprep.subr.mxu0 0.0
      %5024 = vmatpush1.msra.mxu0 0.0
      %5025 = vmatprep.subr.mxu0 0.0
      %5026 = vmatpush1.msra.mxu0 0.0
      %5027 = vmatprep.subr.mxu0 0.0
      %5028 = vmatpush1.msra.mxu0 0.0
      %5029 = vmatprep.subr.mxu0 0.0
      %5030 = vmatpush1.msra.mxu0 0.0
      %5031 = vmatprep.subr.mxu0 0.0
      %5032 = vmatpush1.msra.mxu0 0.0
      %5033 = vmatprep.subr.mxu0 0.0
      %5034 = vmatpush1.msra.mxu0 0.0
      %5035 = vmatprep.subr.mxu0 0.0
      %5036 = vmatpush1.msra.mxu0 0.0
      %5037 = vmatprep.subr.mxu0 0.0
      %5038 = vmatpush1.msra.mxu0 0.0
      %5039 = vmatprep.subr.mxu0 0.0
      %5040 = vmatpush1.msra.mxu0 0.0
      %5041 = vmatprep.subr.mxu0 0.0
      %5042 = vmatpush1.msra.mxu0 0.0
      %5043 = vmatprep.subr.mxu0 0.0
      %5044 = vmatpush1.msra.mxu0 0.0
      %5045 = vmatprep.subr.mxu0 0.0
      %5046 = vmatpush1.msra.mxu0 0.0
      %5047 = vmatprep.mubr.f32.mxu0 0.0
      %5048 = vmatmul.mubr.f32.gmra.mrb[0].mxu0 %v4910
      %v5049 = vpop.f32.mrb[0].mxu0
      %v5050 = vadd.f32 0.0, %v5049
      %v5051 = vpop.f32.mrb[0].mxu0
      %v5052 = vadd.f32 0.0, %v5051
      %5053 = vdwg.mxu0
      %v5054 = vadd.f32 %v4885, %v4979
      %v5055 = vadd.f32 %v4886, %v4981
      %v5056 = vadd.f32 %v4887, %v5050
      %v5057 = vadd.f32 %v4888, %v5052
      %s5058 = scalar_lea.vmem %s2, 136
      %v5059 = vld [vmem:[%s5058] sm:$0xff]
      %5060 = vrot.lane.b32.xlu0 %v4542, 117
      %v5061 = vpop.permute.xlu0 %5060
      %5062 = vrot.lane.b32.xlu0 %v4543, 117
      %v5063 = vpop.permute.xlu0 %5062
      %5064 = vrot.lane.b32.xlu0 %v4544, 117
      %v5065 = vpop.permute.xlu0 %5064
      %5066 = vrot.lane.b32.xlu0 %v4545, 117
      %v5067 = vpop.permute.xlu0 %5066
      %5068 = vrot.lane.b32.xlu0 %v4546, 117
      %v5069 = vpop.permute.xlu0 %5068
      %v5070 = vsel %vm460, %v5061, %v5063
      %v5071 = vsel %vm460, %v5063, %v5065
      %v5072 = vsel %vm460, %v5065, %v5067
      %v5073 = vsel %vm460, %v5067, %v5069
      %v5079 = vsel %vm977, %v5059, 0
      %5081 = vmatprep.subr.mxu0 %v5071
      %5082 = vmatpush1.msra.mxu0 %v5070
      %5083 = vmatprep.subr.mxu0 0.0
      %5084 = vmatpush1.msra.mxu0 0.0
      %5085 = vmatprep.subr.mxu0 0.0
      %5086 = vmatpush1.msra.mxu0 0.0
      %5087 = vmatprep.subr.mxu0 0.0
      %5088 = vmatpush1.msra.mxu0 0.0
      %5089 = vmatprep.subr.mxu0 0.0
      %5090 = vmatpush1.msra.mxu0 0.0
      %5091 = vmatprep.subr.mxu0 0.0
      %5092 = vmatpush1.msra.mxu0 0.0
      %5093 = vmatprep.subr.mxu0 0.0
      %5094 = vmatpush1.msra.mxu0 0.0
      %5095 = vmatprep.subr.mxu0 0.0
      %5096 = vmatpush1.msra.mxu0 0.0
      %5097 = vmatprep.subr.mxu0 0.0
      %5098 = vmatpush1.msra.mxu0 0.0
      %5099 = vmatprep.subr.mxu0 0.0
      %5100 = vmatpush1.msra.mxu0 0.0
      %5101 = vmatprep.subr.mxu0 0.0
      %5102 = vmatpush1.msra.mxu0 0.0
      %5103 = vmatprep.subr.mxu0 0.0
      %5104 = vmatpush1.msra.mxu0 0.0
      %5105 = vmatprep.subr.mxu0 0.0
      %5106 = vmatpush1.msra.mxu0 0.0
      %5107 = vmatprep.subr.mxu0 0.0
      %5108 = vmatpush1.msra.mxu0 0.0
      %5109 = vmatprep.subr.mxu0 0.0
      %5110 = vmatpush1.msra.mxu0 0.0
      %5111 = vmatprep.subr.mxu0 0.0
      %5112 = vmatpush1.msra.mxu0 0.0
      %5113 = vmatprep.subr.mxu0 0.0
      %5114 = vmatpush1.msra.mxu0 0.0
      %5115 = vmatprep.subr.mxu0 0.0
      %5116 = vmatpush1.msra.mxu0 0.0
      %5117 = vmatprep.subr.mxu0 0.0
      %5118 = vmatpush1.msra.mxu0 0.0
      %5119 = vmatprep.subr.mxu0 0.0
      %5120 = vmatpush1.msra.mxu0 0.0
      %5121 = vmatprep.subr.mxu0 0.0
      %5122 = vmatpush1.msra.mxu0 0.0
      %5123 = vmatprep.subr.mxu0 0.0
      %5124 = vmatpush1.msra.mxu0 0.0
      %5125 = vmatprep.subr.mxu0 0.0
      %5126 = vmatpush1.msra.mxu0 0.0
      %5127 = vmatprep.subr.mxu0 0.0
      %5128 = vmatpush1.msra.mxu0 0.0
      %5129 = vmatprep.subr.mxu0 0.0
      %5130 = vmatpush1.msra.mxu0 0.0
      %5131 = vmatprep.subr.mxu0 0.0
      %5132 = vmatpush1.msra.mxu0 0.0
      %5133 = vmatprep.subr.mxu0 0.0
      %5134 = vmatpush1.msra.mxu0 0.0
      %5135 = vmatprep.subr.mxu0 0.0
      %5136 = vmatpush1.msra.mxu0 0.0
      %5137 = vmatprep.subr.mxu0 0.0
      %5138 = vmatpush1.msra.mxu0 0.0
      %5139 = vmatprep.subr.mxu0 0.0
      %5140 = vmatpush1.msra.mxu0 0.0
      %5141 = vmatprep.subr.mxu0 0.0
      %5142 = vmatpush1.msra.mxu0 0.0
      %5143 = vmatprep.subr.mxu0 0.0
      %5144 = vmatpush1.msra.mxu0 0.0
      %5145 = vmatprep.mubr.f32.mxu0 0.0
      %5146 = vmatmul.mubr.f32.gmra.mrb[0].mxu0 %v5079
      %v5147 = vpop.f32.mrb[0].mxu0
      %v5148 = vadd.f32 0.0, %v5147
      %v5149 = vpop.f32.mrb[0].mxu0
      %v5150 = vadd.f32 0.0, %v5149
      %5151 = vdwg.mxu0
      %5152 = vmatprep.subr.mxu0 %v5073
      %5153 = vmatpush1.msra.mxu0 %v5072
      %5154 = vmatprep.subr.mxu0 0.0
      %5155 = vmatpush1.msra.mxu0 0.0
      %5156 = vmatprep.subr.mxu0 0.0
      %5157 = vmatpush1.msra.mxu0 0.0
      %5158 = vmatprep.subr.mxu0 0.0
      %5159 = vmatpush1.msra.mxu0 0.0
      %5160 = vmatprep.subr.mxu0 0.0
      %5161 = vmatpush1.msra.mxu0 0.0
      %5162 = vmatprep.subr.mxu0 0.0
      %5163 = vmatpush1.msra.mxu0 0.0
      %5164 = vmatprep.subr.mxu0 0.0
      %5165 = vmatpush1.msra.mxu0 0.0
      %5166 = vmatprep.subr.mxu0 0.0
      %5167 = vmatpush1.msra.mxu0 0.0
      %5168 = vmatprep.subr.mxu0 0.0
      %5169 = vmatpush1.msra.mxu0 0.0
      %5170 = vmatprep.subr.mxu0 0.0
      %5171 = vmatpush1.msra.mxu0 0.0
      %5172 = vmatprep.subr.mxu0 0.0
      %5173 = vmatpush1.msra.mxu0 0.0
      %5174 = vmatprep.subr.mxu0 0.0
      %5175 = vmatpush1.msra.mxu0 0.0
      %5176 = vmatprep.subr.mxu0 0.0
      %5177 = vmatpush1.msra.mxu0 0.0
      %5178 = vmatprep.subr.mxu0 0.0
      %5179 = vmatpush1.msra.mxu0 0.0
      %5180 = vmatprep.subr.mxu0 0.0
      %5181 = vmatpush1.msra.mxu0 0.0
      %5182 = vmatprep.subr.mxu0 0.0
      %5183 = vmatpush1.msra.mxu0 0.0
      %5184 = vmatprep.subr.mxu0 0.0
      %5185 = vmatpush1.msra.mxu0 0.0
      %5186 = vmatprep.subr.mxu0 0.0
      %5187 = vmatpush1.msra.mxu0 0.0
      %5188 = vmatprep.subr.mxu0 0.0
      %5189 = vmatpush1.msra.mxu0 0.0
      %5190 = vmatprep.subr.mxu0 0.0
      %5191 = vmatpush1.msra.mxu0 0.0
      %5192 = vmatprep.subr.mxu0 0.0
      %5193 = vmatpush1.msra.mxu0 0.0
      %5194 = vmatprep.subr.mxu0 0.0
      %5195 = vmatpush1.msra.mxu0 0.0
      %5196 = vmatprep.subr.mxu0 0.0
      %5197 = vmatpush1.msra.mxu0 0.0
      %5198 = vmatprep.subr.mxu0 0.0
      %5199 = vmatpush1.msra.mxu0 0.0
      %5200 = vmatprep.subr.mxu0 0.0
      %5201 = vmatpush1.msra.mxu0 0.0
      %5202 = vmatprep.subr.mxu0 0.0
      %5203 = vmatpush1.msra.mxu0 0.0
      %5204 = vmatprep.subr.mxu0 0.0
      %5205 = vmatpush1.msra.mxu0 0.0
      %5206 = vmatprep.subr.mxu0 0.0
      %5207 = vmatpush1.msra.mxu0 0.0
      %5208 = vmatprep.subr.mxu0 0.0
      %5209 = vmatpush1.msra.mxu0 0.0
      %5210 = vmatprep.subr.mxu0 0.0
      %5211 = vmatpush1.msra.mxu0 0.0
      %5212 = vmatprep.subr.mxu0 0.0
      %5213 = vmatpush1.msra.mxu0 0.0
      %5214 = vmatprep.subr.mxu0 0.0
      %5215 = vmatpush1.msra.mxu0 0.0
      %5216 = vmatprep.mubr.f32.mxu0 0.0
      %5217 = vmatmul.mubr.f32.gmra.mrb[0].mxu0 %v5079
      %v5218 = vpop.f32.mrb[0].mxu0
      %v5219 = vadd.f32 0.0, %v5218
      %v5220 = vpop.f32.mrb[0].mxu0
      %v5221 = vadd.f32 0.0, %v5220
      %5222 = vdwg.mxu0
      %v5223 = vadd.f32 %v5054, %v5148
      %v5224 = vadd.f32 %v5055, %v5150
      %v5225 = vadd.f32 %v5056, %v5219
      %v5226 = vadd.f32 %v5057, %v5221
      %s5227 = scalar_lea.vmem %s2, 144
      %v5228 = vld [vmem:[%s5227] sm:$0xff]
      %5229 = vrot.lane.b32.xlu0 %v4542, 39
      %v5230 = vpop.permute.xlu0 %5229
      %5231 = vrot.lane.b32.xlu0 %v4543, 39
      %v5232 = vpop.permute.xlu0 %5231
      %5233 = vrot.lane.b32.xlu0 %v4544, 39
      %v5234 = vpop.permute.xlu0 %5233
      %5235 = vrot.lane.b32.xlu0 %v4545, 39
      %v5236 = vpop.permute.xlu0 %5235
      %5237 = vrot.lane.b32.xlu0 %v4546, 39
      %v5238 = vpop.permute.xlu0 %5237
      %vm5239 = vcmask 318464
      %v5240 = vsel %vm5239, %v5230, %v5232
      %v5241 = vsel %vm5239, %v5232, %v5234
      %v5242 = vsel %vm5239, %v5234, %v5236
      %v5243 = vsel %vm5239, %v5236, %v5238
      %v5249 = vsel %vm977, %v5228, 0
      %5251 = vmatprep.subr.mxu0 %v5241
      %5252 = vmatpush1.msra.mxu0 %v5240
      %5253 = vmatprep.subr.mxu0 0.0
      %5254 = vmatpush1.msra.mxu0 0.0
      %5255 = vmatprep.subr.mxu0 0.0
      %5256 = vmatpush1.msra.mxu0 0.0
      %5257 = vmatprep.subr.mxu0 0.0
      %5258 = vmatpush1.msra.mxu0 0.0
      %5259 = vmatprep.subr.mxu0 0.0
      %5260 = vmatpush1.msra.mxu0 0.0
      %5261 = vmatprep.subr.mxu0 0.0
      %5262 = vmatpush1.msra.mxu0 0.0
      %5263 = vmatprep.subr.mxu0 0.0
      %5264 = vmatpush1.msra.mxu0 0.0
      %5265 = vmatprep.subr.mxu0 0.0
      %5266 = vmatpush1.msra.mxu0 0.0
      %5267 = vmatprep.subr.mxu0 0.0
      %5268 = vmatpush1.msra.mxu0 0.0
      %5269 = vmatprep.subr.mxu0 0.0
      %5270 = vmatpush1.msra.mxu0 0.0
      %5271 = vmatprep.subr.mxu0 0.0
      %5272 = vmatpush1.msra.mxu0 0.0
      %5273 = vmatprep.subr.mxu0 0.0
      %5274 = vmatpush1.msra.mxu0 0.0
      %5275 = vmatprep.subr.mxu0 0.0
      %5276 = vmatpush1.msra.mxu0 0.0
      %5277 = vmatprep.subr.mxu0 0.0
      %5278 = vmatpush1.msra.mxu0 0.0
      %5279 = vmatprep.subr.mxu0 0.0
      %5280 = vmatpush1.msra.mxu0 0.0
      %5281 = vmatprep.subr.mxu0 0.0
      %5282 = vmatpush1.msra.mxu0 0.0
      %5283 = vmatprep.subr.mxu0 0.0
      %5284 = vmatpush1.msra.mxu0 0.0
      %5285 = vmatprep.subr.mxu0 0.0
      %5286 = vmatpush1.msra.mxu0 0.0
      %5287 = vmatprep.subr.mxu0 0.0
      %5288 = vmatpush1.msra.mxu0 0.0
      %5289 = vmatprep.subr.mxu0 0.0
      %5290 = vmatpush1.msra.mxu0 0.0
      %5291 = vmatprep.subr.mxu0 0.0
      %5292 = vmatpush1.msra.mxu0 0.0
      %5293 = vmatprep.subr.mxu0 0.0
      %5294 = vmatpush1.msra.mxu0 0.0
      %5295 = vmatprep.subr.mxu0 0.0
      %5296 = vmatpush1.msra.mxu0 0.0
      %5297 = vmatprep.subr.mxu0 0.0
      %5298 = vmatpush1.msra.mxu0 0.0
      %5299 = vmatprep.subr.mxu0 0.0
      %5300 = vmatpush1.msra.mxu0 0.0
      %5301 = vmatprep.subr.mxu0 0.0
      %5302 = vmatpush1.msra.mxu0 0.0
      %5303 = vmatprep.subr.mxu0 0.0
      %5304 = vmatpush1.msra.mxu0 0.0
      %5305 = vmatprep.subr.mxu0 0.0
      %5306 = vmatpush1.msra.mxu0 0.0
      %5307 = vmatprep.subr.mxu0 0.0
      %5308 = vmatpush1.msra.mxu0 0.0
      %5309 = vmatprep.subr.mxu0 0.0
      %5310 = vmatpush1.msra.mxu0 0.0
      %5311 = vmatprep.subr.mxu0 0.0
      %5312 = vmatpush1.msra.mxu0 0.0
      %5313 = vmatprep.subr.mxu0 0.0
      %5314 = vmatpush1.msra.mxu0 0.0
      %5315 = vmatprep.mubr.f32.mxu0 0.0
      %5316 = vmatmul.mubr.f32.gmra.mrb[0].mxu0 %v5249
      %v5317 = vpop.f32.mrb[0].mxu0
      %v5318 = vadd.f32 0.0, %v5317
      %v5319 = vpop.f32.mrb[0].mxu0
      %v5320 = vadd.f32 0.0, %v5319
      %5321 = vdwg.mxu0
      %5322 = vmatprep.subr.mxu0 %v5243
      %5323 = vmatpush1.msra.mxu0 %v5242
      %5324 = vmatprep.subr.mxu0 0.0
      %5325 = vmatpush1.msra.mxu0 0.0
      %5326 = vmatprep.subr.mxu0 0.0
      %5327 = vmatpush1.msra.mxu0 0.0
      %5328 = vmatprep.subr.mxu0 0.0
      %5329 = vmatpush1.msra.mxu0 0.0
      %5330 = vmatprep.subr.mxu0 0.0
      %5331 = vmatpush1.msra.mxu0 0.0
      %5332 = vmatprep.subr.mxu0 0.0
      %5333 = vmatpush1.msra.mxu0 0.0
      %5334 = vmatprep.subr.mxu0 0.0
      %5335 = vmatpush1.msra.mxu0 0.0
      %5336 = vmatprep.subr.mxu0 0.0
      %5337 = vmatpush1.msra.mxu0 0.0
      %5338 = vmatprep.subr.mxu0 0.0
      %5339 = vmatpush1.msra.mxu0 0.0
      %5340 = vmatprep.subr.mxu0 0.0
      %5341 = vmatpush1.msra.mxu0 0.0
      %5342 = vmatprep.subr.mxu0 0.0
      %5343 = vmatpush1.msra.mxu0 0.0
      %5344 = vmatprep.subr.mxu0 0.0
      %5345 = vmatpush1.msra.mxu0 0.0
      %5346 = vmatprep.subr.mxu0 0.0
      %5347 = vmatpush1.msra.mxu0 0.0
      %5348 = vmatprep.subr.mxu0 0.0
      %5349 = vmatpush1.msra.mxu0 0.0
      %5350 = vmatprep.subr.mxu0 0.0
      %5351 = vmatpush1.msra.mxu0 0.0
      %5352 = vmatprep.subr.mxu0 0.0
      %5353 = vmatpush1.msra.mxu0 0.0
      %5354 = vmatprep.subr.mxu0 0.0
      %5355 = vmatpush1.msra.mxu0 0.0
      %5356 = vmatprep.subr.mxu0 0.0
      %5357 = vmatpush1.msra.mxu0 0.0
      %5358 = vmatprep.subr.mxu0 0.0
      %5359 = vmatpush1.msra.mxu0 0.0
      %5360 = vmatprep.subr.mxu0 0.0
      %5361 = vmatpush1.msra.mxu0 0.0
      %5362 = vmatprep.subr.mxu0 0.0
      %5363 = vmatpush1.msra.mxu0 0.0
      %5364 = vmatprep.subr.mxu0 0.0
      %5365 = vmatpush1.msra.mxu0 0.0
      %5366 = vmatprep.subr.mxu0 0.0
      %5367 = vmatpush1.msra.mxu0 0.0
      %5368 = vmatprep.subr.mxu0 0.0
      %5369 = vmatpush1.msra.mxu0 0.0
      %5370 = vmatprep.subr.mxu0 0.0
      %5371 = vmatpush1.msra.mxu0 0.0
      %5372 = vmatprep.subr.mxu0 0.0
      %5373 = vmatpush1.msra.mxu0 0.0
      %5374 = vmatprep.subr.mxu0 0.0
      %5375 = vmatpush1.msra.mxu0 0.0
      %5376 = vmatprep.subr.mxu0 0.0
      %5377 = vmatpush1.msra.mxu0 0.0
      %5378 = vmatprep.subr.mxu0 0.0
      %5379 = vmatpush1.msra.mxu0 0.0
      %5380 = vmatprep.subr.mxu0 0.0
      %5381 = vmatpush1.msra.mxu0 0.0
      %5382 = vmatprep.subr.mxu0 0.0
      %5383 = vmatpush1.msra.mxu0 0.0
      %5384 = vmatprep.subr.mxu0 0.0
      %5385 = vmatpush1.msra.mxu0 0.0
      %5386 = vmatprep.mubr.f32.mxu0 0.0
      %5387 = vmatmul.mubr.f32.gmra.mrb[0].mxu0 %v5249
      %v5388 = vpop.f32.mrb[0].mxu0
      %v5389 = vadd.f32 0.0, %v5388
      %v5390 = vpop.f32.mrb[0].mxu0
      %v5391 = vadd.f32 0.0, %v5390
      %5392 = vdwg.mxu0
      %v5393 = vadd.f32 %v5223, %v5318
      %v5394 = vadd.f32 %v5224, %v5320
      %v5395 = vadd.f32 %v5225, %v5389
      %v5396 = vadd.f32 %v5226, %v5391
      %s5397 = scalar_lea.vmem %s2, 152
      %v5398 = vld [vmem:[%s5397] sm:$0xff]
      %5399 = vrot.lane.b32.xlu0 %v4542, 38
      %v5400 = vpop.permute.xlu0 %5399
      %5401 = vrot.lane.b32.xlu0 %v4543, 38
      %v5402 = vpop.permute.xlu0 %5401
      %5403 = vrot.lane.b32.xlu0 %v4544, 38
      %v5404 = vpop.permute.xlu0 %5403
      %5405 = vrot.lane.b32.xlu0 %v4545, 38
      %v5406 = vpop.permute.xlu0 %5405
      %5407 = vrot.lane.b32.xlu0 %v4546, 38
      %v5408 = vpop.permute.xlu0 %5407
      %vm5409 = vcmask 310272
      %v5410 = vsel %vm5409, %v5400, %v5402
      %v5411 = vsel %vm5409, %v5402, %v5404
      %v5412 = vsel %vm5409, %v5404, %v5406
      %v5413 = vsel %vm5409, %v5406, %v5408
      %v5419 = vsel %vm977, %v5398, 0
      %5421 = vmatprep.subr.mxu0 %v5411
      %5422 = vmatpush1.msra.mxu0 %v5410
      %5423 = vmatprep.subr.mxu0 0.0
      %5424 = vmatpush1.msra.mxu0 0.0
      %5425 = vmatprep.subr.mxu0 0.0
      %5426 = vmatpush1.msra.mxu0 0.0
      %5427 = vmatprep.subr.mxu0 0.0
      %5428 = vmatpush1.msra.mxu0 0.0
      %5429 = vmatprep.subr.mxu0 0.0
      %5430 = vmatpush1.msra.mxu0 0.0
      %5431 = vmatprep.subr.mxu0 0.0
      %5432 = vmatpush1.msra.mxu0 0.0
      %5433 = vmatprep.subr.mxu0 0.0
      %5434 = vmatpush1.msra.mxu0 0.0
      %5435 = vmatprep.subr.mxu0 0.0
      %5436 = vmatpush1.msra.mxu0 0.0
      %5437 = vmatprep.subr.mxu0 0.0
      %5438 = vmatpush1.msra.mxu0 0.0
      %5439 = vmatprep.subr.mxu0 0.0
      %5440 = vmatpush1.msra.mxu0 0.0
      %5441 = vmatprep.subr.mxu0 0.0
      %5442 = vmatpush1.msra.mxu0 0.0
      %5443 = vmatprep.subr.mxu0 0.0
      %5444 = vmatpush1.msra.mxu0 0.0
      %5445 = vmatprep.subr.mxu0 0.0
      %5446 = vmatpush1.msra.mxu0 0.0
      %5447 = vmatprep.subr.mxu0 0.0
      %5448 = vmatpush1.msra.mxu0 0.0
      %5449 = vmatprep.subr.mxu0 0.0
      %5450 = vmatpush1.msra.mxu0 0.0
      %5451 = vmatprep.subr.mxu0 0.0
      %5452 = vmatpush1.msra.mxu0 0.0
      %5453 = vmatprep.subr.mxu0 0.0
      %5454 = vmatpush1.msra.mxu0 0.0
      %5455 = vmatprep.subr.mxu0 0.0
      %5456 = vmatpush1.msra.mxu0 0.0
      %5457 = vmatprep.subr.mxu0 0.0
      %5458 = vmatpush1.msra.mxu0 0.0
      %5459 = vmatprep.subr.mxu0 0.0
      %5460 = vmatpush1.msra.mxu0 0.0
      %5461 = vmatprep.subr.mxu0 0.0
      %5462 = vmatpush1.msra.mxu0 0.0
      %5463 = vmatprep.subr.mxu0 0.0
      %5464 = vmatpush1.msra.mxu0 0.0
      %5465 = vmatprep.subr.mxu0 0.0
      %5466 = vmatpush1.msra.mxu0 0.0
      %5467 = vmatprep.subr.mxu0 0.0
      %5468 = vmatpush1.msra.mxu0 0.0
      %5469 = vmatprep.subr.mxu0 0.0
      %5470 = vmatpush1.msra.mxu0 0.0
      %5471 = vmatprep.subr.mxu0 0.0
      %5472 = vmatpush1.msra.mxu0 0.0
      %5473 = vmatprep.subr.mxu0 0.0
      %5474 = vmatpush1.msra.mxu0 0.0
      %5475 = vmatprep.subr.mxu0 0.0
      %5476 = vmatpush1.msra.mxu0 0.0
      %5477 = vmatprep.subr.mxu0 0.0
      %5478 = vmatpush1.msra.mxu0 0.0
      %5479 = vmatprep.subr.mxu0 0.0
      %5480 = vmatpush1.msra.mxu0 0.0
      %5481 = vmatprep.subr.mxu0 0.0
      %5482 = vmatpush1.msra.mxu0 0.0
      %5483 = vmatprep.subr.mxu0 0.0
      %5484 = vmatpush1.msra.mxu0 0.0
      %5485 = vmatprep.mubr.f32.mxu0 0.0
      %5486 = vmatmul.mubr.f32.gmra.mrb[0].mxu0 %v5419
      %v5487 = vpop.f32.mrb[0].mxu0
      %v5488 = vadd.f32 0.0, %v5487
      %v5489 = vpop.f32.mrb[0].mxu0
      %v5490 = vadd.f32 0.0, %v5489
      %5491 = vdwg.mxu0
      %5492 = vmatprep.subr.mxu0 %v5413
      %5493 = vmatpush1.msra.mxu0 %v5412
      %5494 = vmatprep.subr.mxu0 0.0
      %5495 = vmatpush1.msra.mxu0 0.0
      %5496 = vmatprep.subr.mxu0 0.0
      %5497 = vmatpush1.msra.mxu0 0.0
      %5498 = vmatprep.subr.mxu0 0.0
      %5499 = vmatpush1.msra.mxu0 0.0
      %5500 = vmatprep.subr.mxu0 0.0
      %5501 = vmatpush1.msra.mxu0 0.0
      %5502 = vmatprep.subr.mxu0 0.0
      %5503 = vmatpush1.msra.mxu0 0.0
      %5504 = vmatprep.subr.mxu0 0.0
      %5505 = vmatpush1.msra.mxu0 0.0
      %5506 = vmatprep.subr.mxu0 0.0
      %5507 = vmatpush1.msra.mxu0 0.0
      %5508 = vmatprep.subr.mxu0 0.0
      %5509 = vmatpush1.msra.mxu0 0.0
      %5510 = vmatprep.subr.mxu0 0.0
      %5511 = vmatpush1.msra.mxu0 0.0
      %5512 = vmatprep.subr.mxu0 0.0
      %5513 = vmatpush1.msra.mxu0 0.0
      %5514 = vmatprep.subr.mxu0 0.0
      %5515 = vmatpush1.msra.mxu0 0.0
      %5516 = vmatprep.subr.mxu0 0.0
      %5517 = vmatpush1.msra.mxu0 0.0
      %5518 = vmatprep.subr.mxu0 0.0
      %5519 = vmatpush1.msra.mxu0 0.0
      %5520 = vmatprep.subr.mxu0 0.0
      %5521 = vmatpush1.msra.mxu0 0.0
      %5522 = vmatprep.subr.mxu0 0.0
      %5523 = vmatpush1.msra.mxu0 0.0
      %5524 = vmatprep.subr.mxu0 0.0
      %5525 = vmatpush1.msra.mxu0 0.0
      %5526 = vmatprep.subr.mxu0 0.0
      %5527 = vmatpush1.msra.mxu0 0.0
      %5528 = vmatprep.subr.mxu0 0.0
      %5529 = vmatpush1.msra.mxu0 0.0
      %5530 = vmatprep.subr.mxu0 0.0
      %5531 = vmatpush1.msra.mxu0 0.0
      %5532 = vmatprep.subr.mxu0 0.0
      %5533 = vmatpush1.msra.mxu0 0.0
      %5534 = vmatprep.subr.mxu0 0.0
      %5535 = vmatpush1.msra.mxu0 0.0
      %5536 = vmatprep.subr.mxu0 0.0
      %5537 = vmatpush1.msra.mxu0 0.0
      %5538 = vmatprep.subr.mxu0 0.0
      %5539 = vmatpush1.msra.mxu0 0.0
      %5540 = vmatprep.subr.mxu0 0.0
      %5541 = vmatpush1.msra.mxu0 0.0
      %5542 = vmatprep.subr.mxu0 0.0
      %5543 = vmatpush1.msra.mxu0 0.0
      %5544 = vmatprep.subr.mxu0 0.0
      %5545 = vmatpush1.msra.mxu0 0.0
      %5546 = vmatprep.subr.mxu0 0.0
      %5547 = vmatpush1.msra.mxu0 0.0
      %5548 = vmatprep.subr.mxu0 0.0
      %5549 = vmatpush1.msra.mxu0 0.0
      %5550 = vmatprep.subr.mxu0 0.0
      %5551 = vmatpush1.msra.mxu0 0.0
      %5552 = vmatprep.subr.mxu0 0.0
      %5553 = vmatpush1.msra.mxu0 0.0
      %5554 = vmatprep.subr.mxu0 0.0
      %5555 = vmatpush1.msra.mxu0 0.0
      %5556 = vmatprep.mubr.f32.mxu0 0.0
      %5557 = vmatmul.mubr.f32.gmra.mrb[0].mxu0 %v5419
      %v5558 = vpop.f32.mrb[0].mxu0
      %v5559 = vadd.f32 0.0, %v5558
      %v5560 = vpop.f32.mrb[0].mxu0
      %v5561 = vadd.f32 0.0, %v5560
      %5562 = vdwg.mxu0
      %v5563 = vadd.f32 %v5393, %v5488
      %v5564 = vadd.f32 %v5394, %v5490
      %v5565 = vadd.f32 %v5395, %v5559
      %v5566 = vadd.f32 %v5396, %v5561
      %s5567 = scalar_lea.vmem %s2, 160
      %v5568 = vld [vmem:[%s5567] sm:$0xff]
      %5569 = vrot.lane.b32.xlu0 %v4542, 37
      %v5570 = vpop.permute.xlu0 %5569
      %5571 = vrot.lane.b32.xlu0 %v4543, 37
      %v5572 = vpop.permute.xlu0 %5571
      %5573 = vrot.lane.b32.xlu0 %v4544, 37
      %v5574 = vpop.permute.xlu0 %5573
      %5575 = vrot.lane.b32.xlu0 %v4545, 37
      %v5576 = vpop.permute.xlu0 %5575
      %5577 = vrot.lane.b32.xlu0 %v4546, 37
      %v5578 = vpop.permute.xlu0 %5577
      %vm5579 = vcmask 302080
      %v5580 = vsel %vm5579, %v5570, %v5572
      %v5581 = vsel %vm5579, %v5572, %v5574
      %v5582 = vsel %vm5579, %v5574, %v5576
      %v5583 = vsel %vm5579, %v5576, %v5578
      %v5589 = vsel %vm977, %v5568, 0
      %5591 = vmatprep.subr.mxu0 %v5581
      %5592 = vmatpush1.msra.mxu0 %v5580
      %5593 = vmatprep.subr.mxu0 0.0
      %5594 = vmatpush1.msra.mxu0 0.0
      %5595 = vmatprep.subr.mxu0 0.0
      %5596 = vmatpush1.msra.mxu0 0.0
      %5597 = vmatprep.subr.mxu0 0.0
      %5598 = vmatpush1.msra.mxu0 0.0
      %5599 = vmatprep.subr.mxu0 0.0
      %5600 = vmatpush1.msra.mxu0 0.0
      %5601 = vmatprep.subr.mxu0 0.0
      %5602 = vmatpush1.msra.mxu0 0.0
      %5603 = vmatprep.subr.mxu0 0.0
      %5604 = vmatpush1.msra.mxu0 0.0
      %5605 = vmatprep.subr.mxu0 0.0
      %5606 = vmatpush1.msra.mxu0 0.0
      %5607 = vmatprep.subr.mxu0 0.0
      %5608 = vmatpush1.msra.mxu0 0.0
      %5609 = vmatprep.subr.mxu0 0.0
      %5610 = vmatpush1.msra.mxu0 0.0
      %5611 = vmatprep.subr.mxu0 0.0
      %5612 = vmatpush1.msra.mxu0 0.0
      %5613 = vmatprep.subr.mxu0 0.0
      %5614 = vmatpush1.msra.mxu0 0.0
      %5615 = vmatprep.subr.mxu0 0.0
      %5616 = vmatpush1.msra.mxu0 0.0
      %5617 = vmatprep.subr.mxu0 0.0
      %5618 = vmatpush1.msra.mxu0 0.0
      %5619 = vmatprep.subr.mxu0 0.0
      %5620 = vmatpush1.msra.mxu0 0.0
      %5621 = vmatprep.subr.mxu0 0.0
      %5622 = vmatpush1.msra.mxu0 0.0
      %5623 = vmatprep.subr.mxu0 0.0
      %5624 = vmatpush1.msra.mxu0 0.0
      %5625 = vmatprep.subr.mxu0 0.0
      %5626 = vmatpush1.msra.mxu0 0.0
      %5627 = vmatprep.subr.mxu0 0.0
      %5628 = vmatpush1.msra.mxu0 0.0
      %5629 = vmatprep.subr.mxu0 0.0
      %5630 = vmatpush1.msra.mxu0 0.0
      %5631 = vmatprep.subr.mxu0 0.0
      %5632 = vmatpush1.msra.mxu0 0.0
      %5633 = vmatprep.subr.mxu0 0.0
      %5634 = vmatpush1.msra.mxu0 0.0
      %5635 = vmatprep.subr.mxu0 0.0
      %5636 = vmatpush1.msra.mxu0 0.0
      %5637 = vmatprep.subr.mxu0 0.0
      %5638 = vmatpush1.msra.mxu0 0.0
      %5639 = vmatprep.subr.mxu0 0.0
      %5640 = vmatpush1.msra.mxu0 0.0
      %5641 = vmatprep.subr.mxu0 0.0
      %5642 = vmatpush1.msra.mxu0 0.0
      %5643 = vmatprep.subr.mxu0 0.0
      %5644 = vmatpush1.msra.mxu0 0.0
      %5645 = vmatprep.subr.mxu0 0.0
      %5646 = vmatpush1.msra.mxu0 0.0
      %5647 = vmatprep.subr.mxu0 0.0
      %5648 = vmatpush1.msra.mxu0 0.0
      %5649 = vmatprep.subr.mxu0 0.0
      %5650 = vmatpush1.msra.mxu0 0.0
      %5651 = vmatprep.subr.mxu0 0.0
      %5652 = vmatpush1.msra.mxu0 0.0
      %5653 = vmatprep.subr.mxu0 0.0
      %5654 = vmatpush1.msra.mxu0 0.0
      %5655 = vmatprep.mubr.f32.mxu0 0.0
      %5656 = vmatmul.mubr.f32.gmra.mrb[0].mxu0 %v5589
      %v5657 = vpop.f32.mrb[0].mxu0
      %v5658 = vadd.f32 0.0, %v5657
      %v5659 = vpop.f32.mrb[0].mxu0
      %v5660 = vadd.f32 0.0, %v5659
      %5661 = vdwg.mxu0
      %5662 = vmatprep.subr.mxu0 %v5583
      %5663 = vmatpush1.msra.mxu0 %v5582
      %5664 = vmatprep.subr.mxu0 0.0
      %5665 = vmatpush1.msra.mxu0 0.0
      %5666 = vmatprep.subr.mxu0 0.0
      %5667 = vmatpush1.msra.mxu0 0.0
      %5668 = vmatprep.subr.mxu0 0.0
      %5669 = vmatpush1.msra.mxu0 0.0
      %5670 = vmatprep.subr.mxu0 0.0
      %5671 = vmatpush1.msra.mxu0 0.0
      %5672 = vmatprep.subr.mxu0 0.0
      %5673 = vmatpush1.msra.mxu0 0.0
      %5674 = vmatprep.subr.mxu0 0.0
      %5675 = vmatpush1.msra.mxu0 0.0
      %5676 = vmatprep.subr.mxu0 0.0
      %5677 = vmatpush1.msra.mxu0 0.0
      %5678 = vmatprep.subr.mxu0 0.0
      %5679 = vmatpush1.msra.mxu0 0.0
      %5680 = vmatprep.subr.mxu0 0.0
      %5681 = vmatpush1.msra.mxu0 0.0
      %5682 = vmatprep.subr.mxu0 0.0
      %5683 = vmatpush1.msra.mxu0 0.0
      %5684 = vmatprep.subr.mxu0 0.0
      %5685 = vmatpush1.msra.mxu0 0.0
      %5686 = vmatprep.subr.mxu0 0.0
      %5687 = vmatpush1.msra.mxu0 0.0
      %5688 = vmatprep.subr.mxu0 0.0
      %5689 = vmatpush1.msra.mxu0 0.0
      %5690 = vmatprep.subr.mxu0 0.0
      %5691 = vmatpush1.msra.mxu0 0.0
      %5692 = vmatprep.subr.mxu0 0.0
      %5693 = vmatpush1.msra.mxu0 0.0
      %5694 = vmatprep.subr.mxu0 0.0
      %5695 = vmatpush1.msra.mxu0 0.0
      %5696 = vmatprep.subr.mxu0 0.0
      %5697 = vmatpush1.msra.mxu0 0.0
      %5698 = vmatprep.subr.mxu0 0.0
      %5699 = vmatpush1.msra.mxu0 0.0
      %5700 = vmatprep.subr.mxu0 0.0
      %5701 = vmatpush1.msra.mxu0 0.0
      %5702 = vmatprep.subr.mxu0 0.0
      %5703 = vmatpush1.msra.mxu0 0.0
      %5704 = vmatprep.subr.mxu0 0.0
      %5705 = vmatpush1.msra.mxu0 0.0
      %5706 = vmatprep.subr.mxu0 0.0
      %5707 = vmatpush1.msra.mxu0 0.0
      %5708 = vmatprep.subr.mxu0 0.0
      %5709 = vmatpush1.msra.mxu0 0.0
      %5710 = vmatprep.subr.mxu0 0.0
      %5711 = vmatpush1.msra.mxu0 0.0
      %5712 = vmatprep.subr.mxu0 0.0
      %5713 = vmatpush1.msra.mxu0 0.0
      %5714 = vmatprep.subr.mxu0 0.0
      %5715 = vmatpush1.msra.mxu0 0.0
      %5716 = vmatprep.subr.mxu0 0.0
      %5717 = vmatpush1.msra.mxu0 0.0
      %5718 = vmatprep.subr.mxu0 0.0
      %5719 = vmatpush1.msra.mxu0 0.0
      %5720 = vmatprep.subr.mxu0 0.0
      %5721 = vmatpush1.msra.mxu0 0.0
      %5722 = vmatprep.subr.mxu0 0.0
      %5723 = vmatpush1.msra.mxu0 0.0
      %5724 = vmatprep.subr.mxu0 0.0
      %5725 = vmatpush1.msra.mxu0 0.0
      %5726 = vmatprep.mubr.f32.mxu0 0.0
      %5727 = vmatmul.mubr.f32.gmra.mrb[0].mxu0 %v5589
      %v5728 = vpop.f32.mrb[0].mxu0
      %v5729 = vadd.f32 0.0, %v5728
      %v5730 = vpop.f32.mrb[0].mxu0
      %v5731 = vadd.f32 0.0, %v5730
      %5732 = vdwg.mxu0
      %v5733 = vadd.f32 %v5563, %v5658
      %v5734 = vadd.f32 %v5564, %v5660
      %v5735 = vadd.f32 %v5565, %v5729
      %v5736 = vadd.f32 %v5566, %v5731
      %s5737 = scalar_lea.vmem %s2, 168
      %v5738 = vld [vmem:[%s5737] sm:$0xff]
      %5739 = vrot.lane.b32.xlu0 %v4542, 29
      %v5740 = vpop.permute.xlu0 %5739
      %5741 = vrot.lane.b32.xlu0 %v4543, 29
      %v5742 = vpop.permute.xlu0 %5741
      %5743 = vrot.lane.b32.xlu0 %v4544, 29
      %v5744 = vpop.permute.xlu0 %5743
      %5745 = vrot.lane.b32.xlu0 %v4545, 29
      %v5746 = vpop.permute.xlu0 %5745
      %5747 = vrot.lane.b32.xlu0 %v4546, 29
      %v5748 = vpop.permute.xlu0 %5747
      %vm5749 = vcmask 236544
      %v5750 = vsel %vm5749, %v5740, %v5742
      %v5751 = vsel %vm5749, %v5742, %v5744
      %v5752 = vsel %vm5749, %v5744, %v5746
      %v5753 = vsel %vm5749, %v5746, %v5748
      %v5759 = vsel %vm977, %v5738, 0
      %5761 = vmatprep.subr.mxu0 %v5751
      %5762 = vmatpush1.msra.mxu0 %v5750
      %5763 = vmatprep.subr.mxu0 0.0
      %5764 = vmatpush1.msra.mxu0 0.0
      %5765 = vmatprep.subr.mxu0 0.0
      %5766 = vmatpush1.msra.mxu0 0.0
      %5767 = vmatprep.subr.mxu0 0.0
      %5768 = vmatpush1.msra.mxu0 0.0
      %5769 = vmatprep.subr.mxu0 0.0
      %5770 = vmatpush1.msra.mxu0 0.0
      %5771 = vmatprep.subr.mxu0 0.0
      %5772 = vmatpush1.msra.mxu0 0.0
      %5773 = vmatprep.subr.mxu0 0.0
      %5774 = vmatpush1.msra.mxu0 0.0
      %5775 = vmatprep.subr.mxu0 0.0
      %5776 = vmatpush1.msra.mxu0 0.0
      %5777 = vmatprep.subr.mxu0 0.0
      %5778 = vmatpush1.msra.mxu0 0.0
      %5779 = vmatprep.subr.mxu0 0.0
      %5780 = vmatpush1.msra.mxu0 0.0
      %5781 = vmatprep.subr.mxu0 0.0
      %5782 = vmatpush1.msra.mxu0 0.0
      %5783 = vmatprep.subr.mxu0 0.0
      %5784 = vmatpush1.msra.mxu0 0.0
      %5785 = vmatprep.subr.mxu0 0.0
      %5786 = vmatpush1.msra.mxu0 0.0
      %5787 = vmatprep.subr.mxu0 0.0
      %5788 = vmatpush1.msra.mxu0 0.0
      %5789 = vmatprep.subr.mxu0 0.0
      %5790 = vmatpush1.msra.mxu0 0.0
      %5791 = vmatprep.subr.mxu0 0.0
      %5792 = vmatpush1.msra.mxu0 0.0
      %5793 = vmatprep.subr.mxu0 0.0
      %5794 = vmatpush1.msra.mxu0 0.0
      %5795 = vmatprep.subr.mxu0 0.0
      %5796 = vmatpush1.msra.mxu0 0.0
      %5797 = vmatprep.subr.mxu0 0.0
      %5798 = vmatpush1.msra.mxu0 0.0
      %5799 = vmatprep.subr.mxu0 0.0
      %5800 = vmatpush1.msra.mxu0 0.0
      %5801 = vmatprep.subr.mxu0 0.0
      %5802 = vmatpush1.msra.mxu0 0.0
      %5803 = vmatprep.subr.mxu0 0.0
      %5804 = vmatpush1.msra.mxu0 0.0
      %5805 = vmatprep.subr.mxu0 0.0
      %5806 = vmatpush1.msra.mxu0 0.0
      %5807 = vmatprep.subr.mxu0 0.0
      %5808 = vmatpush1.msra.mxu0 0.0
      %5809 = vmatprep.subr.mxu0 0.0
      %5810 = vmatpush1.msra.mxu0 0.0
      %5811 = vmatprep.subr.mxu0 0.0
      %5812 = vmatpush1.msra.mxu0 0.0
      %5813 = vmatprep.subr.mxu0 0.0
      %5814 = vmatpush1.msra.mxu0 0.0
      %5815 = vmatprep.subr.mxu0 0.0
      %5816 = vmatpush1.msra.mxu0 0.0
      %5817 = vmatprep.subr.mxu0 0.0
      %5818 = vmatpush1.msra.mxu0 0.0
      %5819 = vmatprep.subr.mxu0 0.0
      %5820 = vmatpush1.msra.mxu0 0.0
      %5821 = vmatprep.subr.mxu0 0.0
      %5822 = vmatpush1.msra.mxu0 0.0
      %5823 = vmatprep.subr.mxu0 0.0
      %5824 = vmatpush1.msra.mxu0 0.0
      %5825 = vmatprep.mubr.f32.mxu0 0.0
      %5826 = vmatmul.mubr.f32.gmra.mrb[0].mxu0 %v5759
      %v5827 = vpop.f32.mrb[0].mxu0
      %v5828 = vadd.f32 0.0, %v5827
      %v5829 = vpop.f32.mrb[0].mxu0
      %v5830 = vadd.f32 0.0, %v5829
      %5831 = vdwg.mxu0
      %5832 = vmatprep.subr.mxu0 %v5753
      %5833 = vmatpush1.msra.mxu0 %v5752
      %5834 = vmatprep.subr.mxu0 0.0
      %5835 = vmatpush1.msra.mxu0 0.0
      %5836 = vmatprep.subr.mxu0 0.0
      %5837 = vmatpush1.msra.mxu0 0.0
      %5838 = vmatprep.subr.mxu0 0.0
      %5839 = vmatpush1.msra.mxu0 0.0
      %5840 = vmatprep.subr.mxu0 0.0
      %5841 = vmatpush1.msra.mxu0 0.0
      %5842 = vmatprep.subr.mxu0 0.0
      %5843 = vmatpush1.msra.mxu0 0.0
      %5844 = vmatprep.subr.mxu0 0.0
      %5845 = vmatpush1.msra.mxu0 0.0
      %5846 = vmatprep.subr.mxu0 0.0
      %5847 = vmatpush1.msra.mxu0 0.0
      %5848 = vmatprep.subr.mxu0 0.0
      %5849 = vmatpush1.msra.mxu0 0.0
      %5850 = vmatprep.subr.mxu0 0.0
      %5851 = vmatpush1.msra.mxu0 0.0
      %5852 = vmatprep.subr.mxu0 0.0
      %5853 = vmatpush1.msra.mxu0 0.0
      %5854 = vmatprep.subr.mxu0 0.0
      %5855 = vmatpush1.msra.mxu0 0.0
      %5856 = vmatprep.subr.mxu0 0.0
      %5857 = vmatpush1.msra.mxu0 0.0
      %5858 = vmatprep.subr.mxu0 0.0
      %5859 = vmatpush1.msra.mxu0 0.0
      %5860 = vmatprep.subr.mxu0 0.0
      %5861 = vmatpush1.msra.mxu0 0.0
      %5862 = vmatprep.subr.mxu0 0.0
      %5863 = vmatpush1.msra.mxu0 0.0
      %5864 = vmatprep.subr.mxu0 0.0
      %5865 = vmatpush1.msra.mxu0 0.0
      %5866 = vmatprep.subr.mxu0 0.0
      %5867 = vmatpush1.msra.mxu0 0.0
      %5868 = vmatprep.subr.mxu0 0.0
      %5869 = vmatpush1.msra.mxu0 0.0
      %5870 = vmatprep.subr.mxu0 0.0
      %5871 = vmatpush1.msra.mxu0 0.0
      %5872 = vmatprep.subr.mxu0 0.0
      %5873 = vmatpush1.msra.mxu0 0.0
      %5874 = vmatprep.subr.mxu0 0.0
      %5875 = vmatpush1.msra.mxu0 0.0
      %5876 = vmatprep.subr.mxu0 0.0
      %5877 = vmatpush1.msra.mxu0 0.0
      %5878 = vmatprep.subr.mxu0 0.0
      %5879 = vmatpush1.msra.mxu0 0.0
      %5880 = vmatprep.subr.mxu0 0.0
      %5881 = vmatpush1.msra.mxu0 0.0
      %5882 = vmatprep.subr.mxu0 0.0
      %5883 = vmatpush1.msra.mxu0 0.0
      %5884 = vmatprep.subr.mxu0 0.0
      %5885 = vmatpush1.msra.mxu0 0.0
      %5886 = vmatprep.subr.mxu0 0.0
      %5887 = vmatpush1.msra.mxu0 0.0
      %5888 = vmatprep.subr.mxu0 0.0
      %5889 = vmatpush1.msra.mxu0 0.0
      %5890 = vmatprep.subr.mxu0 0.0
      %5891 = vmatpush1.msra.mxu0 0.0
      %5892 = vmatprep.subr.mxu0 0.0
      %5893 = vmatpush1.msra.mxu0 0.0
      %5894 = vmatprep.subr.mxu0 0.0
      %5895 = vmatpush1.msra.mxu0 0.0
      %5896 = vmatprep.mubr.f32.mxu0 0.0
      %5897 = vmatmul.mubr.f32.gmra.mrb[0].mxu0 %v5759
      %v5898 = vpop.f32.mrb[0].mxu0
      %v5899 = vadd.f32 0.0, %v5898
      %v5900 = vpop.f32.mrb[0].mxu0
      %v5901 = vadd.f32 0.0, %v5900
      %5902 = vdwg.mxu0
      %v5903 = vadd.f32 %v5733, %v5828
      %v5904 = vadd.f32 %v5734, %v5830
      %v5905 = vadd.f32 %v5735, %v5899
      %v5906 = vadd.f32 %v5736, %v5901
      %s5907 = scalar_lea.vmem %s2, 176
      %v5908 = vld [vmem:[%s5907] sm:$0xff]
      %5909 = vrot.lane.b32.xlu0 %v4542, 28
      %v5910 = vpop.permute.xlu0 %5909
      %5911 = vrot.lane.b32.xlu0 %v4543, 28
      %v5912 = vpop.permute.xlu0 %5911
      %5913 = vrot.lane.b32.xlu0 %v4544, 28
      %v5914 = vpop.permute.xlu0 %5913
      %5915 = vrot.lane.b32.xlu0 %v4545, 28
      %v5916 = vpop.permute.xlu0 %5915
      %5917 = vrot.lane.b32.xlu0 %v4546, 28
      %v5918 = vpop.permute.xlu0 %5917
      %v5919 = vsel %vm695, %v5910, %v5912
      %v5920 = vsel %vm695, %v5912, %v5914
      %v5921 = vsel %vm695, %v5914, %v5916
      %v5922 = vsel %vm695, %v5916, %v5918
      %v5928 = vsel %vm977, %v5908, 0
      %5930 = vmatprep.subr.mxu0 %v5920
      %5931 = vmatpush1.msra.mxu0 %v5919
      %5932 = vmatprep.subr.mxu0 0.0
      %5933 = vmatpush1.msra.mxu0 0.0
      %5934 = vmatprep.subr.mxu0 0.0
      %5935 = vmatpush1.msra.mxu0 0.0
      %5936 = vmatprep.subr.mxu0 0.0
      %5937 = vmatpush1.msra.mxu0 0.0
      %5938 = vmatprep.subr.mxu0 0.0
      %5939 = vmatpush1.msra.mxu0 0.0
      %5940 = vmatprep.subr.mxu0 0.0
      %5941 = vmatpush1.msra.mxu0 0.0
      %5942 = vmatprep.subr.mxu0 0.0
      %5943 = vmatpush1.msra.mxu0 0.0
      %5944 = vmatprep.subr.mxu0 0.0
      %5945 = vmatpush1.msra.mxu0 0.0
      %5946 = vmatprep.subr.mxu0 0.0
      %5947 = vmatpush1.msra.mxu0 0.0
      %5948 = vmatprep.subr.mxu0 0.0
      %5949 = vmatpush1.msra.mxu0 0.0
      %5950 = vmatprep.subr.mxu0 0.0
      %5951 = vmatpush1.msra.mxu0 0.0
      %5952 = vmatprep.subr.mxu0 0.0
      %5953 = vmatpush1.msra.mxu0 0.0
      %5954 = vmatprep.subr.mxu0 0.0
      %5955 = vmatpush1.msra.mxu0 0.0
      %5956 = vmatprep.subr.mxu0 0.0
      %5957 = vmatpush1.msra.mxu0 0.0
      %5958 = vmatprep.subr.mxu0 0.0
      %5959 = vmatpush1.msra.mxu0 0.0
      %5960 = vmatprep.subr.mxu0 0.0
      %5961 = vmatpush1.msra.mxu0 0.0
      %5962 = vmatprep.subr.mxu0 0.0
      %5963 = vmatpush1.msra.mxu0 0.0
      %5964 = vmatprep.subr.mxu0 0.0
      %5965 = vmatpush1.msra.mxu0 0.0
      %5966 = vmatprep.subr.mxu0 0.0
      %5967 = vmatpush1.msra.mxu0 0.0
      %5968 = vmatprep.subr.mxu0 0.0
      %5969 = vmatpush1.msra.mxu0 0.0
      %5970 = vmatprep.subr.mxu0 0.0
      %5971 = vmatpush1.msra.mxu0 0.0
      %5972 = vmatprep.subr.mxu0 0.0
      %5973 = vmatpush1.msra.mxu0 0.0
      %5974 = vmatprep.subr.mxu0 0.0
      %5975 = vmatpush1.msra.mxu0 0.0
      %5976 = vmatprep.subr.mxu0 0.0
      %5977 = vmatpush1.msra.mxu0 0.0
      %5978 = vmatprep.subr.mxu0 0.0
      %5979 = vmatpush1.msra.mxu0 0.0
      %5980 = vmatprep.subr.mxu0 0.0
      %5981 = vmatpush1.msra.mxu0 0.0
      %5982 = vmatprep.subr.mxu0 0.0
      %5983 = vmatpush1.msra.mxu0 0.0
      %5984 = vmatprep.subr.mxu0 0.0
      %5985 = vmatpush1.msra.mxu0 0.0
      %5986 = vmatprep.subr.mxu0 0.0
      %5987 = vmatpush1.msra.mxu0 0.0
      %5988 = vmatprep.subr.mxu0 0.0
      %5989 = vmatpush1.msra.mxu0 0.0
      %5990 = vmatprep.subr.mxu0 0.0
      %5991 = vmatpush1.msra.mxu0 0.0
      %5992 = vmatprep.subr.mxu0 0.0
      %5993 = vmatpush1.msra.mxu0 0.0
      %5994 = vmatprep.mubr.f32.mxu0 0.0
      %5995 = vmatmul.mubr.f32.gmra.mrb[0].mxu0 %v5928
      %v5996 = vpop.f32.mrb[0].mxu0
      %v5997 = vadd.f32 0.0, %v5996
      %v5998 = vpop.f32.mrb[0].mxu0
      %v5999 = vadd.f32 0.0, %v5998
      %6000 = vdwg.mxu0
      %6001 = vmatprep.subr.mxu0 %v5922
      %6002 = vmatpush1.msra.mxu0 %v5921
      %6003 = vmatprep.subr.mxu0 0.0
      %6004 = vmatpush1.msra.mxu0 0.0
      %6005 = vmatprep.subr.mxu0 0.0
      %6006 = vmatpush1.msra.mxu0 0.0
      %6007 = vmatprep.subr.mxu0 0.0
      %6008 = vmatpush1.msra.mxu0 0.0
      %6009 = vmatprep.subr.mxu0 0.0
      %6010 = vmatpush1.msra.mxu0 0.0
      %6011 = vmatprep.subr.mxu0 0.0
      %6012 = vmatpush1.msra.mxu0 0.0
      %6013 = vmatprep.subr.mxu0 0.0
      %6014 = vmatpush1.msra.mxu0 0.0
      %6015 = vmatprep.subr.mxu0 0.0
      %6016 = vmatpush1.msra.mxu0 0.0
      %6017 = vmatprep.subr.mxu0 0.0
      %6018 = vmatpush1.msra.mxu0 0.0
      %6019 = vmatprep.subr.mxu0 0.0
      %6020 = vmatpush1.msra.mxu0 0.0
      %6021 = vmatprep.subr.mxu0 0.0
      %6022 = vmatpush1.msra.mxu0 0.0
      %6023 = vmatprep.subr.mxu0 0.0
      %6024 = vmatpush1.msra.mxu0 0.0
      %6025 = vmatprep.subr.mxu0 0.0
      %6026 = vmatpush1.msra.mxu0 0.0
      %6027 = vmatprep.subr.mxu0 0.0
      %6028 = vmatpush1.msra.mxu0 0.0
      %6029 = vmatprep.subr.mxu0 0.0
      %6030 = vmatpush1.msra.mxu0 0.0
      %6031 = vmatprep.subr.mxu0 0.0
      %6032 = vmatpush1.msra.mxu0 0.0
      %6033 = vmatprep.subr.mxu0 0.0
      %6034 = vmatpush1.msra.mxu0 0.0
      %6035 = vmatprep.subr.mxu0 0.0
      %6036 = vmatpush1.msra.mxu0 0.0
      %6037 = vmatprep.subr.mxu0 0.0
      %6038 = vmatpush1.msra.mxu0 0.0
      %6039 = vmatprep.subr.mxu0 0.0
      %6040 = vmatpush1.msra.mxu0 0.0
      %6041 = vmatprep.subr.mxu0 0.0
      %6042 = vmatpush1.msra.mxu0 0.0
      %6043 = vmatprep.subr.mxu0 0.0
      %6044 = vmatpush1.msra.mxu0 0.0
      %6045 = vmatprep.subr.mxu0 0.0
      %6046 = vmatpush1.msra.mxu0 0.0
      %6047 = vmatprep.subr.mxu0 0.0
      %6048 = vmatpush1.msra.mxu0 0.0
      %6049 = vmatprep.subr.mxu0 0.0
      %6050 = vmatpush1.msra.mxu0 0.0
      %6051 = vmatprep.subr.mxu0 0.0
      %6052 = vmatpush1.msra.mxu0 0.0
      %6053 = vmatprep.subr.mxu0 0.0
      %6054 = vmatpush1.msra.mxu0 0.0
      %6055 = vmatprep.subr.mxu0 0.0
      %6056 = vmatpush1.msra.mxu0 0.0
      %6057 = vmatprep.subr.mxu0 0.0
      %6058 = vmatpush1.msra.mxu0 0.0
      %6059 = vmatprep.subr.mxu0 0.0
      %6060 = vmatpush1.msra.mxu0 0.0
      %6061 = vmatprep.subr.mxu0 0.0
      %6062 = vmatpush1.msra.mxu0 0.0
      %6063 = vmatprep.subr.mxu0 0.0
      %6064 = vmatpush1.msra.mxu0 0.0
      %6065 = vmatprep.mubr.f32.mxu0 0.0
      %6066 = vmatmul.mubr.f32.gmra.mrb[0].mxu0 %v5928
      %v6067 = vpop.f32.mrb[0].mxu0
      %v6068 = vadd.f32 0.0, %v6067
      %v6069 = vpop.f32.mrb[0].mxu0
      %v6070 = vadd.f32 0.0, %v6069
      %6071 = vdwg.mxu0
      %v6072 = vadd.f32 %v5903, %v5997
      %v6073 = vadd.f32 %v5904, %v5999
      %v6074 = vadd.f32 %v5905, %v6068
      %v6075 = vadd.f32 %v5906, %v6070
      %s6076 = scalar_lea.vmem %s2, 184
      %v6077 = vld [vmem:[%s6076] sm:$0xff]
      %6078 = vrot.lane.b32.xlu0 %v4542, 27
      %v6079 = vpop.permute.xlu0 %6078
      %6080 = vrot.lane.b32.xlu0 %v4543, 27
      %v6081 = vpop.permute.xlu0 %6080
      %6082 = vrot.lane.b32.xlu0 %v4544, 27
      %v6083 = vpop.permute.xlu0 %6082
      %6084 = vrot.lane.b32.xlu0 %v4545, 27
      %v6085 = vpop.permute.xlu0 %6084
      %6086 = vrot.lane.b32.xlu0 %v4546, 27
      %v6087 = vpop.permute.xlu0 %6086
      %v6088 = vsel %vm742, %v6079, %v6081
      %v6089 = vsel %vm742, %v6081, %v6083
      %v6090 = vsel %vm742, %v6083, %v6085
      %v6091 = vsel %vm742, %v6085, %v6087
      %v6097 = vsel %vm977, %v6077, 0
      %6099 = vmatprep.subr.mxu0 %v6089
      %6100 = vmatpush1.msra.mxu0 %v6088
      %6101 = vmatprep.subr.mxu0 0.0
      %6102 = vmatpush1.msra.mxu0 0.0
      %6103 = vmatprep.subr.mxu0 0.0
      %6104 = vmatpush1.msra.mxu0 0.0
      %6105 = vmatprep.subr.mxu0 0.0
      %6106 = vmatpush1.msra.mxu0 0.0
      %6107 = vmatprep.subr.mxu0 0.0
      %6108 = vmatpush1.msra.mxu0 0.0
      %6109 = vmatprep.subr.mxu0 0.0
      %6110 = vmatpush1.msra.mxu0 0.0
      %6111 = vmatprep.subr.mxu0 0.0
      %6112 = vmatpush1.msra.mxu0 0.0
      %6113 = vmatprep.subr.mxu0 0.0
      %6114 = vmatpush1.msra.mxu0 0.0
      %6115 = vmatprep.subr.mxu0 0.0
      %6116 = vmatpush1.msra.mxu0 0.0
      %6117 = vmatprep.subr.mxu0 0.0
      %6118 = vmatpush1.msra.mxu0 0.0
      %6119 = vmatprep.subr.mxu0 0.0
      %6120 = vmatpush1.msra.mxu0 0.0
      %6121 = vmatprep.subr.mxu0 0.0
      %6122 = vmatpush1.msra.mxu0 0.0
      %6123 = vmatprep.subr.mxu0 0.0
      %6124 = vmatpush1.msra.mxu0 0.0
      %6125 = vmatprep.subr.mxu0 0.0
      %6126 = vmatpush1.msra.mxu0 0.0
      %6127 = vmatprep.subr.mxu0 0.0
      %6128 = vmatpush1.msra.mxu0 0.0
      %6129 = vmatprep.subr.mxu0 0.0
      %6130 = vmatpush1.msra.mxu0 0.0
      %6131 = vmatprep.subr.mxu0 0.0
      %6132 = vmatpush1.msra.mxu0 0.0
      %6133 = vmatprep.subr.mxu0 0.0
      %6134 = vmatpush1.msra.mxu0 0.0
      %6135 = vmatprep.subr.mxu0 0.0
      %6136 = vmatpush1.msra.mxu0 0.0
      %6137 = vmatprep.subr.mxu0 0.0
      %6138 = vmatpush1.msra.mxu0 0.0
      %6139 = vmatprep.subr.mxu0 0.0
      %6140 = vmatpush1.msra.mxu0 0.0
      %6141 = vmatprep.subr.mxu0 0.0
      %6142 = vmatpush1.msra.mxu0 0.0
      %6143 = vmatprep.subr.mxu0 0.0
      %6144 = vmatpush1.msra.mxu0 0.0
      %6145 = vmatprep.subr.mxu0 0.0
      %6146 = vmatpush1.msra.mxu0 0.0
      %6147 = vmatprep.subr.mxu0 0.0
      %6148 = vmatpush1.msra.mxu0 0.0
      %6149 = vmatprep.subr.mxu0 0.0
      %6150 = vmatpush1.msra.mxu0 0.0
      %6151 = vmatprep.subr.mxu0 0.0
      %6152 = vmatpush1.msra.mxu0 0.0
      %6153 = vmatprep.subr.mxu0 0.0
      %6154 = vmatpush1.msra.mxu0 0.0
      %6155 = vmatprep.subr.mxu0 0.0
      %6156 = vmatpush1.msra.mxu0 0.0
      %6157 = vmatprep.subr.mxu0 0.0
      %6158 = vmatpush1.msra.mxu0 0.0
      %6159 = vmatprep.subr.mxu0 0.0
      %6160 = vmatpush1.msra.mxu0 0.0
      %6161 = vmatprep.subr.mxu0 0.0
      %6162 = vmatpush1.msra.mxu0 0.0
      %6163 = vmatprep.mubr.f32.mxu0 0.0
      %6164 = vmatmul.mubr.f32.gmra.mrb[0].mxu0 %v6097
      %v6165 = vpop.f32.mrb[0].mxu0
      %v6166 = vadd.f32 0.0, %v6165
      %v6167 = vpop.f32.mrb[0].mxu0
      %v6168 = vadd.f32 0.0, %v6167
      %6169 = vdwg.mxu0
      %6170 = vmatprep.subr.mxu0 %v6091
      %6171 = vmatpush1.msra.mxu0 %v6090
      %6172 = vmatprep.subr.mxu0 0.0
      %6173 = vmatpush1.msra.mxu0 0.0
      %6174 = vmatprep.subr.mxu0 0.0
      %6175 = vmatpush1.msra.mxu0 0.0
      %6176 = vmatprep.subr.mxu0 0.0
      %6177 = vmatpush1.msra.mxu0 0.0
      %6178 = vmatprep.subr.mxu0 0.0
      %6179 = vmatpush1.msra.mxu0 0.0
      %6180 = vmatprep.subr.mxu0 0.0
      %6181 = vmatpush1.msra.mxu0 0.0
      %6182 = vmatprep.subr.mxu0 0.0
      %6183 = vmatpush1.msra.mxu0 0.0
      %6184 = vmatprep.subr.mxu0 0.0
      %6185 = vmatpush1.msra.mxu0 0.0
      %6186 = vmatprep.subr.mxu0 0.0
      %6187 = vmatpush1.msra.mxu0 0.0
      %6188 = vmatprep.subr.mxu0 0.0
      %6189 = vmatpush1.msra.mxu0 0.0
      %6190 = vmatprep.subr.mxu0 0.0
      %6191 = vmatpush1.msra.mxu0 0.0
      %6192 = vmatprep.subr.mxu0 0.0
      %6193 = vmatpush1.msra.mxu0 0.0
      %6194 = vmatprep.subr.mxu0 0.0
      %6195 = vmatpush1.msra.mxu0 0.0
      %6196 = vmatprep.subr.mxu0 0.0
      %6197 = vmatpush1.msra.mxu0 0.0
      %6198 = vmatprep.subr.mxu0 0.0
      %6199 = vmatpush1.msra.mxu0 0.0
      %6200 = vmatprep.subr.mxu0 0.0
      %6201 = vmatpush1.msra.mxu0 0.0
      %6202 = vmatprep.subr.mxu0 0.0
      %6203 = vmatpush1.msra.mxu0 0.0
      %6204 = vmatprep.subr.mxu0 0.0
      %6205 = vmatpush1.msra.mxu0 0.0
      %6206 = vmatprep.subr.mxu0 0.0
      %6207 = vmatpush1.msra.mxu0 0.0
      %6208 = vmatprep.subr.mxu0 0.0
      %6209 = vmatpush1.msra.mxu0 0.0
      %6210 = vmatprep.subr.mxu0 0.0
      %6211 = vmatpush1.msra.mxu0 0.0
      %6212 = vmatprep.subr.mxu0 0.0
      %6213 = vmatpush1.msra.mxu0 0.0
      %6214 = vmatprep.subr.mxu0 0.0
      %6215 = vmatpush1.msra.mxu0 0.0
      %6216 = vmatprep.subr.mxu0 0.0
      %6217 = vmatpush1.msra.mxu0 0.0
      %6218 = vmatprep.subr.mxu0 0.0
      %6219 = vmatpush1.msra.mxu0 0.0
      %6220 = vmatprep.subr.mxu0 0.0
      %6221 = vmatpush1.msra.mxu0 0.0
      %6222 = vmatprep.subr.mxu0 0.0
      %6223 = vmatpush1.msra.mxu0 0.0
      %6224 = vmatprep.subr.mxu0 0.0
      %6225 = vmatpush1.msra.mxu0 0.0
      %6226 = vmatprep.subr.mxu0 0.0
      %6227 = vmatpush1.msra.mxu0 0.0
      %6228 = vmatprep.subr.mxu0 0.0
      %6229 = vmatpush1.msra.mxu0 0.0
      %6230 = vmatprep.subr.mxu0 0.0
      %6231 = vmatpush1.msra.mxu0 0.0
      %6232 = vmatprep.subr.mxu0 0.0
      %6233 = vmatpush1.msra.mxu0 0.0
      %6234 = vmatprep.mubr.f32.mxu0 0.0
      %6235 = vmatmul.mubr.f32.gmra.mrb[0].mxu0 %v6097
      %v6236 = vpop.f32.mrb[0].mxu0
      %v6237 = vadd.f32 0.0, %v6236
      %v6238 = vpop.f32.mrb[0].mxu0
      %v6239 = vadd.f32 0.0, %v6238
      %6240 = vdwg.mxu0
      %v6241 = vadd.f32 %v6072, %v6166
      %v6242 = vadd.f32 %v6073, %v6168
      %v6243 = vadd.f32 %v6074, %v6237
      %v6244 = vadd.f32 %v6075, %v6239
      %s6245 = scalar_lea.vmem %s2, 192
      %v6246 = vld [vmem:[%s6245] sm:$0xff]
      %6247 = vrot.lane.b32.xlu0 %v4542, 19
      %v6248 = vpop.permute.xlu0 %6247
      %6249 = vrot.lane.b32.xlu0 %v4543, 19
      %v6250 = vpop.permute.xlu0 %6249
      %6251 = vrot.lane.b32.xlu0 %v4544, 19
      %v6252 = vpop.permute.xlu0 %6251
      %6253 = vrot.lane.b32.xlu0 %v4545, 19
      %v6254 = vpop.permute.xlu0 %6253
      %6255 = vrot.lane.b32.xlu0 %v4546, 19
      %v6256 = vpop.permute.xlu0 %6255
      %vm6257 = vcmask 154624
      %v6258 = vsel %vm6257, %v6248, %v6250
      %v6259 = vsel %vm6257, %v6250, %v6252
      %v6260 = vsel %vm6257, %v6252, %v6254
      %v6261 = vsel %vm6257, %v6254, %v6256
      %v6267 = vsel %vm977, %v6246, 0
      %6269 = vmatprep.subr.mxu0 %v6259
      %6270 = vmatpush1.msra.mxu0 %v6258
      %6271 = vmatprep.subr.mxu0 0.0
      %6272 = vmatpush1.msra.mxu0 0.0
      %6273 = vmatprep.subr.mxu0 0.0
      %6274 = vmatpush1.msra.mxu0 0.0
      %6275 = vmatprep.subr.mxu0 0.0
      %6276 = vmatpush1.msra.mxu0 0.0
      %6277 = vmatprep.subr.mxu0 0.0
      %6278 = vmatpush1.msra.mxu0 0.0
      %6279 = vmatprep.subr.mxu0 0.0
      %6280 = vmatpush1.msra.mxu0 0.0
      %6281 = vmatprep.subr.mxu0 0.0
      %6282 = vmatpush1.msra.mxu0 0.0
      %6283 = vmatprep.subr.mxu0 0.0
      %6284 = vmatpush1.msra.mxu0 0.0
      %6285 = vmatprep.subr.mxu0 0.0
      %6286 = vmatpush1.msra.mxu0 0.0
      %6287 = vmatprep.subr.mxu0 0.0
      %6288 = vmatpush1.msra.mxu0 0.0
      %6289 = vmatprep.subr.mxu0 0.0
      %6290 = vmatpush1.msra.mxu0 0.0
      %6291 = vmatprep.subr.mxu0 0.0
      %6292 = vmatpush1.msra.mxu0 0.0
      %6293 = vmatprep.subr.mxu0 0.0
      %6294 = vmatpush1.msra.mxu0 0.0
      %6295 = vmatprep.subr.mxu0 0.0
      %6296 = vmatpush1.msra.mxu0 0.0
      %6297 = vmatprep.subr.mxu0 0.0
      %6298 = vmatpush1.msra.mxu0 0.0
      %6299 = vmatprep.subr.mxu0 0.0
      %6300 = vmatpush1.msra.mxu0 0.0
      %6301 = vmatprep.subr.mxu0 0.0
      %6302 = vmatpush1.msra.mxu0 0.0
      %6303 = vmatprep.subr.mxu0 0.0
      %6304 = vmatpush1.msra.mxu0 0.0
      %6305 = vmatprep.subr.mxu0 0.0
      %6306 = vmatpush1.msra.mxu0 0.0
      %6307 = vmatprep.subr.mxu0 0.0
      %6308 = vmatpush1.msra.mxu0 0.0
      %6309 = vmatprep.subr.mxu0 0.0
      %6310 = vmatpush1.msra.mxu0 0.0
      %6311 = vmatprep.subr.mxu0 0.0
      %6312 = vmatpush1.msra.mxu0 0.0
      %6313 = vmatprep.subr.mxu0 0.0
      %6314 = vmatpush1.msra.mxu0 0.0
      %6315 = vmatprep.subr.mxu0 0.0
      %6316 = vmatpush1.msra.mxu0 0.0
      %6317 = vmatprep.subr.mxu0 0.0
      %6318 = vmatpush1.msra.mxu0 0.0
      %6319 = vmatprep.subr.mxu0 0.0
      %6320 = vmatpush1.msra.mxu0 0.0
      %6321 = vmatprep.subr.mxu0 0.0
      %6322 = vmatpush1.msra.mxu0 0.0
      %6323 = vmatprep.subr.mxu0 0.0
      %6324 = vmatpush1.msra.mxu0 0.0
      %6325 = vmatprep.subr.mxu0 0.0
      %6326 = vmatpush1.msra.mxu0 0.0
      %6327 = vmatprep.subr.mxu0 0.0
      %6328 = vmatpush1.msra.mxu0 0.0
      %6329 = vmatprep.subr.mxu0 0.0
      %6330 = vmatpush1.msra.mxu0 0.0
      %6331 = vmatprep.subr.mxu0 0.0
      %6332 = vmatpush1.msra.mxu0 0.0
      %6333 = vmatprep.mubr.f32.mxu0 0.0
      %6334 = vmatmul.mubr.f32.gmra.mrb[0].mxu0 %v6267
      %v6335 = vpop.f32.mrb[0].mxu0
      %v6336 = vadd.f32 0.0, %v6335
      %v6337 = vpop.f32.mrb[0].mxu0
      %v6338 = vadd.f32 0.0, %v6337
      %6339 = vdwg.mxu0
      %6340 = vmatprep.subr.mxu0 %v6261
      %6341 = vmatpush1.msra.mxu0 %v6260
      %6342 = vmatprep.subr.mxu0 0.0
      %6343 = vmatpush1.msra.mxu0 0.0
      %6344 = vmatprep.subr.mxu0 0.0
      %6345 = vmatpush1.msra.mxu0 0.0
      %6346 = vmatprep.subr.mxu0 0.0
      %6347 = vmatpush1.msra.mxu0 0.0
      %6348 = vmatprep.subr.mxu0 0.0
      %6349 = vmatpush1.msra.mxu0 0.0
      %6350 = vmatprep.subr.mxu0 0.0
      %6351 = vmatpush1.msra.mxu0 0.0
      %6352 = vmatprep.subr.mxu0 0.0
      %6353 = vmatpush1.msra.mxu0 0.0
      %6354 = vmatprep.subr.mxu0 0.0
      %6355 = vmatpush1.msra.mxu0 0.0
      %6356 = vmatprep.subr.mxu0 0.0
      %6357 = vmatpush1.msra.mxu0 0.0
      %6358 = vmatprep.subr.mxu0 0.0
      %6359 = vmatpush1.msra.mxu0 0.0
      %6360 = vmatprep.subr.mxu0 0.0
      %6361 = vmatpush1.msra.mxu0 0.0
      %6362 = vmatprep.subr.mxu0 0.0
      %6363 = vmatpush1.msra.mxu0 0.0
      %6364 = vmatprep.subr.mxu0 0.0
      %6365 = vmatpush1.msra.mxu0 0.0
      %6366 = vmatprep.subr.mxu0 0.0
      %6367 = vmatpush1.msra.mxu0 0.0
      %6368 = vmatprep.subr.mxu0 0.0
      %6369 = vmatpush1.msra.mxu0 0.0
      %6370 = vmatprep.subr.mxu0 0.0
      %6371 = vmatpush1.msra.mxu0 0.0
      %6372 = vmatprep.subr.mxu0 0.0
      %6373 = vmatpush1.msra.mxu0 0.0
      %6374 = vmatprep.subr.mxu0 0.0
      %6375 = vmatpush1.msra.mxu0 0.0
      %6376 = vmatprep.subr.mxu0 0.0
      %6377 = vmatpush1.msra.mxu0 0.0
      %6378 = vmatprep.subr.mxu0 0.0
      %6379 = vmatpush1.msra.mxu0 0.0
      %6380 = vmatprep.subr.mxu0 0.0
      %6381 = vmatpush1.msra.mxu0 0.0
      %6382 = vmatprep.subr.mxu0 0.0
      %6383 = vmatpush1.msra.mxu0 0.0
      %6384 = vmatprep.subr.mxu0 0.0
      %6385 = vmatpush1.msra.mxu0 0.0
      %6386 = vmatprep.subr.mxu0 0.0
      %6387 = vmatpush1.msra.mxu0 0.0
      %6388 = vmatprep.subr.mxu0 0.0
      %6389 = vmatpush1.msra.mxu0 0.0
      %6390 = vmatprep.subr.mxu0 0.0
      %6391 = vmatpush1.msra.mxu0 0.0
      %6392 = vmatprep.subr.mxu0 0.0
      %6393 = vmatpush1.msra.mxu0 0.0
      %6394 = vmatprep.subr.mxu0 0.0
      %6395 = vmatpush1.msra.mxu0 0.0
      %6396 = vmatprep.subr.mxu0 0.0
      %6397 = vmatpush1.msra.mxu0 0.0
      %6398 = vmatprep.subr.mxu0 0.0
      %6399 = vmatpush1.msra.mxu0 0.0
      %6400 = vmatprep.subr.mxu0 0.0
      %6401 = vmatpush1.msra.mxu0 0.0
      %6402 = vmatprep.subr.mxu0 0.0
      %6403 = vmatpush1.msra.mxu0 0.0
      %6404 = vmatprep.mubr.f32.mxu0 0.0
      %6405 = vmatmul.mubr.f32.gmra.mrb[0].mxu0 %v6267
      %v6406 = vpop.f32.mrb[0].mxu0
      %v6407 = vadd.f32 0.0, %v6406
      %v6408 = vpop.f32.mrb[0].mxu0
      %v6409 = vadd.f32 0.0, %v6408
      %6410 = vdwg.mxu0
      %v6411 = vadd.f32 %v6241, %v6336
      %v6412 = vadd.f32 %v6242, %v6338
      %v6413 = vadd.f32 %v6243, %v6407
      %v6414 = vadd.f32 %v6244, %v6409
      %s6415 = scalar_lea.vmem %s2, 200
      %v6416 = vld [vmem:[%s6415] sm:$0xff]
      %6417 = vrot.lane.b32.xlu0 %v4542, 18
      %v6418 = vpop.permute.xlu0 %6417
      %6419 = vrot.lane.b32.xlu0 %v4543, 18
      %v6420 = vpop.permute.xlu0 %6419
      %6421 = vrot.lane.b32.xlu0 %v4544, 18
      %v6422 = vpop.permute.xlu0 %6421
      %6423 = vrot.lane.b32.xlu0 %v4545, 18
      %v6424 = vpop.permute.xlu0 %6423
      %6425 = vrot.lane.b32.xlu0 %v4546, 18
      %v6426 = vpop.permute.xlu0 %6425
      %v6427 = vsel %vm836, %v6418, %v6420
      %v6428 = vsel %vm836, %v6420, %v6422
      %v6429 = vsel %vm836, %v6422, %v6424
      %v6430 = vsel %vm836, %v6424, %v6426
      %v6436 = vsel %vm977, %v6416, 0
      %6438 = vmatprep.subr.mxu0 %v6428
      %6439 = vmatpush1.msra.mxu0 %v6427
      %6440 = vmatprep.subr.mxu0 0.0
      %6441 = vmatpush1.msra.mxu0 0.0
      %6442 = vmatprep.subr.mxu0 0.0
      %6443 = vmatpush1.msra.mxu0 0.0
      %6444 = vmatprep.subr.mxu0 0.0
      %6445 = vmatpush1.msra.mxu0 0.0
      %6446 = vmatprep.subr.mxu0 0.0
      %6447 = vmatpush1.msra.mxu0 0.0
      %6448 = vmatprep.subr.mxu0 0.0
      %6449 = vmatpush1.msra.mxu0 0.0
      %6450 = vmatprep.subr.mxu0 0.0
      %6451 = vmatpush1.msra.mxu0 0.0
      %6452 = vmatprep.subr.mxu0 0.0
      %6453 = vmatpush1.msra.mxu0 0.0
      %6454 = vmatprep.subr.mxu0 0.0
      %6455 = vmatpush1.msra.mxu0 0.0
      %6456 = vmatprep.subr.mxu0 0.0
      %6457 = vmatpush1.msra.mxu0 0.0
      %6458 = vmatprep.subr.mxu0 0.0
      %6459 = vmatpush1.msra.mxu0 0.0
      %6460 = vmatprep.subr.mxu0 0.0
      %6461 = vmatpush1.msra.mxu0 0.0
      %6462 = vmatprep.subr.mxu0 0.0
      %6463 = vmatpush1.msra.mxu0 0.0
      %6464 = vmatprep.subr.mxu0 0.0
      %6465 = vmatpush1.msra.mxu0 0.0
      %6466 = vmatprep.subr.mxu0 0.0
      %6467 = vmatpush1.msra.mxu0 0.0
      %6468 = vmatprep.subr.mxu0 0.0
      %6469 = vmatpush1.msra.mxu0 0.0
      %6470 = vmatprep.subr.mxu0 0.0
      %6471 = vmatpush1.msra.mxu0 0.0
      %6472 = vmatprep.subr.mxu0 0.0
      %6473 = vmatpush1.msra.mxu0 0.0
      %6474 = vmatprep.subr.mxu0 0.0
      %6475 = vmatpush1.msra.mxu0 0.0
      %6476 = vmatprep.subr.mxu0 0.0
      %6477 = vmatpush1.msra.mxu0 0.0
      %6478 = vmatprep.subr.mxu0 0.0
      %6479 = vmatpush1.msra.mxu0 0.0
      %6480 = vmatprep.subr.mxu0 0.0
      %6481 = vmatpush1.msra.mxu0 0.0
      %6482 = vmatprep.subr.mxu0 0.0
      %6483 = vmatpush1.msra.mxu0 0.0
      %6484 = vmatprep.subr.mxu0 0.0
      %6485 = vmatpush1.msra.mxu0 0.0
      %6486 = vmatprep.subr.mxu0 0.0
      %6487 = vmatpush1.msra.mxu0 0.0
      %6488 = vmatprep.subr.mxu0 0.0
      %6489 = vmatpush1.msra.mxu0 0.0
      %6490 = vmatprep.subr.mxu0 0.0
      %6491 = vmatpush1.msra.mxu0 0.0
      %6492 = vmatprep.subr.mxu0 0.0
      %6493 = vmatpush1.msra.mxu0 0.0
      %6494 = vmatprep.subr.mxu0 0.0
      %6495 = vmatpush1.msra.mxu0 0.0
      %6496 = vmatprep.subr.mxu0 0.0
      %6497 = vmatpush1.msra.mxu0 0.0
      %6498 = vmatprep.subr.mxu0 0.0
      %6499 = vmatpush1.msra.mxu0 0.0
      %6500 = vmatprep.subr.mxu0 0.0
      %6501 = vmatpush1.msra.mxu0 0.0
      %6502 = vmatprep.mubr.f32.mxu0 0.0
      %6503 = vmatmul.mubr.f32.gmra.mrb[0].mxu0 %v6436
      %v6504 = vpop.f32.mrb[0].mxu0
      %v6505 = vadd.f32 0.0, %v6504
      %v6506 = vpop.f32.mrb[0].mxu0
      %v6507 = vadd.f32 0.0, %v6506
      %6508 = vdwg.mxu0
      %6509 = vmatprep.subr.mxu0 %v6430
      %6510 = vmatpush1.msra.mxu0 %v6429
      %6511 = vmatprep.subr.mxu0 0.0
      %6512 = vmatpush1.msra.mxu0 0.0
      %6513 = vmatprep.subr.mxu0 0.0
      %6514 = vmatpush1.msra.mxu0 0.0
      %6515 = vmatprep.subr.mxu0 0.0
      %6516 = vmatpush1.msra.mxu0 0.0
      %6517 = vmatprep.subr.mxu0 0.0
      %6518 = vmatpush1.msra.mxu0 0.0
      %6519 = vmatprep.subr.mxu0 0.0
      %6520 = vmatpush1.msra.mxu0 0.0
      %6521 = vmatprep.subr.mxu0 0.0
      %6522 = vmatpush1.msra.mxu0 0.0
      %6523 = vmatprep.subr.mxu0 0.0
      %6524 = vmatpush1.msra.mxu0 0.0
      %6525 = vmatprep.subr.mxu0 0.0
      %6526 = vmatpush1.msra.mxu0 0.0
      %6527 = vmatprep.subr.mxu0 0.0
      %6528 = vmatpush1.msra.mxu0 0.0
      %6529 = vmatprep.subr.mxu0 0.0
      %6530 = vmatpush1.msra.mxu0 0.0
      %6531 = vmatprep.subr.mxu0 0.0
      %6532 = vmatpush1.msra.mxu0 0.0
      %6533 = vmatprep.subr.mxu0 0.0
      %6534 = vmatpush1.msra.mxu0 0.0
      %6535 = vmatprep.subr.mxu0 0.0
      %6536 = vmatpush1.msra.mxu0 0.0
      %6537 = vmatprep.subr.mxu0 0.0
      %6538 = vmatpush1.msra.mxu0 0.0
      %6539 = vmatprep.subr.mxu0 0.0
      %6540 = vmatpush1.msra.mxu0 0.0
      %6541 = vmatprep.subr.mxu0 0.0
      %6542 = vmatpush1.msra.mxu0 0.0
      %6543 = vmatprep.subr.mxu0 0.0
      %6544 = vmatpush1.msra.mxu0 0.0
      %6545 = vmatprep.subr.mxu0 0.0
      %6546 = vmatpush1.msra.mxu0 0.0
      %6547 = vmatprep.subr.mxu0 0.0
      %6548 = vmatpush1.msra.mxu0 0.0
      %6549 = vmatprep.subr.mxu0 0.0
      %6550 = vmatpush1.msra.mxu0 0.0
      %6551 = vmatprep.subr.mxu0 0.0
      %6552 = vmatpush1.msra.mxu0 0.0
      %6553 = vmatprep.subr.mxu0 0.0
      %6554 = vmatpush1.msra.mxu0 0.0
      %6555 = vmatprep.subr.mxu0 0.0
      %6556 = vmatpush1.msra.mxu0 0.0
      %6557 = vmatprep.subr.mxu0 0.0
      %6558 = vmatpush1.msra.mxu0 0.0
      %6559 = vmatprep.subr.mxu0 0.0
      %6560 = vmatpush1.msra.mxu0 0.0
      %6561 = vmatprep.subr.mxu0 0.0
      %6562 = vmatpush1.msra.mxu0 0.0
      %6563 = vmatprep.subr.mxu0 0.0
      %6564 = vmatpush1.msra.mxu0 0.0
      %6565 = vmatprep.subr.mxu0 0.0
      %6566 = vmatpush1.msra.mxu0 0.0
      %6567 = vmatprep.subr.mxu0 0.0
      %6568 = vmatpush1.msra.mxu0 0.0
      %6569 = vmatprep.subr.mxu0 0.0
      %6570 = vmatpush1.msra.mxu0 0.0
      %6571 = vmatprep.subr.mxu0 0.0
      %6572 = vmatpush1.msra.mxu0 0.0
      %6573 = vmatprep.mubr.f32.mxu0 0.0
      %6574 = vmatmul.mubr.f32.gmra.mrb[0].mxu0 %v6436
      %v6575 = vpop.f32.mrb[0].mxu0
      %v6576 = vadd.f32 0.0, %v6575
      %v6577 = vpop.f32.mrb[0].mxu0
      %v6578 = vadd.f32 0.0, %v6577
      %6579 = vdwg.mxu0
      %v6580 = vadd.f32 %v6411, %v6505
      %v6581 = vadd.f32 %v6412, %v6507
      %v6582 = vadd.f32 %v6413, %v6576
      %v6583 = vadd.f32 %v6414, %v6578
      %s6584 = scalar_lea.vmem %s2, 208
      %v6585 = vld [vmem:[%s6584] sm:$0xff]
      %6586 = vrot.lane.b32.xlu0 %v4542, 17
      %v6587 = vpop.permute.xlu0 %6586
      %6588 = vrot.lane.b32.xlu0 %v4543, 17
      %v6589 = vpop.permute.xlu0 %6588
      %6590 = vrot.lane.b32.xlu0 %v4544, 17
      %v6591 = vpop.permute.xlu0 %6590
      %6592 = vrot.lane.b32.xlu0 %v4545, 17
      %v6593 = vpop.permute.xlu0 %6592
      %6594 = vrot.lane.b32.xlu0 %v4546, 17
      %v6595 = vpop.permute.xlu0 %6594
      %v6596 = vsel %vm883, %v6587, %v6589
      %v6597 = vsel %vm883, %v6589, %v6591
      %v6598 = vsel %vm883, %v6591, %v6593
      %v6599 = vsel %vm883, %v6593, %v6595
      %v6605 = vsel %vm977, %v6585, 0
      %6607 = vmatprep.subr.mxu0 %v6597
      %6608 = vmatpush1.msra.mxu0 %v6596
      %6609 = vmatprep.subr.mxu0 0.0
      %6610 = vmatpush1.msra.mxu0 0.0
      %6611 = vmatprep.subr.mxu0 0.0
      %6612 = vmatpush1.msra.mxu0 0.0
      %6613 = vmatprep.subr.mxu0 0.0
      %6614 = vmatpush1.msra.mxu0 0.0
      %6615 = vmatprep.subr.mxu0 0.0
      %6616 = vmatpush1.msra.mxu0 0.0
      %6617 = vmatprep.subr.mxu0 0.0
      %6618 = vmatpush1.msra.mxu0 0.0
      %6619 = vmatprep.subr.mxu0 0.0
      %6620 = vmatpush1.msra.mxu0 0.0
      %6621 = vmatprep.subr.mxu0 0.0
      %6622 = vmatpush1.msra.mxu0 0.0
      %6623 = vmatprep.subr.mxu0 0.0
      %6624 = vmatpush1.msra.mxu0 0.0
      %6625 = vmatprep.subr.mxu0 0.0
      %6626 = vmatpush1.msra.mxu0 0.0
      %6627 = vmatprep.subr.mxu0 0.0
      %6628 = vmatpush1.msra.mxu0 0.0
      %6629 = vmatprep.subr.mxu0 0.0
      %6630 = vmatpush1.msra.mxu0 0.0
      %6631 = vmatprep.subr.mxu0 0.0
      %6632 = vmatpush1.msra.mxu0 0.0
      %6633 = vmatprep.subr.mxu0 0.0
      %6634 = vmatpush1.msra.mxu0 0.0
      %6635 = vmatprep.subr.mxu0 0.0
      %6636 = vmatpush1.msra.mxu0 0.0
      %6637 = vmatprep.subr.mxu0 0.0
      %6638 = vmatpush1.msra.mxu0 0.0
      %6639 = vmatprep.subr.mxu0 0.0
      %6640 = vmatpush1.msra.mxu0 0.0
      %6641 = vmatprep.subr.mxu0 0.0
      %6642 = vmatpush1.msra.mxu0 0.0
      %6643 = vmatprep.subr.mxu0 0.0
      %6644 = vmatpush1.msra.mxu0 0.0
      %6645 = vmatprep.subr.mxu0 0.0
      %6646 = vmatpush1.msra.mxu0 0.0
      %6647 = vmatprep.subr.mxu0 0.0
      %6648 = vmatpush1.msra.mxu0 0.0
      %6649 = vmatprep.subr.mxu0 0.0
      %6650 = vmatpush1.msra.mxu0 0.0
      %6651 = vmatprep.subr.mxu0 0.0
      %6652 = vmatpush1.msra.mxu0 0.0
      %6653 = vmatprep.subr.mxu0 0.0
      %6654 = vmatpush1.msra.mxu0 0.0
      %6655 = vmatprep.subr.mxu0 0.0
      %6656 = vmatpush1.msra.mxu0 0.0
      %6657 = vmatprep.subr.mxu0 0.0
      %6658 = vmatpush1.msra.mxu0 0.0
      %6659 = vmatprep.subr.mxu0 0.0
      %6660 = vmatpush1.msra.mxu0 0.0
      %6661 = vmatprep.subr.mxu0 0.0
      %6662 = vmatpush1.msra.mxu0 0.0
      %6663 = vmatprep.subr.mxu0 0.0
      %6664 = vmatpush1.msra.mxu0 0.0
      %6665 = vmatprep.subr.mxu0 0.0
      %6666 = vmatpush1.msra.mxu0 0.0
      %6667 = vmatprep.subr.mxu0 0.0
      %6668 = vmatpush1.msra.mxu0 0.0
      %6669 = vmatprep.subr.mxu0 0.0
      %6670 = vmatpush1.msra.mxu0 0.0
      %6671 = vmatprep.mubr.f32.mxu0 0.0
      %6672 = vmatmul.mubr.f32.gmra.mrb[0].mxu0 %v6605
      %v6673 = vpop.f32.mrb[0].mxu0
      %v6674 = vadd.f32 0.0, %v6673
      %v6675 = vpop.f32.mrb[0].mxu0
      %v6676 = vadd.f32 0.0, %v6675
      %6677 = vdwg.mxu0
      %6678 = vmatprep.subr.mxu0 %v6599
      %6679 = vmatpush1.msra.mxu0 %v6598
      %6680 = vmatprep.subr.mxu0 0.0
      %6681 = vmatpush1.msra.mxu0 0.0
      %6682 = vmatprep.subr.mxu0 0.0
      %6683 = vmatpush1.msra.mxu0 0.0
      %6684 = vmatprep.subr.mxu0 0.0
      %6685 = vmatpush1.msra.mxu0 0.0
      %6686 = vmatprep.subr.mxu0 0.0
      %6687 = vmatpush1.msra.mxu0 0.0
      %6688 = vmatprep.subr.mxu0 0.0
      %6689 = vmatpush1.msra.mxu0 0.0
      %6690 = vmatprep.subr.mxu0 0.0
      %6691 = vmatpush1.msra.mxu0 0.0
      %6692 = vmatprep.subr.mxu0 0.0
      %6693 = vmatpush1.msra.mxu0 0.0
      %6694 = vmatprep.subr.mxu0 0.0
      %6695 = vmatpush1.msra.mxu0 0.0
      %6696 = vmatprep.subr.mxu0 0.0
      %6697 = vmatpush1.msra.mxu0 0.0
      %6698 = vmatprep.subr.mxu0 0.0
      %6699 = vmatpush1.msra.mxu0 0.0
      %6700 = vmatprep.subr.mxu0 0.0
      %6701 = vmatpush1.msra.mxu0 0.0
      %6702 = vmatprep.subr.mxu0 0.0
      %6703 = vmatpush1.msra.mxu0 0.0
      %6704 = vmatprep.subr.mxu0 0.0
      %6705 = vmatpush1.msra.mxu0 0.0
      %6706 = vmatprep.subr.mxu0 0.0
      %6707 = vmatpush1.msra.mxu0 0.0
      %6708 = vmatprep.subr.mxu0 0.0
      %6709 = vmatpush1.msra.mxu0 0.0
      %6710 = vmatprep.subr.mxu0 0.0
      %6711 = vmatpush1.msra.mxu0 0.0
      %6712 = vmatprep.subr.mxu0 0.0
      %6713 = vmatpush1.msra.mxu0 0.0
      %6714 = vmatprep.subr.mxu0 0.0
      %6715 = vmatpush1.msra.mxu0 0.0
      %6716 = vmatprep.subr.mxu0 0.0
      %6717 = vmatpush1.msra.mxu0 0.0
      %6718 = vmatprep.subr.mxu0 0.0
      %6719 = vmatpush1.msra.mxu0 0.0
      %6720 = vmatprep.subr.mxu0 0.0
      %6721 = vmatpush1.msra.mxu0 0.0
      %6722 = vmatprep.subr.mxu0 0.0
      %6723 = vmatpush1.msra.mxu0 0.0
      %6724 = vmatprep.subr.mxu0 0.0
      %6725 = vmatpush1.msra.mxu0 0.0
      %6726 = vmatprep.subr.mxu0 0.0
      %6727 = vmatpush1.msra.mxu0 0.0
      %6728 = vmatprep.subr.mxu0 0.0
      %6729 = vmatpush1.msra.mxu0 0.0
      %6730 = vmatprep.subr.mxu0 0.0
      %6731 = vmatpush1.msra.mxu0 0.0
      %6732 = vmatprep.subr.mxu0 0.0
      %6733 = vmatpush1.msra.mxu0 0.0
      %6734 = vmatprep.subr.mxu0 0.0
      %6735 = vmatpush1.msra.mxu0 0.0
      %6736 = vmatprep.subr.mxu0 0.0
      %6737 = vmatpush1.msra.mxu0 0.0
      %6738 = vmatprep.subr.mxu0 0.0
      %6739 = vmatpush1.msra.mxu0 0.0
      %6740 = vmatprep.subr.mxu0 0.0
      %6741 = vmatpush1.msra.mxu0 0.0
      %6742 = vmatprep.mubr.f32.mxu0 0.0
      %6743 = vmatmul.mubr.f32.gmra.mrb[0].mxu0 %v6605
      %v6744 = vpop.f32.mrb[0].mxu0
      %v6745 = vadd.f32 0.0, %v6744
      %v6746 = vpop.f32.mrb[0].mxu0
      %v6747 = vadd.f32 0.0, %v6746
      %6748 = vdwg.mxu0
      %v6749 = vadd.f32 %v6580, %v6674
      %v6750 = vadd.f32 %v6581, %v6676
      %v6751 = vadd.f32 %v6582, %v6745
      %v6752 = vadd.f32 %v6583, %v6747
      %v6753 = vmax.f32 %v6749, 0.0
      %v6754 = vmax.f32 %v6750, 0.0
      %v6755 = vmax.f32 %v6751, 0.0
      %v6756 = vmax.f32 %v6752, 0.0
      %6757 = vst [vmem:[%s277] sm:$0xff] %v6753
      %6758 = vst [vmem:[%s277 + $0x8] sm:$0xff] %v6754
      %6759 = vst [vmem:[%s277 + $0x10] sm:$0xff] %v6755
      %6760 = vst [vmem:[%s277 + $0x18] sm:$0xff] %v6756
      %s6761 = smul.u32 4, %s21
      %p6762 = scmp.lt.s32.totalorder %s20, 1
      %s6763 = scalar_select %p6762, %s20, 1
      %p6764 = scmp.lt.s32.totalorder %s6761, 7
      %s6765 = scalar_select %p6764, %s6761, 7
      %s6766 = smul.addr %s6763, 8
      %s6767 = sadd.s32 %s6765, %s6766
      %s6768 = smul.addr %s6767, 8
      %s6769 = scalar_lea.vmem %s5, %s6768
      // Predicated region
      $region41: #{resblock_forward.1} parent=39 // pred_check
        %p6770 = pneg %p165
      $region42: #{resblock_forward.1} parent=39 // pred_check_branch
        %6772 = sbr.rel (%p6770) target = $region44
      $region43: #{resblock_forward.1} parent=39 // pred_region
        %s6773 = smul.u32 4, %s21
      $region44: #{resblock_forward.1} parent=39 // pred_fallthru
        _
    $region40: #{resblock_forward.1} parent=5 // pred_fallthru
      _
    %p6774 = scmp.le.s32.totalorder 2, %s11
    // Predicated region
    $region45: #{resblock_forward.1} parent=5 // pred_check
      %p6775 = pneg %p6774
    $region46: #{resblock_forward.1} parent=5 // pred_check_branch
      %6777 = sbr.rel (%p6775) target = $region48
    $region47: #{resblock_forward.1} parent=5 // pred_region
      %s6778 = ssub.s32 %s11, 2
      // Predicated region
      $region49: #{resblock_forward.1} parent=47 // pred_check
        %p6779 = pneg %p171
      $region50: #{resblock_forward.1} parent=47 // pred_check_branch
        %6781 = sbr.rel (%p6779) target = $region52
      $region51: #{resblock_forward.1} parent=47 // pred_region
        %s6782 = smul.u32 4, %s23
        %p6783 = scmp.lt.s32.totalorder %s22, 1
        %s6784 = scalar_select %p6783, %s22, 1
        %p6785 = scmp.lt.s32.totalorder %s6782, 7
        %s6786 = scalar_select %p6785, %s6782, 7
        %s6787 = smul.addr %s6784, 8
        %s6788 = sadd.s32 %s6786, %s6787
        %s6789 = smul.addr %s6788, 8
        %s6790 = scalar_lea.vmem %s5, %s6789
      $region52: #{resblock_forward.1} parent=47 // pred_fallthru
        _
    $region48: #{resblock_forward.1} parent=5 // pred_fallthru
      _
  $region6: #{resblock_forward.1} parent=0 // loop_footer
    %s15 = sadd.s32 1, %s11
  $region7: #{resblock_forward.1} parent=0 // loop_footer_branch
    %10 = sbr.rel target = $region3
  $region8: #{resblock_forward.1} parent=0 // loop_exit
    _

</llo_original>
